<compile_context>
chip_gen: v5e
topology: v5e:2x2
jax: 0.10.0
libtpu: 0.0.40
codegen_flags: <defaults>
</compile_context>

<pallas_src>
import functools

import jax
import jax.numpy as jnp
from jax.experimental import pallas as pl
from jax.experimental.pallas import tpu as pltpu

EPS = 1e-5
_VMEM_LIMIT = 48 * 1024 * 1024      # leaves headroom under v7x's 64 MiB VMEM
_PASS1_BUDGET = 20 * 1024 * 1024    # audited double-buffered pass-1 working set


def _round_up(x, m):
    return (x + m - 1) // m * m


# -----------------------------------------------------------------------------
# Pallas kernels
# -----------------------------------------------------------------------------
def _matmul_stats_kernel(p_ref, w_ref, y_ref, s_ref, ss_ref):
    """Pass 1: conv-as-matmul (full K, resident weights) + per-tile IN stats.
    Stats are taken from the f32 MXU result; y is stored bf16."""
    y = jnp.dot(p_ref[0], w_ref[...], preferred_element_type=jnp.float32)
    s_ref[0, 0] = jnp.sum(y, axis=0, keepdims=True)
    ss_ref[0, 0] = jnp.sum(y * y, axis=0, keepdims=True)
    y_ref[0] = y.astype(y_ref.dtype)


def _matmul_act_kernel(p_ref, w_ref, o_ref, *, act):
    """Pass-1 variant for layers without InstanceNorm: activation fused,
    no statistics, no second pass."""
    y = jnp.dot(p_ref[0], w_ref[...], preferred_element_type=jnp.float32)
    if act == "relu":
        y = jnp.maximum(y, 0.0)
    elif act == "tanh":
        y = jnp.tanh(y)
    o_ref[0] = y.astype(o_ref.dtype)


def _affine_act_kernel(y_ref, a_ref, b_ref, o_ref, *, act):
    """Pass 2: folded InstanceNorm affine (y*a + b) + activation."""
    v = y_ref[0].astype(jnp.float32) * a_ref[0] + b_ref[0]
    if act == "relu":
        v = jnp.maximum(v, 0.0)
    elif act == "tanh":
        v = jnp.tanh(v)
    o_ref[0] = v.astype(o_ref.dtype)


def _affine_skip_kernel(y_ref, a_ref, b_ref, s_ref, o_ref):
    """Pass 2 (residual tail): folded IN affine + residual add (no activation)."""
    v = (y_ref[0].astype(jnp.float32) * a_ref[0] + b_ref[0]
         + s_ref[0].astype(jnp.float32))
    o_ref[0] = v.astype(o_ref.dtype)


# -----------------------------------------------------------------------------
# pallas_call wrappers
# -----------------------------------------------------------------------------
def _conv_stats_call(patches, w, tm):
    """patches: (N, HWp, Kp) bf16; w: (Kp, Cp) bf16 (held resident in VMEM).
    Returns y (N, HWp, Cp) bf16 and per-tile stats (N, nM, 1, Cp) x2 (f32)."""
    N, HWp, Kp = patches.shape
    Cp = w.shape[1]
    nM = HWp // tm
    return pl.pallas_call(
        _matmul_stats_kernel,
        out_shape=(jax.ShapeDtypeStruct((N, HWp, Cp), jnp.bfloat16),
                   jax.ShapeDtypeStruct((N, nM, 1, Cp), jnp.float32),
                   jax.ShapeDtypeStruct((N, nM, 1, Cp), jnp.float32)),
        grid=(N, nM),
        in_specs=[
            pl.BlockSpec((1, tm, Kp), lambda n, m: (n, m, 0)),
            pl.BlockSpec((Kp, Cp), lambda n, m: (0, 0)),   # fetched once
        ],
        out_specs=(
            pl.BlockSpec((1, tm, Cp), lambda n, m: (n, m, 0)),
            pl.BlockSpec((1, 1, 1, Cp), lambda n, m: (n, m, 0, 0)),
            pl.BlockSpec((1, 1, 1, Cp), lambda n, m: (n, m, 0, 0)),
        ),
        compiler_params=pltpu.CompilerParams(
            dimension_semantics=("parallel", "parallel"),
            vmem_limit_bytes=_VMEM_LIMIT),
    )(patches, w)


def _conv_act_call(patches, w, tm, *, act, out_dtype):
    """Single-pass conv + activation (no InstanceNorm)."""
    N, HWp, Kp = patches.shape
    Cp = w.shape[1]
    nM = HWp // tm
    return pl.pallas_call(
        functools.partial(_matmul_act_kernel, act=act),
        out_shape=jax.ShapeDtypeStruct((N, HWp, Cp), out_dtype),
        grid=(N, nM),
        in_specs=[
            pl.BlockSpec((1, tm, Kp), lambda n, m: (n, m, 0)),
            pl.BlockSpec((Kp, Cp), lambda n, m: (0, 0)),   # fetched once
        ],
        out_specs=pl.BlockSpec((1, tm, Cp), lambda n, m: (n, m, 0)),
        compiler_params=pltpu.CompilerParams(
            dimension_semantics=("parallel", "parallel"),
            vmem_limit_bytes=_VMEM_LIMIT),
    )(patches, w)


def _affine_act_call(y, a, b, tm, *, act, skip=None):
    """y: (N, HWp, Cp) bf16; a, b: (N, 1, Cp) f32; optional skip (N, HWp, Cp) bf16."""
    N, HWp, Cp = y.shape
    nM = HWp // tm
    in_specs = [
        pl.BlockSpec((1, tm, Cp), lambda n, m: (n, m, 0)),
        pl.BlockSpec((1, 1, Cp), lambda n, m: (n, 0, 0)),
        pl.BlockSpec((1, 1, Cp), lambda n, m: (n, 0, 0)),
    ]
    args = [y, a, b]
    if skip is not None:
        in_specs.append(pl.BlockSpec((1, tm, Cp), lambda n, m: (n, m, 0)))
        args.append(skip)
        kernel = _affine_skip_kernel
    else:
        kernel = functools.partial(_affine_act_kernel, act=act)
    return pl.pallas_call(
        kernel,
        out_shape=jax.ShapeDtypeStruct((N, HWp, Cp), jnp.bfloat16),
        grid=(N, nM),
        in_specs=in_specs,
        out_specs=pl.BlockSpec((1, tm, Cp), lambda n, m: (n, m, 0)),
        compiler_params=pltpu.CompilerParams(
            dimension_semantics=("parallel", "parallel"),
            vmem_limit_bytes=_VMEM_LIMIT),
    )(*args)


# -----------------------------------------------------------------------------
# Tile-size policy (audited against a double-buffered VMEM budget)
# -----------------------------------------------------------------------------
def _pick_tm_pass1(HWo, Kp, Cp, out_bytes=2):
    tm = 256
    for cand in (2048, 1024, 512, 256):
        need = (2 * cand * Kp * 2          # double-buffered bf16 patch tiles
                + 2 * Kp * Cp * 2          # resident bf16 weights (2 buffers)
                + 2 * cand * Cp * out_bytes   # double-buffered y tiles
                + 4 * Cp * 4 * 2)          # stats tiles
        if need <= _PASS1_BUDGET:
            tm = cand
            break
    return min(tm, _round_up(HWo, 8))


def _pick_tm_pass2(HWp, tm1):
    """Pass 2 is pure streaming: grow the lane-dense block up to 2048 rows."""
    tm = tm1
    while tm * 2 <= 2048 and HWp % (tm * 2) == 0:
        tm *= 2
    return tm


# -----------------------------------------------------------------------------
# Plain-JAX glue: im2col / weight repacking (data movement only)
# -----------------------------------------------------------------------------
def _im2col(x, kh, kw, stride, pad):
    """x: (N, H, W, C) -> patches (N, Ho*Wo, kh*kw*C), plus Ho, Wo.
    Patch K-order is (dy, dx, cin)."""
    N, H, W, C = x.shape
    xp = jnp.pad(x, ((0, 0), (pad, pad), (pad, pad), (0, 0)))
    Ho = (H + 2 * pad - kh) // stride + 1
    Wo = (W + 2 * pad - kw) // stride + 1
    cols = []
    for i in range(kh):
        for j in range(kw):
            cols.append(xp[:, i:i + Ho * stride:stride,
                           j:j + Wo * stride:stride, :])
    patches = jnp.stack(cols, axis=-2)                  # (N, Ho, Wo, kh*kw, C)
    return patches.reshape(N, Ho * Wo, kh * kw * C), Ho, Wo


def _conv_w_to_mat(w):
    """PyTorch Conv2d weight (Cout, Cin, kh, kw) -> (kh*kw*Cin, Cout)."""
    Cout, Cin, kh, kw = w.shape
    return jnp.transpose(w, (2, 3, 1, 0)).reshape(kh * kw * Cin, Cout)


def _convT_phase_w_to_mat(w):
    """ConvTranspose2d(k=4, s=2, p=1) weight (Cin, Cout, 4, 4) -> sub-pixel
    3x3 stride-1 pad-1 conv matrix (9*Cin, 4*Cout).  Columns are grouped
    phase-major (py, px), each phase's 2x2 taps embedded in the 3x3 window."""
    Cin, Cout, kh, kw = w.shape
    assert kh == 4 and kw == 4
    # phase -> ((window_offset, original_kernel_index), ...)
    taps = {0: ((0, 3), (1, 1)), 1: ((1, 2), (2, 0))}
    cols = []
    for py in (0, 1):
        for px in (0, 1):
            k3 = jnp.zeros((3, 3, Cin, Cout), w.dtype)
            for dy, ky in taps[py]:
                for dx, kx in taps[px]:
                    k3 = k3.at[dy, dx].set(w[:, :, ky, kx])
            cols.append(k3.reshape(9 * Cin, Cout))
    return jnp.concatenate(cols, axis=1)                # (9*Cin, 4*Cout)


# -----------------------------------------------------------------------------
# One fused conv layer (conv + InstanceNorm + activation [+ residual])
# -----------------------------------------------------------------------------
def _fused_conv_layer(x, w_mat, gamma, beta, *, kh, kw, stride, pad,
                      use_in=True, act="relu", skip=None, phases=1,
                      out_dtype=jnp.bfloat16):
    N = x.shape[0]
    K, tot_cols = w_mat.shape
    cout = tot_cols // phases
    cpad = _round_up(cout, 128)
    Cp = phases * cpad

    # cast to bf16 BEFORE im2col: halves the largest HBM producer
    patches, Ho, Wo = _im2col(x.astype(jnp.bfloat16), kh, kw, stride, pad)
    HWo = Ho * Wo
    Kp = _round_up(K, 128)

    out_bytes = 2 if use_in else jnp.dtype(out_dtype).itemsize
    tm1 = _pick_tm_pass1(HWo, Kp, Cp, out_bytes=out_bytes)
    HWp = _round_up(HWo, tm1)

    if (HWp != HWo) or (Kp != K):
        patches = jnp.pad(patches, ((0, 0), (0, HWp - HWo), (0, Kp - K)))

    wq = w_mat.reshape(K, phases, cout)
    if (Kp != K) or (cpad != cout):
        wq = jnp.pad(wq, ((0, Kp - K), (0, 0), (0, cpad - cout)))
    wq = wq.reshape(Kp, Cp).astype(jnp.bfloat16)

    if not use_in:
        # No InstanceNorm: fuse the activation into pass 1, skip pass 2.
        out = _conv_act_call(patches, wq, tm1, act=act, out_dtype=out_dtype)
    else:
        # --- pass 1: matmul + per-tile statistics ---
        y, s_t, ss_t = _conv_stats_call(patches, wq, tm1)

        # --- tiny plain-JAX reduction: fold IN into per-channel scale/shift ---
        s = jnp.sum(s_t, axis=(1, 2))                   # (N, Cp)
        ss = jnp.sum(ss_t, axis=(1, 2))                 # (N, Cp)
        if phases > 1:
            s = s.reshape(N, phases, cpad).sum(axis=1)  # (N, cpad)
            ss = ss.reshape(N, phases, cpad).sum(axis=1)
        count = float(HWo * phases)                     # zero-padded rows add 0
        g = gamma if cpad == cout else jnp.pad(gamma, ((0, 0), (0, cpad - cout)))
        be = beta if cpad == cout else jnp.pad(beta, ((0, 0), (0, cpad - cout)))
        mean = s / count
        var = jnp.maximum(ss / count - mean * mean, 0.0)
        a = g * jax.lax.rsqrt(var + EPS)                # (N, cpad)
        b = be - mean * a
        if phases > 1:
            a = jnp.tile(a, (1, phases))
            b = jnp.tile(b, (1, phases))
        a = a[:, None, :].astype(jnp.float32)
        b = b[:, None, :].astype(jnp.float32)           # (N, 1, Cp)

        skip_p = None
        if skip is not None:
            sk = skip.reshape(N, HWo, cout).astype(jnp.bfloat16)
            if (HWp != HWo) or (cpad != cout):
                sk = jnp.pad(sk, ((0, 0), (0, HWp - HWo), (0, cpad - cout)))
            skip_p = sk

        # --- pass 2: fused affine + activation (+ residual), bf16 streams ---
        tm2 = _pick_tm_pass2(HWp, tm1)
        out = _affine_act_call(y, a, b, tm2, act=act, skip=skip_p)

    if HWp != HWo:
        out = out[:, :HWo, :]
    if phases == 1:
        if cpad != cout:
            out = out[:, :, :cout]
        return out.reshape(N, Ho, Wo, cout)
    # pixel-shuffle the 4 phase groups -> (N, 2Ho, 2Wo, cout)
    out = out.reshape(N, Ho, Wo, 2, 2, cpad)
    out = out.transpose(0, 1, 3, 2, 4, 5).reshape(N, 2 * Ho, 2 * Wo, cpad)
    if cpad != cout:
        out = out[:, :, :, :cout]
    return out


# -----------------------------------------------------------------------------
# Parameter construction (deterministic, synthetic)
# -----------------------------------------------------------------------------
def init_generator_params(key, class_num, conv_dim, layer_num):
    ks = iter(jax.random.split(key, 64))

    def conv_w(cout, cin, k):
        return 0.05 * jax.random.normal(next(ks), (cout, cin, k, k), jnp.float32)

    def convT_w(cin, cout, k):
        return 0.05 * jax.random.normal(next(ks), (cin, cout, k, k), jnp.float32)

    def in_params(c):
        g = 1.0 + 0.1 * jax.random.normal(next(ks), (1, c), jnp.float32)
        b = 0.1 * jax.random.normal(next(ks), (1, c), jnp.float32)
        return g, b

    p = {}
    p["w0"] = conv_w(conv_dim, 3 + class_num, 7)
    p["in0"] = in_params(conv_dim)
    cur = conv_dim
    p["down"] = []
    for _ in range(2):
        p["down"].append((conv_w(cur * 2, cur, 4), in_params(cur * 2)))
        cur *= 2
    p["res"] = []
    for _ in range(layer_num):
        p["res"].append((conv_w(cur, cur, 3), in_params(cur),
                         conv_w(cur, cur, 3), in_params(cur)))
    p["up"] = []
    for _ in range(2):
        p["up"].append((convT_w(cur, cur // 2, 4), in_params(cur // 2)))
        cur //= 2
    p["wf"] = conv_w(3, cur, 7)
    return p


# -----------------------------------------------------------------------------
# Generator forward
# -----------------------------------------------------------------------------
def generator_forward(params, x_nchw, c):
    """x_nchw: (N, 3, H, W) f32; c: (N, class_num) f32 -> (N, 3, H, W) f32."""
    N, _, H, W = x_nchw.shape
    x = jnp.transpose(x_nchw, (0, 2, 3, 1))                       # NHWC
    c_map = jnp.broadcast_to(c[:, None, None, :], (N, H, W, c.shape[1]))
    h = jnp.concatenate([x, c_map], axis=-1)                      # (N,H,W,3+cls)

    # 7x7 conv + IN + ReLU
    g, b = params["in0"]
    h = _fused_conv_layer(h, _conv_w_to_mat(params["w0"]), g, b,
                          kh=7, kw=7, stride=1, pad=3, use_in=True, act="relu")

    # two downsampling convs (k=4, s=2, p=1) + IN + ReLU
    for w, (g, b) in params["down"]:
        h = _fused_conv_layer(h, _conv_w_to_mat(w), g, b,
                              kh=4, kw=4, stride=2, pad=1,
                              use_in=True, act="relu")

    # residual blocks: conv+IN+ReLU, conv+IN, + skip
    for w1, (g1, b1), w2, (g2, b2) in params["res"]:
        t = _fused_conv_layer(h, _conv_w_to_mat(w1), g1, b1,
                              kh=3, kw=3, stride=1, pad=1,
                              use_in=True, act="relu")
        h = _fused_conv_layer(t, _conv_w_to_mat(w2), g2, b2,
                              kh=3, kw=3, stride=1, pad=1,
                              use_in=True, act="none", skip=h)

    # two transposed convs via sub-pixel decomposition + IN + ReLU
    for w, (g, b) in params["up"]:
        h = _fused_conv_layer(h, _convT_phase_w_to_mat(w), g, b,
                              kh=3, kw=3, stride=1, pad=1,
                              use_in=True, act="relu", phases=4)

    # final 7x7 conv + Tanh (no InstanceNorm): single fused Pallas pass, f32 out
    h = _fused_conv_layer(h, _conv_w_to_mat(params["wf"]), None, None,
                          kh=7, kw=7, stride=1, pad=3,
                          use_in=False, act="tanh", out_dtype=jnp.float32)

    return jnp.transpose(h, (0, 3, 1, 2))                         # back to NCHW


# -----------------------------------------------------------------------------
if __name__ == "__main__":
    class_num, conv_dim, layer_num = 5, 8, 2
    N, H, W = 2, 16, 16

    key = jax.random.PRNGKey(0)
    kx, kc, kp = jax.random.split(key, 3)
    x = jax.random.normal(kx, (N, 3, H, W), jnp.float32)
    c = jax.random.normal(kc, (N, class_num), jnp.float32)
    params = init_generator_params(kp, class_num, conv_dim, layer_num)

    fwd = jax.jit(lambda xx, cc: generator_forward(params, xx, cc))
    out = fwd(x, c)
    jax.block_until_ready(out)

    assert out.shape == (N, 3, H, W), out.shape
    assert out.dtype == jnp.float32
    assert bool(jnp.all(jnp.isfinite(out)))
    assert bool(jnp.all(jnp.abs(out) <= 1.0))  # tanh range
    print("KERNEL_OK")
</pallas_src>

<mosaic_0001>
module attributes {stable_mosaic.version = 11 : i64} {
  func.func @_matmul_stats_kernel(%arg0: i32, %arg1: i32, %arg2: memref<1x256x512xbf16, #tpu.memory_space<vmem>>, %arg3: memref<512x128xbf16, #tpu.memory_space<vmem>>, %arg4: memref<1x256x128xbf16, #tpu.memory_space<vmem>>, %arg5: memref<1x1x1x128xf32, #tpu.memory_space<vmem>>, %arg6: memref<1x1x1x128xf32, #tpu.memory_space<vmem>>) attributes {dimension_semantics = [#tpu.dimension_semantics<parallel>, #tpu.dimension_semantics<parallel>], iteration_bounds = array<i64: 2, 1>, scalar_prefetch = 0 : i64, scratch_operands = 0 : i64, tpu.core_type = #tpu.core_type<tc>, window_params = [{transform_indices = @transform_0, window_bounds = array<i64: 1, 256, 512>}, {pipeline_mode = #tpu.pipeline_mode<synchronous>, transform_indices = @transform_1, window_bounds = array<i64: 512, 128>}, {transform_indices = @transform_2, window_bounds = array<i64: 1, 256, 128>}, {transform_indices = @transform_3, window_bounds = array<i64: 1, 1, 1, 128>}, {transform_indices = @transform_4, window_bounds = array<i64: 1, 1, 1, 128>}]} {
    %c0 = arith.constant 0 : index
    %c0_0 = arith.constant 0 : index
    %c0_1 = arith.constant 0 : index
    %0 = vector.load %arg2[%c0, %c0_0, %c0_1] : memref<1x256x512xbf16, #tpu.memory_space<vmem>>, vector<1x256x512xbf16>
    %1 = vector.shape_cast %0 : vector<1x256x512xbf16> to vector<256x512xbf16>
    %c0_2 = arith.constant 0 : index
    %c0_3 = arith.constant 0 : index
    %2 = vector.load %arg3[%c0_2, %c0_3] : memref<512x128xbf16, #tpu.memory_space<vmem>>, vector<512x128xbf16>
    %cst = arith.constant dense<0.000000e+00> : vector<256x128xf32>
    %3 = tpu.matmul %1, %2, %cst {dimension_numbers = #tpu.dot_dimension_numbers<[1], [0], [0], [1], [0, 0, 1, 1], [], []>} : vector<256x512xbf16>, vector<512x128xbf16>, vector<256x128xf32> -> vector<256x128xf32>
    %cst_4 = arith.constant dense<0.000000e+00> : vector<128xf32>
    %4 = vector.multi_reduction <add>, %3, %cst_4 [0] : vector<256x128xf32> to vector<128xf32>
    %5 = vector.shape_cast %4 : vector<128xf32> to vector<1x128xf32>
    %c0_5 = arith.constant 0 : index
    %c0_6 = arith.constant 0 : index
    %c0_7 = arith.constant 0 : index
    %c0_8 = arith.constant 0 : index
    %6 = vector.load %arg5[%c0_5, %c0_6, %c0_7, %c0_8] : memref<1x1x1x128xf32, #tpu.memory_space<vmem>>, vector<1x1x1x128xf32>
    %7 = vector.shape_cast %6 : vector<1x1x1x128xf32> to vector<1x128xf32>
    %8 = vector.shape_cast %5 : vector<1x128xf32> to vector<1x1x1x128xf32>
    tpu.vector_store %arg5[%c0_5, %c0_6, %c0_7, %c0_8], %8 {strides = array<i32>} : memref<1x1x1x128xf32, #tpu.memory_space<vmem>>, vector<1x1x1x128xf32>,
    %9 = arith.mulf %3, %3 : vector<256x128xf32>
    %cst_9 = arith.constant dense<0.000000e+00> : vector<128xf32>
    %10 = vector.multi_reduction <add>, %9, %cst_9 [0] : vector<256x128xf32> to vector<128xf32>
    %11 = vector.shape_cast %10 : vector<128xf32> to vector<1x128xf32>
    %c0_10 = arith.constant 0 : index
    %c0_11 = arith.constant 0 : index
    %c0_12 = arith.constant 0 : index
    %c0_13 = arith.constant 0 : index
    %12 = vector.load %arg6[%c0_10, %c0_11, %c0_12, %c0_13] : memref<1x1x1x128xf32, #tpu.memory_space<vmem>>, vector<1x1x1x128xf32>
    %13 = vector.shape_cast %12 : vector<1x1x1x128xf32> to vector<1x128xf32>
    %14 = vector.shape_cast %11 : vector<1x128xf32> to vector<1x1x1x128xf32>
    tpu.vector_store %arg6[%c0_10, %c0_11, %c0_12, %c0_13], %14 {strides = array<i32>} : memref<1x1x1x128xf32, #tpu.memory_space<vmem>>, vector<1x1x1x128xf32>,
    %15 = arith.truncf %3 : vector<256x128xf32> to vector<256x128xbf16>
    %c0_14 = arith.constant 0 : index
    %c0_15 = arith.constant 0 : index
    %c0_16 = arith.constant 0 : index
    %16 = vector.load %arg4[%c0_14, %c0_15, %c0_16] : memref<1x256x128xbf16, #tpu.memory_space<vmem>>, vector<1x256x128xbf16>
    %17 = vector.shape_cast %16 : vector<1x256x128xbf16> to vector<256x128xbf16>
    %18 = vector.shape_cast %15 : vector<256x128xbf16> to vector<1x256x128xbf16>
    tpu.vector_store %arg4[%c0_14, %c0_15, %c0_16], %18 {strides = array<i32>} : memref<1x256x128xbf16, #tpu.memory_space<vmem>>, vector<1x256x128xbf16>,
    return
  }
  func.func @transform_0(%arg0: i32, %arg1: i32) -> (i32, i32, i32) {
    %c0_i32 = arith.constant 0 : i32
    %c0_i32_0 = arith.constant 0 : i32
    return %arg0, %arg1, %c0_i32 : i32, i32, i32
  }
  func.func @transform_1(%arg0: i32, %arg1: i32) -> (i32, i32) {
    %c0_i32 = arith.constant 0 : i32
    %c0_i32_0 = arith.constant 0 : i32
    %c0_i32_1 = arith.constant 0 : i32
    return %c0_i32, %c0_i32_0 : i32, i32
  }
  func.func @transform_2(%arg0: i32, %arg1: i32) -> (i32, i32, i32) {
    %c0_i32 = arith.constant 0 : i32
    %c0_i32_0 = arith.constant 0 : i32
    return %arg0, %arg1, %c0_i32 : i32, i32, i32
  }
  func.func @transform_3(%arg0: i32, %arg1: i32) -> (i32, i32, i32, i32) {
    %c0_i32 = arith.constant 0 : i32
    %c0_i32_0 = arith.constant 0 : i32
    %c0_i32_1 = arith.constant 0 : i32
    return %arg0, %arg1, %c0_i32, %c0_i32_0 : i32, i32, i32, i32
  }
  func.func @transform_4(%arg0: i32, %arg1: i32) -> (i32, i32, i32, i32) {
    %c0_i32 = arith.constant 0 : i32
    %c0_i32_0 = arith.constant 0 : i32
    %c0_i32_1 = arith.constant 0 : i32
    return %arg0, %arg1, %c0_i32, %c0_i32_0 : i32, i32, i32, i32
  }
}

module attributes {stable_mosaic.version = 11 : i64} {
  func.func @_affine_act_kernel(%arg0: i32, %arg1: i32, %arg2: memref<1x256x128xbf16, #tpu.memory_space<vmem>>, %arg3: memref<1x1x128xf32, #tpu.memory_space<vmem>>, %arg4: memref<1x1x128xf32, #tpu.memory_space<vmem>>, %arg5: memref<1x256x128xbf16, #tpu.memory_space<vmem>>) attributes {dimension_semantics = [#tpu.dimension_semantics<parallel>, #tpu.dimension_semantics<parallel>], iteration_bounds = array<i64: 2, 1>, scalar_prefetch = 0 : i64, scratch_operands = 0 : i64, tpu.core_type = #tpu.core_type<tc>, window_params = [{transform_indices = @transform_0, window_bounds = array<i64: 1, 256, 128>}, {transform_indices = @transform_1, window_bounds = array<i64: 1, 1, 128>}, {transform_indices = @transform_2, window_bounds = array<i64: 1, 1, 128>}, {transform_indices = @transform_3, window_bounds = array<i64: 1, 256, 128>}]} {
    %c0 = arith.constant 0 : index
    %c0_0 = arith.constant 0 : index
    %c0_1 = arith.constant 0 : index
    %0 = vector.load %arg2[%c0, %c0_0, %c0_1] : memref<1x256x128xbf16, #tpu.memory_space<vmem>>, vector<1x256x128xbf16>
    %1 = vector.shape_cast %0 : vector<1x256x128xbf16> to vector<256x128xbf16>
    %2 = arith.extf %1 : vector<256x128xbf16> to vector<256x128xf32>
    %c0_2 = arith.constant 0 : index
    %c0_3 = arith.constant 0 : index
    %c0_4 = arith.constant 0 : index
    %3 = vector.load %arg3[%c0_2, %c0_3, %c0_4] : memref<1x1x128xf32, #tpu.memory_space<vmem>>, vector<1x1x128xf32>
    %4 = vector.shape_cast %3 : vector<1x1x128xf32> to vector<1x128xf32>
    %5 = vector.broadcast %4 : vector<1x128xf32> to vector<256x128xf32>
    %6 = arith.mulf %2, %5 : vector<256x128xf32>
    %c0_5 = arith.constant 0 : index
    %c0_6 = arith.constant 0 : index
    %c0_7 = arith.constant 0 : index
    %7 = vector.load %arg4[%c0_5, %c0_6, %c0_7] : memref<1x1x128xf32, #tpu.memory_space<vmem>>, vector<1x1x128xf32>
    %8 = vector.shape_cast %7 : vector<1x1x128xf32> to vector<1x128xf32>
    %9 = vector.broadcast %8 : vector<1x128xf32> to vector<256x128xf32>
    %10 = arith.addf %6, %9 : vector<256x128xf32>
    %cst = arith.constant 0.000000e+00 : f32
    %11 = vector.broadcast %cst : f32 to vector<256x128xf32>
    %12 = arith.maximumf %10, %11 : vector<256x128xf32>
    %13 = arith.truncf %12 : vector<256x128xf32> to vector<256x128xbf16>
    %c0_8 = arith.constant 0 : index
    %c0_9 = arith.constant 0 : index
    %c0_10 = arith.constant 0 : index
    %14 = vector.load %arg5[%c0_8, %c0_9, %c0_10] : memref<1x256x128xbf16, #tpu.memory_space<vmem>>, vector<1x256x128xbf16>
    %15 = vector.shape_cast %14 : vector<1x256x128xbf16> to vector<256x128xbf16>
    %16 = vector.shape_cast %13 : vector<256x128xbf16> to vector<1x256x128xbf16>
    tpu.vector_store %arg5[%c0_8, %c0_9, %c0_10], %16 {strides = array<i32>} : memref<1x256x128xbf16, #tpu.memory_space<vmem>>, vector<1x256x128xbf16>,
    return
  }
  func.func @transform_0(%arg0: i32, %arg1: i32) -> (i32, i32, i32) {
    %c0_i32 = arith.constant 0 : i32
    %c0_i32_0 = arith.constant 0 : i32
    return %arg0, %arg1, %c0_i32 : i32, i32, i32
  }
  func.func @transform_1(%arg0: i32, %arg1: i32) -> (i32, i32, i32) {
    %c0_i32 = arith.constant 0 : i32
    %c0_i32_0 = arith.constant 0 : i32
    %c0_i32_1 = arith.constant 0 : i32
    return %arg0, %c0_i32, %c0_i32_0 : i32, i32, i32
  }
  func.func @transform_2(%arg0: i32, %arg1: i32) -> (i32, i32, i32) {
    %c0_i32 = arith.constant 0 : i32
    %c0_i32_0 = arith.constant 0 : i32
    %c0_i32_1 = arith.constant 0 : i32
    return %arg0, %c0_i32, %c0_i32_0 : i32, i32, i32
  }
  func.func @transform_3(%arg0: i32, %arg1: i32) -> (i32, i32, i32) {
    %c0_i32 = arith.constant 0 : i32
    %c0_i32_0 = arith.constant 0 : i32
    return %arg0, %arg1, %c0_i32 : i32, i32, i32
  }
}

module attributes {stable_mosaic.version = 11 : i64} {
  func.func @_matmul_stats_kernel(%arg0: i32, %arg1: i32, %arg2: memref<1x64x128xbf16, #tpu.memory_space<vmem>>, %arg3: memref<128x128xbf16, #tpu.memory_space<vmem>>, %arg4: memref<1x64x128xbf16, #tpu.memory_space<vmem>>, %arg5: memref<1x1x1x128xf32, #tpu.memory_space<vmem>>, %arg6: memref<1x1x1x128xf32, #tpu.memory_space<vmem>>) attributes {dimension_semantics = [#tpu.dimension_semantics<parallel>, #tpu.dimension_semantics<parallel>], iteration_bounds = array<i64: 2, 1>, scalar_prefetch = 0 : i64, scratch_operands = 0 : i64, tpu.core_type = #tpu.core_type<tc>, window_params = [{transform_indices = @transform_0, window_bounds = array<i64: 1, 64, 128>}, {pipeline_mode = #tpu.pipeline_mode<synchronous>, transform_indices = @transform_1, window_bounds = array<i64: 128, 128>}, {transform_indices = @transform_2, window_bounds = array<i64: 1, 64, 128>}, {transform_indices = @transform_3, window_bounds = array<i64: 1, 1, 1, 128>}, {transform_indices = @transform_4, window_bounds = array<i64: 1, 1, 1, 128>}]} {
    %c0 = arith.constant 0 : index
    %c0_0 = arith.constant 0 : index
    %c0_1 = arith.constant 0 : index
    %0 = vector.load %arg2[%c0, %c0_0, %c0_1] : memref<1x64x128xbf16, #tpu.memory_space<vmem>>, vector<1x64x128xbf16>
    %1 = vector.shape_cast %0 : vector<1x64x128xbf16> to vector<64x128xbf16>
    %c0_2 = arith.constant 0 : index
    %c0_3 = arith.constant 0 : index
    %2 = vector.load %arg3[%c0_2, %c0_3] : memref<128x128xbf16, #tpu.memory_space<vmem>>, vector<128x128xbf16>
    %cst = arith.constant dense<0.000000e+00> : vector<64x128xf32>
    %3 = tpu.matmul %1, %2, %cst {dimension_numbers = #tpu.dot_dimension_numbers<[1], [0], [0], [1], [0, 0, 1, 1], [], []>} : vector<64x128xbf16>, vector<128x128xbf16>, vector<64x128xf32> -> vector<64x128xf32>
    %cst_4 = arith.constant dense<0.000000e+00> : vector<128xf32>
    %4 = vector.multi_reduction <add>, %3, %cst_4 [0] : vector<64x128xf32> to vector<128xf32>
    %5 = vector.shape_cast %4 : vector<128xf32> to vector<1x128xf32>
    %c0_5 = arith.constant 0 : index
    %c0_6 = arith.constant 0 : index
    %c0_7 = arith.constant 0 : index
    %c0_8 = arith.constant 0 : index
    %6 = vector.load %arg5[%c0_5, %c0_6, %c0_7, %c0_8] : memref<1x1x1x128xf32, #tpu.memory_space<vmem>>, vector<1x1x1x128xf32>
    %7 = vector.shape_cast %6 : vector<1x1x1x128xf32> to vector<1x128xf32>
    %8 = vector.shape_cast %5 : vector<1x128xf32> to vector<1x1x1x128xf32>
    tpu.vector_store %arg5[%c0_5, %c0_6, %c0_7, %c0_8], %8 {strides = array<i32>} : memref<1x1x1x128xf32, #tpu.memory_space<vmem>>, vector<1x1x1x128xf32>,
    %9 = arith.mulf %3, %3 : vector<64x128xf32>
    %cst_9 = arith.constant dense<0.000000e+00> : vector<128xf32>
    %10 = vector.multi_reduction <add>, %9, %cst_9 [0] : vector<64x128xf32> to vector<128xf32>
    %11 = vector.shape_cast %10 : vector<128xf32> to vector<1x128xf32>
    %c0_10 = arith.constant 0 : index
    %c0_11 = arith.constant 0 : index
    %c0_12 = arith.constant 0 : index
    %c0_13 = arith.constant 0 : index
    %12 = vector.load %arg6[%c0_10, %c0_11, %c0_12, %c0_13] : memref<1x1x1x128xf32, #tpu.memory_space<vmem>>, vector<1x1x1x128xf32>
    %13 = vector.shape_cast %12 : vector<1x1x1x128xf32> to vector<1x128xf32>
    %14 = vector.shape_cast %11 : vector<1x128xf32> to vector<1x1x1x128xf32>
    tpu.vector_store %arg6[%c0_10, %c0_11, %c0_12, %c0_13], %14 {strides = array<i32>} : memref<1x1x1x128xf32, #tpu.memory_space<vmem>>, vector<1x1x1x128xf32>,
    %15 = arith.truncf %3 : vector<64x128xf32> to vector<64x128xbf16>
    %c0_14 = arith.constant 0 : index
    %c0_15 = arith.constant 0 : index
    %c0_16 = arith.constant 0 : index
    %16 = vector.load %arg4[%c0_14, %c0_15, %c0_16] : memref<1x64x128xbf16, #tpu.memory_space<vmem>>, vector<1x64x128xbf16>
    %17 = vector.shape_cast %16 : vector<1x64x128xbf16> to vector<64x128xbf16>
    %18 = vector.shape_cast %15 : vector<64x128xbf16> to vector<1x64x128xbf16>
    tpu.vector_store %arg4[%c0_14, %c0_15, %c0_16], %18 {strides = array<i32>} : memref<1x64x128xbf16, #tpu.memory_space<vmem>>, vector<1x64x128xbf16>,
    return
  }
  func.func @transform_0(%arg0: i32, %arg1: i32) -> (i32, i32, i32) {
    %c0_i32 = arith.constant 0 : i32
    %c0_i32_0 = arith.constant 0 : i32
    return %arg0, %arg1, %c0_i32 : i32, i32, i32
  }
  func.func @transform_1(%arg0: i32, %arg1: i32) -> (i32, i32) {
    %c0_i32 = arith.constant 0 : i32
    %c0_i32_0 = arith.constant 0 : i32
    %c0_i32_1 = arith.constant 0 : i32
    return %c0_i32, %c0_i32_0 : i32, i32
  }
  func.func @transform_2(%arg0: i32, %arg1: i32) -> (i32, i32, i32) {
    %c0_i32 = arith.constant 0 : i32
    %c0_i32_0 = arith.constant 0 : i32
    return %arg0, %arg1, %c0_i32 : i32, i32, i32
  }
  func.func @transform_3(%arg0: i32, %arg1: i32) -> (i32, i32, i32, i32) {
    %c0_i32 = arith.constant 0 : i32
    %c0_i32_0 = arith.constant 0 : i32
    %c0_i32_1 = arith.constant 0 : i32
    return %arg0, %arg1, %c0_i32, %c0_i32_0 : i32, i32, i32, i32
  }
  func.func @transform_4(%arg0: i32, %arg1: i32) -> (i32, i32, i32, i32) {
    %c0_i32 = arith.constant 0 : i32
    %c0_i32_0 = arith.constant 0 : i32
    %c0_i32_1 = arith.constant 0 : i32
    return %arg0, %arg1, %c0_i32, %c0_i32_0 : i32, i32, i32, i32
  }
}

module attributes {stable_mosaic.version = 11 : i64} {
  func.func @_affine_act_kernel(%arg0: i32, %arg1: i32, %arg2: memref<1x64x128xbf16, #tpu.memory_space<vmem>>, %arg3: memref<1x1x128xf32, #tpu.memory_space<vmem>>, %arg4: memref<1x1x128xf32, #tpu.memory_space<vmem>>, %arg5: memref<1x64x128xbf16, #tpu.memory_space<vmem>>) attributes {dimension_semantics = [#tpu.dimension_semantics<parallel>, #tpu.dimension_semantics<parallel>], iteration_bounds = array<i64: 2, 1>, scalar_prefetch = 0 : i64, scratch_operands = 0 : i64, tpu.core_type = #tpu.core_type<tc>, window_params = [{transform_indices = @transform_0, window_bounds = array<i64: 1, 64, 128>}, {transform_indices = @transform_1, window_bounds = array<i64: 1, 1, 128>}, {transform_indices = @transform_2, window_bounds = array<i64: 1, 1, 128>}, {transform_indices = @transform_3, window_bounds = array<i64: 1, 64, 128>}]} {
    %c0 = arith.constant 0 : index
    %c0_0 = arith.constant 0 : index
    %c0_1 = arith.constant 0 : index
    %0 = vector.load %arg2[%c0, %c0_0, %c0_1] : memref<1x64x128xbf16, #tpu.memory_space<vmem>>, vector<1x64x128xbf16>
    %1 = vector.shape_cast %0 : vector<1x64x128xbf16> to vector<64x128xbf16>
    %2 = arith.extf %1 : vector<64x128xbf16> to vector<64x128xf32>
    %c0_2 = arith.constant 0 : index
    %c0_3 = arith.constant 0 : index
    %c0_4 = arith.constant 0 : index
    %3 = vector.load %arg3[%c0_2, %c0_3, %c0_4] : memref<1x1x128xf32, #tpu.memory_space<vmem>>, vector<1x1x128xf32>
    %4 = vector.shape_cast %3 : vector<1x1x128xf32> to vector<1x128xf32>
    %5 = vector.broadcast %4 : vector<1x128xf32> to vector<64x128xf32>
    %6 = arith.mulf %2, %5 : vector<64x128xf32>
    %c0_5 = arith.constant 0 : index
    %c0_6 = arith.constant 0 : index
    %c0_7 = arith.constant 0 : index
    %7 = vector.load %arg4[%c0_5, %c0_6, %c0_7] : memref<1x1x128xf32, #tpu.memory_space<vmem>>, vector<1x1x128xf32>
    %8 = vector.shape_cast %7 : vector<1x1x128xf32> to vector<1x128xf32>
    %9 = vector.broadcast %8 : vector<1x128xf32> to vector<64x128xf32>
    %10 = arith.addf %6, %9 : vector<64x128xf32>
    %cst = arith.constant 0.000000e+00 : f32
    %11 = vector.broadcast %cst : f32 to vector<64x128xf32>
    %12 = arith.maximumf %10, %11 : vector<64x128xf32>
    %13 = arith.truncf %12 : vector<64x128xf32> to vector<64x128xbf16>
    %c0_8 = arith.constant 0 : index
    %c0_9 = arith.constant 0 : index
    %c0_10 = arith.constant 0 : index
    %14 = vector.load %arg5[%c0_8, %c0_9, %c0_10] : memref<1x64x128xbf16, #tpu.memory_space<vmem>>, vector<1x64x128xbf16>
    %15 = vector.shape_cast %14 : vector<1x64x128xbf16> to vector<64x128xbf16>
    %16 = vector.shape_cast %13 : vector<64x128xbf16> to vector<1x64x128xbf16>
    tpu.vector_store %arg5[%c0_8, %c0_9, %c0_10], %16 {strides = array<i32>} : memref<1x64x128xbf16, #tpu.memory_space<vmem>>, vector<1x64x128xbf16>,
    return
  }
  func.func @transform_0(%arg0: i32, %arg1: i32) -> (i32, i32, i32) {
    %c0_i32 = arith.constant 0 : i32
    %c0_i32_0 = arith.constant 0 : i32
    return %arg0, %arg1, %c0_i32 : i32, i32, i32
  }
  func.func @transform_1(%arg0: i32, %arg1: i32) -> (i32, i32, i32) {
    %c0_i32 = arith.constant 0 : i32
    %c0_i32_0 = arith.constant 0 : i32
    %c0_i32_1 = arith.constant 0 : i32
    return %arg0, %c0_i32, %c0_i32_0 : i32, i32, i32
  }
  func.func @transform_2(%arg0: i32, %arg1: i32) -> (i32, i32, i32) {
    %c0_i32 = arith.constant 0 : i32
    %c0_i32_0 = arith.constant 0 : i32
    %c0_i32_1 = arith.constant 0 : i32
    return %arg0, %c0_i32, %c0_i32_0 : i32, i32, i32
  }
  func.func @transform_3(%arg0: i32, %arg1: i32) -> (i32, i32, i32) {
    %c0_i32 = arith.constant 0 : i32
    %c0_i32_0 = arith.constant 0 : i32
    return %arg0, %arg1, %c0_i32 : i32, i32, i32
  }
}

module attributes {stable_mosaic.version = 11 : i64} {
  func.func @_matmul_stats_kernel(%arg0: i32, %arg1: i32, %arg2: memref<1x16x256xbf16, #tpu.memory_space<vmem>>, %arg3: memref<256x128xbf16, #tpu.memory_space<vmem>>, %arg4: memref<1x16x128xbf16, #tpu.memory_space<vmem>>, %arg5: memref<1x1x1x128xf32, #tpu.memory_space<vmem>>, %arg6: memref<1x1x1x128xf32, #tpu.memory_space<vmem>>) attributes {dimension_semantics = [#tpu.dimension_semantics<parallel>, #tpu.dimension_semantics<parallel>], iteration_bounds = array<i64: 2, 1>, scalar_prefetch = 0 : i64, scratch_operands = 0 : i64, tpu.core_type = #tpu.core_type<tc>, window_params = [{transform_indices = @transform_0, window_bounds = array<i64: 1, 16, 256>}, {pipeline_mode = #tpu.pipeline_mode<synchronous>, transform_indices = @transform_1, window_bounds = array<i64: 256, 128>}, {transform_indices = @transform_2, window_bounds = array<i64: 1, 16, 128>}, {transform_indices = @transform_3, window_bounds = array<i64: 1, 1, 1, 128>}, {transform_indices = @transform_4, window_bounds = array<i64: 1, 1, 1, 128>}]} {
    %c0 = arith.constant 0 : index
    %c0_0 = arith.constant 0 : index
    %c0_1 = arith.constant 0 : index
    %0 = vector.load %arg2[%c0, %c0_0, %c0_1] : memref<1x16x256xbf16, #tpu.memory_space<vmem>>, vector<1x16x256xbf16>
    %1 = vector.shape_cast %0 : vector<1x16x256xbf16> to vector<16x256xbf16>
    %c0_2 = arith.constant 0 : index
    %c0_3 = arith.constant 0 : index
    %2 = vector.load %arg3[%c0_2, %c0_3] : memref<256x128xbf16, #tpu.memory_space<vmem>>, vector<256x128xbf16>
    %cst = arith.constant dense<0.000000e+00> : vector<16x128xf32>
    %3 = tpu.matmul %1, %2, %cst {dimension_numbers = #tpu.dot_dimension_numbers<[1], [0], [0], [1], [0, 0, 1, 1], [], []>} : vector<16x256xbf16>, vector<256x128xbf16>, vector<16x128xf32> -> vector<16x128xf32>
    %cst_4 = arith.constant dense<0.000000e+00> : vector<128xf32>
    %4 = vector.multi_reduction <add>, %3, %cst_4 [0] : vector<16x128xf32> to vector<128xf32>
    %5 = vector.shape_cast %4 : vector<128xf32> to vector<1x128xf32>
    %c0_5 = arith.constant 0 : index
    %c0_6 = arith.constant 0 : index
    %c0_7 = arith.constant 0 : index
    %c0_8 = arith.constant 0 : index
    %6 = vector.load %arg5[%c0_5, %c0_6, %c0_7, %c0_8] : memref<1x1x1x128xf32, #tpu.memory_space<vmem>>, vector<1x1x1x128xf32>
    %7 = vector.shape_cast %6 : vector<1x1x1x128xf32> to vector<1x128xf32>
    %8 = vector.shape_cast %5 : vector<1x128xf32> to vector<1x1x1x128xf32>
    tpu.vector_store %arg5[%c0_5, %c0_6, %c0_7, %c0_8], %8 {strides = array<i32>} : memref<1x1x1x128xf32, #tpu.memory_space<vmem>>, vector<1x1x1x128xf32>,
    %9 = arith.mulf %3, %3 : vector<16x128xf32>
    %cst_9 = arith.constant dense<0.000000e+00> : vector<128xf32>
    %10 = vector.multi_reduction <add>, %9, %cst_9 [0] : vector<16x128xf32> to vector<128xf32>
    %11 = vector.shape_cast %10 : vector<128xf32> to vector<1x128xf32>
    %c0_10 = arith.constant 0 : index
    %c0_11 = arith.constant 0 : index
    %c0_12 = arith.constant 0 : index
    %c0_13 = arith.constant 0 : index
    %12 = vector.load %arg6[%c0_10, %c0_11, %c0_12, %c0_13] : memref<1x1x1x128xf32, #tpu.memory_space<vmem>>, vector<1x1x1x128xf32>
    %13 = vector.shape_cast %12 : vector<1x1x1x128xf32> to vector<1x128xf32>
    %14 = vector.shape_cast %11 : vector<1x128xf32> to vector<1x1x1x128xf32>
    tpu.vector_store %arg6[%c0_10, %c0_11, %c0_12, %c0_13], %14 {strides = array<i32>} : memref<1x1x1x128xf32, #tpu.memory_space<vmem>>, vector<1x1x1x128xf32>,
    %15 = arith.truncf %3 : vector<16x128xf32> to vector<16x128xbf16>
    %c0_14 = arith.constant 0 : index
    %c0_15 = arith.constant 0 : index
    %c0_16 = arith.constant 0 : index
    %16 = vector.load %arg4[%c0_14, %c0_15, %c0_16] : memref<1x16x128xbf16, #tpu.memory_space<vmem>>, vector<1x16x128xbf16>
    %17 = vector.shape_cast %16 : vector<1x16x128xbf16> to vector<16x128xbf16>
    %18 = vector.shape_cast %15 : vector<16x128xbf16> to vector<1x16x128xbf16>
    tpu.vector_store %arg4[%c0_14, %c0_15, %c0_16], %18 {strides = array<i32>} : memref<1x16x128xbf16, #tpu.memory_space<vmem>>, vector<1x16x128xbf16>,
    return
  }
  func.func @transform_0(%arg0: i32, %arg1: i32) -> (i32, i32, i32) {
    %c0_i32 = arith.constant 0 : i32
    %c0_i32_0 = arith.constant 0 : i32
    return %arg0, %arg1, %c0_i32 : i32, i32, i32
  }
  func.func @transform_1(%arg0: i32, %arg1: i32) -> (i32, i32) {
    %c0_i32 = arith.constant 0 : i32
    %c0_i32_0 = arith.constant 0 : i32
    %c0_i32_1 = arith.constant 0 : i32
    return %c0_i32, %c0_i32_0 : i32, i32
  }
  func.func @transform_2(%arg0: i32, %arg1: i32) -> (i32, i32, i32) {
    %c0_i32 = arith.constant 0 : i32
    %c0_i32_0 = arith.constant 0 : i32
    return %arg0, %arg1, %c0_i32 : i32, i32, i32
  }
  func.func @transform_3(%arg0: i32, %arg1: i32) -> (i32, i32, i32, i32) {
    %c0_i32 = arith.constant 0 : i32
    %c0_i32_0 = arith.constant 0 : i32
    %c0_i32_1 = arith.constant 0 : i32
    return %arg0, %arg1, %c0_i32, %c0_i32_0 : i32, i32, i32, i32
  }
  func.func @transform_4(%arg0: i32, %arg1: i32) -> (i32, i32, i32, i32) {
    %c0_i32 = arith.constant 0 : i32
    %c0_i32_0 = arith.constant 0 : i32
    %c0_i32_1 = arith.constant 0 : i32
    return %arg0, %arg1, %c0_i32, %c0_i32_0 : i32, i32, i32, i32
  }
}

module attributes {stable_mosaic.version = 11 : i64} {
  func.func @_affine_act_kernel(%arg0: i32, %arg1: i32, %arg2: memref<1x16x128xbf16, #tpu.memory_space<vmem>>, %arg3: memref<1x1x128xf32, #tpu.memory_space<vmem>>, %arg4: memref<1x1x128xf32, #tpu.memory_space<vmem>>, %arg5: memref<1x16x128xbf16, #tpu.memory_space<vmem>>) attributes {dimension_semantics = [#tpu.dimension_semantics<parallel>, #tpu.dimension_semantics<parallel>], iteration_bounds = array<i64: 2, 1>, scalar_prefetch = 0 : i64, scratch_operands = 0 : i64, tpu.core_type = #tpu.core_type<tc>, window_params = [{transform_indices = @transform_0, window_bounds = array<i64: 1, 16, 128>}, {transform_indices = @transform_1, window_bounds = array<i64: 1, 1, 128>}, {transform_indices = @transform_2, window_bounds = array<i64: 1, 1, 128>}, {transform_indices = @transform_3, window_bounds = array<i64: 1, 16, 128>}]} {
    %c0 = arith.constant 0 : index
    %c0_0 = arith.constant 0 : index
    %c0_1 = arith.constant 0 : index
    %0 = vector.load %arg2[%c0, %c0_0, %c0_1] : memref<1x16x128xbf16, #tpu.memory_space<vmem>>, vector<1x16x128xbf16>
    %1 = vector.shape_cast %0 : vector<1x16x128xbf16> to vector<16x128xbf16>
    %2 = arith.extf %1 : vector<16x128xbf16> to vector<16x128xf32>
    %c0_2 = arith.constant 0 : index
    %c0_3 = arith.constant 0 : index
    %c0_4 = arith.constant 0 : index
    %3 = vector.load %arg3[%c0_2, %c0_3, %c0_4] : memref<1x1x128xf32, #tpu.memory_space<vmem>>, vector<1x1x128xf32>
    %4 = vector.shape_cast %3 : vector<1x1x128xf32> to vector<1x128xf32>
    %5 = vector.broadcast %4 : vector<1x128xf32> to vector<16x128xf32>
    %6 = arith.mulf %2, %5 : vector<16x128xf32>
    %c0_5 = arith.constant 0 : index
    %c0_6 = arith.constant 0 : index
    %c0_7 = arith.constant 0 : index
    %7 = vector.load %arg4[%c0_5, %c0_6, %c0_7] : memref<1x1x128xf32, #tpu.memory_space<vmem>>, vector<1x1x128xf32>
    %8 = vector.shape_cast %7 : vector<1x1x128xf32> to vector<1x128xf32>
    %9 = vector.broadcast %8 : vector<1x128xf32> to vector<16x128xf32>
    %10 = arith.addf %6, %9 : vector<16x128xf32>
    %cst = arith.constant 0.000000e+00 : f32
    %11 = vector.broadcast %cst : f32 to vector<16x128xf32>
    %12 = arith.maximumf %10, %11 : vector<16x128xf32>
    %13 = arith.truncf %12 : vector<16x128xf32> to vector<16x128xbf16>
    %c0_8 = arith.constant 0 : index
    %c0_9 = arith.constant 0 : index
    %c0_10 = arith.constant 0 : index
    %14 = vector.load %arg5[%c0_8, %c0_9, %c0_10] : memref<1x16x128xbf16, #tpu.memory_space<vmem>>, vector<1x16x128xbf16>
    %15 = vector.shape_cast %14 : vector<1x16x128xbf16> to vector<16x128xbf16>
    %16 = vector.shape_cast %13 : vector<16x128xbf16> to vector<1x16x128xbf16>
    tpu.vector_store %arg5[%c0_8, %c0_9, %c0_10], %16 {strides = array<i32>} : memref<1x16x128xbf16, #tpu.memory_space<vmem>>, vector<1x16x128xbf16>,
    return
  }
  func.func @transform_0(%arg0: i32, %arg1: i32) -> (i32, i32, i32) {
    %c0_i32 = arith.constant 0 : i32
    %c0_i32_0 = arith.constant 0 : i32
    return %arg0, %arg1, %c0_i32 : i32, i32, i32
  }
  func.func @transform_1(%arg0: i32, %arg1: i32) -> (i32, i32, i32) {
    %c0_i32 = arith.constant 0 : i32
    %c0_i32_0 = arith.constant 0 : i32
    %c0_i32_1 = arith.constant 0 : i32
    return %arg0, %c0_i32, %c0_i32_0 : i32, i32, i32
  }
  func.func @transform_2(%arg0: i32, %arg1: i32) -> (i32, i32, i32) {
    %c0_i32 = arith.constant 0 : i32
    %c0_i32_0 = arith.constant 0 : i32
    %c0_i32_1 = arith.constant 0 : i32
    return %arg0, %c0_i32, %c0_i32_0 : i32, i32, i32
  }
  func.func @transform_3(%arg0: i32, %arg1: i32) -> (i32, i32, i32) {
    %c0_i32 = arith.constant 0 : i32
    %c0_i32_0 = arith.constant 0 : i32
    return %arg0, %arg1, %c0_i32 : i32, i32, i32
  }
}

module attributes {stable_mosaic.version = 11 : i64} {
  func.func @_matmul_stats_kernel(%arg0: i32, %arg1: i32, %arg2: memref<1x16x384xbf16, #tpu.memory_space<vmem>>, %arg3: memref<384x128xbf16, #tpu.memory_space<vmem>>, %arg4: memref<1x16x128xbf16, #tpu.memory_space<vmem>>, %arg5: memref<1x1x1x128xf32, #tpu.memory_space<vmem>>, %arg6: memref<1x1x1x128xf32, #tpu.memory_space<vmem>>) attributes {dimension_semantics = [#tpu.dimension_semantics<parallel>, #tpu.dimension_semantics<parallel>], iteration_bounds = array<i64: 2, 1>, scalar_prefetch = 0 : i64, scratch_operands = 0 : i64, tpu.core_type = #tpu.core_type<tc>, window_params = [{transform_indices = @transform_0, window_bounds = array<i64: 1, 16, 384>}, {pipeline_mode = #tpu.pipeline_mode<synchronous>, transform_indices = @transform_1, window_bounds = array<i64: 384, 128>}, {transform_indices = @transform_2, window_bounds = array<i64: 1, 16, 128>}, {transform_indices = @transform_3, window_bounds = array<i64: 1, 1, 1, 128>}, {transform_indices = @transform_4, window_bounds = array<i64: 1, 1, 1, 128>}]} {
    %c0 = arith.constant 0 : index
    %c0_0 = arith.constant 0 : index
    %c0_1 = arith.constant 0 : index
    %0 = vector.load %arg2[%c0, %c0_0, %c0_1] : memref<1x16x384xbf16, #tpu.memory_space<vmem>>, vector<1x16x384xbf16>
    %1 = vector.shape_cast %0 : vector<1x16x384xbf16> to vector<16x384xbf16>
    %c0_2 = arith.constant 0 : index
    %c0_3 = arith.constant 0 : index
    %2 = vector.load %arg3[%c0_2, %c0_3] : memref<384x128xbf16, #tpu.memory_space<vmem>>, vector<384x128xbf16>
    %cst = arith.constant dense<0.000000e+00> : vector<16x128xf32>
    %3 = tpu.matmul %1, %2, %cst {dimension_numbers = #tpu.dot_dimension_numbers<[1], [0], [0], [1], [0, 0, 1, 1], [], []>} : vector<16x384xbf16>, vector<384x128xbf16>, vector<16x128xf32> -> vector<16x128xf32>
    %cst_4 = arith.constant dense<0.000000e+00> : vector<128xf32>
    %4 = vector.multi_reduction <add>, %3, %cst_4 [0] : vector<16x128xf32> to vector<128xf32>
    %5 = vector.shape_cast %4 : vector<128xf32> to vector<1x128xf32>
    %c0_5 = arith.constant 0 : index
    %c0_6 = arith.constant 0 : index
    %c0_7 = arith.constant 0 : index
    %c0_8 = arith.constant 0 : index
    %6 = vector.load %arg5[%c0_5, %c0_6, %c0_7, %c0_8] : memref<1x1x1x128xf32, #tpu.memory_space<vmem>>, vector<1x1x1x128xf32>
    %7 = vector.shape_cast %6 : vector<1x1x1x128xf32> to vector<1x128xf32>
    %8 = vector.shape_cast %5 : vector<1x128xf32> to vector<1x1x1x128xf32>
    tpu.vector_store %arg5[%c0_5, %c0_6, %c0_7, %c0_8], %8 {strides = array<i32>} : memref<1x1x1x128xf32, #tpu.memory_space<vmem>>, vector<1x1x1x128xf32>,
    %9 = arith.mulf %3, %3 : vector<16x128xf32>
    %cst_9 = arith.constant dense<0.000000e+00> : vector<128xf32>
    %10 = vector.multi_reduction <add>, %9, %cst_9 [0] : vector<16x128xf32> to vector<128xf32>
    %11 = vector.shape_cast %10 : vector<128xf32> to vector<1x128xf32>
    %c0_10 = arith.constant 0 : index
    %c0_11 = arith.constant 0 : index
    %c0_12 = arith.constant 0 : index
    %c0_13 = arith.constant 0 : index
    %12 = vector.load %arg6[%c0_10, %c0_11, %c0_12, %c0_13] : memref<1x1x1x128xf32, #tpu.memory_space<vmem>>, vector<1x1x1x128xf32>
    %13 = vector.shape_cast %12 : vector<1x1x1x128xf32> to vector<1x128xf32>
    %14 = vector.shape_cast %11 : vector<1x128xf32> to vector<1x1x1x128xf32>
    tpu.vector_store %arg6[%c0_10, %c0_11, %c0_12, %c0_13], %14 {strides = array<i32>} : memref<1x1x1x128xf32, #tpu.memory_space<vmem>>, vector<1x1x1x128xf32>,
    %15 = arith.truncf %3 : vector<16x128xf32> to vector<16x128xbf16>
    %c0_14 = arith.constant 0 : index
    %c0_15 = arith.constant 0 : index
    %c0_16 = arith.constant 0 : index
    %16 = vector.load %arg4[%c0_14, %c0_15, %c0_16] : memref<1x16x128xbf16, #tpu.memory_space<vmem>>, vector<1x16x128xbf16>
    %17 = vector.shape_cast %16 : vector<1x16x128xbf16> to vector<16x128xbf16>
    %18 = vector.shape_cast %15 : vector<16x128xbf16> to vector<1x16x128xbf16>
    tpu.vector_store %arg4[%c0_14, %c0_15, %c0_16], %18 {strides = array<i32>} : memref<1x16x128xbf16, #tpu.memory_space<vmem>>, vector<1x16x128xbf16>,
    return
  }
  func.func @transform_0(%arg0: i32, %arg1: i32) -> (i32, i32, i32) {
    %c0_i32 = arith.constant 0 : i32
    %c0_i32_0 = arith.constant 0 : i32
    return %arg0, %arg1, %c0_i32 : i32, i32, i32
  }
  func.func @transform_1(%arg0: i32, %arg1: i32) -> (i32, i32) {
    %c0_i32 = arith.constant 0 : i32
    %c0_i32_0 = arith.constant 0 : i32
    %c0_i32_1 = arith.constant 0 : i32
    return %c0_i32, %c0_i32_0 : i32, i32
  }
  func.func @transform_2(%arg0: i32, %arg1: i32) -> (i32, i32, i32) {
    %c0_i32 = arith.constant 0 : i32
    %c0_i32_0 = arith.constant 0 : i32
    return %arg0, %arg1, %c0_i32 : i32, i32, i32
  }
  func.func @transform_3(%arg0: i32, %arg1: i32) -> (i32, i32, i32, i32) {
    %c0_i32 = arith.constant 0 : i32
    %c0_i32_0 = arith.constant 0 : i32
    %c0_i32_1 = arith.constant 0 : i32
    return %arg0, %arg1, %c0_i32, %c0_i32_0 : i32, i32, i32, i32
  }
  func.func @transform_4(%arg0: i32, %arg1: i32) -> (i32, i32, i32, i32) {
    %c0_i32 = arith.constant 0 : i32
    %c0_i32_0 = arith.constant 0 : i32
    %c0_i32_1 = arith.constant 0 : i32
    return %arg0, %arg1, %c0_i32, %c0_i32_0 : i32, i32, i32, i32
  }
}

module attributes {stable_mosaic.version = 11 : i64} {
  func.func @_affine_skip_kernel(%arg0: i32, %arg1: i32, %arg2: memref<1x16x128xbf16, #tpu.memory_space<vmem>>, %arg3: memref<1x1x128xf32, #tpu.memory_space<vmem>>, %arg4: memref<1x1x128xf32, #tpu.memory_space<vmem>>, %arg5: memref<1x16x128xbf16, #tpu.memory_space<vmem>>, %arg6: memref<1x16x128xbf16, #tpu.memory_space<vmem>>) attributes {dimension_semantics = [#tpu.dimension_semantics<parallel>, #tpu.dimension_semantics<parallel>], iteration_bounds = array<i64: 2, 1>, scalar_prefetch = 0 : i64, scratch_operands = 0 : i64, tpu.core_type = #tpu.core_type<tc>, window_params = [{transform_indices = @transform_0, window_bounds = array<i64: 1, 16, 128>}, {transform_indices = @transform_1, window_bounds = array<i64: 1, 1, 128>}, {transform_indices = @transform_2, window_bounds = array<i64: 1, 1, 128>}, {transform_indices = @transform_3, window_bounds = array<i64: 1, 16, 128>}, {transform_indices = @transform_4, window_bounds = array<i64: 1, 16, 128>}]} {
    %c0 = arith.constant 0 : index
    %c0_0 = arith.constant 0 : index
    %c0_1 = arith.constant 0 : index
    %0 = vector.load %arg2[%c0, %c0_0, %c0_1] : memref<1x16x128xbf16, #tpu.memory_space<vmem>>, vector<1x16x128xbf16>
    %1 = vector.shape_cast %0 : vector<1x16x128xbf16> to vector<16x128xbf16>
    %2 = arith.extf %1 : vector<16x128xbf16> to vector<16x128xf32>
    %c0_2 = arith.constant 0 : index
    %c0_3 = arith.constant 0 : index
    %c0_4 = arith.constant 0 : index
    %3 = vector.load %arg3[%c0_2, %c0_3, %c0_4] : memref<1x1x128xf32, #tpu.memory_space<vmem>>, vector<1x1x128xf32>
    %4 = vector.shape_cast %3 : vector<1x1x128xf32> to vector<1x128xf32>
    %5 = vector.broadcast %4 : vector<1x128xf32> to vector<16x128xf32>
    %6 = arith.mulf %2, %5 : vector<16x128xf32>
    %c0_5 = arith.constant 0 : index
    %c0_6 = arith.constant 0 : index
    %c0_7 = arith.constant 0 : index
    %7 = vector.load %arg4[%c0_5, %c0_6, %c0_7] : memref<1x1x128xf32, #tpu.memory_space<vmem>>, vector<1x1x128xf32>
    %8 = vector.shape_cast %7 : vector<1x1x128xf32> to vector<1x128xf32>
    %9 = vector.broadcast %8 : vector<1x128xf32> to vector<16x128xf32>
    %10 = arith.addf %6, %9 : vector<16x128xf32>
    %c0_8 = arith.constant 0 : index
    %c0_9 = arith.constant 0 : index
    %c0_10 = arith.constant 0 : index
    %11 = vector.load %arg5[%c0_8, %c0_9, %c0_10] : memref<1x16x128xbf16, #tpu.memory_space<vmem>>, vector<1x16x128xbf16>
    %12 = vector.shape_cast %11 : vector<1x16x128xbf16> to vector<16x128xbf16>
    %13 = arith.extf %12 : vector<16x128xbf16> to vector<16x128xf32>
    %14 = arith.addf %10, %13 : vector<16x128xf32>
    %15 = arith.truncf %14 : vector<16x128xf32> to vector<16x128xbf16>
    %c0_11 = arith.constant 0 : index
    %c0_12 = arith.constant 0 : index
    %c0_13 = arith.constant 0 : index
    %16 = vector.load %arg6[%c0_11, %c0_12, %c0_13] : memref<1x16x128xbf16, #tpu.memory_space<vmem>>, vector<1x16x128xbf16>
    %17 = vector.shape_cast %16 : vector<1x16x128xbf16> to vector<16x128xbf16>
    %18 = vector.shape_cast %15 : vector<16x128xbf16> to vector<1x16x128xbf16>
    tpu.vector_store %arg6[%c0_11, %c0_12, %c0_13], %18 {strides = array<i32>} : memref<1x16x128xbf16, #tpu.memory_space<vmem>>, vector<1x16x128xbf16>,
    return
  }
  func.func @transform_0(%arg0: i32, %arg1: i32) -> (i32, i32, i32) {
    %c0_i32 = arith.constant 0 : i32
    %c0_i32_0 = arith.constant 0 : i32
    return %arg0, %arg1, %c0_i32 : i32, i32, i32
  }
  func.func @transform_1(%arg0: i32, %arg1: i32) -> (i32, i32, i32) {
    %c0_i32 = arith.constant 0 : i32
    %c0_i32_0 = arith.constant 0 : i32
    %c0_i32_1 = arith.constant 0 : i32
    return %arg0, %c0_i32, %c0_i32_0 : i32, i32, i32
  }
  func.func @transform_2(%arg0: i32, %arg1: i32) -> (i32, i32, i32) {
    %c0_i32 = arith.constant 0 : i32
    %c0_i32_0 = arith.constant 0 : i32
    %c0_i32_1 = arith.constant 0 : i32
    return %arg0, %c0_i32, %c0_i32_0 : i32, i32, i32
  }
  func.func @transform_3(%arg0: i32, %arg1: i32) -> (i32, i32, i32) {
    %c0_i32 = arith.constant 0 : i32
    %c0_i32_0 = arith.constant 0 : i32
    return %arg0, %arg1, %c0_i32 : i32, i32, i32
  }
  func.func @transform_4(%arg0: i32, %arg1: i32) -> (i32, i32, i32) {
    %c0_i32 = arith.constant 0 : i32
    %c0_i32_0 = arith.constant 0 : i32
    return %arg0, %arg1, %c0_i32 : i32, i32, i32
  }
}

module attributes {stable_mosaic.version = 11 : i64} {
  func.func @_affine_act_kernel(%arg0: i32, %arg1: i32, %arg2: memref<1x16x512xbf16, #tpu.memory_space<vmem>>, %arg3: memref<1x1x512xf32, #tpu.memory_space<vmem>>, %arg4: memref<1x1x512xf32, #tpu.memory_space<vmem>>, %arg5: memref<1x16x512xbf16, #tpu.memory_space<vmem>>) attributes {dimension_semantics = [#tpu.dimension_semantics<parallel>, #tpu.dimension_semantics<parallel>], iteration_bounds = array<i64: 2, 1>, scalar_prefetch = 0 : i64, scratch_operands = 0 : i64, tpu.core_type = #tpu.core_type<tc>, window_params = [{transform_indices = @transform_0, window_bounds = array<i64: 1, 16, 512>}, {transform_indices = @transform_1, window_bounds = array<i64: 1, 1, 512>}, {transform_indices = @transform_2, window_bounds = array<i64: 1, 1, 512>}, {transform_indices = @transform_3, window_bounds = array<i64: 1, 16, 512>}]} {
    %c0 = arith.constant 0 : index
    %c0_0 = arith.constant 0 : index
    %c0_1 = arith.constant 0 : index
    %0 = vector.load %arg2[%c0, %c0_0, %c0_1] : memref<1x16x512xbf16, #tpu.memory_space<vmem>>, vector<1x16x512xbf16>
    %1 = vector.shape_cast %0 : vector<1x16x512xbf16> to vector<16x512xbf16>
    %2 = arith.extf %1 : vector<16x512xbf16> to vector<16x512xf32>
    %c0_2 = arith.constant 0 : index
    %c0_3 = arith.constant 0 : index
    %c0_4 = arith.constant 0 : index
    %3 = vector.load %arg3[%c0_2, %c0_3, %c0_4] : memref<1x1x512xf32, #tpu.memory_space<vmem>>, vector<1x1x512xf32>
    %4 = vector.shape_cast %3 : vector<1x1x512xf32> to vector<1x512xf32>
    %5 = vector.broadcast %4 : vector<1x512xf32> to vector<16x512xf32>
    %6 = arith.mulf %2, %5 : vector<16x512xf32>
    %c0_5 = arith.constant 0 : index
    %c0_6 = arith.constant 0 : index
    %c0_7 = arith.constant 0 : index
    %7 = vector.load %arg4[%c0_5, %c0_6, %c0_7] : memref<1x1x512xf32, #tpu.memory_space<vmem>>, vector<1x1x512xf32>
    %8 = vector.shape_cast %7 : vector<1x1x512xf32> to vector<1x512xf32>
    %9 = vector.broadcast %8 : vector<1x512xf32> to vector<16x512xf32>
    %10 = arith.addf %6, %9 : vector<16x512xf32>
    %cst = arith.constant 0.000000e+00 : f32
    %11 = vector.broadcast %cst : f32 to vector<16x512xf32>
    %12 = arith.maximumf %10, %11 : vector<16x512xf32>
    %13 = arith.truncf %12 : vector<16x512xf32> to vector<16x512xbf16>
    %c0_8 = arith.constant 0 : index
    %c0_9 = arith.constant 0 : index
    %c0_10 = arith.constant 0 : index
    %14 = vector.load %arg5[%c0_8, %c0_9, %c0_10] : memref<1x16x512xbf16, #tpu.memory_space<vmem>>, vector<1x16x512xbf16>
    %15 = vector.shape_cast %14 : vector<1x16x512xbf16> to vector<16x512xbf16>
    %16 = vector.shape_cast %13 : vector<16x512xbf16> to vector<1x16x512xbf16>
    tpu.vector_store %arg5[%c0_8, %c0_9, %c0_10], %16 {strides = array<i32>} : memref<1x16x512xbf16, #tpu.memory_space<vmem>>, vector<1x16x512xbf16>,
    return
  }
  func.func @transform_0(%arg0: i32, %arg1: i32) -> (i32, i32, i32) {
    %c0_i32 = arith.constant 0 : i32
    %c0_i32_0 = arith.constant 0 : i32
    return %arg0, %arg1, %c0_i32 : i32, i32, i32
  }
  func.func @transform_1(%arg0: i32, %arg1: i32) -> (i32, i32, i32) {
    %c0_i32 = arith.constant 0 : i32
    %c0_i32_0 = arith.constant 0 : i32
    %c0_i32_1 = arith.constant 0 : i32
    return %arg0, %c0_i32, %c0_i32_0 : i32, i32, i32
  }
  func.func @transform_2(%arg0: i32, %arg1: i32) -> (i32, i32, i32) {
    %c0_i32 = arith.constant 0 : i32
    %c0_i32_0 = arith.constant 0 : i32
    %c0_i32_1 = arith.constant 0 : i32
    return %arg0, %c0_i32, %c0_i32_0 : i32, i32, i32
  }
  func.func @transform_3(%arg0: i32, %arg1: i32) -> (i32, i32, i32) {
    %c0_i32 = arith.constant 0 : i32
    %c0_i32_0 = arith.constant 0 : i32
    return %arg0, %arg1, %c0_i32 : i32, i32, i32
  }
}

module attributes {stable_mosaic.version = 11 : i64} {
  func.func @_matmul_stats_kernel(%arg0: i32, %arg1: i32, %arg2: memref<1x16x384xbf16, #tpu.memory_space<vmem>>, %arg3: memref<384x512xbf16, #tpu.memory_space<vmem>>, %arg4: memref<1x16x512xbf16, #tpu.memory_space<vmem>>, %arg5: memref<1x1x1x512xf32, #tpu.memory_space<vmem>>, %arg6: memref<1x1x1x512xf32, #tpu.memory_space<vmem>>) attributes {dimension_semantics = [#tpu.dimension_semantics<parallel>, #tpu.dimension_semantics<parallel>], iteration_bounds = array<i64: 2, 1>, scalar_prefetch = 0 : i64, scratch_operands = 0 : i64, tpu.core_type = #tpu.core_type<tc>, window_params = [{transform_indices = @transform_0, window_bounds = array<i64: 1, 16, 384>}, {pipeline_mode = #tpu.pipeline_mode<synchronous>, transform_indices = @transform_1, window_bounds = array<i64: 384, 512>}, {transform_indices = @transform_2, window_bounds = array<i64: 1, 16, 512>}, {transform_indices = @transform_3, window_bounds = array<i64: 1, 1, 1, 512>}, {transform_indices = @transform_4, window_bounds = array<i64: 1, 1, 1, 512>}]} {
    %c0 = arith.constant 0 : index
    %c0_0 = arith.constant 0 : index
    %c0_1 = arith.constant 0 : index
    %0 = vector.load %arg2[%c0, %c0_0, %c0_1] : memref<1x16x384xbf16, #tpu.memory_space<vmem>>, vector<1x16x384xbf16>
    %1 = vector.shape_cast %0 : vector<1x16x384xbf16> to vector<16x384xbf16>
    %c0_2 = arith.constant 0 : index
    %c0_3 = arith.constant 0 : index
    %2 = vector.load %arg3[%c0_2, %c0_3] : memref<384x512xbf16, #tpu.memory_space<vmem>>, vector<384x512xbf16>
    %cst = arith.constant dense<0.000000e+00> : vector<16x512xf32>
    %3 = tpu.matmul %1, %2, %cst {dimension_numbers = #tpu.dot_dimension_numbers<[1], [0], [0], [1], [0, 0, 1, 1], [], []>} : vector<16x384xbf16>, vector<384x512xbf16>, vector<16x512xf32> -> vector<16x512xf32>
    %cst_4 = arith.constant dense<0.000000e+00> : vector<512xf32>
    %4 = vector.multi_reduction <add>, %3, %cst_4 [0] : vector<16x512xf32> to vector<512xf32>
    %5 = vector.shape_cast %4 : vector<512xf32> to vector<1x512xf32>
    %c0_5 = arith.constant 0 : index
    %c0_6 = arith.constant 0 : index
    %c0_7 = arith.constant 0 : index
    %c0_8 = arith.constant 0 : index
    %6 = vector.load %arg5[%c0_5, %c0_6, %c0_7, %c0_8] : memref<1x1x1x512xf32, #tpu.memory_space<vmem>>, vector<1x1x1x512xf32>
    %7 = vector.shape_cast %6 : vector<1x1x1x512xf32> to vector<1x512xf32>
    %8 = vector.shape_cast %5 : vector<1x512xf32> to vector<1x1x1x512xf32>
    tpu.vector_store %arg5[%c0_5, %c0_6, %c0_7, %c0_8], %8 {strides = array<i32>} : memref<1x1x1x512xf32, #tpu.memory_space<vmem>>, vector<1x1x1x512xf32>,
    %9 = arith.mulf %3, %3 : vector<16x512xf32>
    %cst_9 = arith.constant dense<0.000000e+00> : vector<512xf32>
    %10 = vector.multi_reduction <add>, %9, %cst_9 [0] : vector<16x512xf32> to vector<512xf32>
    %11 = vector.shape_cast %10 : vector<512xf32> to vector<1x512xf32>
    %c0_10 = arith.constant 0 : index
    %c0_11 = arith.constant 0 : index
    %c0_12 = arith.constant 0 : index
    %c0_13 = arith.constant 0 : index
    %12 = vector.load %arg6[%c0_10, %c0_11, %c0_12, %c0_13] : memref<1x1x1x512xf32, #tpu.memory_space<vmem>>, vector<1x1x1x512xf32>
    %13 = vector.shape_cast %12 : vector<1x1x1x512xf32> to vector<1x512xf32>
    %14 = vector.shape_cast %11 : vector<1x512xf32> to vector<1x1x1x512xf32>
    tpu.vector_store %arg6[%c0_10, %c0_11, %c0_12, %c0_13], %14 {strides = array<i32>} : memref<1x1x1x512xf32, #tpu.memory_space<vmem>>, vector<1x1x1x512xf32>,
    %15 = arith.truncf %3 : vector<16x512xf32> to vector<16x512xbf16>
    %c0_14 = arith.constant 0 : index
    %c0_15 = arith.constant 0 : index
    %c0_16 = arith.constant 0 : index
    %16 = vector.load %arg4[%c0_14, %c0_15, %c0_16] : memref<1x16x512xbf16, #tpu.memory_space<vmem>>, vector<1x16x512xbf16>
    %17 = vector.shape_cast %16 : vector<1x16x512xbf16> to vector<16x512xbf16>
    %18 = vector.shape_cast %15 : vector<16x512xbf16> to vector<1x16x512xbf16>
    tpu.vector_store %arg4[%c0_14, %c0_15, %c0_16], %18 {strides = array<i32>} : memref<1x16x512xbf16, #tpu.memory_space<vmem>>, vector<1x16x512xbf16>,
    return
  }
  func.func @transform_0(%arg0: i32, %arg1: i32) -> (i32, i32, i32) {
    %c0_i32 = arith.constant 0 : i32
    %c0_i32_0 = arith.constant 0 : i32
    return %arg0, %arg1, %c0_i32 : i32, i32, i32
  }
  func.func @transform_1(%arg0: i32, %arg1: i32) -> (i32, i32) {
    %c0_i32 = arith.constant 0 : i32
    %c0_i32_0 = arith.constant 0 : i32
    %c0_i32_1 = arith.constant 0 : i32
    return %c0_i32, %c0_i32_0 : i32, i32
  }
  func.func @transform_2(%arg0: i32, %arg1: i32) -> (i32, i32, i32) {
    %c0_i32 = arith.constant 0 : i32
    %c0_i32_0 = arith.constant 0 : i32
    return %arg0, %arg1, %c0_i32 : i32, i32, i32
  }
  func.func @transform_3(%arg0: i32, %arg1: i32) -> (i32, i32, i32, i32) {
    %c0_i32 = arith.constant 0 : i32
    %c0_i32_0 = arith.constant 0 : i32
    %c0_i32_1 = arith.constant 0 : i32
    return %arg0, %arg1, %c0_i32, %c0_i32_0 : i32, i32, i32, i32
  }
  func.func @transform_4(%arg0: i32, %arg1: i32) -> (i32, i32, i32, i32) {
    %c0_i32 = arith.constant 0 : i32
    %c0_i32_0 = arith.constant 0 : i32
    %c0_i32_1 = arith.constant 0 : i32
    return %arg0, %arg1, %c0_i32, %c0_i32_0 : i32, i32, i32, i32
  }
}

module attributes {stable_mosaic.version = 11 : i64} {
  func.func @_matmul_stats_kernel(%arg0: i32, %arg1: i32, %arg2: memref<1x64x256xbf16, #tpu.memory_space<vmem>>, %arg3: memref<256x512xbf16, #tpu.memory_space<vmem>>, %arg4: memref<1x64x512xbf16, #tpu.memory_space<vmem>>, %arg5: memref<1x1x1x512xf32, #tpu.memory_space<vmem>>, %arg6: memref<1x1x1x512xf32, #tpu.memory_space<vmem>>) attributes {dimension_semantics = [#tpu.dimension_semantics<parallel>, #tpu.dimension_semantics<parallel>], iteration_bounds = array<i64: 2, 1>, scalar_prefetch = 0 : i64, scratch_operands = 0 : i64, tpu.core_type = #tpu.core_type<tc>, window_params = [{transform_indices = @transform_0, window_bounds = array<i64: 1, 64, 256>}, {pipeline_mode = #tpu.pipeline_mode<synchronous>, transform_indices = @transform_1, window_bounds = array<i64: 256, 512>}, {transform_indices = @transform_2, window_bounds = array<i64: 1, 64, 512>}, {transform_indices = @transform_3, window_bounds = array<i64: 1, 1, 1, 512>}, {transform_indices = @transform_4, window_bounds = array<i64: 1, 1, 1, 512>}]} {
    %c0 = arith.constant 0 : index
    %c0_0 = arith.constant 0 : index
    %c0_1 = arith.constant 0 : index
    %0 = vector.load %arg2[%c0, %c0_0, %c0_1] : memref<1x64x256xbf16, #tpu.memory_space<vmem>>, vector<1x64x256xbf16>
    %1 = vector.shape_cast %0 : vector<1x64x256xbf16> to vector<64x256xbf16>
    %c0_2 = arith.constant 0 : index
    %c0_3 = arith.constant 0 : index
    %2 = vector.load %arg3[%c0_2, %c0_3] : memref<256x512xbf16, #tpu.memory_space<vmem>>, vector<256x512xbf16>
    %cst = arith.constant dense<0.000000e+00> : vector<64x512xf32>
    %3 = tpu.matmul %1, %2, %cst {dimension_numbers = #tpu.dot_dimension_numbers<[1], [0], [0], [1], [0, 0, 1, 1], [], []>} : vector<64x256xbf16>, vector<256x512xbf16>, vector<64x512xf32> -> vector<64x512xf32>
    %cst_4 = arith.constant dense<0.000000e+00> : vector<512xf32>
    %4 = vector.multi_reduction <add>, %3, %cst_4 [0] : vector<64x512xf32> to vector<512xf32>
    %5 = vector.shape_cast %4 : vector<512xf32> to vector<1x512xf32>
    %c0_5 = arith.constant 0 : index
    %c0_6 = arith.constant 0 : index
    %c0_7 = arith.constant 0 : index
    %c0_8 = arith.constant 0 : index
    %6 = vector.load %arg5[%c0_5, %c0_6, %c0_7, %c0_8] : memref<1x1x1x512xf32, #tpu.memory_space<vmem>>, vector<1x1x1x512xf32>
    %7 = vector.shape_cast %6 : vector<1x1x1x512xf32> to vector<1x512xf32>
    %8 = vector.shape_cast %5 : vector<1x512xf32> to vector<1x1x1x512xf32>
    tpu.vector_store %arg5[%c0_5, %c0_6, %c0_7, %c0_8], %8 {strides = array<i32>} : memref<1x1x1x512xf32, #tpu.memory_space<vmem>>, vector<1x1x1x512xf32>,
    %9 = arith.mulf %3, %3 : vector<64x512xf32>
    %cst_9 = arith.constant dense<0.000000e+00> : vector<512xf32>
    %10 = vector.multi_reduction <add>, %9, %cst_9 [0] : vector<64x512xf32> to vector<512xf32>
    %11 = vector.shape_cast %10 : vector<512xf32> to vector<1x512xf32>
    %c0_10 = arith.constant 0 : index
    %c0_11 = arith.constant 0 : index
    %c0_12 = arith.constant 0 : index
    %c0_13 = arith.constant 0 : index
    %12 = vector.load %arg6[%c0_10, %c0_11, %c0_12, %c0_13] : memref<1x1x1x512xf32, #tpu.memory_space<vmem>>, vector<1x1x1x512xf32>
    %13 = vector.shape_cast %12 : vector<1x1x1x512xf32> to vector<1x512xf32>
    %14 = vector.shape_cast %11 : vector<1x512xf32> to vector<1x1x1x512xf32>
    tpu.vector_store %arg6[%c0_10, %c0_11, %c0_12, %c0_13], %14 {strides = array<i32>} : memref<1x1x1x512xf32, #tpu.memory_space<vmem>>, vector<1x1x1x512xf32>,
    %15 = arith.truncf %3 : vector<64x512xf32> to vector<64x512xbf16>
    %c0_14 = arith.constant 0 : index
    %c0_15 = arith.constant 0 : index
    %c0_16 = arith.constant 0 : index
    %16 = vector.load %arg4[%c0_14, %c0_15, %c0_16] : memref<1x64x512xbf16, #tpu.memory_space<vmem>>, vector<1x64x512xbf16>
    %17 = vector.shape_cast %16 : vector<1x64x512xbf16> to vector<64x512xbf16>
    %18 = vector.shape_cast %15 : vector<64x512xbf16> to vector<1x64x512xbf16>
    tpu.vector_store %arg4[%c0_14, %c0_15, %c0_16], %18 {strides = array<i32>} : memref<1x64x512xbf16, #tpu.memory_space<vmem>>, vector<1x64x512xbf16>,
    return
  }
  func.func @transform_0(%arg0: i32, %arg1: i32) -> (i32, i32, i32) {
    %c0_i32 = arith.constant 0 : i32
    %c0_i32_0 = arith.constant 0 : i32
    return %arg0, %arg1, %c0_i32 : i32, i32, i32
  }
  func.func @transform_1(%arg0: i32, %arg1: i32) -> (i32, i32) {
    %c0_i32 = arith.constant 0 : i32
    %c0_i32_0 = arith.constant 0 : i32
    %c0_i32_1 = arith.constant 0 : i32
    return %c0_i32, %c0_i32_0 : i32, i32
  }
  func.func @transform_2(%arg0: i32, %arg1: i32) -> (i32, i32, i32) {
    %c0_i32 = arith.constant 0 : i32
    %c0_i32_0 = arith.constant 0 : i32
    return %arg0, %arg1, %c0_i32 : i32, i32, i32
  }
  func.func @transform_3(%arg0: i32, %arg1: i32) -> (i32, i32, i32, i32) {
    %c0_i32 = arith.constant 0 : i32
    %c0_i32_0 = arith.constant 0 : i32
    %c0_i32_1 = arith.constant 0 : i32
    return %arg0, %arg1, %c0_i32, %c0_i32_0 : i32, i32, i32, i32
  }
  func.func @transform_4(%arg0: i32, %arg1: i32) -> (i32, i32, i32, i32) {
    %c0_i32 = arith.constant 0 : i32
    %c0_i32_0 = arith.constant 0 : i32
    %c0_i32_1 = arith.constant 0 : i32
    return %arg0, %arg1, %c0_i32, %c0_i32_0 : i32, i32, i32, i32
  }
}

module attributes {stable_mosaic.version = 11 : i64} {
  func.func @_affine_act_kernel(%arg0: i32, %arg1: i32, %arg2: memref<1x64x512xbf16, #tpu.memory_space<vmem>>, %arg3: memref<1x1x512xf32, #tpu.memory_space<vmem>>, %arg4: memref<1x1x512xf32, #tpu.memory_space<vmem>>, %arg5: memref<1x64x512xbf16, #tpu.memory_space<vmem>>) attributes {dimension_semantics = [#tpu.dimension_semantics<parallel>, #tpu.dimension_semantics<parallel>], iteration_bounds = array<i64: 2, 1>, scalar_prefetch = 0 : i64, scratch_operands = 0 : i64, tpu.core_type = #tpu.core_type<tc>, window_params = [{transform_indices = @transform_0, window_bounds = array<i64: 1, 64, 512>}, {transform_indices = @transform_1, window_bounds = array<i64: 1, 1, 512>}, {transform_indices = @transform_2, window_bounds = array<i64: 1, 1, 512>}, {transform_indices = @transform_3, window_bounds = array<i64: 1, 64, 512>}]} {
    %c0 = arith.constant 0 : index
    %c0_0 = arith.constant 0 : index
    %c0_1 = arith.constant 0 : index
    %0 = vector.load %arg2[%c0, %c0_0, %c0_1] : memref<1x64x512xbf16, #tpu.memory_space<vmem>>, vector<1x64x512xbf16>
    %1 = vector.shape_cast %0 : vector<1x64x512xbf16> to vector<64x512xbf16>
    %2 = arith.extf %1 : vector<64x512xbf16> to vector<64x512xf32>
    %c0_2 = arith.constant 0 : index
    %c0_3 = arith.constant 0 : index
    %c0_4 = arith.constant 0 : index
    %3 = vector.load %arg3[%c0_2, %c0_3, %c0_4] : memref<1x1x512xf32, #tpu.memory_space<vmem>>, vector<1x1x512xf32>
    %4 = vector.shape_cast %3 : vector<1x1x512xf32> to vector<1x512xf32>
    %5 = vector.broadcast %4 : vector<1x512xf32> to vector<64x512xf32>
    %6 = arith.mulf %2, %5 : vector<64x512xf32>
    %c0_5 = arith.constant 0 : index
    %c0_6 = arith.constant 0 : index
    %c0_7 = arith.constant 0 : index
    %7 = vector.load %arg4[%c0_5, %c0_6, %c0_7] : memref<1x1x512xf32, #tpu.memory_space<vmem>>, vector<1x1x512xf32>
    %8 = vector.shape_cast %7 : vector<1x1x512xf32> to vector<1x512xf32>
    %9 = vector.broadcast %8 : vector<1x512xf32> to vector<64x512xf32>
    %10 = arith.addf %6, %9 : vector<64x512xf32>
    %cst = arith.constant 0.000000e+00 : f32
    %11 = vector.broadcast %cst : f32 to vector<64x512xf32>
    %12 = arith.maximumf %10, %11 : vector<64x512xf32>
    %13 = arith.truncf %12 : vector<64x512xf32> to vector<64x512xbf16>
    %c0_8 = arith.constant 0 : index
    %c0_9 = arith.constant 0 : index
    %c0_10 = arith.constant 0 : index
    %14 = vector.load %arg5[%c0_8, %c0_9, %c0_10] : memref<1x64x512xbf16, #tpu.memory_space<vmem>>, vector<1x64x512xbf16>
    %15 = vector.shape_cast %14 : vector<1x64x512xbf16> to vector<64x512xbf16>
    %16 = vector.shape_cast %13 : vector<64x512xbf16> to vector<1x64x512xbf16>
    tpu.vector_store %arg5[%c0_8, %c0_9, %c0_10], %16 {strides = array<i32>} : memref<1x64x512xbf16, #tpu.memory_space<vmem>>, vector<1x64x512xbf16>,
    return
  }
  func.func @transform_0(%arg0: i32, %arg1: i32) -> (i32, i32, i32) {
    %c0_i32 = arith.constant 0 : i32
    %c0_i32_0 = arith.constant 0 : i32
    return %arg0, %arg1, %c0_i32 : i32, i32, i32
  }
  func.func @transform_1(%arg0: i32, %arg1: i32) -> (i32, i32, i32) {
    %c0_i32 = arith.constant 0 : i32
    %c0_i32_0 = arith.constant 0 : i32
    %c0_i32_1 = arith.constant 0 : i32
    return %arg0, %c0_i32, %c0_i32_0 : i32, i32, i32
  }
  func.func @transform_2(%arg0: i32, %arg1: i32) -> (i32, i32, i32) {
    %c0_i32 = arith.constant 0 : i32
    %c0_i32_0 = arith.constant 0 : i32
    %c0_i32_1 = arith.constant 0 : i32
    return %arg0, %c0_i32, %c0_i32_0 : i32, i32, i32
  }
  func.func @transform_3(%arg0: i32, %arg1: i32) -> (i32, i32, i32) {
    %c0_i32 = arith.constant 0 : i32
    %c0_i32_0 = arith.constant 0 : i32
    return %arg0, %arg1, %c0_i32 : i32, i32, i32
  }
}

module attributes {stable_mosaic.version = 11 : i64} {
  func.func @_matmul_act_kernel(%arg0: i32, %arg1: i32, %arg2: memref<1x256x512xbf16, #tpu.memory_space<vmem>>, %arg3: memref<512x128xbf16, #tpu.memory_space<vmem>>, %arg4: memref<1x256x128xf32, #tpu.memory_space<vmem>>) attributes {dimension_semantics = [#tpu.dimension_semantics<parallel>, #tpu.dimension_semantics<parallel>], iteration_bounds = array<i64: 2, 1>, scalar_prefetch = 0 : i64, scratch_operands = 0 : i64, tpu.core_type = #tpu.core_type<tc>, window_params = [{transform_indices = @transform_0, window_bounds = array<i64: 1, 256, 512>}, {pipeline_mode = #tpu.pipeline_mode<synchronous>, transform_indices = @transform_1, window_bounds = array<i64: 512, 128>}, {transform_indices = @transform_2, window_bounds = array<i64: 1, 256, 128>}]} {
    %c0 = arith.constant 0 : index
    %c0_0 = arith.constant 0 : index
    %c0_1 = arith.constant 0 : index
    %0 = vector.load %arg2[%c0, %c0_0, %c0_1] : memref<1x256x512xbf16, #tpu.memory_space<vmem>>, vector<1x256x512xbf16>
    %1 = vector.shape_cast %0 : vector<1x256x512xbf16> to vector<256x512xbf16>
    %c0_2 = arith.constant 0 : index
    %c0_3 = arith.constant 0 : index
    %2 = vector.load %arg3[%c0_2, %c0_3] : memref<512x128xbf16, #tpu.memory_space<vmem>>, vector<512x128xbf16>
    %cst = arith.constant dense<0.000000e+00> : vector<256x128xf32>
    %3 = tpu.matmul %1, %2, %cst {dimension_numbers = #tpu.dot_dimension_numbers<[1], [0], [0], [1], [0, 0, 1, 1], [], []>} : vector<256x512xbf16>, vector<512x128xbf16>, vector<256x128xf32> -> vector<256x128xf32>
    %4 = math.tanh %3 : vector<256x128xf32>
    %c0_4 = arith.constant 0 : index
    %c0_5 = arith.constant 0 : index
    %c0_6 = arith.constant 0 : index
    %5 = vector.load %arg4[%c0_4, %c0_5, %c0_6] : memref<1x256x128xf32, #tpu.memory_space<vmem>>, vector<1x256x128xf32>
    %6 = vector.shape_cast %5 : vector<1x256x128xf32> to vector<256x128xf32>
    %7 = vector.shape_cast %4 : vector<256x128xf32> to vector<1x256x128xf32>
    tpu.vector_store %arg4[%c0_4, %c0_5, %c0_6], %7 {strides = array<i32>} : memref<1x256x128xf32, #tpu.memory_space<vmem>>, vector<1x256x128xf32>,
    return
  }
  func.func @transform_0(%arg0: i32, %arg1: i32) -> (i32, i32, i32) {
    %c0_i32 = arith.constant 0 : i32
    %c0_i32_0 = arith.constant 0 : i32
    return %arg0, %arg1, %c0_i32 : i32, i32, i32
  }
  func.func @transform_1(%arg0: i32, %arg1: i32) -> (i32, i32) {
    %c0_i32 = arith.constant 0 : i32
    %c0_i32_0 = arith.constant 0 : i32
    %c0_i32_1 = arith.constant 0 : i32
    return %c0_i32, %c0_i32_0 : i32, i32
  }
  func.func @transform_2(%arg0: i32, %arg1: i32) -> (i32, i32, i32) {
    %c0_i32 = arith.constant 0 : i32
    %c0_i32_0 = arith.constant 0 : i32
    return %arg0, %arg1, %c0_i32 : i32, i32, i32
  }
}

</mosaic_0001>

<llo_original>
// kernel: _lambda_.20
$region0: #{_lambda_.20}
  #allocation0 [shape = 'u32[]', space=smem, size = 0x4, offset = 0x4, fixed_abs, tag = 'smem constant byte address 0x4 - core index']
  #allocation1 [shape = 'u32[72,128]{1,0:T(1,128)}', space=vmem, size = 0x9000, scoped, tag = 'internal scratch']
  %s0 = inlined_call_operand.vmem [shape: bf16[2,256,128], index: 0, kind: input, shape index: {}]
  %s1 = inlined_call_operand.vmem [shape: f32[2,1,128], index: 1, kind: input, shape index: {}]
  %s2 = inlined_call_operand.vmem [shape: f32[2,1,128], index: 2, kind: input, shape index: {}]
  %s3 = inlined_call_operand.vmem [shape: bf16[2,256,128], index: 3, kind: output, shape index: {}]
  %s4 = sld [smem:[#allocation0]]
  $region45: #{_lambda_.20} parent=0
    _
  %s6 = ssub.s32 1, %s4
  %s7 = scalar_select 0, %s6, %s4
  loop: start=0, step=1, limit=4
  $region2: #{_lambda_.20} parent=0 // loop_pre_header
    _
  $region3: #{_lambda_.20} parent=0 // loop_header
    %s9 = sphi 0, %s13
    %p10 = scmp.ge.s32.totalorder %s9, 4
    %s16 = sphi 0, %s28
    %s17 = sphi 0, %s24
    %s18 = sphi 0, %s16
    %s19 = sphi 0, %s17
    %s20 = sphi 0, %s18
    %s21 = sphi 0, %s19
    %s33 = sphi 0, %s35
    %s36 = sphi 0, %s33
    %s37 = sphi 0, %s36
    %s53 = sphi 0, %s37
    %s59 = sphi 0, %s61
    %s62 = sphi 0, %s59
    %s63 = sphi 0, %s62
    %s79 = sphi 0, %s63
    %s85 = sphi 0, %s87
    %s88 = sphi 0, %s85
    %s89 = sphi 0, %s88
    %s105 = sphi 0, %s89
    %s113 = sphi 0, %s115
    %s116 = sphi 0, %s113
    %s117 = sphi 0, %s116
    %s133 = sphi 0, %s117
  $region4: #{_lambda_.20} parent=0 // loop_header_branch
    %12 = sbr.rel (%p10) target = $region8
  $region5: #{_lambda_.20} parent=0 // loop_body
    %s14 = ssub.s32 %s9, 1
    %s15 = ssub.s32 %s9, 2
    %s22 = sadd.s32 1, %s17
    %p23 = scmp.ge.s32.totalorder %s22, 1
    %s24 = scalar_select %p23, 0, %s22
    %s25 = sadd.s32 1, %s16
    %s26 = scalar_select %p23, %s25, %s16
    %p27 = scmp.ge.s32.totalorder %s26, 2
    %s28 = scalar_select %p27, 0, %s26
    %s29 = ssub.s32 %s16, %s28
    %s30 = ssub.s32 %s17, %s24
    %s31 = sor.u32 %s29, %s30
    %p32 = scmp.eq.s32.totalorder %s31, 0
    %s34 = sadd.s32 %s33, 1
    %s35 = scalar_select %p32, %s33, %s34
    %p38 = pneg %p32
    %p39 = scmp.eq.s32.totalorder %s9, 1
    %p40 = por %p38, %p39
    %p41 = scmp.ne.s32.totalorder %s33, %s36
    %p42 = scmp.eq.s32.totalorder %s9, 0
    %p43 = por %p41, %p42
    %p44 = scmp.ne.s32.totalorder %s33, %s36
    %p45 = scmp.eq.s32.totalorder %s14, 1
    %p46 = por %p44, %p45
    %p47 = scmp.ne.s32.totalorder %s36, %s37
    %p48 = scmp.eq.s32.totalorder %s14, 0
    %p49 = por %p47, %p48
    %p50 = scmp.ne.s32.totalorder %s36, %s37
    %p51 = scmp.eq.s32.totalorder %s15, 1
    %p52 = por %p50, %p51
    %p54 = scmp.ne.s32.totalorder %s37, %s53
    %p55 = scmp.eq.s32.totalorder %s15, 0
    %p56 = por %p54, %p55
    %s57 = ssub.s32 %s16, %s28
    %p58 = scmp.eq.s32.totalorder %s57, 0
    %s60 = sadd.s32 %s59, 1
    %s61 = scalar_select %p58, %s59, %s60
    %p64 = pneg %p58
    %p65 = scmp.eq.s32.totalorder %s9, 1
    %p66 = por %p64, %p65
    %p67 = scmp.ne.s32.totalorder %s59, %s62
    %p68 = scmp.eq.s32.totalorder %s9, 0
    %p69 = por %p67, %p68
    %p70 = scmp.ne.s32.totalorder %s59, %s62
    %p71 = scmp.eq.s32.totalorder %s14, 1
    %p72 = por %p70, %p71
    %p73 = scmp.ne.s32.totalorder %s62, %s63
    %p74 = scmp.eq.s32.totalorder %s14, 0
    %p75 = por %p73, %p74
    %p76 = scmp.ne.s32.totalorder %s62, %s63
    %p77 = scmp.eq.s32.totalorder %s15, 1
    %p78 = por %p76, %p77
    %p80 = scmp.ne.s32.totalorder %s63, %s79
    %p81 = scmp.eq.s32.totalorder %s15, 0
    %p82 = por %p80, %p81
    %s83 = ssub.s32 %s16, %s28
    %p84 = scmp.eq.s32.totalorder %s83, 0
    %s86 = sadd.s32 %s85, 1
    %s87 = scalar_select %p84, %s85, %s86
    %p90 = pneg %p84
    %p91 = scmp.eq.s32.totalorder %s9, 1
    %p92 = por %p90, %p91
    %p93 = scmp.ne.s32.totalorder %s85, %s88
    %p94 = scmp.eq.s32.totalorder %s9, 0
    %p95 = por %p93, %p94
    %p96 = scmp.ne.s32.totalorder %s85, %s88
    %p97 = scmp.eq.s32.totalorder %s14, 1
    %p98 = por %p96, %p97
    %p99 = scmp.ne.s32.totalorder %s88, %s89
    %p100 = scmp.eq.s32.totalorder %s14, 0
    %p101 = por %p99, %p100
    %p102 = scmp.ne.s32.totalorder %s88, %s89
    %p103 = scmp.eq.s32.totalorder %s15, 1
    %p104 = por %p102, %p103
    %p106 = scmp.ne.s32.totalorder %s89, %s105
    %p107 = scmp.eq.s32.totalorder %s15, 0
    %p108 = por %p106, %p107
    %s109 = ssub.s32 %s16, %s28
    %s110 = ssub.s32 %s17, %s24
    %s111 = sor.u32 %s109, %s110
    %p112 = scmp.eq.s32.totalorder %s111, 0
    %s114 = sadd.s32 %s113, 1
    %s115 = scalar_select %p112, %s113, %s114
    %p118 = pneg %p112
    %p119 = scmp.eq.s32.totalorder %s9, 1
    %p120 = por %p118, %p119
    %p121 = scmp.ne.s32.totalorder %s113, %s116
    %p122 = scmp.eq.s32.totalorder %s9, 0
    %p123 = por %p121, %p122
    %p124 = scmp.ne.s32.totalorder %s113, %s116
    %p125 = scmp.eq.s32.totalorder %s14, 1
    %p126 = por %p124, %p125
    %p127 = scmp.ne.s32.totalorder %s116, %s117
    %p128 = scmp.eq.s32.totalorder %s14, 0
    %p129 = por %p127, %p128
    %p130 = scmp.ne.s32.totalorder %s116, %s117
    %p131 = scmp.eq.s32.totalorder %s15, 1
    %p132 = por %p130, %p131
    %p134 = scmp.ne.s32.totalorder %s117, %s133
    %p135 = scmp.eq.s32.totalorder %s15, 0
    %p136 = por %p134, %p135
    %p137 = scmp.le.s32.totalorder 1, %s9
    %p138 = scmp.lt.s32.totalorder %s9, 3
    %p139 = pnand %p137, %p138
    %p140 = pneg %p139
    // Predicated region
    $region9: #{_lambda_.20} parent=5 // pred_check
      _
    $region10: #{_lambda_.20} parent=5 // pred_check_branch
      %142 = sbr.rel (%p139) target = $region12
    $region11: #{_lambda_.20} parent=5 // pred_region
      %s143 = ssub.s32 %s9, 1
    $region12: #{_lambda_.20} parent=5 // pred_fallthru
      _
    %p144 = scmp.lt.s32.totalorder %s9, 2
    // Predicated region
    $region13: #{_lambda_.20} parent=5 // pred_check
      %p145 = pneg %p144
    $region14: #{_lambda_.20} parent=5 // pred_check_branch
      %147 = sbr.rel (%p145) target = $region16
    $region15: #{_lambda_.20} parent=5 // pred_region
      // Predicated region
      $region17: #{_lambda_.20} parent=15 // pred_check
        %p148 = pneg %p43
      $region18: #{_lambda_.20} parent=15 // pred_check_branch
        %150 = sbr.rel (%p148) target = $region20
      $region19: #{_lambda_.20} parent=15 // pred_region
        %s151 = smul.u32 32, %s17
        %p152 = scmp.lt.s32.totalorder %s16, 1
        %s153 = scalar_select %p152, %s16, 1
        %p154 = scmp.lt.s32.totalorder %s151, 31
        %s155 = scalar_select %p154, %s151, 31
        %s156 = smul.addr %s153, 32
        %s157 = sadd.s32 %s155, %s156
        %s158 = smul.addr %s157, 4
        %s159 = scalar_lea.vmem %s0, %s158
        %s160 = smul.u32 32, %s17
      $region20: #{_lambda_.20} parent=15 // pred_fallthru
        _
      // Predicated region
      $region21: #{_lambda_.20} parent=15 // pred_check
        %p161 = pneg %p69
      $region22: #{_lambda_.20} parent=15 // pred_check_branch
        %163 = sbr.rel (%p161) target = $region24
      $region23: #{_lambda_.20} parent=15 // pred_region
        %p164 = scmp.lt.s32.totalorder %s16, 1
        %s165 = scalar_select %p164, %s16, 1
        %s166 = scalar_lea.vmem %s1, %s165
      $region24: #{_lambda_.20} parent=15 // pred_fallthru
        _
      // Predicated region
      $region25: #{_lambda_.20} parent=15 // pred_check
        %p167 = pneg %p95
      $region26: #{_lambda_.20} parent=15 // pred_check_branch
        %169 = sbr.rel (%p167) target = $region28
      $region27: #{_lambda_.20} parent=15 // pred_region
        %p170 = scmp.lt.s32.totalorder %s16, 1
        %s171 = scalar_select %p170, %s16, 1
        %s172 = scalar_lea.vmem %s2, %s171
      $region28: #{_lambda_.20} parent=15 // pred_fallthru
        _
    $region16: #{_lambda_.20} parent=5 // pred_fallthru
      _
    %p173 = scmp.le.s32.totalorder 1, %s9
    %p174 = scmp.lt.s32.totalorder %s9, 3
    %p175 = pnand %p173, %p174
    %p176 = pneg %p175
    // Predicated region
    $region29: #{_lambda_.20} parent=5 // pred_check
      _
    $region30: #{_lambda_.20} parent=5 // pred_check_branch
      %178 = sbr.rel (%p175) target = $region32
    $region31: #{_lambda_.20} parent=5 // pred_region
      %s179 = ssub.s32 %s9, 1
      %s180 = smul.u32 32, %s19
      %p181 = scmp.lt.s32.totalorder %s18, 1
      %s182 = scalar_select %p181, %s18, 1
      %p183 = scmp.lt.s32.totalorder %s180, 31
      %s184 = scalar_select %p183, %s180, 31
      %s185 = smul.addr %s182, 32
      %s186 = sadd.s32 %s184, %s185
      %s187 = smul.addr %s186, 4
      %s188 = scalar_lea.vmem %s0, %s187
      %p189 = pneg %p49
      %p190 = pneg %p46
      %p191 = scmp.lt.s32.totalorder %s18, 1
      %s192 = scalar_select %p191, %s18, 1
      %s193 = scalar_lea.vmem %s1, %s192
      %p194 = pneg %p75
      %p195 = pneg %p72
      %p196 = scmp.lt.s32.totalorder %s18, 1
      %s197 = scalar_select %p196, %s18, 1
      %s198 = scalar_lea.vmem %s2, %s197
      %p199 = pneg %p101
      %p200 = pneg %p98
      %p201 = pneg %p129
      %p202 = pneg %p126
      %s203 = smul.u32 32, %s19
      %p204 = scmp.lt.s32.totalorder %s18, 1
      %s205 = scalar_select %p204, %s18, 1
      %p206 = scmp.lt.s32.totalorder %s203, 31
      %s207 = scalar_select %p206, %s203, 31
      %s208 = smul.addr %s205, 32
      %s209 = sadd.s32 %s207, %s208
      %s210 = smul.addr %s209, 4
      %s211 = scalar_lea.vmem %s3, %s210
      %s212 = smul.u32 32, %s19
      %p213 = scmp.lt.s32.totalorder %s18, 1
      %s214 = scalar_select %p213, %s18, 1
      %p215 = scmp.lt.s32.totalorder %s212, 31
      %s216 = scalar_select %p215, %s212, 31
      %s217 = smul.addr %s214, 32
      %s218 = sadd.s32 %s216, %s217
      %s219 = smul.addr %s218, 4
      %s220 = scalar_lea.vmem %s0, %s219
      %s221 = smul.u32 32, %s19
      %p222 = scmp.lt.s32.totalorder %s18, 1
      %s223 = scalar_select %p222, %s18, 1
      %s224 = scalar_lea.vmem %s1, %s223
      %p225 = scmp.lt.s32.totalorder %s18, 1
      %s226 = scalar_select %p225, %s18, 1
      %s227 = scalar_lea.vmem %s2, %s226
      %s228 = smul.u32 32, %s19
      %p229 = scmp.lt.s32.totalorder %s18, 1
      %s230 = scalar_select %p229, %s18, 1
      %p231 = scmp.lt.s32.totalorder %s228, 31
      %s232 = scalar_select %p231, %s228, 31
      %s233 = smul.addr %s230, 32
      %s234 = sadd.s32 %s232, %s233
      %s235 = smul.addr %s234, 4
      %s236 = scalar_lea.vmem %s3, %s235
      %s237 = smul.u32 32, %s19
      %v238 = vld [vmem:[%s220] sm:$0xf]
      %v239 = vld [vmem:[%s220 + $0x4] sm:$0xf]
      %v240 = vld [vmem:[%s220 + $0x8] sm:$0xf]
      %v241 = vld [vmem:[%s220 + $0xc] sm:$0xf]
      %v242 = vld [vmem:[%s220 + $0x10] sm:$0xf]
      %v243 = vld [vmem:[%s220 + $0x14] sm:$0xf]
      %v244 = vld [vmem:[%s220 + $0x18] sm:$0xf]
      %v245 = vld [vmem:[%s220 + $0x1c] sm:$0xf]
      %v246 = vld [vmem:[%s220 + $0x20] sm:$0xf]
      %v247 = vld [vmem:[%s220 + $0x24] sm:$0xf]
      %v248 = vld [vmem:[%s220 + $0x28] sm:$0xf]
      %v249 = vld [vmem:[%s220 + $0x2c] sm:$0xf]
      %v250 = vld [vmem:[%s220 + $0x30] sm:$0xf]
      %v251 = vld [vmem:[%s220 + $0x34] sm:$0xf]
      %v252 = vld [vmem:[%s220 + $0x38] sm:$0xf]
      %v253 = vld [vmem:[%s220 + $0x3c] sm:$0xf]
      %v254 = vld [vmem:[%s220 + $0x40] sm:$0xf]
      %v255 = vld [vmem:[%s220 + $0x44] sm:$0xf]
      %v256 = vld [vmem:[%s220 + $0x48] sm:$0xf]
      %v257 = vld [vmem:[%s220 + $0x4c] sm:$0xf]
      %v258 = vld [vmem:[%s220 + $0x50] sm:$0xf]
      %v259 = vld [vmem:[%s220 + $0x54] sm:$0xf]
      %v260 = vld [vmem:[%s220 + $0x58] sm:$0xf]
      %v261 = vld [vmem:[%s220 + $0x5c] sm:$0xf]
      %v262 = vld [vmem:[%s220 + $0x60] sm:$0xf]
      %v263 = vld [vmem:[%s220 + $0x64] sm:$0xf]
      %v264 = vld [vmem:[%s220 + $0x68] sm:$0xf]
      %v265 = vld [vmem:[%s220 + $0x6c] sm:$0xf]
      %v266 = vld [vmem:[%s220 + $0x70] sm:$0xf]
      %v267 = vld [vmem:[%s220 + $0x74] sm:$0xf]
      %v268 = vld [vmem:[%s220 + $0x78] sm:$0xf]
      %v269 = vld [vmem:[%s220 + $0x7c] sm:$0xf]
      %v270 = vunpack.c.l.bf16 %v238
      %v271 = vunpack.c.l.bf16 %v239
      %v272 = vunpack.c.l.bf16 %v240
      %v273 = vunpack.c.l.bf16 %v241
      %v274 = vunpack.c.l.bf16 %v242
      %v275 = vunpack.c.l.bf16 %v243
      %v276 = vunpack.c.l.bf16 %v244
      %v277 = vunpack.c.l.bf16 %v245
      %v278 = vunpack.c.l.bf16 %v246
      %v279 = vunpack.c.l.bf16 %v247
      %v280 = vunpack.c.l.bf16 %v248
      %v281 = vunpack.c.l.bf16 %v249
      %v282 = vunpack.c.l.bf16 %v250
      %v283 = vunpack.c.l.bf16 %v251
      %v284 = vunpack.c.l.bf16 %v252
      %v285 = vunpack.c.l.bf16 %v253
      %v286 = vunpack.c.l.bf16 %v254
      %v287 = vunpack.c.l.bf16 %v255
      %v288 = vunpack.c.l.bf16 %v256
      %v289 = vunpack.c.l.bf16 %v257
      %v290 = vunpack.c.l.bf16 %v258
      %v291 = vunpack.c.l.bf16 %v259
      %v292 = vunpack.c.l.bf16 %v260
      %v293 = vunpack.c.l.bf16 %v261
      %v294 = vunpack.c.l.bf16 %v262
      %v295 = vunpack.c.l.bf16 %v263
      %v296 = vunpack.c.l.bf16 %v264
      %v297 = vunpack.c.l.bf16 %v265
      %v298 = vunpack.c.l.bf16 %v266
      %v299 = vunpack.c.l.bf16 %v267
      %v300 = vunpack.c.l.bf16 %v268
      %v301 = vunpack.c.l.bf16 %v269
      %v302 = vld [vmem:[%s224] sm:$0x1]
      %v304 = vperm.slane %v302, 0
      %v306 = vmul.f32 %v270, %v304
      %v307 = vmul.f32 %v271, %v304
      %v308 = vmul.f32 %v272, %v304
      %v309 = vmul.f32 %v273, %v304
      %v310 = vmul.f32 %v274, %v304
      %v311 = vmul.f32 %v275, %v304
      %v312 = vmul.f32 %v276, %v304
      %v313 = vmul.f32 %v277, %v304
      %v314 = vmul.f32 %v278, %v304
      %v315 = vmul.f32 %v279, %v304
      %v316 = vmul.f32 %v280, %v304
      %v317 = vmul.f32 %v281, %v304
      %v318 = vmul.f32 %v282, %v304
      %v319 = vmul.f32 %v283, %v304
      %v320 = vmul.f32 %v284, %v304
      %v321 = vmul.f32 %v285, %v304
      %v322 = vmul.f32 %v286, %v304
      %v323 = vmul.f32 %v287, %v304
      %v324 = vmul.f32 %v288, %v304
      %v325 = vmul.f32 %v289, %v304
      %v326 = vmul.f32 %v290, %v304
      %v327 = vmul.f32 %v291, %v304
      %v328 = vmul.f32 %v292, %v304
      %v329 = vmul.f32 %v293, %v304
      %v330 = vmul.f32 %v294, %v304
      %v331 = vmul.f32 %v295, %v304
      %v332 = vmul.f32 %v296, %v304
      %v333 = vmul.f32 %v297, %v304
      %v334 = vmul.f32 %v298, %v304
      %v335 = vmul.f32 %v299, %v304
      %v336 = vmul.f32 %v300, %v304
      %v337 = vmul.f32 %v301, %v304
      %v338 = vld [vmem:[%s227] sm:$0x1]
      %v340 = vperm.slane %v338, 0
      %v342 = vadd.f32 %v306, %v340
      %v343 = vadd.f32 %v307, %v340
      %v344 = vadd.f32 %v308, %v340
      %v345 = vadd.f32 %v309, %v340
      %v346 = vadd.f32 %v310, %v340
      %v347 = vadd.f32 %v311, %v340
      %v348 = vadd.f32 %v312, %v340
      %v349 = vadd.f32 %v313, %v340
      %v350 = vadd.f32 %v314, %v340
      %v351 = vadd.f32 %v315, %v340
      %v352 = vadd.f32 %v316, %v340
      %v353 = vadd.f32 %v317, %v340
      %v354 = vadd.f32 %v318, %v340
      %v355 = vadd.f32 %v319, %v340
      %v356 = vadd.f32 %v320, %v340
      %v357 = vadd.f32 %v321, %v340
      %v358 = vadd.f32 %v322, %v340
      %v359 = vadd.f32 %v323, %v340
      %v360 = vadd.f32 %v324, %v340
      %v361 = vadd.f32 %v325, %v340
      %v362 = vadd.f32 %v326, %v340
      %v363 = vadd.f32 %v327, %v340
      %v364 = vadd.f32 %v328, %v340
      %v365 = vadd.f32 %v329, %v340
      %v366 = vadd.f32 %v330, %v340
      %v367 = vadd.f32 %v331, %v340
      %v368 = vadd.f32 %v332, %v340
      %v369 = vadd.f32 %v333, %v340
      %v370 = vadd.f32 %v334, %v340
      %v371 = vadd.f32 %v335, %v340
      %v372 = vadd.f32 %v336, %v340
      %v373 = vadd.f32 %v337, %v340
      %v374 = vmax.f32 %v342, 0.0
      %v375 = vmax.f32 %v343, 0.0
      %v376 = vmax.f32 %v344, 0.0
      %v377 = vmax.f32 %v345, 0.0
      %v378 = vmax.f32 %v346, 0.0
      %v379 = vmax.f32 %v347, 0.0
      %v380 = vmax.f32 %v348, 0.0
      %v381 = vmax.f32 %v349, 0.0
      %v382 = vmax.f32 %v350, 0.0
      %v383 = vmax.f32 %v351, 0.0
      %v384 = vmax.f32 %v352, 0.0
      %v385 = vmax.f32 %v353, 0.0
      %v386 = vmax.f32 %v354, 0.0
      %v387 = vmax.f32 %v355, 0.0
      %v388 = vmax.f32 %v356, 0.0
      %v389 = vmax.f32 %v357, 0.0
      %v390 = vmax.f32 %v358, 0.0
      %v391 = vmax.f32 %v359, 0.0
      %v392 = vmax.f32 %v360, 0.0
      %v393 = vmax.f32 %v361, 0.0
      %v394 = vmax.f32 %v362, 0.0
      %v395 = vmax.f32 %v363, 0.0
      %v396 = vmax.f32 %v364, 0.0
      %v397 = vmax.f32 %v365, 0.0
      %v398 = vmax.f32 %v366, 0.0
      %v399 = vmax.f32 %v367, 0.0
      %v400 = vmax.f32 %v368, 0.0
      %v401 = vmax.f32 %v369, 0.0
      %v402 = vmax.f32 %v370, 0.0
      %v403 = vmax.f32 %v371, 0.0
      %v404 = vmax.f32 %v372, 0.0
      %v405 = vmax.f32 %v373, 0.0
      %v406 = vpack.c.bf16 %v374, %v374
      %v407 = vpack.c.bf16 %v375, %v375
      %v408 = vpack.c.bf16 %v376, %v376
      %v409 = vpack.c.bf16 %v377, %v377
      %v410 = vpack.c.bf16 %v378, %v378
      %v411 = vpack.c.bf16 %v379, %v379
      %v412 = vpack.c.bf16 %v380, %v380
      %v413 = vpack.c.bf16 %v381, %v381
      %v414 = vpack.c.bf16 %v382, %v382
      %v415 = vpack.c.bf16 %v383, %v383
      %v416 = vpack.c.bf16 %v384, %v384
      %v417 = vpack.c.bf16 %v385, %v385
      %v418 = vpack.c.bf16 %v386, %v386
      %v419 = vpack.c.bf16 %v387, %v387
      %v420 = vpack.c.bf16 %v388, %v388
      %v421 = vpack.c.bf16 %v389, %v389
      %v422 = vpack.c.bf16 %v390, %v390
      %v423 = vpack.c.bf16 %v391, %v391
      %v424 = vpack.c.bf16 %v392, %v392
      %v425 = vpack.c.bf16 %v393, %v393
      %v426 = vpack.c.bf16 %v394, %v394
      %v427 = vpack.c.bf16 %v395, %v395
      %v428 = vpack.c.bf16 %v396, %v396
      %v429 = vpack.c.bf16 %v397, %v397
      %v430 = vpack.c.bf16 %v398, %v398
      %v431 = vpack.c.bf16 %v399, %v399
      %v432 = vpack.c.bf16 %v400, %v400
      %v433 = vpack.c.bf16 %v401, %v401
      %v434 = vpack.c.bf16 %v402, %v402
      %v435 = vpack.c.bf16 %v403, %v403
      %v436 = vpack.c.bf16 %v404, %v404
      %v437 = vpack.c.bf16 %v405, %v405
      %438 = vst [vmem:[%s236] sm:$0xf] %v406
      %439 = vst [vmem:[%s236 + $0x4] sm:$0xf] %v407
      %440 = vst [vmem:[%s236 + $0x8] sm:$0xf] %v408
      %441 = vst [vmem:[%s236 + $0xc] sm:$0xf] %v409
      %442 = vst [vmem:[%s236 + $0x10] sm:$0xf] %v410
      %443 = vst [vmem:[%s236 + $0x14] sm:$0xf] %v411
      %444 = vst [vmem:[%s236 + $0x18] sm:$0xf] %v412
      %445 = vst [vmem:[%s236 + $0x1c] sm:$0xf] %v413
      %446 = vst [vmem:[%s236 + $0x20] sm:$0xf] %v414
      %447 = vst [vmem:[%s236 + $0x24] sm:$0xf] %v415
      %448 = vst [vmem:[%s236 + $0x28] sm:$0xf] %v416
      %449 = vst [vmem:[%s236 + $0x2c] sm:$0xf] %v417
      %450 = vst [vmem:[%s236 + $0x30] sm:$0xf] %v418
      %451 = vst [vmem:[%s236 + $0x34] sm:$0xf] %v419
      %452 = vst [vmem:[%s236 + $0x38] sm:$0xf] %v420
      %453 = vst [vmem:[%s236 + $0x3c] sm:$0xf] %v421
      %454 = vst [vmem:[%s236 + $0x40] sm:$0xf] %v422
      %455 = vst [vmem:[%s236 + $0x44] sm:$0xf] %v423
      %456 = vst [vmem:[%s236 + $0x48] sm:$0xf] %v424
      %457 = vst [vmem:[%s236 + $0x4c] sm:$0xf] %v425
      %458 = vst [vmem:[%s236 + $0x50] sm:$0xf] %v426
      %459 = vst [vmem:[%s236 + $0x54] sm:$0xf] %v427
      %460 = vst [vmem:[%s236 + $0x58] sm:$0xf] %v428
      %461 = vst [vmem:[%s236 + $0x5c] sm:$0xf] %v429
      %462 = vst [vmem:[%s236 + $0x60] sm:$0xf] %v430
      %463 = vst [vmem:[%s236 + $0x64] sm:$0xf] %v431
      %464 = vst [vmem:[%s236 + $0x68] sm:$0xf] %v432
      %465 = vst [vmem:[%s236 + $0x6c] sm:$0xf] %v433
      %466 = vst [vmem:[%s236 + $0x70] sm:$0xf] %v434
      %467 = vst [vmem:[%s236 + $0x74] sm:$0xf] %v435
      %468 = vst [vmem:[%s236 + $0x78] sm:$0xf] %v436
      %469 = vst [vmem:[%s236 + $0x7c] sm:$0xf] %v437
      %s470 = smul.u32 32, %s19
      %p471 = scmp.lt.s32.totalorder %s18, 1
      %s472 = scalar_select %p471, %s18, 1
      %p473 = scmp.lt.s32.totalorder %s470, 31
      %s474 = scalar_select %p473, %s470, 31
      %s475 = smul.addr %s472, 32
      %s476 = sadd.s32 %s474, %s475
      %s477 = smul.addr %s476, 4
      %s478 = scalar_lea.vmem %s3, %s477
      // Predicated region
      $region33: #{_lambda_.20} parent=31 // pred_check
        %p479 = pneg %p126
      $region34: #{_lambda_.20} parent=31 // pred_check_branch
        %481 = sbr.rel (%p479) target = $region36
      $region35: #{_lambda_.20} parent=31 // pred_region
        %s482 = smul.u32 32, %s19
      $region36: #{_lambda_.20} parent=31 // pred_fallthru
        _
    $region32: #{_lambda_.20} parent=5 // pred_fallthru
      _
    %p483 = scmp.le.s32.totalorder 2, %s9
    // Predicated region
    $region37: #{_lambda_.20} parent=5 // pred_check
      %p484 = pneg %p483
    $region38: #{_lambda_.20} parent=5 // pred_check_branch
      %486 = sbr.rel (%p484) target = $region40
    $region39: #{_lambda_.20} parent=5 // pred_region
      %s487 = ssub.s32 %s9, 2
      // Predicated region
      $region41: #{_lambda_.20} parent=39 // pred_check
        %p488 = pneg %p132
      $region42: #{_lambda_.20} parent=39 // pred_check_branch
        %490 = sbr.rel (%p488) target = $region44
      $region43: #{_lambda_.20} parent=39 // pred_region
        %s491 = smul.u32 32, %s21
        %p492 = scmp.lt.s32.totalorder %s20, 1
        %s493 = scalar_select %p492, %s20, 1
        %p494 = scmp.lt.s32.totalorder %s491, 31
        %s495 = scalar_select %p494, %s491, 31
        %s496 = smul.addr %s493, 32
        %s497 = sadd.s32 %s495, %s496
        %s498 = smul.addr %s497, 4
        %s499 = scalar_lea.vmem %s3, %s498
      $region44: #{_lambda_.20} parent=39 // pred_fallthru
        _
    $region40: #{_lambda_.20} parent=5 // pred_fallthru
      _
  $region6: #{_lambda_.20} parent=0 // loop_footer
    %s13 = sadd.s32 1, %s9
  $region7: #{_lambda_.20} parent=0 // loop_footer_branch
    %8 = sbr.rel target = $region3
  $region8: #{_lambda_.20} parent=0 // loop_exit
    _

// kernel: _lambda_.19
$region0: #{_lambda_.19}
  #allocation0 [shape = 'u32[]', space=smem, size = 0x4, offset = 0x4, fixed_abs, tag = 'smem constant byte address 0x4 - core index']
  #allocation1 [shape = 'u32[72,128]{1,0:T(1,128)}', space=vmem, size = 0x9000, scoped, tag = 'internal scratch']
  %s0 = inlined_call_operand.vmem [shape: bf16[2,256,512], index: 0, kind: input, shape index: {}]
  %s1 = inlined_call_operand.vmem [shape: bf16[512,128], index: 1, kind: input, shape index: {}]
  %s2 = inlined_call_operand.vmem [shape: bf16[2,256,128], index: 2, kind: output, shape index: {0}]
  %s3 = inlined_call_operand.vmem [shape: f32[2,1,1,128], index: 3, kind: output, shape index: {1}]
  %s4 = inlined_call_operand.vmem [shape: f32[2,1,1,128], index: 4, kind: output, shape index: {2}]
  %5 = xla_tuple %s2, %s3, %s4
  %s6 = sld [smem:[#allocation0]]
  $region57: #{_lambda_.19} parent=0
    _
  %s8 = ssub.s32 1, %s6
  %s9 = scalar_select 0, %s8, %s6
  loop: start=0, step=1, limit=4
  $region2: #{_lambda_.19} parent=0 // loop_pre_header
    _
  $region3: #{_lambda_.19} parent=0 // loop_header
    %s11 = sphi 0, %s15
    %p12 = scmp.ge.s32.totalorder %s11, 4
    %s18 = sphi 0, %s30
    %s19 = sphi 0, %s26
    %s20 = sphi 0, %s18
    %s21 = sphi 0, %s19
    %s22 = sphi 0, %s20
    %s23 = sphi 0, %s21
    %s35 = sphi 0, %s37
    %s38 = sphi 0, %s35
    %s39 = sphi 0, %s38
    %s55 = sphi 0, %s39
    %s59 = sphi 0, %s59
    %s61 = sphi 0, %s59
    %s62 = sphi 0, %s61
    %s76 = sphi 0, %s62
    %s84 = sphi 0, %s86
    %s87 = sphi 0, %s84
    %s88 = sphi 0, %s87
    %s104 = sphi 0, %s88
    %s112 = sphi 0, %s114
    %s115 = sphi 0, %s112
    %s116 = sphi 0, %s115
    %s132 = sphi 0, %s116
    %s140 = sphi 0, %s142
    %s143 = sphi 0, %s140
    %s144 = sphi 0, %s143
    %s160 = sphi 0, %s144
  $region4: #{_lambda_.19} parent=0 // loop_header_branch
    %14 = sbr.rel (%p12) target = $region8
  $region5: #{_lambda_.19} parent=0 // loop_body
    %s16 = ssub.s32 %s11, 1
    %s17 = ssub.s32 %s11, 2
    %s24 = sadd.s32 1, %s19
    %p25 = scmp.ge.s32.totalorder %s24, 1
    %s26 = scalar_select %p25, 0, %s24
    %s27 = sadd.s32 1, %s18
    %s28 = scalar_select %p25, %s27, %s18
    %p29 = scmp.ge.s32.totalorder %s28, 2
    %s30 = scalar_select %p29, 0, %s28
    %s31 = ssub.s32 %s18, %s30
    %s32 = ssub.s32 %s19, %s26
    %s33 = sor.u32 %s31, %s32
    %p34 = scmp.eq.s32.totalorder %s33, 0
    %s36 = sadd.s32 %s35, 1
    %s37 = scalar_select %p34, %s35, %s36
    %p40 = pneg %p34
    %p41 = scmp.eq.s32.totalorder %s11, 1
    %p42 = por %p40, %p41
    %p43 = scmp.ne.s32.totalorder %s35, %s38
    %p44 = scmp.eq.s32.totalorder %s11, 0
    %p45 = por %p43, %p44
    %p46 = scmp.ne.s32.totalorder %s35, %s38
    %p47 = scmp.eq.s32.totalorder %s16, 1
    %p48 = por %p46, %p47
    %p49 = scmp.ne.s32.totalorder %s38, %s39
    %p50 = scmp.eq.s32.totalorder %s16, 0
    %p51 = por %p49, %p50
    %p52 = scmp.ne.s32.totalorder %s38, %s39
    %p53 = scmp.eq.s32.totalorder %s17, 1
    %p54 = por %p52, %p53
    %p56 = scmp.ne.s32.totalorder %s39, %s55
    %p57 = scmp.eq.s32.totalorder %s17, 0
    %p58 = por %p56, %p57
    %s60 = sadd.s32 %s59, 1
    %p63 = scmp.eq.s32.totalorder %s11, 1
    %p64 = scmp.ne.s32.totalorder %s59, %s61
    %p65 = scmp.eq.s32.totalorder %s11, 0
    %p66 = por %p64, %p65
    %p67 = scmp.ne.s32.totalorder %s59, %s61
    %p68 = scmp.eq.s32.totalorder %s16, 1
    %p69 = por %p67, %p68
    %p70 = scmp.ne.s32.totalorder %s61, %s62
    %p71 = scmp.eq.s32.totalorder %s16, 0
    %p72 = por %p70, %p71
    %p73 = scmp.ne.s32.totalorder %s61, %s62
    %p74 = scmp.eq.s32.totalorder %s17, 1
    %p75 = por %p73, %p74
    %p77 = scmp.ne.s32.totalorder %s62, %s76
    %p78 = scmp.eq.s32.totalorder %s17, 0
    %p79 = por %p77, %p78
    %s80 = ssub.s32 %s18, %s30
    %s81 = ssub.s32 %s19, %s26
    %s82 = sor.u32 %s80, %s81
    %p83 = scmp.eq.s32.totalorder %s82, 0
    %s85 = sadd.s32 %s84, 1
    %s86 = scalar_select %p83, %s84, %s85
    %p89 = pneg %p83
    %p90 = scmp.eq.s32.totalorder %s11, 1
    %p91 = por %p89, %p90
    %p92 = scmp.ne.s32.totalorder %s84, %s87
    %p93 = scmp.eq.s32.totalorder %s11, 0
    %p94 = por %p92, %p93
    %p95 = scmp.ne.s32.totalorder %s84, %s87
    %p96 = scmp.eq.s32.totalorder %s16, 1
    %p97 = por %p95, %p96
    %p98 = scmp.ne.s32.totalorder %s87, %s88
    %p99 = scmp.eq.s32.totalorder %s16, 0
    %p100 = por %p98, %p99
    %p101 = scmp.ne.s32.totalorder %s87, %s88
    %p102 = scmp.eq.s32.totalorder %s17, 1
    %p103 = por %p101, %p102
    %p105 = scmp.ne.s32.totalorder %s88, %s104
    %p106 = scmp.eq.s32.totalorder %s17, 0
    %p107 = por %p105, %p106
    %s108 = ssub.s32 %s18, %s30
    %s109 = ssub.s32 %s19, %s26
    %s110 = sor.u32 %s108, %s109
    %p111 = scmp.eq.s32.totalorder %s110, 0
    %s113 = sadd.s32 %s112, 1
    %s114 = scalar_select %p111, %s112, %s113
    %p117 = pneg %p111
    %p118 = scmp.eq.s32.totalorder %s11, 1
    %p119 = por %p117, %p118
    %p120 = scmp.ne.s32.totalorder %s112, %s115
    %p121 = scmp.eq.s32.totalorder %s11, 0
    %p122 = por %p120, %p121
    %p123 = scmp.ne.s32.totalorder %s112, %s115
    %p124 = scmp.eq.s32.totalorder %s16, 1
    %p125 = por %p123, %p124
    %p126 = scmp.ne.s32.totalorder %s115, %s116
    %p127 = scmp.eq.s32.totalorder %s16, 0
    %p128 = por %p126, %p127
    %p129 = scmp.ne.s32.totalorder %s115, %s116
    %p130 = scmp.eq.s32.totalorder %s17, 1
    %p131 = por %p129, %p130
    %p133 = scmp.ne.s32.totalorder %s116, %s132
    %p134 = scmp.eq.s32.totalorder %s17, 0
    %p135 = por %p133, %p134
    %s136 = ssub.s32 %s18, %s30
    %s137 = ssub.s32 %s19, %s26
    %s138 = sor.u32 %s136, %s137
    %p139 = scmp.eq.s32.totalorder %s138, 0
    %s141 = sadd.s32 %s140, 1
    %s142 = scalar_select %p139, %s140, %s141
    %p145 = pneg %p139
    %p146 = scmp.eq.s32.totalorder %s11, 1
    %p147 = por %p145, %p146
    %p148 = scmp.ne.s32.totalorder %s140, %s143
    %p149 = scmp.eq.s32.totalorder %s11, 0
    %p150 = por %p148, %p149
    %p151 = scmp.ne.s32.totalorder %s140, %s143
    %p152 = scmp.eq.s32.totalorder %s16, 1
    %p153 = por %p151, %p152
    %p154 = scmp.ne.s32.totalorder %s143, %s144
    %p155 = scmp.eq.s32.totalorder %s16, 0
    %p156 = por %p154, %p155
    %p157 = scmp.ne.s32.totalorder %s143, %s144
    %p158 = scmp.eq.s32.totalorder %s17, 1
    %p159 = por %p157, %p158
    %p161 = scmp.ne.s32.totalorder %s144, %s160
    %p162 = scmp.eq.s32.totalorder %s17, 0
    %p163 = por %p161, %p162
    %p164 = scmp.le.s32.totalorder 1, %s11
    %p165 = scmp.lt.s32.totalorder %s11, 3
    %p166 = pnand %p164, %p165
    %p167 = pneg %p166
    // Predicated region
    $region9: #{_lambda_.19} parent=5 // pred_check
      _
    $region10: #{_lambda_.19} parent=5 // pred_check_branch
      %169 = sbr.rel (%p166) target = $region12
    $region11: #{_lambda_.19} parent=5 // pred_region
      %s170 = ssub.s32 %s11, 1
      // Predicated region
      $region13: #{_lambda_.19} parent=11 // pred_check
        %p171 = pneg %p72
      $region14: #{_lambda_.19} parent=11 // pred_check_branch
        %173 = sbr.rel (%p171) target = $region16
      $region15: #{_lambda_.19} parent=11 // pred_region
        _
      $region16: #{_lambda_.19} parent=11 // pred_fallthru
        _
    $region12: #{_lambda_.19} parent=5 // pred_fallthru
      _
    %p174 = scmp.lt.s32.totalorder %s11, 2
    // Predicated region
    $region17: #{_lambda_.19} parent=5 // pred_check
      %p175 = pneg %p174
    $region18: #{_lambda_.19} parent=5 // pred_check_branch
      %177 = sbr.rel (%p175) target = $region20
    $region19: #{_lambda_.19} parent=5 // pred_region
      // Predicated region
      $region21: #{_lambda_.19} parent=19 // pred_check
        %p178 = pneg %p45
      $region22: #{_lambda_.19} parent=19 // pred_check_branch
        %180 = sbr.rel (%p178) target = $region24
      $region23: #{_lambda_.19} parent=19 // pred_region
        %s181 = smul.u32 32, %s19
        %p182 = scmp.lt.s32.totalorder %s18, 1
        %s183 = scalar_select %p182, %s18, 1
        %p184 = scmp.lt.s32.totalorder %s181, 31
        %s185 = scalar_select %p184, %s181, 31
        %s186 = smul.addr %s185, 4
        %s187 = smul.addr %s183, 128
        %s188 = sadd.s32 %s186, %s187
        %s189 = smul.addr %s188, 4
        %s190 = scalar_lea.vmem %s0, %s189
        %s191 = smul.u32 32, %s19
      $region24: #{_lambda_.19} parent=19 // pred_fallthru
        _
    $region20: #{_lambda_.19} parent=5 // pred_fallthru
      _
    %p192 = scmp.le.s32.totalorder 1, %s11
    %p193 = scmp.lt.s32.totalorder %s11, 3
    %p194 = pnand %p192, %p193
    %p195 = pneg %p194
    // Predicated region
    $region25: #{_lambda_.19} parent=5 // pred_check
      _
    $region26: #{_lambda_.19} parent=5 // pred_check_branch
      %197 = sbr.rel (%p194) target = $region28
    $region27: #{_lambda_.19} parent=5 // pred_region
      %s198 = ssub.s32 %s11, 1
      %s199 = smul.u32 32, %s21
      %p200 = scmp.lt.s32.totalorder %s20, 1
      %s201 = scalar_select %p200, %s20, 1
      %p202 = scmp.lt.s32.totalorder %s199, 31
      %s203 = scalar_select %p202, %s199, 31
      %s204 = smul.addr %s203, 4
      %s205 = smul.addr %s201, 128
      %s206 = sadd.s32 %s204, %s205
      %s207 = smul.addr %s206, 4
      %s208 = scalar_lea.vmem %s0, %s207
      %p209 = pneg %p51
      %p210 = pneg %p48
      %p211 = pneg %p72
      %p212 = pneg %p69
      %p213 = pneg %p100
      %p214 = pneg %p97
      %s215 = smul.u32 32, %s21
      %p216 = scmp.lt.s32.totalorder %s20, 1
      %s217 = scalar_select %p216, %s20, 1
      %p218 = scmp.lt.s32.totalorder %s215, 31
      %s219 = scalar_select %p218, %s215, 31
      %s220 = smul.addr %s217, 32
      %s221 = sadd.s32 %s219, %s220
      %s222 = smul.addr %s221, 4
      %s223 = scalar_lea.vmem %s2, %s222
      %p224 = pneg %p128
      %p225 = pneg %p125
      %p226 = scmp.lt.s32.totalorder %s20, 1
      %s227 = scalar_select %p226, %s20, 1
      %p228 = scmp.lt.s32.totalorder %s21, 0
      %s229 = scalar_select %p228, %s21, 0
      %s230 = sadd.s32 %s229, %s227
      %s231 = scalar_lea.vmem %s3, %s230
      %p232 = pneg %p156
      %p233 = pneg %p153
      %p234 = scmp.lt.s32.totalorder %s20, 1
      %s235 = scalar_select %p234, %s20, 1
      %p236 = scmp.lt.s32.totalorder %s21, 0
      %s237 = scalar_select %p236, %s21, 0
      %s238 = sadd.s32 %s237, %s235
      %s239 = scalar_lea.vmem %s4, %s238
      %s240 = smul.u32 32, %s21
      %p241 = scmp.lt.s32.totalorder %s20, 1
      %s242 = scalar_select %p241, %s20, 1
      %p243 = scmp.lt.s32.totalorder %s240, 31
      %s244 = scalar_select %p243, %s240, 31
      %s245 = smul.addr %s244, 4
      %s246 = smul.addr %s242, 128
      %s247 = sadd.s32 %s245, %s246
      %s248 = smul.addr %s247, 4
      %s249 = scalar_lea.vmem %s0, %s248
      %s250 = smul.u32 32, %s21
      %s251 = smul.u32 32, %s21
      %p252 = scmp.lt.s32.totalorder %s20, 1
      %s253 = scalar_select %p252, %s20, 1
      %p254 = scmp.lt.s32.totalorder %s251, 31
      %s255 = scalar_select %p254, %s251, 31
      %s256 = smul.addr %s253, 32
      %s257 = sadd.s32 %s255, %s256
      %s258 = smul.addr %s257, 4
      %s259 = scalar_lea.vmem %s2, %s258
      %s260 = smul.u32 32, %s21
      %p261 = scmp.lt.s32.totalorder %s20, 1
      %s262 = scalar_select %p261, %s20, 1
      %p263 = scmp.lt.s32.totalorder %s21, 0
      %s264 = scalar_select %p263, %s21, 0
      %s265 = sadd.s32 %s264, %s262
      %s266 = scalar_lea.vmem %s3, %s265
      %p267 = scmp.lt.s32.totalorder %s20, 1
      %s268 = scalar_select %p267, %s20, 1
      %p269 = scmp.lt.s32.totalorder %s21, 0
      %s270 = scalar_select %p269, %s21, 0
      %s271 = sadd.s32 %s270, %s268
      %s272 = scalar_lea.vmem %s4, %s271
      %v273 = vld [vmem:[%s249] sm:$0xff]
      %v274 = vld [vmem:[%s249 + $0x8] sm:$0xff]
      %v275 = vld [vmem:[%s249 + $0x10] sm:$0xff]
      %v276 = vld [vmem:[%s249 + $0x18] sm:$0xff]
      %v277 = vld [vmem:[%s249 + $0x20] sm:$0xff]
      %v278 = vld [vmem:[%s249 + $0x28] sm:$0xff]
      %v279 = vld [vmem:[%s249 + $0x30] sm:$0xff]
      %v280 = vld [vmem:[%s249 + $0x38] sm:$0xff]
      %v281 = vld [vmem:[%s249 + $0x40] sm:$0xff]
      %v282 = vld [vmem:[%s249 + $0x48] sm:$0xff]
      %v283 = vld [vmem:[%s249 + $0x50] sm:$0xff]
      %v284 = vld [vmem:[%s249 + $0x58] sm:$0xff]
      %v285 = vld [vmem:[%s249 + $0x60] sm:$0xff]
      %v286 = vld [vmem:[%s249 + $0x68] sm:$0xff]
      %v287 = vld [vmem:[%s249 + $0x70] sm:$0xff]
      %v288 = vld [vmem:[%s249 + $0x78] sm:$0xff]
      %v289 = vld [vmem:[%s249 + $0x80] sm:$0xff]
      %v290 = vld [vmem:[%s249 + $0x88] sm:$0xff]
      %v291 = vld [vmem:[%s249 + $0x90] sm:$0xff]
      %v292 = vld [vmem:[%s249 + $0x98] sm:$0xff]
      %v293 = vld [vmem:[%s249 + $0xa0] sm:$0xff]
      %v294 = vld [vmem:[%s249 + $0xa8] sm:$0xff]
      %v295 = vld [vmem:[%s249 + $0xb0] sm:$0xff]
      %v296 = vld [vmem:[%s249 + $0xb8] sm:$0xff]
      %v297 = vld [vmem:[%s249 + $0xc0] sm:$0xff]
      %v298 = vld [vmem:[%s249 + $0xc8] sm:$0xff]
      %v299 = vld [vmem:[%s249 + $0xd0] sm:$0xff]
      %v300 = vld [vmem:[%s249 + $0xd8] sm:$0xff]
      %v301 = vld [vmem:[%s249 + $0xe0] sm:$0xff]
      %v302 = vld [vmem:[%s249 + $0xe8] sm:$0xff]
      %v303 = vld [vmem:[%s249 + $0xf0] sm:$0xff]
      %v304 = vld [vmem:[%s249 + $0xf8] sm:$0xff]
      %v305 = vld [vmem:[%s249 + $0x100] sm:$0xff]
      %v306 = vld [vmem:[%s249 + $0x108] sm:$0xff]
      %v307 = vld [vmem:[%s249 + $0x110] sm:$0xff]
      %v308 = vld [vmem:[%s249 + $0x118] sm:$0xff]
      %v309 = vld [vmem:[%s249 + $0x120] sm:$0xff]
      %v310 = vld [vmem:[%s249 + $0x128] sm:$0xff]
      %v311 = vld [vmem:[%s249 + $0x130] sm:$0xff]
      %v312 = vld [vmem:[%s249 + $0x138] sm:$0xff]
      %v313 = vld [vmem:[%s249 + $0x140] sm:$0xff]
      %v314 = vld [vmem:[%s249 + $0x148] sm:$0xff]
      %v315 = vld [vmem:[%s249 + $0x150] sm:$0xff]
      %v316 = vld [vmem:[%s249 + $0x158] sm:$0xff]
      %v317 = vld [vmem:[%s249 + $0x160] sm:$0xff]
      %v318 = vld [vmem:[%s249 + $0x168] sm:$0xff]
      %v319 = vld [vmem:[%s249 + $0x170] sm:$0xff]
      %v320 = vld [vmem:[%s249 + $0x178] sm:$0xff]
      %v321 = vld [vmem:[%s249 + $0x180] sm:$0xff]
      %v322 = vld [vmem:[%s249 + $0x188] sm:$0xff]
      %v323 = vld [vmem:[%s249 + $0x190] sm:$0xff]
      %v324 = vld [vmem:[%s249 + $0x198] sm:$0xff]
      %v325 = vld [vmem:[%s249 + $0x1a0] sm:$0xff]
      %v326 = vld [vmem:[%s249 + $0x1a8] sm:$0xff]
      %v327 = vld [vmem:[%s249 + $0x1b0] sm:$0xff]
      %v328 = vld [vmem:[%s249 + $0x1b8] sm:$0xff]
      %v329 = vld [vmem:[%s249 + $0x1c0] sm:$0xff]
      %v330 = vld [vmem:[%s249 + $0x1c8] sm:$0xff]
      %v331 = vld [vmem:[%s249 + $0x1d0] sm:$0xff]
      %v332 = vld [vmem:[%s249 + $0x1d8] sm:$0xff]
      %v333 = vld [vmem:[%s249 + $0x1e0] sm:$0xff]
      %v334 = vld [vmem:[%s249 + $0x1e8] sm:$0xff]
      %v335 = vld [vmem:[%s249 + $0x1f0] sm:$0xff]
      %v336 = vld [vmem:[%s249 + $0x1f8] sm:$0xff]
      %v337 = vld [vmem:[%s1] sm:$0xf]
      %v338 = vld [vmem:[%s1 + $0x4] sm:$0xf]
      %v339 = vld [vmem:[%s1 + $0x8] sm:$0xf]
      %v340 = vld [vmem:[%s1 + $0xc] sm:$0xf]
      %v341 = vld [vmem:[%s1 + $0x10] sm:$0xf]
      %v342 = vld [vmem:[%s1 + $0x14] sm:$0xf]
      %v343 = vld [vmem:[%s1 + $0x18] sm:$0xf]
      %v344 = vld [vmem:[%s1 + $0x1c] sm:$0xf]
      %v345 = vld [vmem:[%s1 + $0x20] sm:$0xf]
      %v346 = vld [vmem:[%s1 + $0x24] sm:$0xf]
      %v347 = vld [vmem:[%s1 + $0x28] sm:$0xf]
      %v348 = vld [vmem:[%s1 + $0x2c] sm:$0xf]
      %v349 = vld [vmem:[%s1 + $0x30] sm:$0xf]
      %v350 = vld [vmem:[%s1 + $0x34] sm:$0xf]
      %v351 = vld [vmem:[%s1 + $0x38] sm:$0xf]
      %v352 = vld [vmem:[%s1 + $0x3c] sm:$0xf]
      %v353 = vld [vmem:[%s1 + $0x40] sm:$0xf]
      %v354 = vld [vmem:[%s1 + $0x44] sm:$0xf]
      %v355 = vld [vmem:[%s1 + $0x48] sm:$0xf]
      %v356 = vld [vmem:[%s1 + $0x4c] sm:$0xf]
      %v357 = vld [vmem:[%s1 + $0x50] sm:$0xf]
      %v358 = vld [vmem:[%s1 + $0x54] sm:$0xf]
      %v359 = vld [vmem:[%s1 + $0x58] sm:$0xf]
      %v360 = vld [vmem:[%s1 + $0x5c] sm:$0xf]
      %v361 = vld [vmem:[%s1 + $0x60] sm:$0xf]
      %v362 = vld [vmem:[%s1 + $0x64] sm:$0xf]
      %v363 = vld [vmem:[%s1 + $0x68] sm:$0xf]
      %v364 = vld [vmem:[%s1 + $0x6c] sm:$0xf]
      %v365 = vld [vmem:[%s1 + $0x70] sm:$0xf]
      %v366 = vld [vmem:[%s1 + $0x74] sm:$0xf]
      %v367 = vld [vmem:[%s1 + $0x78] sm:$0xf]
      %v368 = vld [vmem:[%s1 + $0x7c] sm:$0xf]
      %v369 = vld [vmem:[%s1 + $0x80] sm:$0xf]
      %v370 = vld [vmem:[%s1 + $0x84] sm:$0xf]
      %v371 = vld [vmem:[%s1 + $0x88] sm:$0xf]
      %v372 = vld [vmem:[%s1 + $0x8c] sm:$0xf]
      %v373 = vld [vmem:[%s1 + $0x90] sm:$0xf]
      %v374 = vld [vmem:[%s1 + $0x94] sm:$0xf]
      %v375 = vld [vmem:[%s1 + $0x98] sm:$0xf]
      %v376 = vld [vmem:[%s1 + $0x9c] sm:$0xf]
      %v377 = vld [vmem:[%s1 + $0xa0] sm:$0xf]
      %v378 = vld [vmem:[%s1 + $0xa4] sm:$0xf]
      %v379 = vld [vmem:[%s1 + $0xa8] sm:$0xf]
      %v380 = vld [vmem:[%s1 + $0xac] sm:$0xf]
      %v381 = vld [vmem:[%s1 + $0xb0] sm:$0xf]
      %v382 = vld [vmem:[%s1 + $0xb4] sm:$0xf]
      %v383 = vld [vmem:[%s1 + $0xb8] sm:$0xf]
      %v384 = vld [vmem:[%s1 + $0xbc] sm:$0xf]
      %v385 = vld [vmem:[%s1 + $0xc0] sm:$0xf]
      %v386 = vld [vmem:[%s1 + $0xc4] sm:$0xf]
      %v387 = vld [vmem:[%s1 + $0xc8] sm:$0xf]
      %v388 = vld [vmem:[%s1 + $0xcc] sm:$0xf]
      %v389 = vld [vmem:[%s1 + $0xd0] sm:$0xf]
      %v390 = vld [vmem:[%s1 + $0xd4] sm:$0xf]
      %v391 = vld [vmem:[%s1 + $0xd8] sm:$0xf]
      %v392 = vld [vmem:[%s1 + $0xdc] sm:$0xf]
      %v393 = vld [vmem:[%s1 + $0xe0] sm:$0xf]
      %v394 = vld [vmem:[%s1 + $0xe4] sm:$0xf]
      %v395 = vld [vmem:[%s1 + $0xe8] sm:$0xf]
      %v396 = vld [vmem:[%s1 + $0xec] sm:$0xf]
      %v397 = vld [vmem:[%s1 + $0xf0] sm:$0xf]
      %v398 = vld [vmem:[%s1 + $0xf4] sm:$0xf]
      %v399 = vld [vmem:[%s1 + $0xf8] sm:$0xf]
      %v400 = vld [vmem:[%s1 + $0xfc] sm:$0xf]
      %v465 = vunpack.c.l.b16 %v273
      %v466 = vunpack.c.h.b16 %v273
      %v467 = vunpack.c.l.b16 %v274
      %v468 = vunpack.c.h.b16 %v274
      %v469 = vunpack.c.l.b16 %v275
      %v470 = vunpack.c.h.b16 %v275
      %v471 = vunpack.c.l.b16 %v276
      %v472 = vunpack.c.h.b16 %v276
      %v473 = vunpack.c.l.b16 %v277
      %v474 = vunpack.c.h.b16 %v277
      %v475 = vunpack.c.l.b16 %v278
      %v476 = vunpack.c.h.b16 %v278
      %v477 = vunpack.c.l.b16 %v279
      %v478 = vunpack.c.h.b16 %v279
      %v479 = vunpack.c.l.b16 %v280
      %v480 = vunpack.c.h.b16 %v280
      %v481 = vunpack.c.l.b16 %v281
      %v482 = vunpack.c.h.b16 %v281
      %v483 = vunpack.c.l.b16 %v282
      %v484 = vunpack.c.h.b16 %v282
      %v485 = vunpack.c.l.b16 %v283
      %v486 = vunpack.c.h.b16 %v283
      %v487 = vunpack.c.l.b16 %v284
      %v488 = vunpack.c.h.b16 %v284
      %v489 = vunpack.c.l.b16 %v285
      %v490 = vunpack.c.h.b16 %v285
      %v491 = vunpack.c.l.b16 %v286
      %v492 = vunpack.c.h.b16 %v286
      %v493 = vunpack.c.l.b16 %v287
      %v494 = vunpack.c.h.b16 %v287
      %v495 = vunpack.c.l.b16 %v288
      %v496 = vunpack.c.h.b16 %v288
      %v497 = vunpack.c.l.b16 %v289
      %v498 = vunpack.c.h.b16 %v289
      %v499 = vunpack.c.l.b16 %v290
      %v500 = vunpack.c.h.b16 %v290
      %v501 = vunpack.c.l.b16 %v291
      %v502 = vunpack.c.h.b16 %v291
      %v503 = vunpack.c.l.b16 %v292
      %v504 = vunpack.c.h.b16 %v292
      %v505 = vunpack.c.l.b16 %v293
      %v506 = vunpack.c.h.b16 %v293
      %v507 = vunpack.c.l.b16 %v294
      %v508 = vunpack.c.h.b16 %v294
      %v509 = vunpack.c.l.b16 %v295
      %v510 = vunpack.c.h.b16 %v295
      %v511 = vunpack.c.l.b16 %v296
      %v512 = vunpack.c.h.b16 %v296
      %v513 = vunpack.c.l.b16 %v297
      %v514 = vunpack.c.h.b16 %v297
      %v515 = vunpack.c.l.b16 %v298
      %v516 = vunpack.c.h.b16 %v298
      %v517 = vunpack.c.l.b16 %v299
      %v518 = vunpack.c.h.b16 %v299
      %v519 = vunpack.c.l.b16 %v300
      %v520 = vunpack.c.h.b16 %v300
      %v521 = vunpack.c.l.b16 %v301
      %v522 = vunpack.c.h.b16 %v301
      %v523 = vunpack.c.l.b16 %v302
      %v524 = vunpack.c.h.b16 %v302
      %v525 = vunpack.c.l.b16 %v303
      %v526 = vunpack.c.h.b16 %v303
      %v527 = vunpack.c.l.b16 %v304
      %v528 = vunpack.c.h.b16 %v304
      %v529 = vunpack.c.l.b16 %v305
      %v530 = vunpack.c.h.b16 %v305
      %v531 = vunpack.c.l.b16 %v306
      %v532 = vunpack.c.h.b16 %v306
      %v533 = vunpack.c.l.b16 %v307
      %v534 = vunpack.c.h.b16 %v307
      %v535 = vunpack.c.l.b16 %v308
      %v536 = vunpack.c.h.b16 %v308
      %v537 = vunpack.c.l.b16 %v309
      %v538 = vunpack.c.h.b16 %v309
      %v539 = vunpack.c.l.b16 %v310
      %v540 = vunpack.c.h.b16 %v310
      %v541 = vunpack.c.l.b16 %v311
      %v542 = vunpack.c.h.b16 %v311
      %v543 = vunpack.c.l.b16 %v312
      %v544 = vunpack.c.h.b16 %v312
      %v545 = vunpack.c.l.b16 %v313
      %v546 = vunpack.c.h.b16 %v313
      %v547 = vunpack.c.l.b16 %v314
      %v548 = vunpack.c.h.b16 %v314
      %v549 = vunpack.c.l.b16 %v315
      %v550 = vunpack.c.h.b16 %v315
      %v551 = vunpack.c.l.b16 %v316
      %v552 = vunpack.c.h.b16 %v316
      %v553 = vunpack.c.l.b16 %v317
      %v554 = vunpack.c.h.b16 %v317
      %v555 = vunpack.c.l.b16 %v318
      %v556 = vunpack.c.h.b16 %v318
      %v557 = vunpack.c.l.b16 %v319
      %v558 = vunpack.c.h.b16 %v319
      %v559 = vunpack.c.l.b16 %v320
      %v560 = vunpack.c.h.b16 %v320
      %v561 = vunpack.c.l.b16 %v321
      %v562 = vunpack.c.h.b16 %v321
      %v563 = vunpack.c.l.b16 %v322
      %v564 = vunpack.c.h.b16 %v322
      %v565 = vunpack.c.l.b16 %v323
      %v566 = vunpack.c.h.b16 %v323
      %v567 = vunpack.c.l.b16 %v324
      %v568 = vunpack.c.h.b16 %v324
      %v569 = vunpack.c.l.b16 %v325
      %v570 = vunpack.c.h.b16 %v325
      %v571 = vunpack.c.l.b16 %v326
      %v572 = vunpack.c.h.b16 %v326
      %v573 = vunpack.c.l.b16 %v327
      %v574 = vunpack.c.h.b16 %v327
      %v575 = vunpack.c.l.b16 %v328
      %v576 = vunpack.c.h.b16 %v328
      %v577 = vunpack.c.l.b16 %v329
      %v578 = vunpack.c.h.b16 %v329
      %v579 = vunpack.c.l.b16 %v330
      %v580 = vunpack.c.h.b16 %v330
      %v581 = vunpack.c.l.b16 %v331
      %v582 = vunpack.c.h.b16 %v331
      %v583 = vunpack.c.l.b16 %v332
      %v584 = vunpack.c.h.b16 %v332
      %v585 = vunpack.c.l.b16 %v333
      %v586 = vunpack.c.h.b16 %v333
      %v587 = vunpack.c.l.b16 %v334
      %v588 = vunpack.c.h.b16 %v334
      %v589 = vunpack.c.l.b16 %v335
      %v590 = vunpack.c.h.b16 %v335
      %v591 = vunpack.c.l.b16 %v336
      %v592 = vunpack.c.h.b16 %v336
      %v593 = vpack.c.b16 %v469, %v465
      %v594 = vpack.c.b16 %v470, %v466
      %v595 = vpack.c.b16 %v471, %v467
      %v596 = vpack.c.b16 %v472, %v468
      %v597 = vpack.c.b16 %v477, %v473
      %v598 = vpack.c.b16 %v478, %v474
      %v599 = vpack.c.b16 %v479, %v475
      %v600 = vpack.c.b16 %v480, %v476
      %v601 = vpack.c.b16 %v485, %v481
      %v602 = vpack.c.b16 %v486, %v482
      %v603 = vpack.c.b16 %v487, %v483
      %v604 = vpack.c.b16 %v488, %v484
      %v605 = vpack.c.b16 %v493, %v489
      %v606 = vpack.c.b16 %v494, %v490
      %v607 = vpack.c.b16 %v495, %v491
      %v608 = vpack.c.b16 %v496, %v492
      %v609 = vpack.c.b16 %v501, %v497
      %v610 = vpack.c.b16 %v502, %v498
      %v611 = vpack.c.b16 %v503, %v499
      %v612 = vpack.c.b16 %v504, %v500
      %v613 = vpack.c.b16 %v509, %v505
      %v614 = vpack.c.b16 %v510, %v506
      %v615 = vpack.c.b16 %v511, %v507
      %v616 = vpack.c.b16 %v512, %v508
      %v617 = vpack.c.b16 %v517, %v513
      %v618 = vpack.c.b16 %v518, %v514
      %v619 = vpack.c.b16 %v519, %v515
      %v620 = vpack.c.b16 %v520, %v516
      %v621 = vpack.c.b16 %v525, %v521
      %v622 = vpack.c.b16 %v526, %v522
      %v623 = vpack.c.b16 %v527, %v523
      %v624 = vpack.c.b16 %v528, %v524
      %v625 = vpack.c.b16 %v533, %v529
      %v626 = vpack.c.b16 %v534, %v530
      %v627 = vpack.c.b16 %v535, %v531
      %v628 = vpack.c.b16 %v536, %v532
      %v629 = vpack.c.b16 %v541, %v537
      %v630 = vpack.c.b16 %v542, %v538
      %v631 = vpack.c.b16 %v543, %v539
      %v632 = vpack.c.b16 %v544, %v540
      %v633 = vpack.c.b16 %v549, %v545
      %v634 = vpack.c.b16 %v550, %v546
      %v635 = vpack.c.b16 %v551, %v547
      %v636 = vpack.c.b16 %v552, %v548
      %v637 = vpack.c.b16 %v557, %v553
      %v638 = vpack.c.b16 %v558, %v554
      %v639 = vpack.c.b16 %v559, %v555
      %v640 = vpack.c.b16 %v560, %v556
      %v641 = vpack.c.b16 %v565, %v561
      %v642 = vpack.c.b16 %v566, %v562
      %v643 = vpack.c.b16 %v567, %v563
      %v644 = vpack.c.b16 %v568, %v564
      %v645 = vpack.c.b16 %v573, %v569
      %v646 = vpack.c.b16 %v574, %v570
      %v647 = vpack.c.b16 %v575, %v571
      %v648 = vpack.c.b16 %v576, %v572
      %v649 = vpack.c.b16 %v581, %v577
      %v650 = vpack.c.b16 %v582, %v578
      %v651 = vpack.c.b16 %v583, %v579
      %v652 = vpack.c.b16 %v584, %v580
      %v653 = vpack.c.b16 %v589, %v585
      %v654 = vpack.c.b16 %v590, %v586
      %v655 = vpack.c.b16 %v591, %v587
      %v656 = vpack.c.b16 %v592, %v588
      %v785 = vunpack.c.l.b16 %v337
      %v786 = vunpack.c.l.b16 %v338
      %v787 = vunpack.c.l.b16 %v339
      %v788 = vunpack.c.l.b16 %v340
      %v789 = vunpack.c.l.b16 %v341
      %v790 = vunpack.c.l.b16 %v342
      %v791 = vunpack.c.l.b16 %v343
      %v792 = vunpack.c.l.b16 %v344
      %v793 = vunpack.c.l.b16 %v345
      %v794 = vunpack.c.l.b16 %v346
      %v795 = vunpack.c.l.b16 %v347
      %v796 = vunpack.c.l.b16 %v348
      %v797 = vunpack.c.l.b16 %v349
      %v798 = vunpack.c.l.b16 %v350
      %v799 = vunpack.c.l.b16 %v351
      %v800 = vunpack.c.l.b16 %v352
      %v801 = vunpack.c.l.b16 %v353
      %v802 = vunpack.c.l.b16 %v354
      %v803 = vunpack.c.l.b16 %v355
      %v804 = vunpack.c.l.b16 %v356
      %v805 = vunpack.c.l.b16 %v357
      %v806 = vunpack.c.l.b16 %v358
      %v807 = vunpack.c.l.b16 %v359
      %v808 = vunpack.c.l.b16 %v360
      %v809 = vunpack.c.l.b16 %v361
      %v810 = vunpack.c.l.b16 %v362
      %v811 = vunpack.c.l.b16 %v363
      %v812 = vunpack.c.l.b16 %v364
      %v813 = vunpack.c.l.b16 %v365
      %v814 = vunpack.c.l.b16 %v366
      %v815 = vunpack.c.l.b16 %v367
      %v816 = vunpack.c.l.b16 %v368
      %v817 = vunpack.c.l.b16 %v369
      %v818 = vunpack.c.l.b16 %v370
      %v819 = vunpack.c.l.b16 %v371
      %v820 = vunpack.c.l.b16 %v372
      %v821 = vunpack.c.l.b16 %v373
      %v822 = vunpack.c.l.b16 %v374
      %v823 = vunpack.c.l.b16 %v375
      %v824 = vunpack.c.l.b16 %v376
      %v825 = vunpack.c.l.b16 %v377
      %v826 = vunpack.c.l.b16 %v378
      %v827 = vunpack.c.l.b16 %v379
      %v828 = vunpack.c.l.b16 %v380
      %v829 = vunpack.c.l.b16 %v381
      %v830 = vunpack.c.l.b16 %v382
      %v831 = vunpack.c.l.b16 %v383
      %v832 = vunpack.c.l.b16 %v384
      %v833 = vunpack.c.l.b16 %v385
      %v834 = vunpack.c.l.b16 %v386
      %v835 = vunpack.c.l.b16 %v387
      %v836 = vunpack.c.l.b16 %v388
      %v837 = vunpack.c.l.b16 %v389
      %v838 = vunpack.c.l.b16 %v390
      %v839 = vunpack.c.l.b16 %v391
      %v840 = vunpack.c.l.b16 %v392
      %v841 = vunpack.c.l.b16 %v393
      %v842 = vunpack.c.l.b16 %v394
      %v843 = vunpack.c.l.b16 %v395
      %v844 = vunpack.c.l.b16 %v396
      %v845 = vunpack.c.l.b16 %v397
      %v846 = vunpack.c.l.b16 %v398
      %v847 = vunpack.c.l.b16 %v399
      %v848 = vunpack.c.l.b16 %v400
      %v849 = vpack.c.b16 %v786, %v785
      %v850 = vpack.c.b16 %v788, %v787
      %v851 = vpack.c.b16 %v790, %v789
      %v852 = vpack.c.b16 %v792, %v791
      %v853 = vpack.c.b16 %v794, %v793
      %v854 = vpack.c.b16 %v796, %v795
      %v855 = vpack.c.b16 %v798, %v797
      %v856 = vpack.c.b16 %v800, %v799
      %v857 = vpack.c.b16 %v802, %v801
      %v858 = vpack.c.b16 %v804, %v803
      %v859 = vpack.c.b16 %v806, %v805
      %v860 = vpack.c.b16 %v808, %v807
      %v861 = vpack.c.b16 %v810, %v809
      %v862 = vpack.c.b16 %v812, %v811
      %v863 = vpack.c.b16 %v814, %v813
      %v864 = vpack.c.b16 %v816, %v815
      %v865 = vpack.c.b16 %v818, %v817
      %v866 = vpack.c.b16 %v820, %v819
      %v867 = vpack.c.b16 %v822, %v821
      %v868 = vpack.c.b16 %v824, %v823
      %v869 = vpack.c.b16 %v826, %v825
      %v870 = vpack.c.b16 %v828, %v827
      %v871 = vpack.c.b16 %v830, %v829
      %v872 = vpack.c.b16 %v832, %v831
      %v873 = vpack.c.b16 %v834, %v833
      %v874 = vpack.c.b16 %v836, %v835
      %v875 = vpack.c.b16 %v838, %v837
      %v876 = vpack.c.b16 %v840, %v839
      %v877 = vpack.c.b16 %v842, %v841
      %v878 = vpack.c.b16 %v844, %v843
      %v879 = vpack.c.b16 %v846, %v845
      %v880 = vpack.c.b16 %v848, %v847
      %913 = vmatpush.bf16.msra.mxu0 %v856
      %914 = vmatpush.bf16.msra.mxu0 %v855
      %915 = vmatpush.bf16.msra.mxu0 %v854
      %916 = vmatpush.bf16.msra.mxu0 %v853
      %917 = vmatpush.bf16.msra.mxu0 %v852
      %918 = vmatpush.bf16.msra.mxu0 %v851
      %919 = vmatpush.bf16.msra.mxu0 %v850
      %920 = vmatpush.bf16.msra.mxu0 %v849
      %921 = vmatmul.bf16.gmra.mxu0 %v593
      %v922 = vpop.f32.mrf.mxu0
      %v923 = vadd.f32 0.0, %v922
      %v924 = vpop.f32.mrf.mxu0
      %v925 = vadd.f32 0.0, %v924
      %926 = vmatmul.bf16.gmra.mxu0 %v597
      %v927 = vpop.f32.mrf.mxu0
      %v928 = vadd.f32 0.0, %v927
      %v929 = vpop.f32.mrf.mxu0
      %v930 = vadd.f32 0.0, %v929
      %931 = vmatmul.bf16.gmra.mxu0 %v601
      %v932 = vpop.f32.mrf.mxu0
      %v933 = vadd.f32 0.0, %v932
      %v934 = vpop.f32.mrf.mxu0
      %v935 = vadd.f32 0.0, %v934
      %936 = vmatmul.bf16.gmra.mxu0 %v605
      %v937 = vpop.f32.mrf.mxu0
      %v938 = vadd.f32 0.0, %v937
      %v939 = vpop.f32.mrf.mxu0
      %v940 = vadd.f32 0.0, %v939
      %941 = vmatmul.bf16.gmra.mxu0 %v609
      %v942 = vpop.f32.mrf.mxu0
      %v943 = vadd.f32 0.0, %v942
      %v944 = vpop.f32.mrf.mxu0
      %v945 = vadd.f32 0.0, %v944
      %946 = vmatmul.bf16.gmra.mxu0 %v613
      %v947 = vpop.f32.mrf.mxu0
      %v948 = vadd.f32 0.0, %v947
      %v949 = vpop.f32.mrf.mxu0
      %v950 = vadd.f32 0.0, %v949
      %951 = vmatmul.bf16.gmra.mxu0 %v617
      %v952 = vpop.f32.mrf.mxu0
      %v953 = vadd.f32 0.0, %v952
      %v954 = vpop.f32.mrf.mxu0
      %v955 = vadd.f32 0.0, %v954
      %956 = vmatmul.bf16.gmra.mxu0 %v621
      %v957 = vpop.f32.mrf.mxu0
      %v958 = vadd.f32 0.0, %v957
      %v959 = vpop.f32.mrf.mxu0
      %v960 = vadd.f32 0.0, %v959
      %961 = vmatmul.bf16.gmra.mxu0 %v625
      %v962 = vpop.f32.mrf.mxu0
      %v963 = vadd.f32 0.0, %v962
      %v964 = vpop.f32.mrf.mxu0
      %v965 = vadd.f32 0.0, %v964
      %966 = vmatmul.bf16.gmra.mxu0 %v629
      %v967 = vpop.f32.mrf.mxu0
      %v968 = vadd.f32 0.0, %v967
      %v969 = vpop.f32.mrf.mxu0
      %v970 = vadd.f32 0.0, %v969
      %971 = vmatmul.bf16.gmra.mxu0 %v633
      %v972 = vpop.f32.mrf.mxu0
      %v973 = vadd.f32 0.0, %v972
      %v974 = vpop.f32.mrf.mxu0
      %v975 = vadd.f32 0.0, %v974
      %976 = vmatmul.bf16.gmra.mxu0 %v637
      %v977 = vpop.f32.mrf.mxu0
      %v978 = vadd.f32 0.0, %v977
      %v979 = vpop.f32.mrf.mxu0
      %v980 = vadd.f32 0.0, %v979
      %981 = vmatmul.bf16.gmra.mxu0 %v641
      %v982 = vpop.f32.mrf.mxu0
      %v983 = vadd.f32 0.0, %v982
      %v984 = vpop.f32.mrf.mxu0
      %v985 = vadd.f32 0.0, %v984
      %986 = vmatmul.bf16.gmra.mxu0 %v645
      %v987 = vpop.f32.mrf.mxu0
      %v988 = vadd.f32 0.0, %v987
      %v989 = vpop.f32.mrf.mxu0
      %v990 = vadd.f32 0.0, %v989
      %991 = vmatmul.bf16.gmra.mxu0 %v649
      %v992 = vpop.f32.mrf.mxu0
      %v993 = vadd.f32 0.0, %v992
      %v994 = vpop.f32.mrf.mxu0
      %v995 = vadd.f32 0.0, %v994
      %996 = vmatmul.bf16.gmra.mxu0 %v653
      %v997 = vpop.f32.mrf.mxu0
      %v998 = vadd.f32 0.0, %v997
      %v999 = vpop.f32.mrf.mxu0
      %v1000 = vadd.f32 0.0, %v999
      %1001 = vdwg.mxu0
      %1002 = vmatpush.bf16.msra.mxu0 %v864
      %1003 = vmatpush.bf16.msra.mxu0 %v863
      %1004 = vmatpush.bf16.msra.mxu0 %v862
      %1005 = vmatpush.bf16.msra.mxu0 %v861
      %1006 = vmatpush.bf16.msra.mxu0 %v860
      %1007 = vmatpush.bf16.msra.mxu0 %v859
      %1008 = vmatpush.bf16.msra.mxu0 %v858
      %1009 = vmatpush.bf16.msra.mxu0 %v857
      %1010 = vmatmul.bf16.gmra.mxu0 %v594
      %v1011 = vpop.f32.mrf.mxu0
      %v1012 = vadd.f32 %v923, %v1011
      %v1013 = vpop.f32.mrf.mxu0
      %v1014 = vadd.f32 %v925, %v1013
      %1015 = vmatmul.bf16.gmra.mxu0 %v598
      %v1016 = vpop.f32.mrf.mxu0
      %v1017 = vadd.f32 %v928, %v1016
      %v1018 = vpop.f32.mrf.mxu0
      %v1019 = vadd.f32 %v930, %v1018
      %1020 = vmatmul.bf16.gmra.mxu0 %v602
      %v1021 = vpop.f32.mrf.mxu0
      %v1022 = vadd.f32 %v933, %v1021
      %v1023 = vpop.f32.mrf.mxu0
      %v1024 = vadd.f32 %v935, %v1023
      %1025 = vmatmul.bf16.gmra.mxu0 %v606
      %v1026 = vpop.f32.mrf.mxu0
      %v1027 = vadd.f32 %v938, %v1026
      %v1028 = vpop.f32.mrf.mxu0
      %v1029 = vadd.f32 %v940, %v1028
      %1030 = vmatmul.bf16.gmra.mxu0 %v610
      %v1031 = vpop.f32.mrf.mxu0
      %v1032 = vadd.f32 %v943, %v1031
      %v1033 = vpop.f32.mrf.mxu0
      %v1034 = vadd.f32 %v945, %v1033
      %1035 = vmatmul.bf16.gmra.mxu0 %v614
      %v1036 = vpop.f32.mrf.mxu0
      %v1037 = vadd.f32 %v948, %v1036
      %v1038 = vpop.f32.mrf.mxu0
      %v1039 = vadd.f32 %v950, %v1038
      %1040 = vmatmul.bf16.gmra.mxu0 %v618
      %v1041 = vpop.f32.mrf.mxu0
      %v1042 = vadd.f32 %v953, %v1041
      %v1043 = vpop.f32.mrf.mxu0
      %v1044 = vadd.f32 %v955, %v1043
      %1045 = vmatmul.bf16.gmra.mxu0 %v622
      %v1046 = vpop.f32.mrf.mxu0
      %v1047 = vadd.f32 %v958, %v1046
      %v1048 = vpop.f32.mrf.mxu0
      %v1049 = vadd.f32 %v960, %v1048
      %1050 = vmatmul.bf16.gmra.mxu0 %v626
      %v1051 = vpop.f32.mrf.mxu0
      %v1052 = vadd.f32 %v963, %v1051
      %v1053 = vpop.f32.mrf.mxu0
      %v1054 = vadd.f32 %v965, %v1053
      %1055 = vmatmul.bf16.gmra.mxu0 %v630
      %v1056 = vpop.f32.mrf.mxu0
      %v1057 = vadd.f32 %v968, %v1056
      %v1058 = vpop.f32.mrf.mxu0
      %v1059 = vadd.f32 %v970, %v1058
      %1060 = vmatmul.bf16.gmra.mxu0 %v634
      %v1061 = vpop.f32.mrf.mxu0
      %v1062 = vadd.f32 %v973, %v1061
      %v1063 = vpop.f32.mrf.mxu0
      %v1064 = vadd.f32 %v975, %v1063
      %1065 = vmatmul.bf16.gmra.mxu0 %v638
      %v1066 = vpop.f32.mrf.mxu0
      %v1067 = vadd.f32 %v978, %v1066
      %v1068 = vpop.f32.mrf.mxu0
      %v1069 = vadd.f32 %v980, %v1068
      %1070 = vmatmul.bf16.gmra.mxu0 %v642
      %v1071 = vpop.f32.mrf.mxu0
      %v1072 = vadd.f32 %v983, %v1071
      %v1073 = vpop.f32.mrf.mxu0
      %v1074 = vadd.f32 %v985, %v1073
      %1075 = vmatmul.bf16.gmra.mxu0 %v646
      %v1076 = vpop.f32.mrf.mxu0
      %v1077 = vadd.f32 %v988, %v1076
      %v1078 = vpop.f32.mrf.mxu0
      %v1079 = vadd.f32 %v990, %v1078
      %1080 = vmatmul.bf16.gmra.mxu0 %v650
      %v1081 = vpop.f32.mrf.mxu0
      %v1082 = vadd.f32 %v993, %v1081
      %v1083 = vpop.f32.mrf.mxu0
      %v1084 = vadd.f32 %v995, %v1083
      %1085 = vmatmul.bf16.gmra.mxu0 %v654
      %v1086 = vpop.f32.mrf.mxu0
      %v1087 = vadd.f32 %v998, %v1086
      %v1088 = vpop.f32.mrf.mxu0
      %v1089 = vadd.f32 %v1000, %v1088
      %1090 = vdwg.mxu0
      %1091 = vmatpush.bf16.msra.mxu0 %v872
      %1092 = vmatpush.bf16.msra.mxu0 %v871
      %1093 = vmatpush.bf16.msra.mxu0 %v870
      %1094 = vmatpush.bf16.msra.mxu0 %v869
      %1095 = vmatpush.bf16.msra.mxu0 %v868
      %1096 = vmatpush.bf16.msra.mxu0 %v867
      %1097 = vmatpush.bf16.msra.mxu0 %v866
      %1098 = vmatpush.bf16.msra.mxu0 %v865
      %1099 = vmatmul.bf16.gmra.mxu0 %v595
      %v1100 = vpop.f32.mrf.mxu0
      %v1101 = vadd.f32 %v1012, %v1100
      %v1102 = vpop.f32.mrf.mxu0
      %v1103 = vadd.f32 %v1014, %v1102
      %1104 = vmatmul.bf16.gmra.mxu0 %v599
      %v1105 = vpop.f32.mrf.mxu0
      %v1106 = vadd.f32 %v1017, %v1105
      %v1107 = vpop.f32.mrf.mxu0
      %v1108 = vadd.f32 %v1019, %v1107
      %1109 = vmatmul.bf16.gmra.mxu0 %v603
      %v1110 = vpop.f32.mrf.mxu0
      %v1111 = vadd.f32 %v1022, %v1110
      %v1112 = vpop.f32.mrf.mxu0
      %v1113 = vadd.f32 %v1024, %v1112
      %1114 = vmatmul.bf16.gmra.mxu0 %v607
      %v1115 = vpop.f32.mrf.mxu0
      %v1116 = vadd.f32 %v1027, %v1115
      %v1117 = vpop.f32.mrf.mxu0
      %v1118 = vadd.f32 %v1029, %v1117
      %1119 = vmatmul.bf16.gmra.mxu0 %v611
      %v1120 = vpop.f32.mrf.mxu0
      %v1121 = vadd.f32 %v1032, %v1120
      %v1122 = vpop.f32.mrf.mxu0
      %v1123 = vadd.f32 %v1034, %v1122
      %1124 = vmatmul.bf16.gmra.mxu0 %v615
      %v1125 = vpop.f32.mrf.mxu0
      %v1126 = vadd.f32 %v1037, %v1125
      %v1127 = vpop.f32.mrf.mxu0
      %v1128 = vadd.f32 %v1039, %v1127
      %1129 = vmatmul.bf16.gmra.mxu0 %v619
      %v1130 = vpop.f32.mrf.mxu0
      %v1131 = vadd.f32 %v1042, %v1130
      %v1132 = vpop.f32.mrf.mxu0
      %v1133 = vadd.f32 %v1044, %v1132
      %1134 = vmatmul.bf16.gmra.mxu0 %v623
      %v1135 = vpop.f32.mrf.mxu0
      %v1136 = vadd.f32 %v1047, %v1135
      %v1137 = vpop.f32.mrf.mxu0
      %v1138 = vadd.f32 %v1049, %v1137
      %1139 = vmatmul.bf16.gmra.mxu0 %v627
      %v1140 = vpop.f32.mrf.mxu0
      %v1141 = vadd.f32 %v1052, %v1140
      %v1142 = vpop.f32.mrf.mxu0
      %v1143 = vadd.f32 %v1054, %v1142
      %1144 = vmatmul.bf16.gmra.mxu0 %v631
      %v1145 = vpop.f32.mrf.mxu0
      %v1146 = vadd.f32 %v1057, %v1145
      %v1147 = vpop.f32.mrf.mxu0
      %v1148 = vadd.f32 %v1059, %v1147
      %1149 = vmatmul.bf16.gmra.mxu0 %v635
      %v1150 = vpop.f32.mrf.mxu0
      %v1151 = vadd.f32 %v1062, %v1150
      %v1152 = vpop.f32.mrf.mxu0
      %v1153 = vadd.f32 %v1064, %v1152
      %1154 = vmatmul.bf16.gmra.mxu0 %v639
      %v1155 = vpop.f32.mrf.mxu0
      %v1156 = vadd.f32 %v1067, %v1155
      %v1157 = vpop.f32.mrf.mxu0
      %v1158 = vadd.f32 %v1069, %v1157
      %1159 = vmatmul.bf16.gmra.mxu0 %v643
      %v1160 = vpop.f32.mrf.mxu0
      %v1161 = vadd.f32 %v1072, %v1160
      %v1162 = vpop.f32.mrf.mxu0
      %v1163 = vadd.f32 %v1074, %v1162
      %1164 = vmatmul.bf16.gmra.mxu0 %v647
      %v1165 = vpop.f32.mrf.mxu0
      %v1166 = vadd.f32 %v1077, %v1165
      %v1167 = vpop.f32.mrf.mxu0
      %v1168 = vadd.f32 %v1079, %v1167
      %1169 = vmatmul.bf16.gmra.mxu0 %v651
      %v1170 = vpop.f32.mrf.mxu0
      %v1171 = vadd.f32 %v1082, %v1170
      %v1172 = vpop.f32.mrf.mxu0
      %v1173 = vadd.f32 %v1084, %v1172
      %1174 = vmatmul.bf16.gmra.mxu0 %v655
      %v1175 = vpop.f32.mrf.mxu0
      %v1176 = vadd.f32 %v1087, %v1175
      %v1177 = vpop.f32.mrf.mxu0
      %v1178 = vadd.f32 %v1089, %v1177
      %1179 = vdwg.mxu0
      %1180 = vmatpush.bf16.msra.mxu0 %v880
      %1181 = vmatpush.bf16.msra.mxu0 %v879
      %1182 = vmatpush.bf16.msra.mxu0 %v878
      %1183 = vmatpush.bf16.msra.mxu0 %v877
      %1184 = vmatpush.bf16.msra.mxu0 %v876
      %1185 = vmatpush.bf16.msra.mxu0 %v875
      %1186 = vmatpush.bf16.msra.mxu0 %v874
      %1187 = vmatpush.bf16.msra.mxu0 %v873
      %1188 = vmatmul.bf16.gmra.mxu0 %v596
      %v1189 = vpop.f32.mrf.mxu0
      %v1190 = vadd.f32 %v1101, %v1189
      %v1191 = vpop.f32.mrf.mxu0
      %v1192 = vadd.f32 %v1103, %v1191
      %1193 = vmatmul.bf16.gmra.mxu0 %v600
      %v1194 = vpop.f32.mrf.mxu0
      %v1195 = vadd.f32 %v1106, %v1194
      %v1196 = vpop.f32.mrf.mxu0
      %v1197 = vadd.f32 %v1108, %v1196
      %1198 = vmatmul.bf16.gmra.mxu0 %v604
      %v1199 = vpop.f32.mrf.mxu0
      %v1200 = vadd.f32 %v1111, %v1199
      %v1201 = vpop.f32.mrf.mxu0
      %v1202 = vadd.f32 %v1113, %v1201
      %1203 = vmatmul.bf16.gmra.mxu0 %v608
      %v1204 = vpop.f32.mrf.mxu0
      %v1205 = vadd.f32 %v1116, %v1204
      %v1206 = vpop.f32.mrf.mxu0
      %v1207 = vadd.f32 %v1118, %v1206
      %1208 = vmatmul.bf16.gmra.mxu0 %v612
      %v1209 = vpop.f32.mrf.mxu0
      %v1210 = vadd.f32 %v1121, %v1209
      %v1211 = vpop.f32.mrf.mxu0
      %v1212 = vadd.f32 %v1123, %v1211
      %1213 = vmatmul.bf16.gmra.mxu0 %v616
      %v1214 = vpop.f32.mrf.mxu0
      %v1215 = vadd.f32 %v1126, %v1214
      %v1216 = vpop.f32.mrf.mxu0
      %v1217 = vadd.f32 %v1128, %v1216
      %1218 = vmatmul.bf16.gmra.mxu0 %v620
      %v1219 = vpop.f32.mrf.mxu0
      %v1220 = vadd.f32 %v1131, %v1219
      %v1221 = vpop.f32.mrf.mxu0
      %v1222 = vadd.f32 %v1133, %v1221
      %1223 = vmatmul.bf16.gmra.mxu0 %v624
      %v1224 = vpop.f32.mrf.mxu0
      %v1225 = vadd.f32 %v1136, %v1224
      %v1226 = vpop.f32.mrf.mxu0
      %v1227 = vadd.f32 %v1138, %v1226
      %1228 = vmatmul.bf16.gmra.mxu0 %v628
      %v1229 = vpop.f32.mrf.mxu0
      %v1230 = vadd.f32 %v1141, %v1229
      %v1231 = vpop.f32.mrf.mxu0
      %v1232 = vadd.f32 %v1143, %v1231
      %1233 = vmatmul.bf16.gmra.mxu0 %v632
      %v1234 = vpop.f32.mrf.mxu0
      %v1235 = vadd.f32 %v1146, %v1234
      %v1236 = vpop.f32.mrf.mxu0
      %v1237 = vadd.f32 %v1148, %v1236
      %1238 = vmatmul.bf16.gmra.mxu0 %v636
      %v1239 = vpop.f32.mrf.mxu0
      %v1240 = vadd.f32 %v1151, %v1239
      %v1241 = vpop.f32.mrf.mxu0
      %v1242 = vadd.f32 %v1153, %v1241
      %1243 = vmatmul.bf16.gmra.mxu0 %v640
      %v1244 = vpop.f32.mrf.mxu0
      %v1245 = vadd.f32 %v1156, %v1244
      %v1246 = vpop.f32.mrf.mxu0
      %v1247 = vadd.f32 %v1158, %v1246
      %1248 = vmatmul.bf16.gmra.mxu0 %v644
      %v1249 = vpop.f32.mrf.mxu0
      %v1250 = vadd.f32 %v1161, %v1249
      %v1251 = vpop.f32.mrf.mxu0
      %v1252 = vadd.f32 %v1163, %v1251
      %1253 = vmatmul.bf16.gmra.mxu0 %v648
      %v1254 = vpop.f32.mrf.mxu0
      %v1255 = vadd.f32 %v1166, %v1254
      %v1256 = vpop.f32.mrf.mxu0
      %v1257 = vadd.f32 %v1168, %v1256
      %1258 = vmatmul.bf16.gmra.mxu0 %v652
      %v1259 = vpop.f32.mrf.mxu0
      %v1260 = vadd.f32 %v1171, %v1259
      %v1261 = vpop.f32.mrf.mxu0
      %v1262 = vadd.f32 %v1173, %v1261
      %1263 = vmatmul.bf16.gmra.mxu0 %v656
      %v1264 = vpop.f32.mrf.mxu0
      %v1265 = vadd.f32 %v1176, %v1264
      %v1266 = vpop.f32.mrf.mxu0
      %v1267 = vadd.f32 %v1178, %v1266
      %1268 = vdwg.mxu0
      %v1269 = vadd.f32 %v1190, %v1192
      %v1270 = vadd.f32 %v1269, %v1195
      %v1271 = vadd.f32 %v1270, %v1197
      %v1272 = vadd.f32 %v1271, %v1200
      %v1273 = vadd.f32 %v1272, %v1202
      %v1274 = vadd.f32 %v1273, %v1205
      %v1275 = vadd.f32 %v1274, %v1207
      %v1276 = vadd.f32 %v1275, %v1210
      %v1277 = vadd.f32 %v1276, %v1212
      %v1278 = vadd.f32 %v1277, %v1215
      %v1279 = vadd.f32 %v1278, %v1217
      %v1280 = vadd.f32 %v1279, %v1220
      %v1281 = vadd.f32 %v1280, %v1222
      %v1282 = vadd.f32 %v1281, %v1225
      %v1283 = vadd.f32 %v1282, %v1227
      %v1284 = vadd.f32 %v1283, %v1230
      %v1285 = vadd.f32 %v1284, %v1232
      %v1286 = vadd.f32 %v1285, %v1235
      %v1287 = vadd.f32 %v1286, %v1237
      %v1288 = vadd.f32 %v1287, %v1240
      %v1289 = vadd.f32 %v1288, %v1242
      %v1290 = vadd.f32 %v1289, %v1245
      %v1291 = vadd.f32 %v1290, %v1247
      %v1292 = vadd.f32 %v1291, %v1250
      %v1293 = vadd.f32 %v1292, %v1252
      %v1294 = vadd.f32 %v1293, %v1255
      %v1295 = vadd.f32 %v1294, %v1257
      %v1296 = vadd.f32 %v1295, %v1260
      %v1297 = vadd.f32 %v1296, %v1262
      %v1298 = vadd.f32 %v1297, %v1265
      %v1299 = vadd.f32 %v1298, %v1267
      %v1300 = vrot.slane %v1299, 4
      %v1301 = vadd.f32 %v1299, %v1300
      %v1302 = vrot.slane %v1301, 2
      %v1303 = vadd.f32 %v1301, %v1302
      %v1304 = vrot.slane %v1303, 1
      %v1305 = vadd.f32 %v1303, %v1304
      %1306 = vst [vmem:[%s266] sm:$0x1] %v1305
      %v1307 = vmul.f32 %v1190, %v1190
      %v1308 = vmul.f32 %v1192, %v1192
      %v1309 = vmul.f32 %v1195, %v1195
      %v1310 = vmul.f32 %v1197, %v1197
      %v1311 = vmul.f32 %v1200, %v1200
      %v1312 = vmul.f32 %v1202, %v1202
      %v1313 = vmul.f32 %v1205, %v1205
      %v1314 = vmul.f32 %v1207, %v1207
      %v1315 = vmul.f32 %v1210, %v1210
      %v1316 = vmul.f32 %v1212, %v1212
      %v1317 = vmul.f32 %v1215, %v1215
      %v1318 = vmul.f32 %v1217, %v1217
      %v1319 = vmul.f32 %v1220, %v1220
      %v1320 = vmul.f32 %v1222, %v1222
      %v1321 = vmul.f32 %v1225, %v1225
      %v1322 = vmul.f32 %v1227, %v1227
      %v1323 = vmul.f32 %v1230, %v1230
      %v1324 = vmul.f32 %v1232, %v1232
      %v1325 = vmul.f32 %v1235, %v1235
      %v1326 = vmul.f32 %v1237, %v1237
      %v1327 = vmul.f32 %v1240, %v1240
      %v1328 = vmul.f32 %v1242, %v1242
      %v1329 = vmul.f32 %v1245, %v1245
      %v1330 = vmul.f32 %v1247, %v1247
      %v1331 = vmul.f32 %v1250, %v1250
      %v1332 = vmul.f32 %v1252, %v1252
      %v1333 = vmul.f32 %v1255, %v1255
      %v1334 = vmul.f32 %v1257, %v1257
      %v1335 = vmul.f32 %v1260, %v1260
      %v1336 = vmul.f32 %v1262, %v1262
      %v1337 = vmul.f32 %v1265, %v1265
      %v1338 = vmul.f32 %v1267, %v1267
      %v1339 = vadd.f32 %v1307, %v1308
      %v1340 = vadd.f32 %v1339, %v1309
      %v1341 = vadd.f32 %v1340, %v1310
      %v1342 = vadd.f32 %v1341, %v1311
      %v1343 = vadd.f32 %v1342, %v1312
      %v1344 = vadd.f32 %v1343, %v1313
      %v1345 = vadd.f32 %v1344, %v1314
      %v1346 = vadd.f32 %v1345, %v1315
      %v1347 = vadd.f32 %v1346, %v1316
      %v1348 = vadd.f32 %v1347, %v1317
      %v1349 = vadd.f32 %v1348, %v1318
      %v1350 = vadd.f32 %v1349, %v1319
      %v1351 = vadd.f32 %v1350, %v1320
      %v1352 = vadd.f32 %v1351, %v1321
      %v1353 = vadd.f32 %v1352, %v1322
      %v1354 = vadd.f32 %v1353, %v1323
      %v1355 = vadd.f32 %v1354, %v1324
      %v1356 = vadd.f32 %v1355, %v1325
      %v1357 = vadd.f32 %v1356, %v1326
      %v1358 = vadd.f32 %v1357, %v1327
      %v1359 = vadd.f32 %v1358, %v1328
      %v1360 = vadd.f32 %v1359, %v1329
      %v1361 = vadd.f32 %v1360, %v1330
      %v1362 = vadd.f32 %v1361, %v1331
      %v1363 = vadd.f32 %v1362, %v1332
      %v1364 = vadd.f32 %v1363, %v1333
      %v1365 = vadd.f32 %v1364, %v1334
      %v1366 = vadd.f32 %v1365, %v1335
      %v1367 = vadd.f32 %v1366, %v1336
      %v1368 = vadd.f32 %v1367, %v1337
      %v1369 = vadd.f32 %v1368, %v1338
      %v1370 = vrot.slane %v1369, 4
      %v1371 = vadd.f32 %v1369, %v1370
      %v1372 = vrot.slane %v1371, 2
      %v1373 = vadd.f32 %v1371, %v1372
      %v1374 = vrot.slane %v1373, 1
      %v1375 = vadd.f32 %v1373, %v1374
      %1376 = vst [vmem:[%s272] sm:$0x1] %v1375
      %v1377 = vpack.c.bf16 %v1190, %v1190
      %v1378 = vpack.c.bf16 %v1192, %v1192
      %v1379 = vpack.c.bf16 %v1195, %v1195
      %v1380 = vpack.c.bf16 %v1197, %v1197
      %v1381 = vpack.c.bf16 %v1200, %v1200
      %v1382 = vpack.c.bf16 %v1202, %v1202
      %v1383 = vpack.c.bf16 %v1205, %v1205
      %v1384 = vpack.c.bf16 %v1207, %v1207
      %v1385 = vpack.c.bf16 %v1210, %v1210
      %v1386 = vpack.c.bf16 %v1212, %v1212
      %v1387 = vpack.c.bf16 %v1215, %v1215
      %v1388 = vpack.c.bf16 %v1217, %v1217
      %v1389 = vpack.c.bf16 %v1220, %v1220
      %v1390 = vpack.c.bf16 %v1222, %v1222
      %v1391 = vpack.c.bf16 %v1225, %v1225
      %v1392 = vpack.c.bf16 %v1227, %v1227
      %v1393 = vpack.c.bf16 %v1230, %v1230
      %v1394 = vpack.c.bf16 %v1232, %v1232
      %v1395 = vpack.c.bf16 %v1235, %v1235
      %v1396 = vpack.c.bf16 %v1237, %v1237
      %v1397 = vpack.c.bf16 %v1240, %v1240
      %v1398 = vpack.c.bf16 %v1242, %v1242
      %v1399 = vpack.c.bf16 %v1245, %v1245
      %v1400 = vpack.c.bf16 %v1247, %v1247
      %v1401 = vpack.c.bf16 %v1250, %v1250
      %v1402 = vpack.c.bf16 %v1252, %v1252
      %v1403 = vpack.c.bf16 %v1255, %v1255
      %v1404 = vpack.c.bf16 %v1257, %v1257
      %v1405 = vpack.c.bf16 %v1260, %v1260
      %v1406 = vpack.c.bf16 %v1262, %v1262
      %v1407 = vpack.c.bf16 %v1265, %v1265
      %v1408 = vpack.c.bf16 %v1267, %v1267
      %1409 = vst [vmem:[%s259] sm:$0xf] %v1377
      %1410 = vst [vmem:[%s259 + $0x4] sm:$0xf] %v1378
      %1411 = vst [vmem:[%s259 + $0x8] sm:$0xf] %v1379
      %1412 = vst [vmem:[%s259 + $0xc] sm:$0xf] %v1380
      %1413 = vst [vmem:[%s259 + $0x10] sm:$0xf] %v1381
      %1414 = vst [vmem:[%s259 + $0x14] sm:$0xf] %v1382
      %1415 = vst [vmem:[%s259 + $0x18] sm:$0xf] %v1383
      %1416 = vst [vmem:[%s259 + $0x1c] sm:$0xf] %v1384
      %1417 = vst [vmem:[%s259 + $0x20] sm:$0xf] %v1385
      %1418 = vst [vmem:[%s259 + $0x24] sm:$0xf] %v1386
      %1419 = vst [vmem:[%s259 + $0x28] sm:$0xf] %v1387
      %1420 = vst [vmem:[%s259 + $0x2c] sm:$0xf] %v1388
      %1421 = vst [vmem:[%s259 + $0x30] sm:$0xf] %v1389
      %1422 = vst [vmem:[%s259 + $0x34] sm:$0xf] %v1390
      %1423 = vst [vmem:[%s259 + $0x38] sm:$0xf] %v1391
      %1424 = vst [vmem:[%s259 + $0x3c] sm:$0xf] %v1392
      %1425 = vst [vmem:[%s259 + $0x40] sm:$0xf] %v1393
      %1426 = vst [vmem:[%s259 + $0x44] sm:$0xf] %v1394
      %1427 = vst [vmem:[%s259 + $0x48] sm:$0xf] %v1395
      %1428 = vst [vmem:[%s259 + $0x4c] sm:$0xf] %v1396
      %1429 = vst [vmem:[%s259 + $0x50] sm:$0xf] %v1397
      %1430 = vst [vmem:[%s259 + $0x54] sm:$0xf] %v1398
      %1431 = vst [vmem:[%s259 + $0x58] sm:$0xf] %v1399
      %1432 = vst [vmem:[%s259 + $0x5c] sm:$0xf] %v1400
      %1433 = vst [vmem:[%s259 + $0x60] sm:$0xf] %v1401
      %1434 = vst [vmem:[%s259 + $0x64] sm:$0xf] %v1402
      %1435 = vst [vmem:[%s259 + $0x68] sm:$0xf] %v1403
      %1436 = vst [vmem:[%s259 + $0x6c] sm:$0xf] %v1404
      %1437 = vst [vmem:[%s259 + $0x70] sm:$0xf] %v1405
      %1438 = vst [vmem:[%s259 + $0x74] sm:$0xf] %v1406
      %1439 = vst [vmem:[%s259 + $0x78] sm:$0xf] %v1407
      %1440 = vst [vmem:[%s259 + $0x7c] sm:$0xf] %v1408
      %s1441 = smul.u32 32, %s21
      %p1442 = scmp.lt.s32.totalorder %s20, 1
      %s1443 = scalar_select %p1442, %s20, 1
      %p1444 = scmp.lt.s32.totalorder %s1441, 31
      %s1445 = scalar_select %p1444, %s1441, 31
      %s1446 = smul.addr %s1443, 32
      %s1447 = sadd.s32 %s1445, %s1446
      %s1448 = smul.addr %s1447, 4
      %s1449 = scalar_lea.vmem %s2, %s1448
      %p1450 = scmp.lt.s32.totalorder %s20, 1
      %s1451 = scalar_select %p1450, %s20, 1
      %p1452 = scmp.lt.s32.totalorder %s21, 0
      %s1453 = scalar_select %p1452, %s21, 0
      %s1454 = sadd.s32 %s1453, %s1451
      %s1455 = scalar_lea.vmem %s3, %s1454
      %p1456 = scmp.lt.s32.totalorder %s20, 1
      %s1457 = scalar_select %p1456, %s20, 1
      %p1458 = scmp.lt.s32.totalorder %s21, 0
      %s1459 = scalar_select %p1458, %s21, 0
      %s1460 = sadd.s32 %s1459, %s1457
      %s1461 = scalar_lea.vmem %s4, %s1460
      // Predicated region
      $region29: #{_lambda_.19} parent=27 // pred_check
        %p1462 = pneg %p97
      $region30: #{_lambda_.19} parent=27 // pred_check_branch
        %1464 = sbr.rel (%p1462) target = $region32
      $region31: #{_lambda_.19} parent=27 // pred_region
        %s1465 = smul.u32 32, %s21
      $region32: #{_lambda_.19} parent=27 // pred_fallthru
        _
      // Predicated region
      $region33: #{_lambda_.19} parent=27 // pred_check
        %p1466 = pneg %p125
      $region34: #{_lambda_.19} parent=27 // pred_check_branch
        %1468 = sbr.rel (%p1466) target = $region36
      $region35: #{_lambda_.19} parent=27 // pred_region
        _
      $region36: #{_lambda_.19} parent=27 // pred_fallthru
        _
      // Predicated region
      $region37: #{_lambda_.19} parent=27 // pred_check
        %p1469 = pneg %p153
      $region38: #{_lambda_.19} parent=27 // pred_check_branch
        %1471 = sbr.rel (%p1469) target = $region40
      $region39: #{_lambda_.19} parent=27 // pred_region
        _
      $region40: #{_lambda_.19} parent=27 // pred_fallthru
        _
    $region28: #{_lambda_.19} parent=5 // pred_fallthru
      _
    %p1472 = scmp.le.s32.totalorder 2, %s11
    // Predicated region
    $region41: #{_lambda_.19} parent=5 // pred_check
      %p1473 = pneg %p1472
    $region42: #{_lambda_.19} parent=5 // pred_check_branch
      %1475 = sbr.rel (%p1473) target = $region44
    $region43: #{_lambda_.19} parent=5 // pred_region
      %s1476 = ssub.s32 %s11, 2
      // Predicated region
      $region45: #{_lambda_.19} parent=43 // pred_check
        %p1477 = pneg %p103
      $region46: #{_lambda_.19} parent=43 // pred_check_branch
        %1479 = sbr.rel (%p1477) target = $region48
      $region47: #{_lambda_.19} parent=43 // pred_region
        %s1480 = smul.u32 32, %s23
        %p1481 = scmp.lt.s32.totalorder %s22, 1
        %s1482 = scalar_select %p1481, %s22, 1
        %p1483 = scmp.lt.s32.totalorder %s1480, 31
        %s1484 = scalar_select %p1483, %s1480, 31
        %s1485 = smul.addr %s1482, 32
        %s1486 = sadd.s32 %s1484, %s1485
        %s1487 = smul.addr %s1486, 4
        %s1488 = scalar_lea.vmem %s2, %s1487
      $region48: #{_lambda_.19} parent=43 // pred_fallthru
        _
      // Predicated region
      $region49: #{_lambda_.19} parent=43 // pred_check
        %p1489 = pneg %p131
      $region50: #{_lambda_.19} parent=43 // pred_check_branch
        %1491 = sbr.rel (%p1489) target = $region52
      $region51: #{_lambda_.19} parent=43 // pred_region
        %p1492 = scmp.lt.s32.totalorder %s22, 1
        %s1493 = scalar_select %p1492, %s22, 1
        %p1494 = scmp.lt.s32.totalorder %s23, 0
        %s1495 = scalar_select %p1494, %s23, 0
        %s1496 = sadd.s32 %s1495, %s1493
        %s1497 = scalar_lea.vmem %s3, %s1496
      $region52: #{_lambda_.19} parent=43 // pred_fallthru
        _
      // Predicated region
      $region53: #{_lambda_.19} parent=43 // pred_check
        %p1498 = pneg %p159
      $region54: #{_lambda_.19} parent=43 // pred_check_branch
        %1500 = sbr.rel (%p1498) target = $region56
      $region55: #{_lambda_.19} parent=43 // pred_region
        %p1501 = scmp.lt.s32.totalorder %s22, 1
        %s1502 = scalar_select %p1501, %s22, 1
        %p1503 = scmp.lt.s32.totalorder %s23, 0
        %s1504 = scalar_select %p1503, %s23, 0
        %s1505 = sadd.s32 %s1504, %s1502
        %s1506 = scalar_lea.vmem %s4, %s1505
      $region56: #{_lambda_.19} parent=43 // pred_fallthru
        _
    $region44: #{_lambda_.19} parent=5 // pred_fallthru
      _
  $region6: #{_lambda_.19} parent=0 // loop_footer
    %s15 = sadd.s32 1, %s11
  $region7: #{_lambda_.19} parent=0 // loop_footer_branch
    %10 = sbr.rel target = $region3
  $region8: #{_lambda_.19} parent=0 // loop_exit
    _

// kernel: _lambda_.21
$region0: #{_lambda_.21}
  #allocation0 [shape = 'u32[]', space=smem, size = 0x4, offset = 0x4, fixed_abs, tag = 'smem constant byte address 0x4 - core index']
  #allocation1 [shape = 'u32[72,128]{1,0:T(1,128)}', space=vmem, size = 0x9000, scoped, tag = 'internal scratch']
  %s0 = inlined_call_operand.vmem [shape: bf16[2,64,128], index: 0, kind: input, shape index: {}]
  %s1 = inlined_call_operand.vmem [shape: bf16[128,128], index: 1, kind: input, shape index: {}]
  %s2 = inlined_call_operand.vmem [shape: bf16[2,64,128], index: 2, kind: output, shape index: {0}]
  %s3 = inlined_call_operand.vmem [shape: f32[2,1,1,128], index: 3, kind: output, shape index: {1}]
  %s4 = inlined_call_operand.vmem [shape: f32[2,1,1,128], index: 4, kind: output, shape index: {2}]
  %5 = xla_tuple %s2, %s3, %s4
  %s6 = sld [smem:[#allocation0]]
  $region57: #{_lambda_.21} parent=0
    _
  %s8 = ssub.s32 1, %s6
  %s9 = scalar_select 0, %s8, %s6
  loop: start=0, step=1, limit=4
  $region2: #{_lambda_.21} parent=0 // loop_pre_header
    _
  $region3: #{_lambda_.21} parent=0 // loop_header
    %s11 = sphi 0, %s15
    %p12 = scmp.ge.s32.totalorder %s11, 4
    %s18 = sphi 0, %s30
    %s19 = sphi 0, %s26
    %s20 = sphi 0, %s18
    %s21 = sphi 0, %s19
    %s22 = sphi 0, %s20
    %s23 = sphi 0, %s21
    %s35 = sphi 0, %s37
    %s38 = sphi 0, %s35
    %s39 = sphi 0, %s38
    %s55 = sphi 0, %s39
    %s59 = sphi 0, %s59
    %s61 = sphi 0, %s59
    %s62 = sphi 0, %s61
    %s76 = sphi 0, %s62
    %s84 = sphi 0, %s86
    %s87 = sphi 0, %s84
    %s88 = sphi 0, %s87
    %s104 = sphi 0, %s88
    %s112 = sphi 0, %s114
    %s115 = sphi 0, %s112
    %s116 = sphi 0, %s115
    %s132 = sphi 0, %s116
    %s140 = sphi 0, %s142
    %s143 = sphi 0, %s140
    %s144 = sphi 0, %s143
    %s160 = sphi 0, %s144
  $region4: #{_lambda_.21} parent=0 // loop_header_branch
    %14 = sbr.rel (%p12) target = $region8
  $region5: #{_lambda_.21} parent=0 // loop_body
    %s16 = ssub.s32 %s11, 1
    %s17 = ssub.s32 %s11, 2
    %s24 = sadd.s32 1, %s19
    %p25 = scmp.ge.s32.totalorder %s24, 1
    %s26 = scalar_select %p25, 0, %s24
    %s27 = sadd.s32 1, %s18
    %s28 = scalar_select %p25, %s27, %s18
    %p29 = scmp.ge.s32.totalorder %s28, 2
    %s30 = scalar_select %p29, 0, %s28
    %s31 = ssub.s32 %s18, %s30
    %s32 = ssub.s32 %s19, %s26
    %s33 = sor.u32 %s31, %s32
    %p34 = scmp.eq.s32.totalorder %s33, 0
    %s36 = sadd.s32 %s35, 1
    %s37 = scalar_select %p34, %s35, %s36
    %p40 = pneg %p34
    %p41 = scmp.eq.s32.totalorder %s11, 1
    %p42 = por %p40, %p41
    %p43 = scmp.ne.s32.totalorder %s35, %s38
    %p44 = scmp.eq.s32.totalorder %s11, 0
    %p45 = por %p43, %p44
    %p46 = scmp.ne.s32.totalorder %s35, %s38
    %p47 = scmp.eq.s32.totalorder %s16, 1
    %p48 = por %p46, %p47
    %p49 = scmp.ne.s32.totalorder %s38, %s39
    %p50 = scmp.eq.s32.totalorder %s16, 0
    %p51 = por %p49, %p50
    %p52 = scmp.ne.s32.totalorder %s38, %s39
    %p53 = scmp.eq.s32.totalorder %s17, 1
    %p54 = por %p52, %p53
    %p56 = scmp.ne.s32.totalorder %s39, %s55
    %p57 = scmp.eq.s32.totalorder %s17, 0
    %p58 = por %p56, %p57
    %s60 = sadd.s32 %s59, 1
    %p63 = scmp.eq.s32.totalorder %s11, 1
    %p64 = scmp.ne.s32.totalorder %s59, %s61
    %p65 = scmp.eq.s32.totalorder %s11, 0
    %p66 = por %p64, %p65
    %p67 = scmp.ne.s32.totalorder %s59, %s61
    %p68 = scmp.eq.s32.totalorder %s16, 1
    %p69 = por %p67, %p68
    %p70 = scmp.ne.s32.totalorder %s61, %s62
    %p71 = scmp.eq.s32.totalorder %s16, 0
    %p72 = por %p70, %p71
    %p73 = scmp.ne.s32.totalorder %s61, %s62
    %p74 = scmp.eq.s32.totalorder %s17, 1
    %p75 = por %p73, %p74
    %p77 = scmp.ne.s32.totalorder %s62, %s76
    %p78 = scmp.eq.s32.totalorder %s17, 0
    %p79 = por %p77, %p78
    %s80 = ssub.s32 %s18, %s30
    %s81 = ssub.s32 %s19, %s26
    %s82 = sor.u32 %s80, %s81
    %p83 = scmp.eq.s32.totalorder %s82, 0
    %s85 = sadd.s32 %s84, 1
    %s86 = scalar_select %p83, %s84, %s85
    %p89 = pneg %p83
    %p90 = scmp.eq.s32.totalorder %s11, 1
    %p91 = por %p89, %p90
    %p92 = scmp.ne.s32.totalorder %s84, %s87
    %p93 = scmp.eq.s32.totalorder %s11, 0
    %p94 = por %p92, %p93
    %p95 = scmp.ne.s32.totalorder %s84, %s87
    %p96 = scmp.eq.s32.totalorder %s16, 1
    %p97 = por %p95, %p96
    %p98 = scmp.ne.s32.totalorder %s87, %s88
    %p99 = scmp.eq.s32.totalorder %s16, 0
    %p100 = por %p98, %p99
    %p101 = scmp.ne.s32.totalorder %s87, %s88
    %p102 = scmp.eq.s32.totalorder %s17, 1
    %p103 = por %p101, %p102
    %p105 = scmp.ne.s32.totalorder %s88, %s104
    %p106 = scmp.eq.s32.totalorder %s17, 0
    %p107 = por %p105, %p106
    %s108 = ssub.s32 %s18, %s30
    %s109 = ssub.s32 %s19, %s26
    %s110 = sor.u32 %s108, %s109
    %p111 = scmp.eq.s32.totalorder %s110, 0
    %s113 = sadd.s32 %s112, 1
    %s114 = scalar_select %p111, %s112, %s113
    %p117 = pneg %p111
    %p118 = scmp.eq.s32.totalorder %s11, 1
    %p119 = por %p117, %p118
    %p120 = scmp.ne.s32.totalorder %s112, %s115
    %p121 = scmp.eq.s32.totalorder %s11, 0
    %p122 = por %p120, %p121
    %p123 = scmp.ne.s32.totalorder %s112, %s115
    %p124 = scmp.eq.s32.totalorder %s16, 1
    %p125 = por %p123, %p124
    %p126 = scmp.ne.s32.totalorder %s115, %s116
    %p127 = scmp.eq.s32.totalorder %s16, 0
    %p128 = por %p126, %p127
    %p129 = scmp.ne.s32.totalorder %s115, %s116
    %p130 = scmp.eq.s32.totalorder %s17, 1
    %p131 = por %p129, %p130
    %p133 = scmp.ne.s32.totalorder %s116, %s132
    %p134 = scmp.eq.s32.totalorder %s17, 0
    %p135 = por %p133, %p134
    %s136 = ssub.s32 %s18, %s30
    %s137 = ssub.s32 %s19, %s26
    %s138 = sor.u32 %s136, %s137
    %p139 = scmp.eq.s32.totalorder %s138, 0
    %s141 = sadd.s32 %s140, 1
    %s142 = scalar_select %p139, %s140, %s141
    %p145 = pneg %p139
    %p146 = scmp.eq.s32.totalorder %s11, 1
    %p147 = por %p145, %p146
    %p148 = scmp.ne.s32.totalorder %s140, %s143
    %p149 = scmp.eq.s32.totalorder %s11, 0
    %p150 = por %p148, %p149
    %p151 = scmp.ne.s32.totalorder %s140, %s143
    %p152 = scmp.eq.s32.totalorder %s16, 1
    %p153 = por %p151, %p152
    %p154 = scmp.ne.s32.totalorder %s143, %s144
    %p155 = scmp.eq.s32.totalorder %s16, 0
    %p156 = por %p154, %p155
    %p157 = scmp.ne.s32.totalorder %s143, %s144
    %p158 = scmp.eq.s32.totalorder %s17, 1
    %p159 = por %p157, %p158
    %p161 = scmp.ne.s32.totalorder %s144, %s160
    %p162 = scmp.eq.s32.totalorder %s17, 0
    %p163 = por %p161, %p162
    %p164 = scmp.le.s32.totalorder 1, %s11
    %p165 = scmp.lt.s32.totalorder %s11, 3
    %p166 = pnand %p164, %p165
    %p167 = pneg %p166
    // Predicated region
    $region9: #{_lambda_.21} parent=5 // pred_check
      _
    $region10: #{_lambda_.21} parent=5 // pred_check_branch
      %169 = sbr.rel (%p166) target = $region12
    $region11: #{_lambda_.21} parent=5 // pred_region
      %s170 = ssub.s32 %s11, 1
      // Predicated region
      $region13: #{_lambda_.21} parent=11 // pred_check
        %p171 = pneg %p72
      $region14: #{_lambda_.21} parent=11 // pred_check_branch
        %173 = sbr.rel (%p171) target = $region16
      $region15: #{_lambda_.21} parent=11 // pred_region
        _
      $region16: #{_lambda_.21} parent=11 // pred_fallthru
        _
    $region12: #{_lambda_.21} parent=5 // pred_fallthru
      _
    %p174 = scmp.lt.s32.totalorder %s11, 2
    // Predicated region
    $region17: #{_lambda_.21} parent=5 // pred_check
      %p175 = pneg %p174
    $region18: #{_lambda_.21} parent=5 // pred_check_branch
      %177 = sbr.rel (%p175) target = $region20
    $region19: #{_lambda_.21} parent=5 // pred_region
      // Predicated region
      $region21: #{_lambda_.21} parent=19 // pred_check
        %p178 = pneg %p45
      $region22: #{_lambda_.21} parent=19 // pred_check_branch
        %180 = sbr.rel (%p178) target = $region24
      $region23: #{_lambda_.21} parent=19 // pred_region
        %s181 = smul.u32 8, %s19
        %p182 = scmp.lt.s32.totalorder %s18, 1
        %s183 = scalar_select %p182, %s18, 1
        %p184 = scmp.lt.s32.totalorder %s181, 7
        %s185 = scalar_select %p184, %s181, 7
        %s186 = smul.addr %s183, 8
        %s187 = sadd.s32 %s185, %s186
        %s188 = smul.addr %s187, 4
        %s189 = scalar_lea.vmem %s0, %s188
        %s190 = smul.u32 8, %s19
      $region24: #{_lambda_.21} parent=19 // pred_fallthru
        _
    $region20: #{_lambda_.21} parent=5 // pred_fallthru
      _
    %p191 = scmp.le.s32.totalorder 1, %s11
    %p192 = scmp.lt.s32.totalorder %s11, 3
    %p193 = pnand %p191, %p192
    %p194 = pneg %p193
    // Predicated region
    $region25: #{_lambda_.21} parent=5 // pred_check
      _
    $region26: #{_lambda_.21} parent=5 // pred_check_branch
      %196 = sbr.rel (%p193) target = $region28
    $region27: #{_lambda_.21} parent=5 // pred_region
      %s197 = ssub.s32 %s11, 1
      %s198 = smul.u32 8, %s21
      %p199 = scmp.lt.s32.totalorder %s20, 1
      %s200 = scalar_select %p199, %s20, 1
      %p201 = scmp.lt.s32.totalorder %s198, 7
      %s202 = scalar_select %p201, %s198, 7
      %s203 = smul.addr %s200, 8
      %s204 = sadd.s32 %s202, %s203
      %s205 = smul.addr %s204, 4
      %s206 = scalar_lea.vmem %s0, %s205
      %p207 = pneg %p51
      %p208 = pneg %p48
      %p209 = pneg %p72
      %p210 = pneg %p69
      %p211 = pneg %p100
      %p212 = pneg %p97
      %s213 = smul.u32 8, %s21
      %p214 = scmp.lt.s32.totalorder %s20, 1
      %s215 = scalar_select %p214, %s20, 1
      %p216 = scmp.lt.s32.totalorder %s213, 7
      %s217 = scalar_select %p216, %s213, 7
      %s218 = smul.addr %s215, 8
      %s219 = sadd.s32 %s217, %s218
      %s220 = smul.addr %s219, 4
      %s221 = scalar_lea.vmem %s2, %s220
      %p222 = pneg %p128
      %p223 = pneg %p125
      %p224 = scmp.lt.s32.totalorder %s20, 1
      %s225 = scalar_select %p224, %s20, 1
      %p226 = scmp.lt.s32.totalorder %s21, 0
      %s227 = scalar_select %p226, %s21, 0
      %s228 = sadd.s32 %s227, %s225
      %s229 = scalar_lea.vmem %s3, %s228
      %p230 = pneg %p156
      %p231 = pneg %p153
      %p232 = scmp.lt.s32.totalorder %s20, 1
      %s233 = scalar_select %p232, %s20, 1
      %p234 = scmp.lt.s32.totalorder %s21, 0
      %s235 = scalar_select %p234, %s21, 0
      %s236 = sadd.s32 %s235, %s233
      %s237 = scalar_lea.vmem %s4, %s236
      %s238 = smul.u32 8, %s21
      %p239 = scmp.lt.s32.totalorder %s20, 1
      %s240 = scalar_select %p239, %s20, 1
      %p241 = scmp.lt.s32.totalorder %s238, 7
      %s242 = scalar_select %p241, %s238, 7
      %s243 = smul.addr %s240, 8
      %s244 = sadd.s32 %s242, %s243
      %s245 = smul.addr %s244, 4
      %s246 = scalar_lea.vmem %s0, %s245
      %s247 = smul.u32 8, %s21
      %s248 = smul.u32 8, %s21
      %p249 = scmp.lt.s32.totalorder %s20, 1
      %s250 = scalar_select %p249, %s20, 1
      %p251 = scmp.lt.s32.totalorder %s248, 7
      %s252 = scalar_select %p251, %s248, 7
      %s253 = smul.addr %s250, 8
      %s254 = sadd.s32 %s252, %s253
      %s255 = smul.addr %s254, 4
      %s256 = scalar_lea.vmem %s2, %s255
      %s257 = smul.u32 8, %s21
      %p258 = scmp.lt.s32.totalorder %s20, 1
      %s259 = scalar_select %p258, %s20, 1
      %p260 = scmp.lt.s32.totalorder %s21, 0
      %s261 = scalar_select %p260, %s21, 0
      %s262 = sadd.s32 %s261, %s259
      %s263 = scalar_lea.vmem %s3, %s262
      %p264 = scmp.lt.s32.totalorder %s20, 1
      %s265 = scalar_select %p264, %s20, 1
      %p266 = scmp.lt.s32.totalorder %s21, 0
      %s267 = scalar_select %p266, %s21, 0
      %s268 = sadd.s32 %s267, %s265
      %s269 = scalar_lea.vmem %s4, %s268
      %v270 = vld [vmem:[%s246] sm:$0xf]
      %v271 = vld [vmem:[%s246 + $0x4] sm:$0xf]
      %v272 = vld [vmem:[%s246 + $0x8] sm:$0xf]
      %v273 = vld [vmem:[%s246 + $0xc] sm:$0xf]
      %v274 = vld [vmem:[%s246 + $0x10] sm:$0xf]
      %v275 = vld [vmem:[%s246 + $0x14] sm:$0xf]
      %v276 = vld [vmem:[%s246 + $0x18] sm:$0xf]
      %v277 = vld [vmem:[%s246 + $0x1c] sm:$0xf]
      %v278 = vld [vmem:[%s1] sm:$0xf]
      %v279 = vld [vmem:[%s1 + $0x4] sm:$0xf]
      %v280 = vld [vmem:[%s1 + $0x8] sm:$0xf]
      %v281 = vld [vmem:[%s1 + $0xc] sm:$0xf]
      %v282 = vld [vmem:[%s1 + $0x10] sm:$0xf]
      %v283 = vld [vmem:[%s1 + $0x14] sm:$0xf]
      %v284 = vld [vmem:[%s1 + $0x18] sm:$0xf]
      %v285 = vld [vmem:[%s1 + $0x1c] sm:$0xf]
      %v286 = vld [vmem:[%s1 + $0x20] sm:$0xf]
      %v287 = vld [vmem:[%s1 + $0x24] sm:$0xf]
      %v288 = vld [vmem:[%s1 + $0x28] sm:$0xf]
      %v289 = vld [vmem:[%s1 + $0x2c] sm:$0xf]
      %v290 = vld [vmem:[%s1 + $0x30] sm:$0xf]
      %v291 = vld [vmem:[%s1 + $0x34] sm:$0xf]
      %v292 = vld [vmem:[%s1 + $0x38] sm:$0xf]
      %v293 = vld [vmem:[%s1 + $0x3c] sm:$0xf]
      %v302 = vunpack.c.l.b16 %v270
      %v303 = vunpack.c.l.b16 %v271
      %v304 = vunpack.c.l.b16 %v272
      %v305 = vunpack.c.l.b16 %v273
      %v306 = vunpack.c.l.b16 %v274
      %v307 = vunpack.c.l.b16 %v275
      %v308 = vunpack.c.l.b16 %v276
      %v309 = vunpack.c.l.b16 %v277
      %v310 = vpack.c.b16 %v303, %v302
      %v311 = vpack.c.b16 %v305, %v304
      %v312 = vpack.c.b16 %v307, %v306
      %v313 = vpack.c.b16 %v309, %v308
      %v334 = vunpack.c.l.b16 %v278
      %v335 = vunpack.c.l.b16 %v279
      %v336 = vunpack.c.l.b16 %v280
      %v337 = vunpack.c.l.b16 %v281
      %v338 = vunpack.c.l.b16 %v282
      %v339 = vunpack.c.l.b16 %v283
      %v340 = vunpack.c.l.b16 %v284
      %v341 = vunpack.c.l.b16 %v285
      %v342 = vunpack.c.l.b16 %v286
      %v343 = vunpack.c.l.b16 %v287
      %v344 = vunpack.c.l.b16 %v288
      %v345 = vunpack.c.l.b16 %v289
      %v346 = vunpack.c.l.b16 %v290
      %v347 = vunpack.c.l.b16 %v291
      %v348 = vunpack.c.l.b16 %v292
      %v349 = vunpack.c.l.b16 %v293
      %v350 = vpack.c.b16 %v335, %v334
      %v351 = vpack.c.b16 %v337, %v336
      %v352 = vpack.c.b16 %v339, %v338
      %v353 = vpack.c.b16 %v341, %v340
      %v354 = vpack.c.b16 %v343, %v342
      %v355 = vpack.c.b16 %v345, %v344
      %v356 = vpack.c.b16 %v347, %v346
      %v357 = vpack.c.b16 %v349, %v348
      %366 = vmatpush.bf16.msra.mxu0 %v357
      %367 = vmatpush.bf16.msra.mxu0 %v356
      %368 = vmatpush.bf16.msra.mxu0 %v355
      %369 = vmatpush.bf16.msra.mxu0 %v354
      %370 = vmatpush.bf16.msra.mxu0 %v353
      %371 = vmatpush.bf16.msra.mxu0 %v352
      %372 = vmatpush.bf16.msra.mxu0 %v351
      %373 = vmatpush.bf16.msra.mxu0 %v350
      %374 = vmatmul.bf16.gmra.mxu0 %v310
      %v375 = vpop.f32.mrf.mxu0
      %v376 = vadd.f32 0.0, %v375
      %v377 = vpop.f32.mrf.mxu0
      %v378 = vadd.f32 0.0, %v377
      %379 = vmatmul.bf16.gmra.mxu0 %v311
      %v380 = vpop.f32.mrf.mxu0
      %v381 = vadd.f32 0.0, %v380
      %v382 = vpop.f32.mrf.mxu0
      %v383 = vadd.f32 0.0, %v382
      %384 = vmatmul.bf16.gmra.mxu0 %v312
      %v385 = vpop.f32.mrf.mxu0
      %v386 = vadd.f32 0.0, %v385
      %v387 = vpop.f32.mrf.mxu0
      %v388 = vadd.f32 0.0, %v387
      %389 = vmatmul.bf16.gmra.mxu0 %v313
      %v390 = vpop.f32.mrf.mxu0
      %v391 = vadd.f32 0.0, %v390
      %v392 = vpop.f32.mrf.mxu0
      %v393 = vadd.f32 0.0, %v392
      %394 = vdwg.mxu0
      %v395 = vadd.f32 %v376, %v378
      %v396 = vadd.f32 %v395, %v381
      %v397 = vadd.f32 %v396, %v383
      %v398 = vadd.f32 %v397, %v386
      %v399 = vadd.f32 %v398, %v388
      %v400 = vadd.f32 %v399, %v391
      %v401 = vadd.f32 %v400, %v393
      %v402 = vrot.slane %v401, 4
      %v403 = vadd.f32 %v401, %v402
      %v404 = vrot.slane %v403, 2
      %v405 = vadd.f32 %v403, %v404
      %v406 = vrot.slane %v405, 1
      %v407 = vadd.f32 %v405, %v406
      %408 = vst [vmem:[%s263] sm:$0x1] %v407
      %v409 = vmul.f32 %v376, %v376
      %v410 = vmul.f32 %v378, %v378
      %v411 = vmul.f32 %v381, %v381
      %v412 = vmul.f32 %v383, %v383
      %v413 = vmul.f32 %v386, %v386
      %v414 = vmul.f32 %v388, %v388
      %v415 = vmul.f32 %v391, %v391
      %v416 = vmul.f32 %v393, %v393
      %v417 = vadd.f32 %v409, %v410
      %v418 = vadd.f32 %v417, %v411
      %v419 = vadd.f32 %v418, %v412
      %v420 = vadd.f32 %v419, %v413
      %v421 = vadd.f32 %v420, %v414
      %v422 = vadd.f32 %v421, %v415
      %v423 = vadd.f32 %v422, %v416
      %v424 = vrot.slane %v423, 4
      %v425 = vadd.f32 %v423, %v424
      %v426 = vrot.slane %v425, 2
      %v427 = vadd.f32 %v425, %v426
      %v428 = vrot.slane %v427, 1
      %v429 = vadd.f32 %v427, %v428
      %430 = vst [vmem:[%s269] sm:$0x1] %v429
      %v431 = vpack.c.bf16 %v376, %v376
      %v432 = vpack.c.bf16 %v378, %v378
      %v433 = vpack.c.bf16 %v381, %v381
      %v434 = vpack.c.bf16 %v383, %v383
      %v435 = vpack.c.bf16 %v386, %v386
      %v436 = vpack.c.bf16 %v388, %v388
      %v437 = vpack.c.bf16 %v391, %v391
      %v438 = vpack.c.bf16 %v393, %v393
      %439 = vst [vmem:[%s256] sm:$0xf] %v431
      %440 = vst [vmem:[%s256 + $0x4] sm:$0xf] %v432
      %441 = vst [vmem:[%s256 + $0x8] sm:$0xf] %v433
      %442 = vst [vmem:[%s256 + $0xc] sm:$0xf] %v434
      %443 = vst [vmem:[%s256 + $0x10] sm:$0xf] %v435
      %444 = vst [vmem:[%s256 + $0x14] sm:$0xf] %v436
      %445 = vst [vmem:[%s256 + $0x18] sm:$0xf] %v437
      %446 = vst [vmem:[%s256 + $0x1c] sm:$0xf] %v438
      %s447 = smul.u32 8, %s21
      %p448 = scmp.lt.s32.totalorder %s20, 1
      %s449 = scalar_select %p448, %s20, 1
      %p450 = scmp.lt.s32.totalorder %s447, 7
      %s451 = scalar_select %p450, %s447, 7
      %s452 = smul.addr %s449, 8
      %s453 = sadd.s32 %s451, %s452
      %s454 = smul.addr %s453, 4
      %s455 = scalar_lea.vmem %s2, %s454
      %p456 = scmp.lt.s32.totalorder %s20, 1
      %s457 = scalar_select %p456, %s20, 1
      %p458 = scmp.lt.s32.totalorder %s21, 0
      %s459 = scalar_select %p458, %s21, 0
      %s460 = sadd.s32 %s459, %s457
      %s461 = scalar_lea.vmem %s3, %s460
      %p462 = scmp.lt.s32.totalorder %s20, 1
      %s463 = scalar_select %p462, %s20, 1
      %p464 = scmp.lt.s32.totalorder %s21, 0
      %s465 = scalar_select %p464, %s21, 0
      %s466 = sadd.s32 %s465, %s463
      %s467 = scalar_lea.vmem %s4, %s466
      // Predicated region
      $region29: #{_lambda_.21} parent=27 // pred_check
        %p468 = pneg %p97
      $region30: #{_lambda_.21} parent=27 // pred_check_branch
        %470 = sbr.rel (%p468) target = $region32
      $region31: #{_lambda_.21} parent=27 // pred_region
        %s471 = smul.u32 8, %s21
      $region32: #{_lambda_.21} parent=27 // pred_fallthru
        _
      // Predicated region
      $region33: #{_lambda_.21} parent=27 // pred_check
        %p472 = pneg %p125
      $region34: #{_lambda_.21} parent=27 // pred_check_branch
        %474 = sbr.rel (%p472) target = $region36
      $region35: #{_lambda_.21} parent=27 // pred_region
        _
      $region36: #{_lambda_.21} parent=27 // pred_fallthru
        _
      // Predicated region
      $region37: #{_lambda_.21} parent=27 // pred_check
        %p475 = pneg %p153
      $region38: #{_lambda_.21} parent=27 // pred_check_branch
        %477 = sbr.rel (%p475) target = $region40
      $region39: #{_lambda_.21} parent=27 // pred_region
        _
      $region40: #{_lambda_.21} parent=27 // pred_fallthru
        _
    $region28: #{_lambda_.21} parent=5 // pred_fallthru
      _
    %p478 = scmp.le.s32.totalorder 2, %s11
    // Predicated region
    $region41: #{_lambda_.21} parent=5 // pred_check
      %p479 = pneg %p478
    $region42: #{_lambda_.21} parent=5 // pred_check_branch
      %481 = sbr.rel (%p479) target = $region44
    $region43: #{_lambda_.21} parent=5 // pred_region
      %s482 = ssub.s32 %s11, 2
      // Predicated region
      $region45: #{_lambda_.21} parent=43 // pred_check
        %p483 = pneg %p103
      $region46: #{_lambda_.21} parent=43 // pred_check_branch
        %485 = sbr.rel (%p483) target = $region48
      $region47: #{_lambda_.21} parent=43 // pred_region
        %s486 = smul.u32 8, %s23
        %p487 = scmp.lt.s32.totalorder %s22, 1
        %s488 = scalar_select %p487, %s22, 1
        %p489 = scmp.lt.s32.totalorder %s486, 7
        %s490 = scalar_select %p489, %s486, 7
        %s491 = smul.addr %s488, 8
        %s492 = sadd.s32 %s490, %s491
        %s493 = smul.addr %s492, 4
        %s494 = scalar_lea.vmem %s2, %s493
      $region48: #{_lambda_.21} parent=43 // pred_fallthru
        _
      // Predicated region
      $region49: #{_lambda_.21} parent=43 // pred_check
        %p495 = pneg %p131
      $region50: #{_lambda_.21} parent=43 // pred_check_branch
        %497 = sbr.rel (%p495) target = $region52
      $region51: #{_lambda_.21} parent=43 // pred_region
        %p498 = scmp.lt.s32.totalorder %s22, 1
        %s499 = scalar_select %p498, %s22, 1
        %p500 = scmp.lt.s32.totalorder %s23, 0
        %s501 = scalar_select %p500, %s23, 0
        %s502 = sadd.s32 %s501, %s499
        %s503 = scalar_lea.vmem %s3, %s502
      $region52: #{_lambda_.21} parent=43 // pred_fallthru
        _
      // Predicated region
      $region53: #{_lambda_.21} parent=43 // pred_check
        %p504 = pneg %p159
      $region54: #{_lambda_.21} parent=43 // pred_check_branch
        %506 = sbr.rel (%p504) target = $region56
      $region55: #{_lambda_.21} parent=43 // pred_region
        %p507 = scmp.lt.s32.totalorder %s22, 1
        %s508 = scalar_select %p507, %s22, 1
        %p509 = scmp.lt.s32.totalorder %s23, 0
        %s510 = scalar_select %p509, %s23, 0
        %s511 = sadd.s32 %s510, %s508
        %s512 = scalar_lea.vmem %s4, %s511
      $region56: #{_lambda_.21} parent=43 // pred_fallthru
        _
    $region44: #{_lambda_.21} parent=5 // pred_fallthru
      _
  $region6: #{_lambda_.21} parent=0 // loop_footer
    %s15 = sadd.s32 1, %s11
  $region7: #{_lambda_.21} parent=0 // loop_footer_branch
    %10 = sbr.rel target = $region3
  $region8: #{_lambda_.21} parent=0 // loop_exit
    _

// kernel: _lambda_.22
$region0: #{_lambda_.22}
  #allocation0 [shape = 'u32[]', space=smem, size = 0x4, offset = 0x4, fixed_abs, tag = 'smem constant byte address 0x4 - core index']
  #allocation1 [shape = 'u32[72,128]{1,0:T(1,128)}', space=vmem, size = 0x9000, scoped, tag = 'internal scratch']
  %s0 = inlined_call_operand.vmem [shape: bf16[2,64,128], index: 0, kind: input, shape index: {}]
  %s1 = inlined_call_operand.vmem [shape: f32[2,1,128], index: 1, kind: input, shape index: {}]
  %s2 = inlined_call_operand.vmem [shape: f32[2,1,128], index: 2, kind: input, shape index: {}]
  %s3 = inlined_call_operand.vmem [shape: bf16[2,64,128], index: 3, kind: output, shape index: {}]
  %s4 = sld [smem:[#allocation0]]
  $region45: #{_lambda_.22} parent=0
    _
  %s6 = ssub.s32 1, %s4
  %s7 = scalar_select 0, %s6, %s4
  loop: start=0, step=1, limit=4
  $region2: #{_lambda_.22} parent=0 // loop_pre_header
    _
  $region3: #{_lambda_.22} parent=0 // loop_header
    %s9 = sphi 0, %s13
    %p10 = scmp.ge.s32.totalorder %s9, 4
    %s16 = sphi 0, %s28
    %s17 = sphi 0, %s24
    %s18 = sphi 0, %s16
    %s19 = sphi 0, %s17
    %s20 = sphi 0, %s18
    %s21 = sphi 0, %s19
    %s33 = sphi 0, %s35
    %s36 = sphi 0, %s33
    %s37 = sphi 0, %s36
    %s53 = sphi 0, %s37
    %s59 = sphi 0, %s61
    %s62 = sphi 0, %s59
    %s63 = sphi 0, %s62
    %s79 = sphi 0, %s63
    %s85 = sphi 0, %s87
    %s88 = sphi 0, %s85
    %s89 = sphi 0, %s88
    %s105 = sphi 0, %s89
    %s113 = sphi 0, %s115
    %s116 = sphi 0, %s113
    %s117 = sphi 0, %s116
    %s133 = sphi 0, %s117
  $region4: #{_lambda_.22} parent=0 // loop_header_branch
    %12 = sbr.rel (%p10) target = $region8
  $region5: #{_lambda_.22} parent=0 // loop_body
    %s14 = ssub.s32 %s9, 1
    %s15 = ssub.s32 %s9, 2
    %s22 = sadd.s32 1, %s17
    %p23 = scmp.ge.s32.totalorder %s22, 1
    %s24 = scalar_select %p23, 0, %s22
    %s25 = sadd.s32 1, %s16
    %s26 = scalar_select %p23, %s25, %s16
    %p27 = scmp.ge.s32.totalorder %s26, 2
    %s28 = scalar_select %p27, 0, %s26
    %s29 = ssub.s32 %s16, %s28
    %s30 = ssub.s32 %s17, %s24
    %s31 = sor.u32 %s29, %s30
    %p32 = scmp.eq.s32.totalorder %s31, 0
    %s34 = sadd.s32 %s33, 1
    %s35 = scalar_select %p32, %s33, %s34
    %p38 = pneg %p32
    %p39 = scmp.eq.s32.totalorder %s9, 1
    %p40 = por %p38, %p39
    %p41 = scmp.ne.s32.totalorder %s33, %s36
    %p42 = scmp.eq.s32.totalorder %s9, 0
    %p43 = por %p41, %p42
    %p44 = scmp.ne.s32.totalorder %s33, %s36
    %p45 = scmp.eq.s32.totalorder %s14, 1
    %p46 = por %p44, %p45
    %p47 = scmp.ne.s32.totalorder %s36, %s37
    %p48 = scmp.eq.s32.totalorder %s14, 0
    %p49 = por %p47, %p48
    %p50 = scmp.ne.s32.totalorder %s36, %s37
    %p51 = scmp.eq.s32.totalorder %s15, 1
    %p52 = por %p50, %p51
    %p54 = scmp.ne.s32.totalorder %s37, %s53
    %p55 = scmp.eq.s32.totalorder %s15, 0
    %p56 = por %p54, %p55
    %s57 = ssub.s32 %s16, %s28
    %p58 = scmp.eq.s32.totalorder %s57, 0
    %s60 = sadd.s32 %s59, 1
    %s61 = scalar_select %p58, %s59, %s60
    %p64 = pneg %p58
    %p65 = scmp.eq.s32.totalorder %s9, 1
    %p66 = por %p64, %p65
    %p67 = scmp.ne.s32.totalorder %s59, %s62
    %p68 = scmp.eq.s32.totalorder %s9, 0
    %p69 = por %p67, %p68
    %p70 = scmp.ne.s32.totalorder %s59, %s62
    %p71 = scmp.eq.s32.totalorder %s14, 1
    %p72 = por %p70, %p71
    %p73 = scmp.ne.s32.totalorder %s62, %s63
    %p74 = scmp.eq.s32.totalorder %s14, 0
    %p75 = por %p73, %p74
    %p76 = scmp.ne.s32.totalorder %s62, %s63
    %p77 = scmp.eq.s32.totalorder %s15, 1
    %p78 = por %p76, %p77
    %p80 = scmp.ne.s32.totalorder %s63, %s79
    %p81 = scmp.eq.s32.totalorder %s15, 0
    %p82 = por %p80, %p81
    %s83 = ssub.s32 %s16, %s28
    %p84 = scmp.eq.s32.totalorder %s83, 0
    %s86 = sadd.s32 %s85, 1
    %s87 = scalar_select %p84, %s85, %s86
    %p90 = pneg %p84
    %p91 = scmp.eq.s32.totalorder %s9, 1
    %p92 = por %p90, %p91
    %p93 = scmp.ne.s32.totalorder %s85, %s88
    %p94 = scmp.eq.s32.totalorder %s9, 0
    %p95 = por %p93, %p94
    %p96 = scmp.ne.s32.totalorder %s85, %s88
    %p97 = scmp.eq.s32.totalorder %s14, 1
    %p98 = por %p96, %p97
    %p99 = scmp.ne.s32.totalorder %s88, %s89
    %p100 = scmp.eq.s32.totalorder %s14, 0
    %p101 = por %p99, %p100
    %p102 = scmp.ne.s32.totalorder %s88, %s89
    %p103 = scmp.eq.s32.totalorder %s15, 1
    %p104 = por %p102, %p103
    %p106 = scmp.ne.s32.totalorder %s89, %s105
    %p107 = scmp.eq.s32.totalorder %s15, 0
    %p108 = por %p106, %p107
    %s109 = ssub.s32 %s16, %s28
    %s110 = ssub.s32 %s17, %s24
    %s111 = sor.u32 %s109, %s110
    %p112 = scmp.eq.s32.totalorder %s111, 0
    %s114 = sadd.s32 %s113, 1
    %s115 = scalar_select %p112, %s113, %s114
    %p118 = pneg %p112
    %p119 = scmp.eq.s32.totalorder %s9, 1
    %p120 = por %p118, %p119
    %p121 = scmp.ne.s32.totalorder %s113, %s116
    %p122 = scmp.eq.s32.totalorder %s9, 0
    %p123 = por %p121, %p122
    %p124 = scmp.ne.s32.totalorder %s113, %s116
    %p125 = scmp.eq.s32.totalorder %s14, 1
    %p126 = por %p124, %p125
    %p127 = scmp.ne.s32.totalorder %s116, %s117
    %p128 = scmp.eq.s32.totalorder %s14, 0
    %p129 = por %p127, %p128
    %p130 = scmp.ne.s32.totalorder %s116, %s117
    %p131 = scmp.eq.s32.totalorder %s15, 1
    %p132 = por %p130, %p131
    %p134 = scmp.ne.s32.totalorder %s117, %s133
    %p135 = scmp.eq.s32.totalorder %s15, 0
    %p136 = por %p134, %p135
    %p137 = scmp.le.s32.totalorder 1, %s9
    %p138 = scmp.lt.s32.totalorder %s9, 3
    %p139 = pnand %p137, %p138
    %p140 = pneg %p139
    // Predicated region
    $region9: #{_lambda_.22} parent=5 // pred_check
      _
    $region10: #{_lambda_.22} parent=5 // pred_check_branch
      %142 = sbr.rel (%p139) target = $region12
    $region11: #{_lambda_.22} parent=5 // pred_region
      %s143 = ssub.s32 %s9, 1
    $region12: #{_lambda_.22} parent=5 // pred_fallthru
      _
    %p144 = scmp.lt.s32.totalorder %s9, 2
    // Predicated region
    $region13: #{_lambda_.22} parent=5 // pred_check
      %p145 = pneg %p144
    $region14: #{_lambda_.22} parent=5 // pred_check_branch
      %147 = sbr.rel (%p145) target = $region16
    $region15: #{_lambda_.22} parent=5 // pred_region
      // Predicated region
      $region17: #{_lambda_.22} parent=15 // pred_check
        %p148 = pneg %p43
      $region18: #{_lambda_.22} parent=15 // pred_check_branch
        %150 = sbr.rel (%p148) target = $region20
      $region19: #{_lambda_.22} parent=15 // pred_region
        %s151 = smul.u32 8, %s17
        %p152 = scmp.lt.s32.totalorder %s16, 1
        %s153 = scalar_select %p152, %s16, 1
        %p154 = scmp.lt.s32.totalorder %s151, 7
        %s155 = scalar_select %p154, %s151, 7
        %s156 = smul.addr %s153, 8
        %s157 = sadd.s32 %s155, %s156
        %s158 = smul.addr %s157, 4
        %s159 = scalar_lea.vmem %s0, %s158
        %s160 = smul.u32 8, %s17
      $region20: #{_lambda_.22} parent=15 // pred_fallthru
        _
      // Predicated region
      $region21: #{_lambda_.22} parent=15 // pred_check
        %p161 = pneg %p69
      $region22: #{_lambda_.22} parent=15 // pred_check_branch
        %163 = sbr.rel (%p161) target = $region24
      $region23: #{_lambda_.22} parent=15 // pred_region
        %p164 = scmp.lt.s32.totalorder %s16, 1
        %s165 = scalar_select %p164, %s16, 1
        %s166 = scalar_lea.vmem %s1, %s165
      $region24: #{_lambda_.22} parent=15 // pred_fallthru
        _
      // Predicated region
      $region25: #{_lambda_.22} parent=15 // pred_check
        %p167 = pneg %p95
      $region26: #{_lambda_.22} parent=15 // pred_check_branch
        %169 = sbr.rel (%p167) target = $region28
      $region27: #{_lambda_.22} parent=15 // pred_region
        %p170 = scmp.lt.s32.totalorder %s16, 1
        %s171 = scalar_select %p170, %s16, 1
        %s172 = scalar_lea.vmem %s2, %s171
      $region28: #{_lambda_.22} parent=15 // pred_fallthru
        _
    $region16: #{_lambda_.22} parent=5 // pred_fallthru
      _
    %p173 = scmp.le.s32.totalorder 1, %s9
    %p174 = scmp.lt.s32.totalorder %s9, 3
    %p175 = pnand %p173, %p174
    %p176 = pneg %p175
    // Predicated region
    $region29: #{_lambda_.22} parent=5 // pred_check
      _
    $region30: #{_lambda_.22} parent=5 // pred_check_branch
      %178 = sbr.rel (%p175) target = $region32
    $region31: #{_lambda_.22} parent=5 // pred_region
      %s179 = ssub.s32 %s9, 1
      %s180 = smul.u32 8, %s19
      %p181 = scmp.lt.s32.totalorder %s18, 1
      %s182 = scalar_select %p181, %s18, 1
      %p183 = scmp.lt.s32.totalorder %s180, 7
      %s184 = scalar_select %p183, %s180, 7
      %s185 = smul.addr %s182, 8
      %s186 = sadd.s32 %s184, %s185
      %s187 = smul.addr %s186, 4
      %s188 = scalar_lea.vmem %s0, %s187
      %p189 = pneg %p49
      %p190 = pneg %p46
      %p191 = scmp.lt.s32.totalorder %s18, 1
      %s192 = scalar_select %p191, %s18, 1
      %s193 = scalar_lea.vmem %s1, %s192
      %p194 = pneg %p75
      %p195 = pneg %p72
      %p196 = scmp.lt.s32.totalorder %s18, 1
      %s197 = scalar_select %p196, %s18, 1
      %s198 = scalar_lea.vmem %s2, %s197
      %p199 = pneg %p101
      %p200 = pneg %p98
      %p201 = pneg %p129
      %p202 = pneg %p126
      %s203 = smul.u32 8, %s19
      %p204 = scmp.lt.s32.totalorder %s18, 1
      %s205 = scalar_select %p204, %s18, 1
      %p206 = scmp.lt.s32.totalorder %s203, 7
      %s207 = scalar_select %p206, %s203, 7
      %s208 = smul.addr %s205, 8
      %s209 = sadd.s32 %s207, %s208
      %s210 = smul.addr %s209, 4
      %s211 = scalar_lea.vmem %s3, %s210
      %s212 = smul.u32 8, %s19
      %p213 = scmp.lt.s32.totalorder %s18, 1
      %s214 = scalar_select %p213, %s18, 1
      %p215 = scmp.lt.s32.totalorder %s212, 7
      %s216 = scalar_select %p215, %s212, 7
      %s217 = smul.addr %s214, 8
      %s218 = sadd.s32 %s216, %s217
      %s219 = smul.addr %s218, 4
      %s220 = scalar_lea.vmem %s0, %s219
      %s221 = smul.u32 8, %s19
      %p222 = scmp.lt.s32.totalorder %s18, 1
      %s223 = scalar_select %p222, %s18, 1
      %s224 = scalar_lea.vmem %s1, %s223
      %p225 = scmp.lt.s32.totalorder %s18, 1
      %s226 = scalar_select %p225, %s18, 1
      %s227 = scalar_lea.vmem %s2, %s226
      %s228 = smul.u32 8, %s19
      %p229 = scmp.lt.s32.totalorder %s18, 1
      %s230 = scalar_select %p229, %s18, 1
      %p231 = scmp.lt.s32.totalorder %s228, 7
      %s232 = scalar_select %p231, %s228, 7
      %s233 = smul.addr %s230, 8
      %s234 = sadd.s32 %s232, %s233
      %s235 = smul.addr %s234, 4
      %s236 = scalar_lea.vmem %s3, %s235
      %s237 = smul.u32 8, %s19
      %v238 = vld [vmem:[%s220] sm:$0xf]
      %v239 = vld [vmem:[%s220 + $0x4] sm:$0xf]
      %v240 = vld [vmem:[%s220 + $0x8] sm:$0xf]
      %v241 = vld [vmem:[%s220 + $0xc] sm:$0xf]
      %v242 = vld [vmem:[%s220 + $0x10] sm:$0xf]
      %v243 = vld [vmem:[%s220 + $0x14] sm:$0xf]
      %v244 = vld [vmem:[%s220 + $0x18] sm:$0xf]
      %v245 = vld [vmem:[%s220 + $0x1c] sm:$0xf]
      %v246 = vunpack.c.l.bf16 %v238
      %v247 = vunpack.c.l.bf16 %v239
      %v248 = vunpack.c.l.bf16 %v240
      %v249 = vunpack.c.l.bf16 %v241
      %v250 = vunpack.c.l.bf16 %v242
      %v251 = vunpack.c.l.bf16 %v243
      %v252 = vunpack.c.l.bf16 %v244
      %v253 = vunpack.c.l.bf16 %v245
      %v254 = vld [vmem:[%s224] sm:$0x1]
      %v256 = vperm.slane %v254, 0
      %v258 = vmul.f32 %v246, %v256
      %v259 = vmul.f32 %v247, %v256
      %v260 = vmul.f32 %v248, %v256
      %v261 = vmul.f32 %v249, %v256
      %v262 = vmul.f32 %v250, %v256
      %v263 = vmul.f32 %v251, %v256
      %v264 = vmul.f32 %v252, %v256
      %v265 = vmul.f32 %v253, %v256
      %v266 = vld [vmem:[%s227] sm:$0x1]
      %v268 = vperm.slane %v266, 0
      %v270 = vadd.f32 %v258, %v268
      %v271 = vadd.f32 %v259, %v268
      %v272 = vadd.f32 %v260, %v268
      %v273 = vadd.f32 %v261, %v268
      %v274 = vadd.f32 %v262, %v268
      %v275 = vadd.f32 %v263, %v268
      %v276 = vadd.f32 %v264, %v268
      %v277 = vadd.f32 %v265, %v268
      %v278 = vmax.f32 %v270, 0.0
      %v279 = vmax.f32 %v271, 0.0
      %v280 = vmax.f32 %v272, 0.0
      %v281 = vmax.f32 %v273, 0.0
      %v282 = vmax.f32 %v274, 0.0
      %v283 = vmax.f32 %v275, 0.0
      %v284 = vmax.f32 %v276, 0.0
      %v285 = vmax.f32 %v277, 0.0
      %v286 = vpack.c.bf16 %v278, %v278
      %v287 = vpack.c.bf16 %v279, %v279
      %v288 = vpack.c.bf16 %v280, %v280
      %v289 = vpack.c.bf16 %v281, %v281
      %v290 = vpack.c.bf16 %v282, %v282
      %v291 = vpack.c.bf16 %v283, %v283
      %v292 = vpack.c.bf16 %v284, %v284
      %v293 = vpack.c.bf16 %v285, %v285
      %294 = vst [vmem:[%s236] sm:$0xf] %v286
      %295 = vst [vmem:[%s236 + $0x4] sm:$0xf] %v287
      %296 = vst [vmem:[%s236 + $0x8] sm:$0xf] %v288
      %297 = vst [vmem:[%s236 + $0xc] sm:$0xf] %v289
      %298 = vst [vmem:[%s236 + $0x10] sm:$0xf] %v290
      %299 = vst [vmem:[%s236 + $0x14] sm:$0xf] %v291
      %300 = vst [vmem:[%s236 + $0x18] sm:$0xf] %v292
      %301 = vst [vmem:[%s236 + $0x1c] sm:$0xf] %v293
      %s302 = smul.u32 8, %s19
      %p303 = scmp.lt.s32.totalorder %s18, 1
      %s304 = scalar_select %p303, %s18, 1
      %p305 = scmp.lt.s32.totalorder %s302, 7
      %s306 = scalar_select %p305, %s302, 7
      %s307 = smul.addr %s304, 8
      %s308 = sadd.s32 %s306, %s307
      %s309 = smul.addr %s308, 4
      %s310 = scalar_lea.vmem %s3, %s309
      // Predicated region
      $region33: #{_lambda_.22} parent=31 // pred_check
        %p311 = pneg %p126
      $region34: #{_lambda_.22} parent=31 // pred_check_branch
        %313 = sbr.rel (%p311) target = $region36
      $region35: #{_lambda_.22} parent=31 // pred_region
        %s314 = smul.u32 8, %s19
      $region36: #{_lambda_.22} parent=31 // pred_fallthru
        _
    $region32: #{_lambda_.22} parent=5 // pred_fallthru
      _
    %p315 = scmp.le.s32.totalorder 2, %s9
    // Predicated region
    $region37: #{_lambda_.22} parent=5 // pred_check
      %p316 = pneg %p315
    $region38: #{_lambda_.22} parent=5 // pred_check_branch
      %318 = sbr.rel (%p316) target = $region40
    $region39: #{_lambda_.22} parent=5 // pred_region
      %s319 = ssub.s32 %s9, 2
      // Predicated region
      $region41: #{_lambda_.22} parent=39 // pred_check
        %p320 = pneg %p132
      $region42: #{_lambda_.22} parent=39 // pred_check_branch
        %322 = sbr.rel (%p320) target = $region44
      $region43: #{_lambda_.22} parent=39 // pred_region
        %s323 = smul.u32 8, %s21
        %p324 = scmp.lt.s32.totalorder %s20, 1
        %s325 = scalar_select %p324, %s20, 1
        %p326 = scmp.lt.s32.totalorder %s323, 7
        %s327 = scalar_select %p326, %s323, 7
        %s328 = smul.addr %s325, 8
        %s329 = sadd.s32 %s327, %s328
        %s330 = smul.addr %s329, 4
        %s331 = scalar_lea.vmem %s3, %s330
      $region44: #{_lambda_.22} parent=39 // pred_fallthru
        _
    $region40: #{_lambda_.22} parent=5 // pred_fallthru
      _
  $region6: #{_lambda_.22} parent=0 // loop_footer
    %s13 = sadd.s32 1, %s9
  $region7: #{_lambda_.22} parent=0 // loop_footer_branch
    %8 = sbr.rel target = $region3
  $region8: #{_lambda_.22} parent=0 // loop_exit
    _

// kernel: _lambda_.23
$region0: #{_lambda_.23}
  #allocation0 [shape = 'u32[]', space=smem, size = 0x4, offset = 0x4, fixed_abs, tag = 'smem constant byte address 0x4 - core index']
  #allocation1 [shape = 'u32[72,128]{1,0:T(1,128)}', space=vmem, size = 0x9000, scoped, tag = 'internal scratch']
  %s0 = inlined_call_operand.vmem [shape: bf16[2,16,256], index: 0, kind: input, shape index: {}]
  %s1 = inlined_call_operand.vmem [shape: bf16[256,128], index: 1, kind: input, shape index: {}]
  %s2 = inlined_call_operand.vmem [shape: bf16[2,16,128], index: 2, kind: output, shape index: {0}]
  %s3 = inlined_call_operand.vmem [shape: f32[2,1,1,128], index: 3, kind: output, shape index: {1}]
  %s4 = inlined_call_operand.vmem [shape: f32[2,1,1,128], index: 4, kind: output, shape index: {2}]
  %5 = xla_tuple %s2, %s3, %s4
  %s6 = sld [smem:[#allocation0]]
  $region57: #{_lambda_.23} parent=0
    _
  %s8 = ssub.s32 1, %s6
  %s9 = scalar_select 0, %s8, %s6
  loop: start=0, step=1, limit=4
  $region2: #{_lambda_.23} parent=0 // loop_pre_header
    _
  $region3: #{_lambda_.23} parent=0 // loop_header
    %s11 = sphi 0, %s15
    %p12 = scmp.ge.s32.totalorder %s11, 4
    %s18 = sphi 0, %s30
    %s19 = sphi 0, %s26
    %s20 = sphi 0, %s18
    %s21 = sphi 0, %s19
    %s22 = sphi 0, %s20
    %s23 = sphi 0, %s21
    %s35 = sphi 0, %s37
    %s38 = sphi 0, %s35
    %s39 = sphi 0, %s38
    %s55 = sphi 0, %s39
    %s59 = sphi 0, %s59
    %s61 = sphi 0, %s59
    %s62 = sphi 0, %s61
    %s76 = sphi 0, %s62
    %s84 = sphi 0, %s86
    %s87 = sphi 0, %s84
    %s88 = sphi 0, %s87
    %s104 = sphi 0, %s88
    %s112 = sphi 0, %s114
    %s115 = sphi 0, %s112
    %s116 = sphi 0, %s115
    %s132 = sphi 0, %s116
    %s140 = sphi 0, %s142
    %s143 = sphi 0, %s140
    %s144 = sphi 0, %s143
    %s160 = sphi 0, %s144
  $region4: #{_lambda_.23} parent=0 // loop_header_branch
    %14 = sbr.rel (%p12) target = $region8
  $region5: #{_lambda_.23} parent=0 // loop_body
    %s16 = ssub.s32 %s11, 1
    %s17 = ssub.s32 %s11, 2
    %s24 = sadd.s32 1, %s19
    %p25 = scmp.ge.s32.totalorder %s24, 1
    %s26 = scalar_select %p25, 0, %s24
    %s27 = sadd.s32 1, %s18
    %s28 = scalar_select %p25, %s27, %s18
    %p29 = scmp.ge.s32.totalorder %s28, 2
    %s30 = scalar_select %p29, 0, %s28
    %s31 = ssub.s32 %s18, %s30
    %s32 = ssub.s32 %s19, %s26
    %s33 = sor.u32 %s31, %s32
    %p34 = scmp.eq.s32.totalorder %s33, 0
    %s36 = sadd.s32 %s35, 1
    %s37 = scalar_select %p34, %s35, %s36
    %p40 = pneg %p34
    %p41 = scmp.eq.s32.totalorder %s11, 1
    %p42 = por %p40, %p41
    %p43 = scmp.ne.s32.totalorder %s35, %s38
    %p44 = scmp.eq.s32.totalorder %s11, 0
    %p45 = por %p43, %p44
    %p46 = scmp.ne.s32.totalorder %s35, %s38
    %p47 = scmp.eq.s32.totalorder %s16, 1
    %p48 = por %p46, %p47
    %p49 = scmp.ne.s32.totalorder %s38, %s39
    %p50 = scmp.eq.s32.totalorder %s16, 0
    %p51 = por %p49, %p50
    %p52 = scmp.ne.s32.totalorder %s38, %s39
    %p53 = scmp.eq.s32.totalorder %s17, 1
    %p54 = por %p52, %p53
    %p56 = scmp.ne.s32.totalorder %s39, %s55
    %p57 = scmp.eq.s32.totalorder %s17, 0
    %p58 = por %p56, %p57
    %s60 = sadd.s32 %s59, 1
    %p63 = scmp.eq.s32.totalorder %s11, 1
    %p64 = scmp.ne.s32.totalorder %s59, %s61
    %p65 = scmp.eq.s32.totalorder %s11, 0
    %p66 = por %p64, %p65
    %p67 = scmp.ne.s32.totalorder %s59, %s61
    %p68 = scmp.eq.s32.totalorder %s16, 1
    %p69 = por %p67, %p68
    %p70 = scmp.ne.s32.totalorder %s61, %s62
    %p71 = scmp.eq.s32.totalorder %s16, 0
    %p72 = por %p70, %p71
    %p73 = scmp.ne.s32.totalorder %s61, %s62
    %p74 = scmp.eq.s32.totalorder %s17, 1
    %p75 = por %p73, %p74
    %p77 = scmp.ne.s32.totalorder %s62, %s76
    %p78 = scmp.eq.s32.totalorder %s17, 0
    %p79 = por %p77, %p78
    %s80 = ssub.s32 %s18, %s30
    %s81 = ssub.s32 %s19, %s26
    %s82 = sor.u32 %s80, %s81
    %p83 = scmp.eq.s32.totalorder %s82, 0
    %s85 = sadd.s32 %s84, 1
    %s86 = scalar_select %p83, %s84, %s85
    %p89 = pneg %p83
    %p90 = scmp.eq.s32.totalorder %s11, 1
    %p91 = por %p89, %p90
    %p92 = scmp.ne.s32.totalorder %s84, %s87
    %p93 = scmp.eq.s32.totalorder %s11, 0
    %p94 = por %p92, %p93
    %p95 = scmp.ne.s32.totalorder %s84, %s87
    %p96 = scmp.eq.s32.totalorder %s16, 1
    %p97 = por %p95, %p96
    %p98 = scmp.ne.s32.totalorder %s87, %s88
    %p99 = scmp.eq.s32.totalorder %s16, 0
    %p100 = por %p98, %p99
    %p101 = scmp.ne.s32.totalorder %s87, %s88
    %p102 = scmp.eq.s32.totalorder %s17, 1
    %p103 = por %p101, %p102
    %p105 = scmp.ne.s32.totalorder %s88, %s104
    %p106 = scmp.eq.s32.totalorder %s17, 0
    %p107 = por %p105, %p106
    %s108 = ssub.s32 %s18, %s30
    %s109 = ssub.s32 %s19, %s26
    %s110 = sor.u32 %s108, %s109
    %p111 = scmp.eq.s32.totalorder %s110, 0
    %s113 = sadd.s32 %s112, 1
    %s114 = scalar_select %p111, %s112, %s113
    %p117 = pneg %p111
    %p118 = scmp.eq.s32.totalorder %s11, 1
    %p119 = por %p117, %p118
    %p120 = scmp.ne.s32.totalorder %s112, %s115
    %p121 = scmp.eq.s32.totalorder %s11, 0
    %p122 = por %p120, %p121
    %p123 = scmp.ne.s32.totalorder %s112, %s115
    %p124 = scmp.eq.s32.totalorder %s16, 1
    %p125 = por %p123, %p124
    %p126 = scmp.ne.s32.totalorder %s115, %s116
    %p127 = scmp.eq.s32.totalorder %s16, 0
    %p128 = por %p126, %p127
    %p129 = scmp.ne.s32.totalorder %s115, %s116
    %p130 = scmp.eq.s32.totalorder %s17, 1
    %p131 = por %p129, %p130
    %p133 = scmp.ne.s32.totalorder %s116, %s132
    %p134 = scmp.eq.s32.totalorder %s17, 0
    %p135 = por %p133, %p134
    %s136 = ssub.s32 %s18, %s30
    %s137 = ssub.s32 %s19, %s26
    %s138 = sor.u32 %s136, %s137
    %p139 = scmp.eq.s32.totalorder %s138, 0
    %s141 = sadd.s32 %s140, 1
    %s142 = scalar_select %p139, %s140, %s141
    %p145 = pneg %p139
    %p146 = scmp.eq.s32.totalorder %s11, 1
    %p147 = por %p145, %p146
    %p148 = scmp.ne.s32.totalorder %s140, %s143
    %p149 = scmp.eq.s32.totalorder %s11, 0
    %p150 = por %p148, %p149
    %p151 = scmp.ne.s32.totalorder %s140, %s143
    %p152 = scmp.eq.s32.totalorder %s16, 1
    %p153 = por %p151, %p152
    %p154 = scmp.ne.s32.totalorder %s143, %s144
    %p155 = scmp.eq.s32.totalorder %s16, 0
    %p156 = por %p154, %p155
    %p157 = scmp.ne.s32.totalorder %s143, %s144
    %p158 = scmp.eq.s32.totalorder %s17, 1
    %p159 = por %p157, %p158
    %p161 = scmp.ne.s32.totalorder %s144, %s160
    %p162 = scmp.eq.s32.totalorder %s17, 0
    %p163 = por %p161, %p162
    %p164 = scmp.le.s32.totalorder 1, %s11
    %p165 = scmp.lt.s32.totalorder %s11, 3
    %p166 = pnand %p164, %p165
    %p167 = pneg %p166
    // Predicated region
    $region9: #{_lambda_.23} parent=5 // pred_check
      _
    $region10: #{_lambda_.23} parent=5 // pred_check_branch
      %169 = sbr.rel (%p166) target = $region12
    $region11: #{_lambda_.23} parent=5 // pred_region
      %s170 = ssub.s32 %s11, 1
      // Predicated region
      $region13: #{_lambda_.23} parent=11 // pred_check
        %p171 = pneg %p72
      $region14: #{_lambda_.23} parent=11 // pred_check_branch
        %173 = sbr.rel (%p171) target = $region16
      $region15: #{_lambda_.23} parent=11 // pred_region
        _
      $region16: #{_lambda_.23} parent=11 // pred_fallthru
        _
    $region12: #{_lambda_.23} parent=5 // pred_fallthru
      _
    %p174 = scmp.lt.s32.totalorder %s11, 2
    // Predicated region
    $region17: #{_lambda_.23} parent=5 // pred_check
      %p175 = pneg %p174
    $region18: #{_lambda_.23} parent=5 // pred_check_branch
      %177 = sbr.rel (%p175) target = $region20
    $region19: #{_lambda_.23} parent=5 // pred_region
      // Predicated region
      $region21: #{_lambda_.23} parent=19 // pred_check
        %p178 = pneg %p45
      $region22: #{_lambda_.23} parent=19 // pred_check_branch
        %180 = sbr.rel (%p178) target = $region24
      $region23: #{_lambda_.23} parent=19 // pred_region
        %s181 = smul.u32 2, %s19
        %p182 = scmp.lt.s32.totalorder %s18, 1
        %s183 = scalar_select %p182, %s18, 1
        %p184 = scmp.lt.s32.totalorder %s181, 1
        %s185 = scalar_select %p184, %s181, 1
        %s186 = smul.addr %s185, 2
        %s187 = smul.addr %s183, 4
        %s188 = sadd.s32 %s186, %s187
        %s189 = smul.addr %s188, 4
        %s190 = scalar_lea.vmem %s0, %s189
        %s191 = smul.u32 2, %s19
      $region24: #{_lambda_.23} parent=19 // pred_fallthru
        _
    $region20: #{_lambda_.23} parent=5 // pred_fallthru
      _
    %p192 = scmp.le.s32.totalorder 1, %s11
    %p193 = scmp.lt.s32.totalorder %s11, 3
    %p194 = pnand %p192, %p193
    %p195 = pneg %p194
    // Predicated region
    $region25: #{_lambda_.23} parent=5 // pred_check
      _
    $region26: #{_lambda_.23} parent=5 // pred_check_branch
      %197 = sbr.rel (%p194) target = $region28
    $region27: #{_lambda_.23} parent=5 // pred_region
      %s198 = ssub.s32 %s11, 1
      %s199 = smul.u32 2, %s21
      %p200 = scmp.lt.s32.totalorder %s20, 1
      %s201 = scalar_select %p200, %s20, 1
      %p202 = scmp.lt.s32.totalorder %s199, 1
      %s203 = scalar_select %p202, %s199, 1
      %s204 = smul.addr %s203, 2
      %s205 = smul.addr %s201, 4
      %s206 = sadd.s32 %s204, %s205
      %s207 = smul.addr %s206, 4
      %s208 = scalar_lea.vmem %s0, %s207
      %p209 = pneg %p51
      %p210 = pneg %p48
      %p211 = pneg %p72
      %p212 = pneg %p69
      %p213 = pneg %p100
      %p214 = pneg %p97
      %s215 = smul.u32 2, %s21
      %p216 = scmp.lt.s32.totalorder %s20, 1
      %s217 = scalar_select %p216, %s20, 1
      %p218 = scmp.lt.s32.totalorder %s215, 1
      %s219 = scalar_select %p218, %s215, 1
      %s220 = smul.addr %s217, 2
      %s221 = sadd.s32 %s219, %s220
      %s222 = smul.addr %s221, 4
      %s223 = scalar_lea.vmem %s2, %s222
      %p224 = pneg %p128
      %p225 = pneg %p125
      %p226 = scmp.lt.s32.totalorder %s20, 1
      %s227 = scalar_select %p226, %s20, 1
      %p228 = scmp.lt.s32.totalorder %s21, 0
      %s229 = scalar_select %p228, %s21, 0
      %s230 = sadd.s32 %s229, %s227
      %s231 = scalar_lea.vmem %s3, %s230
      %p232 = pneg %p156
      %p233 = pneg %p153
      %p234 = scmp.lt.s32.totalorder %s20, 1
      %s235 = scalar_select %p234, %s20, 1
      %p236 = scmp.lt.s32.totalorder %s21, 0
      %s237 = scalar_select %p236, %s21, 0
      %s238 = sadd.s32 %s237, %s235
      %s239 = scalar_lea.vmem %s4, %s238
      %s240 = smul.u32 2, %s21
      %p241 = scmp.lt.s32.totalorder %s20, 1
      %s242 = scalar_select %p241, %s20, 1
      %p243 = scmp.lt.s32.totalorder %s240, 1
      %s244 = scalar_select %p243, %s240, 1
      %s245 = smul.addr %s244, 2
      %s246 = smul.addr %s242, 4
      %s247 = sadd.s32 %s245, %s246
      %s248 = smul.addr %s247, 4
      %s249 = scalar_lea.vmem %s0, %s248
      %s250 = smul.u32 2, %s21
      %s251 = smul.u32 2, %s21
      %p252 = scmp.lt.s32.totalorder %s20, 1
      %s253 = scalar_select %p252, %s20, 1
      %p254 = scmp.lt.s32.totalorder %s251, 1
      %s255 = scalar_select %p254, %s251, 1
      %s256 = smul.addr %s253, 2
      %s257 = sadd.s32 %s255, %s256
      %s258 = smul.addr %s257, 4
      %s259 = scalar_lea.vmem %s2, %s258
      %s260 = smul.u32 2, %s21
      %p261 = scmp.lt.s32.totalorder %s20, 1
      %s262 = scalar_select %p261, %s20, 1
      %p263 = scmp.lt.s32.totalorder %s21, 0
      %s264 = scalar_select %p263, %s21, 0
      %s265 = sadd.s32 %s264, %s262
      %s266 = scalar_lea.vmem %s3, %s265
      %p267 = scmp.lt.s32.totalorder %s20, 1
      %s268 = scalar_select %p267, %s20, 1
      %p269 = scmp.lt.s32.totalorder %s21, 0
      %s270 = scalar_select %p269, %s21, 0
      %s271 = sadd.s32 %s270, %s268
      %s272 = scalar_lea.vmem %s4, %s271
      %v273 = vld [vmem:[%s249] sm:$0xff]
      %v274 = vld [vmem:[%s249 + $0x8] sm:$0xff]
      %v275 = vld [vmem:[%s1] sm:$0xf]
      %v276 = vld [vmem:[%s1 + $0x4] sm:$0xf]
      %v277 = vld [vmem:[%s1 + $0x8] sm:$0xf]
      %v278 = vld [vmem:[%s1 + $0xc] sm:$0xf]
      %v279 = vld [vmem:[%s1 + $0x10] sm:$0xf]
      %v280 = vld [vmem:[%s1 + $0x14] sm:$0xf]
      %v281 = vld [vmem:[%s1 + $0x18] sm:$0xf]
      %v282 = vld [vmem:[%s1 + $0x1c] sm:$0xf]
      %v283 = vld [vmem:[%s1 + $0x20] sm:$0xf]
      %v284 = vld [vmem:[%s1 + $0x24] sm:$0xf]
      %v285 = vld [vmem:[%s1 + $0x28] sm:$0xf]
      %v286 = vld [vmem:[%s1 + $0x2c] sm:$0xf]
      %v287 = vld [vmem:[%s1 + $0x30] sm:$0xf]
      %v288 = vld [vmem:[%s1 + $0x34] sm:$0xf]
      %v289 = vld [vmem:[%s1 + $0x38] sm:$0xf]
      %v290 = vld [vmem:[%s1 + $0x3c] sm:$0xf]
      %v291 = vld [vmem:[%s1 + $0x40] sm:$0xf]
      %v292 = vld [vmem:[%s1 + $0x44] sm:$0xf]
      %v293 = vld [vmem:[%s1 + $0x48] sm:$0xf]
      %v294 = vld [vmem:[%s1 + $0x4c] sm:$0xf]
      %v295 = vld [vmem:[%s1 + $0x50] sm:$0xf]
      %v296 = vld [vmem:[%s1 + $0x54] sm:$0xf]
      %v297 = vld [vmem:[%s1 + $0x58] sm:$0xf]
      %v298 = vld [vmem:[%s1 + $0x5c] sm:$0xf]
      %v299 = vld [vmem:[%s1 + $0x60] sm:$0xf]
      %v300 = vld [vmem:[%s1 + $0x64] sm:$0xf]
      %v301 = vld [vmem:[%s1 + $0x68] sm:$0xf]
      %v302 = vld [vmem:[%s1 + $0x6c] sm:$0xf]
      %v303 = vld [vmem:[%s1 + $0x70] sm:$0xf]
      %v304 = vld [vmem:[%s1 + $0x74] sm:$0xf]
      %v305 = vld [vmem:[%s1 + $0x78] sm:$0xf]
      %v306 = vld [vmem:[%s1 + $0x7c] sm:$0xf]
      %v309 = vunpack.c.l.b16 %v273
      %v310 = vunpack.c.h.b16 %v273
      %v311 = vunpack.c.l.b16 %v274
      %v312 = vunpack.c.h.b16 %v274
      %v313 = vpack.c.b16 %v311, %v309
      %v314 = vpack.c.b16 %v312, %v310
      %v349 = vunpack.c.l.b16 %v275
      %v350 = vunpack.c.l.b16 %v276
      %v351 = vunpack.c.l.b16 %v277
      %v352 = vunpack.c.l.b16 %v278
      %v353 = vunpack.c.l.b16 %v279
      %v354 = vunpack.c.l.b16 %v280
      %v355 = vunpack.c.l.b16 %v281
      %v356 = vunpack.c.l.b16 %v282
      %v357 = vunpack.c.l.b16 %v283
      %v358 = vunpack.c.l.b16 %v284
      %v359 = vunpack.c.l.b16 %v285
      %v360 = vunpack.c.l.b16 %v286
      %v361 = vunpack.c.l.b16 %v287
      %v362 = vunpack.c.l.b16 %v288
      %v363 = vunpack.c.l.b16 %v289
      %v364 = vunpack.c.l.b16 %v290
      %v365 = vunpack.c.l.b16 %v291
      %v366 = vunpack.c.l.b16 %v292
      %v367 = vunpack.c.l.b16 %v293
      %v368 = vunpack.c.l.b16 %v294
      %v369 = vunpack.c.l.b16 %v295
      %v370 = vunpack.c.l.b16 %v296
      %v371 = vunpack.c.l.b16 %v297
      %v372 = vunpack.c.l.b16 %v298
      %v373 = vunpack.c.l.b16 %v299
      %v374 = vunpack.c.l.b16 %v300
      %v375 = vunpack.c.l.b16 %v301
      %v376 = vunpack.c.l.b16 %v302
      %v377 = vunpack.c.l.b16 %v303
      %v378 = vunpack.c.l.b16 %v304
      %v379 = vunpack.c.l.b16 %v305
      %v380 = vunpack.c.l.b16 %v306
      %v381 = vpack.c.b16 %v350, %v349
      %v382 = vpack.c.b16 %v352, %v351
      %v383 = vpack.c.b16 %v354, %v353
      %v384 = vpack.c.b16 %v356, %v355
      %v385 = vpack.c.b16 %v358, %v357
      %v386 = vpack.c.b16 %v360, %v359
      %v387 = vpack.c.b16 %v362, %v361
      %v388 = vpack.c.b16 %v364, %v363
      %v389 = vpack.c.b16 %v366, %v365
      %v390 = vpack.c.b16 %v368, %v367
      %v391 = vpack.c.b16 %v370, %v369
      %v392 = vpack.c.b16 %v372, %v371
      %v393 = vpack.c.b16 %v374, %v373
      %v394 = vpack.c.b16 %v376, %v375
      %v395 = vpack.c.b16 %v378, %v377
      %v396 = vpack.c.b16 %v380, %v379
      %413 = vmatpush.bf16.msra.mxu0 %v388
      %414 = vmatpush.bf16.msra.mxu0 %v387
      %415 = vmatpush.bf16.msra.mxu0 %v386
      %416 = vmatpush.bf16.msra.mxu0 %v385
      %417 = vmatpush.bf16.msra.mxu0 %v384
      %418 = vmatpush.bf16.msra.mxu0 %v383
      %419 = vmatpush.bf16.msra.mxu0 %v382
      %420 = vmatpush.bf16.msra.mxu0 %v381
      %421 = vmatmul.bf16.gmra.mxu0 %v313
      %v422 = vpop.f32.mrf.mxu0
      %v423 = vadd.f32 0.0, %v422
      %v424 = vpop.f32.mrf.mxu0
      %v425 = vadd.f32 0.0, %v424
      %426 = vdwg.mxu0
      %427 = vmatpush.bf16.msra.mxu0 %v396
      %428 = vmatpush.bf16.msra.mxu0 %v395
      %429 = vmatpush.bf16.msra.mxu0 %v394
      %430 = vmatpush.bf16.msra.mxu0 %v393
      %431 = vmatpush.bf16.msra.mxu0 %v392
      %432 = vmatpush.bf16.msra.mxu0 %v391
      %433 = vmatpush.bf16.msra.mxu0 %v390
      %434 = vmatpush.bf16.msra.mxu0 %v389
      %435 = vmatmul.bf16.gmra.mxu0 %v314
      %v436 = vpop.f32.mrf.mxu0
      %v437 = vadd.f32 %v423, %v436
      %v438 = vpop.f32.mrf.mxu0
      %v439 = vadd.f32 %v425, %v438
      %440 = vdwg.mxu0
      %v441 = vadd.f32 %v437, %v439
      %v442 = vrot.slane %v441, 4
      %v443 = vadd.f32 %v441, %v442
      %v444 = vrot.slane %v443, 2
      %v445 = vadd.f32 %v443, %v444
      %v446 = vrot.slane %v445, 1
      %v447 = vadd.f32 %v445, %v446
      %448 = vst [vmem:[%s266] sm:$0x1] %v447
      %v449 = vmul.f32 %v437, %v437
      %v450 = vmul.f32 %v439, %v439
      %v451 = vadd.f32 %v449, %v450
      %v452 = vrot.slane %v451, 4
      %v453 = vadd.f32 %v451, %v452
      %v454 = vrot.slane %v453, 2
      %v455 = vadd.f32 %v453, %v454
      %v456 = vrot.slane %v455, 1
      %v457 = vadd.f32 %v455, %v456
      %458 = vst [vmem:[%s272] sm:$0x1] %v457
      %v459 = vpack.c.bf16 %v437, %v437
      %v460 = vpack.c.bf16 %v439, %v439
      %461 = vst [vmem:[%s259] sm:$0xf] %v459
      %462 = vst [vmem:[%s259 + $0x4] sm:$0xf] %v460
      %s463 = smul.u32 2, %s21
      %p464 = scmp.lt.s32.totalorder %s20, 1
      %s465 = scalar_select %p464, %s20, 1
      %p466 = scmp.lt.s32.totalorder %s463, 1
      %s467 = scalar_select %p466, %s463, 1
      %s468 = smul.addr %s465, 2
      %s469 = sadd.s32 %s467, %s468
      %s470 = smul.addr %s469, 4
      %s471 = scalar_lea.vmem %s2, %s470
      %p472 = scmp.lt.s32.totalorder %s20, 1
      %s473 = scalar_select %p472, %s20, 1
      %p474 = scmp.lt.s32.totalorder %s21, 0
      %s475 = scalar_select %p474, %s21, 0
      %s476 = sadd.s32 %s475, %s473
      %s477 = scalar_lea.vmem %s3, %s476
      %p478 = scmp.lt.s32.totalorder %s20, 1
      %s479 = scalar_select %p478, %s20, 1
      %p480 = scmp.lt.s32.totalorder %s21, 0
      %s481 = scalar_select %p480, %s21, 0
      %s482 = sadd.s32 %s481, %s479
      %s483 = scalar_lea.vmem %s4, %s482
      // Predicated region
      $region29: #{_lambda_.23} parent=27 // pred_check
        %p484 = pneg %p97
      $region30: #{_lambda_.23} parent=27 // pred_check_branch
        %486 = sbr.rel (%p484) target = $region32
      $region31: #{_lambda_.23} parent=27 // pred_region
        %s487 = smul.u32 2, %s21
      $region32: #{_lambda_.23} parent=27 // pred_fallthru
        _
      // Predicated region
      $region33: #{_lambda_.23} parent=27 // pred_check
        %p488 = pneg %p125
      $region34: #{_lambda_.23} parent=27 // pred_check_branch
        %490 = sbr.rel (%p488) target = $region36
      $region35: #{_lambda_.23} parent=27 // pred_region
        _
      $region36: #{_lambda_.23} parent=27 // pred_fallthru
        _
      // Predicated region
      $region37: #{_lambda_.23} parent=27 // pred_check
        %p491 = pneg %p153
      $region38: #{_lambda_.23} parent=27 // pred_check_branch
        %493 = sbr.rel (%p491) target = $region40
      $region39: #{_lambda_.23} parent=27 // pred_region
        _
      $region40: #{_lambda_.23} parent=27 // pred_fallthru
        _
    $region28: #{_lambda_.23} parent=5 // pred_fallthru
      _
    %p494 = scmp.le.s32.totalorder 2, %s11
    // Predicated region
    $region41: #{_lambda_.23} parent=5 // pred_check
      %p495 = pneg %p494
    $region42: #{_lambda_.23} parent=5 // pred_check_branch
      %497 = sbr.rel (%p495) target = $region44
    $region43: #{_lambda_.23} parent=5 // pred_region
      %s498 = ssub.s32 %s11, 2
      // Predicated region
      $region45: #{_lambda_.23} parent=43 // pred_check
        %p499 = pneg %p103
      $region46: #{_lambda_.23} parent=43 // pred_check_branch
        %501 = sbr.rel (%p499) target = $region48
      $region47: #{_lambda_.23} parent=43 // pred_region
        %s502 = smul.u32 2, %s23
        %p503 = scmp.lt.s32.totalorder %s22, 1
        %s504 = scalar_select %p503, %s22, 1
        %p505 = scmp.lt.s32.totalorder %s502, 1
        %s506 = scalar_select %p505, %s502, 1
        %s507 = smul.addr %s504, 2
        %s508 = sadd.s32 %s506, %s507
        %s509 = smul.addr %s508, 4
        %s510 = scalar_lea.vmem %s2, %s509
      $region48: #{_lambda_.23} parent=43 // pred_fallthru
        _
      // Predicated region
      $region49: #{_lambda_.23} parent=43 // pred_check
        %p511 = pneg %p131
      $region50: #{_lambda_.23} parent=43 // pred_check_branch
        %513 = sbr.rel (%p511) target = $region52
      $region51: #{_lambda_.23} parent=43 // pred_region
        %p514 = scmp.lt.s32.totalorder %s22, 1
        %s515 = scalar_select %p514, %s22, 1
        %p516 = scmp.lt.s32.totalorder %s23, 0
        %s517 = scalar_select %p516, %s23, 0
        %s518 = sadd.s32 %s517, %s515
        %s519 = scalar_lea.vmem %s3, %s518
      $region52: #{_lambda_.23} parent=43 // pred_fallthru
        _
      // Predicated region
      $region53: #{_lambda_.23} parent=43 // pred_check
        %p520 = pneg %p159
      $region54: #{_lambda_.23} parent=43 // pred_check_branch
        %522 = sbr.rel (%p520) target = $region56
      $region55: #{_lambda_.23} parent=43 // pred_region
        %p523 = scmp.lt.s32.totalorder %s22, 1
        %s524 = scalar_select %p523, %s22, 1
        %p525 = scmp.lt.s32.totalorder %s23, 0
        %s526 = scalar_select %p525, %s23, 0
        %s527 = sadd.s32 %s526, %s524
        %s528 = scalar_lea.vmem %s4, %s527
      $region56: #{_lambda_.23} parent=43 // pred_fallthru
        _
    $region44: #{_lambda_.23} parent=5 // pred_fallthru
      _
  $region6: #{_lambda_.23} parent=0 // loop_footer
    %s15 = sadd.s32 1, %s11
  $region7: #{_lambda_.23} parent=0 // loop_footer_branch
    %10 = sbr.rel target = $region3
  $region8: #{_lambda_.23} parent=0 // loop_exit
    _

// kernel: _lambda_.24
$region0: #{_lambda_.24}
  #allocation0 [shape = 'u32[]', space=smem, size = 0x4, offset = 0x4, fixed_abs, tag = 'smem constant byte address 0x4 - core index']
  #allocation1 [shape = 'u32[72,128]{1,0:T(1,128)}', space=vmem, size = 0x9000, scoped, tag = 'internal scratch']
  %s0 = inlined_call_operand.vmem [shape: bf16[2,16,128], index: 0, kind: input, shape index: {}]
  %s1 = inlined_call_operand.vmem [shape: f32[2,1,128], index: 1, kind: input, shape index: {}]
  %s2 = inlined_call_operand.vmem [shape: f32[2,1,128], index: 2, kind: input, shape index: {}]
  %s3 = inlined_call_operand.vmem [shape: bf16[2,16,128], index: 3, kind: output, shape index: {}]
  %s4 = sld [smem:[#allocation0]]
  $region45: #{_lambda_.24} parent=0
    _
  %s6 = ssub.s32 1, %s4
  %s7 = scalar_select 0, %s6, %s4
  loop: start=0, step=1, limit=4
  $region2: #{_lambda_.24} parent=0 // loop_pre_header
    _
  $region3: #{_lambda_.24} parent=0 // loop_header
    %s9 = sphi 0, %s13
    %p10 = scmp.ge.s32.totalorder %s9, 4
    %s16 = sphi 0, %s28
    %s17 = sphi 0, %s24
    %s18 = sphi 0, %s16
    %s19 = sphi 0, %s17
    %s20 = sphi 0, %s18
    %s21 = sphi 0, %s19
    %s33 = sphi 0, %s35
    %s36 = sphi 0, %s33
    %s37 = sphi 0, %s36
    %s53 = sphi 0, %s37
    %s59 = sphi 0, %s61
    %s62 = sphi 0, %s59
    %s63 = sphi 0, %s62
    %s79 = sphi 0, %s63
    %s85 = sphi 0, %s87
    %s88 = sphi 0, %s85
    %s89 = sphi 0, %s88
    %s105 = sphi 0, %s89
    %s113 = sphi 0, %s115
    %s116 = sphi 0, %s113
    %s117 = sphi 0, %s116
    %s133 = sphi 0, %s117
  $region4: #{_lambda_.24} parent=0 // loop_header_branch
    %12 = sbr.rel (%p10) target = $region8
  $region5: #{_lambda_.24} parent=0 // loop_body
    %s14 = ssub.s32 %s9, 1
    %s15 = ssub.s32 %s9, 2
    %s22 = sadd.s32 1, %s17
    %p23 = scmp.ge.s32.totalorder %s22, 1
    %s24 = scalar_select %p23, 0, %s22
    %s25 = sadd.s32 1, %s16
    %s26 = scalar_select %p23, %s25, %s16
    %p27 = scmp.ge.s32.totalorder %s26, 2
    %s28 = scalar_select %p27, 0, %s26
    %s29 = ssub.s32 %s16, %s28
    %s30 = ssub.s32 %s17, %s24
    %s31 = sor.u32 %s29, %s30
    %p32 = scmp.eq.s32.totalorder %s31, 0
    %s34 = sadd.s32 %s33, 1
    %s35 = scalar_select %p32, %s33, %s34
    %p38 = pneg %p32
    %p39 = scmp.eq.s32.totalorder %s9, 1
    %p40 = por %p38, %p39
    %p41 = scmp.ne.s32.totalorder %s33, %s36
    %p42 = scmp.eq.s32.totalorder %s9, 0
    %p43 = por %p41, %p42
    %p44 = scmp.ne.s32.totalorder %s33, %s36
    %p45 = scmp.eq.s32.totalorder %s14, 1
    %p46 = por %p44, %p45
    %p47 = scmp.ne.s32.totalorder %s36, %s37
    %p48 = scmp.eq.s32.totalorder %s14, 0
    %p49 = por %p47, %p48
    %p50 = scmp.ne.s32.totalorder %s36, %s37
    %p51 = scmp.eq.s32.totalorder %s15, 1
    %p52 = por %p50, %p51
    %p54 = scmp.ne.s32.totalorder %s37, %s53
    %p55 = scmp.eq.s32.totalorder %s15, 0
    %p56 = por %p54, %p55
    %s57 = ssub.s32 %s16, %s28
    %p58 = scmp.eq.s32.totalorder %s57, 0
    %s60 = sadd.s32 %s59, 1
    %s61 = scalar_select %p58, %s59, %s60
    %p64 = pneg %p58
    %p65 = scmp.eq.s32.totalorder %s9, 1
    %p66 = por %p64, %p65
    %p67 = scmp.ne.s32.totalorder %s59, %s62
    %p68 = scmp.eq.s32.totalorder %s9, 0
    %p69 = por %p67, %p68
    %p70 = scmp.ne.s32.totalorder %s59, %s62
    %p71 = scmp.eq.s32.totalorder %s14, 1
    %p72 = por %p70, %p71
    %p73 = scmp.ne.s32.totalorder %s62, %s63
    %p74 = scmp.eq.s32.totalorder %s14, 0
    %p75 = por %p73, %p74
    %p76 = scmp.ne.s32.totalorder %s62, %s63
    %p77 = scmp.eq.s32.totalorder %s15, 1
    %p78 = por %p76, %p77
    %p80 = scmp.ne.s32.totalorder %s63, %s79
    %p81 = scmp.eq.s32.totalorder %s15, 0
    %p82 = por %p80, %p81
    %s83 = ssub.s32 %s16, %s28
    %p84 = scmp.eq.s32.totalorder %s83, 0
    %s86 = sadd.s32 %s85, 1
    %s87 = scalar_select %p84, %s85, %s86
    %p90 = pneg %p84
    %p91 = scmp.eq.s32.totalorder %s9, 1
    %p92 = por %p90, %p91
    %p93 = scmp.ne.s32.totalorder %s85, %s88
    %p94 = scmp.eq.s32.totalorder %s9, 0
    %p95 = por %p93, %p94
    %p96 = scmp.ne.s32.totalorder %s85, %s88
    %p97 = scmp.eq.s32.totalorder %s14, 1
    %p98 = por %p96, %p97
    %p99 = scmp.ne.s32.totalorder %s88, %s89
    %p100 = scmp.eq.s32.totalorder %s14, 0
    %p101 = por %p99, %p100
    %p102 = scmp.ne.s32.totalorder %s88, %s89
    %p103 = scmp.eq.s32.totalorder %s15, 1
    %p104 = por %p102, %p103
    %p106 = scmp.ne.s32.totalorder %s89, %s105
    %p107 = scmp.eq.s32.totalorder %s15, 0
    %p108 = por %p106, %p107
    %s109 = ssub.s32 %s16, %s28
    %s110 = ssub.s32 %s17, %s24
    %s111 = sor.u32 %s109, %s110
    %p112 = scmp.eq.s32.totalorder %s111, 0
    %s114 = sadd.s32 %s113, 1
    %s115 = scalar_select %p112, %s113, %s114
    %p118 = pneg %p112
    %p119 = scmp.eq.s32.totalorder %s9, 1
    %p120 = por %p118, %p119
    %p121 = scmp.ne.s32.totalorder %s113, %s116
    %p122 = scmp.eq.s32.totalorder %s9, 0
    %p123 = por %p121, %p122
    %p124 = scmp.ne.s32.totalorder %s113, %s116
    %p125 = scmp.eq.s32.totalorder %s14, 1
    %p126 = por %p124, %p125
    %p127 = scmp.ne.s32.totalorder %s116, %s117
    %p128 = scmp.eq.s32.totalorder %s14, 0
    %p129 = por %p127, %p128
    %p130 = scmp.ne.s32.totalorder %s116, %s117
    %p131 = scmp.eq.s32.totalorder %s15, 1
    %p132 = por %p130, %p131
    %p134 = scmp.ne.s32.totalorder %s117, %s133
    %p135 = scmp.eq.s32.totalorder %s15, 0
    %p136 = por %p134, %p135
    %p137 = scmp.le.s32.totalorder 1, %s9
    %p138 = scmp.lt.s32.totalorder %s9, 3
    %p139 = pnand %p137, %p138
    %p140 = pneg %p139
    // Predicated region
    $region9: #{_lambda_.24} parent=5 // pred_check
      _
    $region10: #{_lambda_.24} parent=5 // pred_check_branch
      %142 = sbr.rel (%p139) target = $region12
    $region11: #{_lambda_.24} parent=5 // pred_region
      %s143 = ssub.s32 %s9, 1
    $region12: #{_lambda_.24} parent=5 // pred_fallthru
      _
    %p144 = scmp.lt.s32.totalorder %s9, 2
    // Predicated region
    $region13: #{_lambda_.24} parent=5 // pred_check
      %p145 = pneg %p144
    $region14: #{_lambda_.24} parent=5 // pred_check_branch
      %147 = sbr.rel (%p145) target = $region16
    $region15: #{_lambda_.24} parent=5 // pred_region
      // Predicated region
      $region17: #{_lambda_.24} parent=15 // pred_check
        %p148 = pneg %p43
      $region18: #{_lambda_.24} parent=15 // pred_check_branch
        %150 = sbr.rel (%p148) target = $region20
      $region19: #{_lambda_.24} parent=15 // pred_region
        %s151 = smul.u32 2, %s17
        %p152 = scmp.lt.s32.totalorder %s16, 1
        %s153 = scalar_select %p152, %s16, 1
        %p154 = scmp.lt.s32.totalorder %s151, 1
        %s155 = scalar_select %p154, %s151, 1
        %s156 = smul.addr %s153, 2
        %s157 = sadd.s32 %s155, %s156
        %s158 = smul.addr %s157, 4
        %s159 = scalar_lea.vmem %s0, %s158
        %s160 = smul.u32 2, %s17
      $region20: #{_lambda_.24} parent=15 // pred_fallthru
        _
      // Predicated region
      $region21: #{_lambda_.24} parent=15 // pred_check
        %p161 = pneg %p69
      $region22: #{_lambda_.24} parent=15 // pred_check_branch
        %163 = sbr.rel (%p161) target = $region24
      $region23: #{_lambda_.24} parent=15 // pred_region
        %p164 = scmp.lt.s32.totalorder %s16, 1
        %s165 = scalar_select %p164, %s16, 1
        %s166 = scalar_lea.vmem %s1, %s165
      $region24: #{_lambda_.24} parent=15 // pred_fallthru
        _
      // Predicated region
      $region25: #{_lambda_.24} parent=15 // pred_check
        %p167 = pneg %p95
      $region26: #{_lambda_.24} parent=15 // pred_check_branch
        %169 = sbr.rel (%p167) target = $region28
      $region27: #{_lambda_.24} parent=15 // pred_region
        %p170 = scmp.lt.s32.totalorder %s16, 1
        %s171 = scalar_select %p170, %s16, 1
        %s172 = scalar_lea.vmem %s2, %s171
      $region28: #{_lambda_.24} parent=15 // pred_fallthru
        _
    $region16: #{_lambda_.24} parent=5 // pred_fallthru
      _
    %p173 = scmp.le.s32.totalorder 1, %s9
    %p174 = scmp.lt.s32.totalorder %s9, 3
    %p175 = pnand %p173, %p174
    %p176 = pneg %p175
    // Predicated region
    $region29: #{_lambda_.24} parent=5 // pred_check
      _
    $region30: #{_lambda_.24} parent=5 // pred_check_branch
      %178 = sbr.rel (%p175) target = $region32
    $region31: #{_lambda_.24} parent=5 // pred_region
      %s179 = ssub.s32 %s9, 1
      %s180 = smul.u32 2, %s19
      %p181 = scmp.lt.s32.totalorder %s18, 1
      %s182 = scalar_select %p181, %s18, 1
      %p183 = scmp.lt.s32.totalorder %s180, 1
      %s184 = scalar_select %p183, %s180, 1
      %s185 = smul.addr %s182, 2
      %s186 = sadd.s32 %s184, %s185
      %s187 = smul.addr %s186, 4
      %s188 = scalar_lea.vmem %s0, %s187
      %p189 = pneg %p49
      %p190 = pneg %p46
      %p191 = scmp.lt.s32.totalorder %s18, 1
      %s192 = scalar_select %p191, %s18, 1
      %s193 = scalar_lea.vmem %s1, %s192
      %p194 = pneg %p75
      %p195 = pneg %p72
      %p196 = scmp.lt.s32.totalorder %s18, 1
      %s197 = scalar_select %p196, %s18, 1
      %s198 = scalar_lea.vmem %s2, %s197
      %p199 = pneg %p101
      %p200 = pneg %p98
      %p201 = pneg %p129
      %p202 = pneg %p126
      %s203 = smul.u32 2, %s19
      %p204 = scmp.lt.s32.totalorder %s18, 1
      %s205 = scalar_select %p204, %s18, 1
      %p206 = scmp.lt.s32.totalorder %s203, 1
      %s207 = scalar_select %p206, %s203, 1
      %s208 = smul.addr %s205, 2
      %s209 = sadd.s32 %s207, %s208
      %s210 = smul.addr %s209, 4
      %s211 = scalar_lea.vmem %s3, %s210
      %s212 = smul.u32 2, %s19
      %p213 = scmp.lt.s32.totalorder %s18, 1
      %s214 = scalar_select %p213, %s18, 1
      %p215 = scmp.lt.s32.totalorder %s212, 1
      %s216 = scalar_select %p215, %s212, 1
      %s217 = smul.addr %s214, 2
      %s218 = sadd.s32 %s216, %s217
      %s219 = smul.addr %s218, 4
      %s220 = scalar_lea.vmem %s0, %s219
      %s221 = smul.u32 2, %s19
      %p222 = scmp.lt.s32.totalorder %s18, 1
      %s223 = scalar_select %p222, %s18, 1
      %s224 = scalar_lea.vmem %s1, %s223
      %p225 = scmp.lt.s32.totalorder %s18, 1
      %s226 = scalar_select %p225, %s18, 1
      %s227 = scalar_lea.vmem %s2, %s226
      %s228 = smul.u32 2, %s19
      %p229 = scmp.lt.s32.totalorder %s18, 1
      %s230 = scalar_select %p229, %s18, 1
      %p231 = scmp.lt.s32.totalorder %s228, 1
      %s232 = scalar_select %p231, %s228, 1
      %s233 = smul.addr %s230, 2
      %s234 = sadd.s32 %s232, %s233
      %s235 = smul.addr %s234, 4
      %s236 = scalar_lea.vmem %s3, %s235
      %s237 = smul.u32 2, %s19
      %v238 = vld [vmem:[%s220] sm:$0xf]
      %v239 = vld [vmem:[%s220 + $0x4] sm:$0xf]
      %v240 = vunpack.c.l.bf16 %v238
      %v241 = vunpack.c.l.bf16 %v239
      %v242 = vld [vmem:[%s224] sm:$0x1]
      %v244 = vperm.slane %v242, 0
      %v246 = vmul.f32 %v240, %v244
      %v247 = vmul.f32 %v241, %v244
      %v248 = vld [vmem:[%s227] sm:$0x1]
      %v250 = vperm.slane %v248, 0
      %v252 = vadd.f32 %v246, %v250
      %v253 = vadd.f32 %v247, %v250
      %v254 = vmax.f32 %v252, 0.0
      %v255 = vmax.f32 %v253, 0.0
      %v256 = vpack.c.bf16 %v254, %v254
      %v257 = vpack.c.bf16 %v255, %v255
      %258 = vst [vmem:[%s236] sm:$0xf] %v256
      %259 = vst [vmem:[%s236 + $0x4] sm:$0xf] %v257
      %s260 = smul.u32 2, %s19
      %p261 = scmp.lt.s32.totalorder %s18, 1
      %s262 = scalar_select %p261, %s18, 1
      %p263 = scmp.lt.s32.totalorder %s260, 1
      %s264 = scalar_select %p263, %s260, 1
      %s265 = smul.addr %s262, 2
      %s266 = sadd.s32 %s264, %s265
      %s267 = smul.addr %s266, 4
      %s268 = scalar_lea.vmem %s3, %s267
      // Predicated region
      $region33: #{_lambda_.24} parent=31 // pred_check
        %p269 = pneg %p126
      $region34: #{_lambda_.24} parent=31 // pred_check_branch
        %271 = sbr.rel (%p269) target = $region36
      $region35: #{_lambda_.24} parent=31 // pred_region
        %s272 = smul.u32 2, %s19
      $region36: #{_lambda_.24} parent=31 // pred_fallthru
        _
    $region32: #{_lambda_.24} parent=5 // pred_fallthru
      _
    %p273 = scmp.le.s32.totalorder 2, %s9
    // Predicated region
    $region37: #{_lambda_.24} parent=5 // pred_check
      %p274 = pneg %p273
    $region38: #{_lambda_.24} parent=5 // pred_check_branch
      %276 = sbr.rel (%p274) target = $region40
    $region39: #{_lambda_.24} parent=5 // pred_region
      %s277 = ssub.s32 %s9, 2
      // Predicated region
      $region41: #{_lambda_.24} parent=39 // pred_check
        %p278 = pneg %p132
      $region42: #{_lambda_.24} parent=39 // pred_check_branch
        %280 = sbr.rel (%p278) target = $region44
      $region43: #{_lambda_.24} parent=39 // pred_region
        %s281 = smul.u32 2, %s21
        %p282 = scmp.lt.s32.totalorder %s20, 1
        %s283 = scalar_select %p282, %s20, 1
        %p284 = scmp.lt.s32.totalorder %s281, 1
        %s285 = scalar_select %p284, %s281, 1
        %s286 = smul.addr %s283, 2
        %s287 = sadd.s32 %s285, %s286
        %s288 = smul.addr %s287, 4
        %s289 = scalar_lea.vmem %s3, %s288
      $region44: #{_lambda_.24} parent=39 // pred_fallthru
        _
    $region40: #{_lambda_.24} parent=5 // pred_fallthru
      _
  $region6: #{_lambda_.24} parent=0 // loop_footer
    %s13 = sadd.s32 1, %s9
  $region7: #{_lambda_.24} parent=0 // loop_footer_branch
    %8 = sbr.rel target = $region3
  $region8: #{_lambda_.24} parent=0 // loop_exit
    _

// kernel: _lambda_.25
$region0: #{_lambda_.25}
  #allocation0 [shape = 'u32[]', space=smem, size = 0x4, offset = 0x4, fixed_abs, tag = 'smem constant byte address 0x4 - core index']
  #allocation1 [shape = 'u32[72,128]{1,0:T(1,128)}', space=vmem, size = 0x9000, scoped, tag = 'internal scratch']
  %s0 = inlined_call_operand.vmem [shape: bf16[2,16,384], index: 0, kind: input, shape index: {}]
  %s1 = inlined_call_operand.vmem [shape: bf16[384,128], index: 1, kind: input, shape index: {}]
  %s2 = inlined_call_operand.vmem [shape: bf16[2,16,128], index: 2, kind: output, shape index: {0}]
  %s3 = inlined_call_operand.vmem [shape: f32[2,1,1,128], index: 3, kind: output, shape index: {1}]
  %s4 = inlined_call_operand.vmem [shape: f32[2,1,1,128], index: 4, kind: output, shape index: {2}]
  %5 = xla_tuple %s2, %s3, %s4
  %s6 = sld [smem:[#allocation0]]
  $region57: #{_lambda_.25} parent=0
    _
  %s8 = ssub.s32 1, %s6
  %s9 = scalar_select 0, %s8, %s6
  loop: start=0, step=1, limit=4
  $region2: #{_lambda_.25} parent=0 // loop_pre_header
    _
  $region3: #{_lambda_.25} parent=0 // loop_header
    %s11 = sphi 0, %s15
    %p12 = scmp.ge.s32.totalorder %s11, 4
    %s18 = sphi 0, %s30
    %s19 = sphi 0, %s26
    %s20 = sphi 0, %s18
    %s21 = sphi 0, %s19
    %s22 = sphi 0, %s20
    %s23 = sphi 0, %s21
    %s35 = sphi 0, %s37
    %s38 = sphi 0, %s35
    %s39 = sphi 0, %s38
    %s55 = sphi 0, %s39
    %s59 = sphi 0, %s59
    %s61 = sphi 0, %s59
    %s62 = sphi 0, %s61
    %s76 = sphi 0, %s62
    %s84 = sphi 0, %s86
    %s87 = sphi 0, %s84
    %s88 = sphi 0, %s87
    %s104 = sphi 0, %s88
    %s112 = sphi 0, %s114
    %s115 = sphi 0, %s112
    %s116 = sphi 0, %s115
    %s132 = sphi 0, %s116
    %s140 = sphi 0, %s142
    %s143 = sphi 0, %s140
    %s144 = sphi 0, %s143
    %s160 = sphi 0, %s144
  $region4: #{_lambda_.25} parent=0 // loop_header_branch
    %14 = sbr.rel (%p12) target = $region8
  $region5: #{_lambda_.25} parent=0 // loop_body
    %s16 = ssub.s32 %s11, 1
    %s17 = ssub.s32 %s11, 2
    %s24 = sadd.s32 1, %s19
    %p25 = scmp.ge.s32.totalorder %s24, 1
    %s26 = scalar_select %p25, 0, %s24
    %s27 = sadd.s32 1, %s18
    %s28 = scalar_select %p25, %s27, %s18
    %p29 = scmp.ge.s32.totalorder %s28, 2
    %s30 = scalar_select %p29, 0, %s28
    %s31 = ssub.s32 %s18, %s30
    %s32 = ssub.s32 %s19, %s26
    %s33 = sor.u32 %s31, %s32
    %p34 = scmp.eq.s32.totalorder %s33, 0
    %s36 = sadd.s32 %s35, 1
    %s37 = scalar_select %p34, %s35, %s36
    %p40 = pneg %p34
    %p41 = scmp.eq.s32.totalorder %s11, 1
    %p42 = por %p40, %p41
    %p43 = scmp.ne.s32.totalorder %s35, %s38
    %p44 = scmp.eq.s32.totalorder %s11, 0
    %p45 = por %p43, %p44
    %p46 = scmp.ne.s32.totalorder %s35, %s38
    %p47 = scmp.eq.s32.totalorder %s16, 1
    %p48 = por %p46, %p47
    %p49 = scmp.ne.s32.totalorder %s38, %s39
    %p50 = scmp.eq.s32.totalorder %s16, 0
    %p51 = por %p49, %p50
    %p52 = scmp.ne.s32.totalorder %s38, %s39
    %p53 = scmp.eq.s32.totalorder %s17, 1
    %p54 = por %p52, %p53
    %p56 = scmp.ne.s32.totalorder %s39, %s55
    %p57 = scmp.eq.s32.totalorder %s17, 0
    %p58 = por %p56, %p57
    %s60 = sadd.s32 %s59, 1
    %p63 = scmp.eq.s32.totalorder %s11, 1
    %p64 = scmp.ne.s32.totalorder %s59, %s61
    %p65 = scmp.eq.s32.totalorder %s11, 0
    %p66 = por %p64, %p65
    %p67 = scmp.ne.s32.totalorder %s59, %s61
    %p68 = scmp.eq.s32.totalorder %s16, 1
    %p69 = por %p67, %p68
    %p70 = scmp.ne.s32.totalorder %s61, %s62
    %p71 = scmp.eq.s32.totalorder %s16, 0
    %p72 = por %p70, %p71
    %p73 = scmp.ne.s32.totalorder %s61, %s62
    %p74 = scmp.eq.s32.totalorder %s17, 1
    %p75 = por %p73, %p74
    %p77 = scmp.ne.s32.totalorder %s62, %s76
    %p78 = scmp.eq.s32.totalorder %s17, 0
    %p79 = por %p77, %p78
    %s80 = ssub.s32 %s18, %s30
    %s81 = ssub.s32 %s19, %s26
    %s82 = sor.u32 %s80, %s81
    %p83 = scmp.eq.s32.totalorder %s82, 0
    %s85 = sadd.s32 %s84, 1
    %s86 = scalar_select %p83, %s84, %s85
    %p89 = pneg %p83
    %p90 = scmp.eq.s32.totalorder %s11, 1
    %p91 = por %p89, %p90
    %p92 = scmp.ne.s32.totalorder %s84, %s87
    %p93 = scmp.eq.s32.totalorder %s11, 0
    %p94 = por %p92, %p93
    %p95 = scmp.ne.s32.totalorder %s84, %s87
    %p96 = scmp.eq.s32.totalorder %s16, 1
    %p97 = por %p95, %p96
    %p98 = scmp.ne.s32.totalorder %s87, %s88
    %p99 = scmp.eq.s32.totalorder %s16, 0
    %p100 = por %p98, %p99
    %p101 = scmp.ne.s32.totalorder %s87, %s88
    %p102 = scmp.eq.s32.totalorder %s17, 1
    %p103 = por %p101, %p102
    %p105 = scmp.ne.s32.totalorder %s88, %s104
    %p106 = scmp.eq.s32.totalorder %s17, 0
    %p107 = por %p105, %p106
    %s108 = ssub.s32 %s18, %s30
    %s109 = ssub.s32 %s19, %s26
    %s110 = sor.u32 %s108, %s109
    %p111 = scmp.eq.s32.totalorder %s110, 0
    %s113 = sadd.s32 %s112, 1
    %s114 = scalar_select %p111, %s112, %s113
    %p117 = pneg %p111
    %p118 = scmp.eq.s32.totalorder %s11, 1
    %p119 = por %p117, %p118
    %p120 = scmp.ne.s32.totalorder %s112, %s115
    %p121 = scmp.eq.s32.totalorder %s11, 0
    %p122 = por %p120, %p121
    %p123 = scmp.ne.s32.totalorder %s112, %s115
    %p124 = scmp.eq.s32.totalorder %s16, 1
    %p125 = por %p123, %p124
    %p126 = scmp.ne.s32.totalorder %s115, %s116
    %p127 = scmp.eq.s32.totalorder %s16, 0
    %p128 = por %p126, %p127
    %p129 = scmp.ne.s32.totalorder %s115, %s116
    %p130 = scmp.eq.s32.totalorder %s17, 1
    %p131 = por %p129, %p130
    %p133 = scmp.ne.s32.totalorder %s116, %s132
    %p134 = scmp.eq.s32.totalorder %s17, 0
    %p135 = por %p133, %p134
    %s136 = ssub.s32 %s18, %s30
    %s137 = ssub.s32 %s19, %s26
    %s138 = sor.u32 %s136, %s137
    %p139 = scmp.eq.s32.totalorder %s138, 0
    %s141 = sadd.s32 %s140, 1
    %s142 = scalar_select %p139, %s140, %s141
    %p145 = pneg %p139
    %p146 = scmp.eq.s32.totalorder %s11, 1
    %p147 = por %p145, %p146
    %p148 = scmp.ne.s32.totalorder %s140, %s143
    %p149 = scmp.eq.s32.totalorder %s11, 0
    %p150 = por %p148, %p149
    %p151 = scmp.ne.s32.totalorder %s140, %s143
    %p152 = scmp.eq.s32.totalorder %s16, 1
    %p153 = por %p151, %p152
    %p154 = scmp.ne.s32.totalorder %s143, %s144
    %p155 = scmp.eq.s32.totalorder %s16, 0
    %p156 = por %p154, %p155
    %p157 = scmp.ne.s32.totalorder %s143, %s144
    %p158 = scmp.eq.s32.totalorder %s17, 1
    %p159 = por %p157, %p158
    %p161 = scmp.ne.s32.totalorder %s144, %s160
    %p162 = scmp.eq.s32.totalorder %s17, 0
    %p163 = por %p161, %p162
    %p164 = scmp.le.s32.totalorder 1, %s11
    %p165 = scmp.lt.s32.totalorder %s11, 3
    %p166 = pnand %p164, %p165
    %p167 = pneg %p166
    // Predicated region
    $region9: #{_lambda_.25} parent=5 // pred_check
      _
    $region10: #{_lambda_.25} parent=5 // pred_check_branch
      %169 = sbr.rel (%p166) target = $region12
    $region11: #{_lambda_.25} parent=5 // pred_region
      %s170 = ssub.s32 %s11, 1
      // Predicated region
      $region13: #{_lambda_.25} parent=11 // pred_check
        %p171 = pneg %p72
      $region14: #{_lambda_.25} parent=11 // pred_check_branch
        %173 = sbr.rel (%p171) target = $region16
      $region15: #{_lambda_.25} parent=11 // pred_region
        _
      $region16: #{_lambda_.25} parent=11 // pred_fallthru
        _
    $region12: #{_lambda_.25} parent=5 // pred_fallthru
      _
    %p174 = scmp.lt.s32.totalorder %s11, 2
    // Predicated region
    $region17: #{_lambda_.25} parent=5 // pred_check
      %p175 = pneg %p174
    $region18: #{_lambda_.25} parent=5 // pred_check_branch
      %177 = sbr.rel (%p175) target = $region20
    $region19: #{_lambda_.25} parent=5 // pred_region
      // Predicated region
      $region21: #{_lambda_.25} parent=19 // pred_check
        %p178 = pneg %p45
      $region22: #{_lambda_.25} parent=19 // pred_check_branch
        %180 = sbr.rel (%p178) target = $region24
      $region23: #{_lambda_.25} parent=19 // pred_region
        %s181 = smul.u32 2, %s19
        %p182 = scmp.lt.s32.totalorder %s18, 1
        %s183 = scalar_select %p182, %s18, 1
        %p184 = scmp.lt.s32.totalorder %s181, 1
        %s185 = scalar_select %p184, %s181, 1
        %s186 = smul.addr %s185, 3
        %s187 = smul.addr %s183, 6
        %s188 = sadd.s32 %s186, %s187
        %s189 = smul.addr %s188, 4
        %s190 = scalar_lea.vmem %s0, %s189
        %s191 = smul.u32 2, %s19
      $region24: #{_lambda_.25} parent=19 // pred_fallthru
        _
    $region20: #{_lambda_.25} parent=5 // pred_fallthru
      _
    %p192 = scmp.le.s32.totalorder 1, %s11
    %p193 = scmp.lt.s32.totalorder %s11, 3
    %p194 = pnand %p192, %p193
    %p195 = pneg %p194
    // Predicated region
    $region25: #{_lambda_.25} parent=5 // pred_check
      _
    $region26: #{_lambda_.25} parent=5 // pred_check_branch
      %197 = sbr.rel (%p194) target = $region28
    $region27: #{_lambda_.25} parent=5 // pred_region
      %s198 = ssub.s32 %s11, 1
      %s199 = smul.u32 2, %s21
      %p200 = scmp.lt.s32.totalorder %s20, 1
      %s201 = scalar_select %p200, %s20, 1
      %p202 = scmp.lt.s32.totalorder %s199, 1
      %s203 = scalar_select %p202, %s199, 1
      %s204 = smul.addr %s203, 3
      %s205 = smul.addr %s201, 6
      %s206 = sadd.s32 %s204, %s205
      %s207 = smul.addr %s206, 4
      %s208 = scalar_lea.vmem %s0, %s207
      %p209 = pneg %p51
      %p210 = pneg %p48
      %p211 = pneg %p72
      %p212 = pneg %p69
      %p213 = pneg %p100
      %p214 = pneg %p97
      %s215 = smul.u32 2, %s21
      %p216 = scmp.lt.s32.totalorder %s20, 1
      %s217 = scalar_select %p216, %s20, 1
      %p218 = scmp.lt.s32.totalorder %s215, 1
      %s219 = scalar_select %p218, %s215, 1
      %s220 = smul.addr %s217, 2
      %s221 = sadd.s32 %s219, %s220
      %s222 = smul.addr %s221, 4
      %s223 = scalar_lea.vmem %s2, %s222
      %p224 = pneg %p128
      %p225 = pneg %p125
      %p226 = scmp.lt.s32.totalorder %s20, 1
      %s227 = scalar_select %p226, %s20, 1
      %p228 = scmp.lt.s32.totalorder %s21, 0
      %s229 = scalar_select %p228, %s21, 0
      %s230 = sadd.s32 %s229, %s227
      %s231 = scalar_lea.vmem %s3, %s230
      %p232 = pneg %p156
      %p233 = pneg %p153
      %p234 = scmp.lt.s32.totalorder %s20, 1
      %s235 = scalar_select %p234, %s20, 1
      %p236 = scmp.lt.s32.totalorder %s21, 0
      %s237 = scalar_select %p236, %s21, 0
      %s238 = sadd.s32 %s237, %s235
      %s239 = scalar_lea.vmem %s4, %s238
      %s240 = smul.u32 2, %s21
      %p241 = scmp.lt.s32.totalorder %s20, 1
      %s242 = scalar_select %p241, %s20, 1
      %p243 = scmp.lt.s32.totalorder %s240, 1
      %s244 = scalar_select %p243, %s240, 1
      %s245 = smul.addr %s244, 3
      %s246 = smul.addr %s242, 6
      %s247 = sadd.s32 %s245, %s246
      %s248 = smul.addr %s247, 4
      %s249 = scalar_lea.vmem %s0, %s248
      %s250 = smul.u32 2, %s21
      %s251 = smul.u32 2, %s21
      %p252 = scmp.lt.s32.totalorder %s20, 1
      %s253 = scalar_select %p252, %s20, 1
      %p254 = scmp.lt.s32.totalorder %s251, 1
      %s255 = scalar_select %p254, %s251, 1
      %s256 = smul.addr %s253, 2
      %s257 = sadd.s32 %s255, %s256
      %s258 = smul.addr %s257, 4
      %s259 = scalar_lea.vmem %s2, %s258
      %s260 = smul.u32 2, %s21
      %p261 = scmp.lt.s32.totalorder %s20, 1
      %s262 = scalar_select %p261, %s20, 1
      %p263 = scmp.lt.s32.totalorder %s21, 0
      %s264 = scalar_select %p263, %s21, 0
      %s265 = sadd.s32 %s264, %s262
      %s266 = scalar_lea.vmem %s3, %s265
      %p267 = scmp.lt.s32.totalorder %s20, 1
      %s268 = scalar_select %p267, %s20, 1
      %p269 = scmp.lt.s32.totalorder %s21, 0
      %s270 = scalar_select %p269, %s21, 0
      %s271 = sadd.s32 %s270, %s268
      %s272 = scalar_lea.vmem %s4, %s271
      %v273 = vld [vmem:[%s249] sm:$0xff]
      %v274 = vld [vmem:[%s249 + $0x8] sm:$0xf]
      %v275 = vld [vmem:[%s249 + $0xc] sm:$0xff]
      %v276 = vld [vmem:[%s249 + $0x14] sm:$0xf]
      %v277 = vld [vmem:[%s1] sm:$0xf]
      %v278 = vld [vmem:[%s1 + $0x4] sm:$0xf]
      %v279 = vld [vmem:[%s1 + $0x8] sm:$0xf]
      %v280 = vld [vmem:[%s1 + $0xc] sm:$0xf]
      %v281 = vld [vmem:[%s1 + $0x10] sm:$0xf]
      %v282 = vld [vmem:[%s1 + $0x14] sm:$0xf]
      %v283 = vld [vmem:[%s1 + $0x18] sm:$0xf]
      %v284 = vld [vmem:[%s1 + $0x1c] sm:$0xf]
      %v285 = vld [vmem:[%s1 + $0x20] sm:$0xf]
      %v286 = vld [vmem:[%s1 + $0x24] sm:$0xf]
      %v287 = vld [vmem:[%s1 + $0x28] sm:$0xf]
      %v288 = vld [vmem:[%s1 + $0x2c] sm:$0xf]
      %v289 = vld [vmem:[%s1 + $0x30] sm:$0xf]
      %v290 = vld [vmem:[%s1 + $0x34] sm:$0xf]
      %v291 = vld [vmem:[%s1 + $0x38] sm:$0xf]
      %v292 = vld [vmem:[%s1 + $0x3c] sm:$0xf]
      %v293 = vld [vmem:[%s1 + $0x40] sm:$0xf]
      %v294 = vld [vmem:[%s1 + $0x44] sm:$0xf]
      %v295 = vld [vmem:[%s1 + $0x48] sm:$0xf]
      %v296 = vld [vmem:[%s1 + $0x4c] sm:$0xf]
      %v297 = vld [vmem:[%s1 + $0x50] sm:$0xf]
      %v298 = vld [vmem:[%s1 + $0x54] sm:$0xf]
      %v299 = vld [vmem:[%s1 + $0x58] sm:$0xf]
      %v300 = vld [vmem:[%s1 + $0x5c] sm:$0xf]
      %v301 = vld [vmem:[%s1 + $0x60] sm:$0xf]
      %v302 = vld [vmem:[%s1 + $0x64] sm:$0xf]
      %v303 = vld [vmem:[%s1 + $0x68] sm:$0xf]
      %v304 = vld [vmem:[%s1 + $0x6c] sm:$0xf]
      %v305 = vld [vmem:[%s1 + $0x70] sm:$0xf]
      %v306 = vld [vmem:[%s1 + $0x74] sm:$0xf]
      %v307 = vld [vmem:[%s1 + $0x78] sm:$0xf]
      %v308 = vld [vmem:[%s1 + $0x7c] sm:$0xf]
      %v309 = vld [vmem:[%s1 + $0x80] sm:$0xf]
      %v310 = vld [vmem:[%s1 + $0x84] sm:$0xf]
      %v311 = vld [vmem:[%s1 + $0x88] sm:$0xf]
      %v312 = vld [vmem:[%s1 + $0x8c] sm:$0xf]
      %v313 = vld [vmem:[%s1 + $0x90] sm:$0xf]
      %v314 = vld [vmem:[%s1 + $0x94] sm:$0xf]
      %v315 = vld [vmem:[%s1 + $0x98] sm:$0xf]
      %v316 = vld [vmem:[%s1 + $0x9c] sm:$0xf]
      %v317 = vld [vmem:[%s1 + $0xa0] sm:$0xf]
      %v318 = vld [vmem:[%s1 + $0xa4] sm:$0xf]
      %v319 = vld [vmem:[%s1 + $0xa8] sm:$0xf]
      %v320 = vld [vmem:[%s1 + $0xac] sm:$0xf]
      %v321 = vld [vmem:[%s1 + $0xb0] sm:$0xf]
      %v322 = vld [vmem:[%s1 + $0xb4] sm:$0xf]
      %v323 = vld [vmem:[%s1 + $0xb8] sm:$0xf]
      %v324 = vld [vmem:[%s1 + $0xbc] sm:$0xf]
      %v329 = vunpack.c.l.b16 %v273
      %v330 = vunpack.c.h.b16 %v273
      %v331 = vunpack.c.l.b16 %v274
      %v332 = vunpack.c.l.b16 %v275
      %v333 = vunpack.c.h.b16 %v275
      %v334 = vunpack.c.l.b16 %v276
      %v335 = vpack.c.b16 %v332, %v329
      %v336 = vpack.c.b16 %v333, %v330
      %v337 = vpack.c.b16 %v334, %v331
      %v389 = vunpack.c.l.b16 %v277
      %v390 = vunpack.c.l.b16 %v278
      %v391 = vunpack.c.l.b16 %v279
      %v392 = vunpack.c.l.b16 %v280
      %v393 = vunpack.c.l.b16 %v281
      %v394 = vunpack.c.l.b16 %v282
      %v395 = vunpack.c.l.b16 %v283
      %v396 = vunpack.c.l.b16 %v284
      %v397 = vunpack.c.l.b16 %v285
      %v398 = vunpack.c.l.b16 %v286
      %v399 = vunpack.c.l.b16 %v287
      %v400 = vunpack.c.l.b16 %v288
      %v401 = vunpack.c.l.b16 %v289
      %v402 = vunpack.c.l.b16 %v290
      %v403 = vunpack.c.l.b16 %v291
      %v404 = vunpack.c.l.b16 %v292
      %v405 = vunpack.c.l.b16 %v293
      %v406 = vunpack.c.l.b16 %v294
      %v407 = vunpack.c.l.b16 %v295
      %v408 = vunpack.c.l.b16 %v296
      %v409 = vunpack.c.l.b16 %v297
      %v410 = vunpack.c.l.b16 %v298
      %v411 = vunpack.c.l.b16 %v299
      %v412 = vunpack.c.l.b16 %v300
      %v413 = vunpack.c.l.b16 %v301
      %v414 = vunpack.c.l.b16 %v302
      %v415 = vunpack.c.l.b16 %v303
      %v416 = vunpack.c.l.b16 %v304
      %v417 = vunpack.c.l.b16 %v305
      %v418 = vunpack.c.l.b16 %v306
      %v419 = vunpack.c.l.b16 %v307
      %v420 = vunpack.c.l.b16 %v308
      %v421 = vunpack.c.l.b16 %v309
      %v422 = vunpack.c.l.b16 %v310
      %v423 = vunpack.c.l.b16 %v311
      %v424 = vunpack.c.l.b16 %v312
      %v425 = vunpack.c.l.b16 %v313
      %v426 = vunpack.c.l.b16 %v314
      %v427 = vunpack.c.l.b16 %v315
      %v428 = vunpack.c.l.b16 %v316
      %v429 = vunpack.c.l.b16 %v317
      %v430 = vunpack.c.l.b16 %v318
      %v431 = vunpack.c.l.b16 %v319
      %v432 = vunpack.c.l.b16 %v320
      %v433 = vunpack.c.l.b16 %v321
      %v434 = vunpack.c.l.b16 %v322
      %v435 = vunpack.c.l.b16 %v323
      %v436 = vunpack.c.l.b16 %v324
      %v437 = vpack.c.b16 %v390, %v389
      %v438 = vpack.c.b16 %v392, %v391
      %v439 = vpack.c.b16 %v394, %v393
      %v440 = vpack.c.b16 %v396, %v395
      %v441 = vpack.c.b16 %v398, %v397
      %v442 = vpack.c.b16 %v400, %v399
      %v443 = vpack.c.b16 %v402, %v401
      %v444 = vpack.c.b16 %v404, %v403
      %v445 = vpack.c.b16 %v406, %v405
      %v446 = vpack.c.b16 %v408, %v407
      %v447 = vpack.c.b16 %v410, %v409
      %v448 = vpack.c.b16 %v412, %v411
      %v449 = vpack.c.b16 %v414, %v413
      %v450 = vpack.c.b16 %v416, %v415
      %v451 = vpack.c.b16 %v418, %v417
      %v452 = vpack.c.b16 %v420, %v419
      %v453 = vpack.c.b16 %v422, %v421
      %v454 = vpack.c.b16 %v424, %v423
      %v455 = vpack.c.b16 %v426, %v425
      %v456 = vpack.c.b16 %v428, %v427
      %v457 = vpack.c.b16 %v430, %v429
      %v458 = vpack.c.b16 %v432, %v431
      %v459 = vpack.c.b16 %v434, %v433
      %v460 = vpack.c.b16 %v436, %v435
      %485 = vmatpush.bf16.msra.mxu0 %v444
      %486 = vmatpush.bf16.msra.mxu0 %v443
      %487 = vmatpush.bf16.msra.mxu0 %v442
      %488 = vmatpush.bf16.msra.mxu0 %v441
      %489 = vmatpush.bf16.msra.mxu0 %v440
      %490 = vmatpush.bf16.msra.mxu0 %v439
      %491 = vmatpush.bf16.msra.mxu0 %v438
      %492 = vmatpush.bf16.msra.mxu0 %v437
      %493 = vmatmul.bf16.gmra.mxu0 %v335
      %v494 = vpop.f32.mrf.mxu0
      %v495 = vadd.f32 0.0, %v494
      %v496 = vpop.f32.mrf.mxu0
      %v497 = vadd.f32 0.0, %v496
      %498 = vdwg.mxu0
      %499 = vmatpush.bf16.msra.mxu0 %v452
      %500 = vmatpush.bf16.msra.mxu0 %v451
      %501 = vmatpush.bf16.msra.mxu0 %v450
      %502 = vmatpush.bf16.msra.mxu0 %v449
      %503 = vmatpush.bf16.msra.mxu0 %v448
      %504 = vmatpush.bf16.msra.mxu0 %v447
      %505 = vmatpush.bf16.msra.mxu0 %v446
      %506 = vmatpush.bf16.msra.mxu0 %v445
      %507 = vmatmul.bf16.gmra.mxu0 %v336
      %v508 = vpop.f32.mrf.mxu0
      %v509 = vadd.f32 %v495, %v508
      %v510 = vpop.f32.mrf.mxu0
      %v511 = vadd.f32 %v497, %v510
      %512 = vdwg.mxu0
      %513 = vmatpush.bf16.msra.mxu0 %v460
      %514 = vmatpush.bf16.msra.mxu0 %v459
      %515 = vmatpush.bf16.msra.mxu0 %v458
      %516 = vmatpush.bf16.msra.mxu0 %v457
      %517 = vmatpush.bf16.msra.mxu0 %v456
      %518 = vmatpush.bf16.msra.mxu0 %v455
      %519 = vmatpush.bf16.msra.mxu0 %v454
      %520 = vmatpush.bf16.msra.mxu0 %v453
      %521 = vmatmul.bf16.gmra.mxu0 %v337
      %v522 = vpop.f32.mrf.mxu0
      %v523 = vadd.f32 %v509, %v522
      %v524 = vpop.f32.mrf.mxu0
      %v525 = vadd.f32 %v511, %v524
      %526 = vdwg.mxu0
      %v527 = vadd.f32 %v523, %v525
      %v528 = vrot.slane %v527, 4
      %v529 = vadd.f32 %v527, %v528
      %v530 = vrot.slane %v529, 2
      %v531 = vadd.f32 %v529, %v530
      %v532 = vrot.slane %v531, 1
      %v533 = vadd.f32 %v531, %v532
      %534 = vst [vmem:[%s266] sm:$0x1] %v533
      %v535 = vmul.f32 %v523, %v523
      %v536 = vmul.f32 %v525, %v525
      %v537 = vadd.f32 %v535, %v536
      %v538 = vrot.slane %v537, 4
      %v539 = vadd.f32 %v537, %v538
      %v540 = vrot.slane %v539, 2
      %v541 = vadd.f32 %v539, %v540
      %v542 = vrot.slane %v541, 1
      %v543 = vadd.f32 %v541, %v542
      %544 = vst [vmem:[%s272] sm:$0x1] %v543
      %v545 = vpack.c.bf16 %v523, %v523
      %v546 = vpack.c.bf16 %v525, %v525
      %547 = vst [vmem:[%s259] sm:$0xf] %v545
      %548 = vst [vmem:[%s259 + $0x4] sm:$0xf] %v546
      %s549 = smul.u32 2, %s21
      %p550 = scmp.lt.s32.totalorder %s20, 1
      %s551 = scalar_select %p550, %s20, 1
      %p552 = scmp.lt.s32.totalorder %s549, 1
      %s553 = scalar_select %p552, %s549, 1
      %s554 = smul.addr %s551, 2
      %s555 = sadd.s32 %s553, %s554
      %s556 = smul.addr %s555, 4
      %s557 = scalar_lea.vmem %s2, %s556
      %p558 = scmp.lt.s32.totalorder %s20, 1
      %s559 = scalar_select %p558, %s20, 1
      %p560 = scmp.lt.s32.totalorder %s21, 0
      %s561 = scalar_select %p560, %s21, 0
      %s562 = sadd.s32 %s561, %s559
      %s563 = scalar_lea.vmem %s3, %s562
      %p564 = scmp.lt.s32.totalorder %s20, 1
      %s565 = scalar_select %p564, %s20, 1
      %p566 = scmp.lt.s32.totalorder %s21, 0
      %s567 = scalar_select %p566, %s21, 0
      %s568 = sadd.s32 %s567, %s565
      %s569 = scalar_lea.vmem %s4, %s568
      // Predicated region
      $region29: #{_lambda_.25} parent=27 // pred_check
        %p570 = pneg %p97
      $region30: #{_lambda_.25} parent=27 // pred_check_branch
        %572 = sbr.rel (%p570) target = $region32
      $region31: #{_lambda_.25} parent=27 // pred_region
        %s573 = smul.u32 2, %s21
      $region32: #{_lambda_.25} parent=27 // pred_fallthru
        _
      // Predicated region
      $region33: #{_lambda_.25} parent=27 // pred_check
        %p574 = pneg %p125
      $region34: #{_lambda_.25} parent=27 // pred_check_branch
        %576 = sbr.rel (%p574) target = $region36
      $region35: #{_lambda_.25} parent=27 // pred_region
        _
      $region36: #{_lambda_.25} parent=27 // pred_fallthru
        _
      // Predicated region
      $region37: #{_lambda_.25} parent=27 // pred_check
        %p577 = pneg %p153
      $region38: #{_lambda_.25} parent=27 // pred_check_branch
        %579 = sbr.rel (%p577) target = $region40
      $region39: #{_lambda_.25} parent=27 // pred_region
        _
      $region40: #{_lambda_.25} parent=27 // pred_fallthru
        _
    $region28: #{_lambda_.25} parent=5 // pred_fallthru
      _
    %p580 = scmp.le.s32.totalorder 2, %s11
    // Predicated region
    $region41: #{_lambda_.25} parent=5 // pred_check
      %p581 = pneg %p580
    $region42: #{_lambda_.25} parent=5 // pred_check_branch
      %583 = sbr.rel (%p581) target = $region44
    $region43: #{_lambda_.25} parent=5 // pred_region
      %s584 = ssub.s32 %s11, 2
      // Predicated region
      $region45: #{_lambda_.25} parent=43 // pred_check
        %p585 = pneg %p103
      $region46: #{_lambda_.25} parent=43 // pred_check_branch
        %587 = sbr.rel (%p585) target = $region48
      $region47: #{_lambda_.25} parent=43 // pred_region
        %s588 = smul.u32 2, %s23
        %p589 = scmp.lt.s32.totalorder %s22, 1
        %s590 = scalar_select %p589, %s22, 1
        %p591 = scmp.lt.s32.totalorder %s588, 1
        %s592 = scalar_select %p591, %s588, 1
        %s593 = smul.addr %s590, 2
        %s594 = sadd.s32 %s592, %s593
        %s595 = smul.addr %s594, 4
        %s596 = scalar_lea.vmem %s2, %s595
      $region48: #{_lambda_.25} parent=43 // pred_fallthru
        _
      // Predicated region
      $region49: #{_lambda_.25} parent=43 // pred_check
        %p597 = pneg %p131
      $region50: #{_lambda_.25} parent=43 // pred_check_branch
        %599 = sbr.rel (%p597) target = $region52
      $region51: #{_lambda_.25} parent=43 // pred_region
        %p600 = scmp.lt.s32.totalorder %s22, 1
        %s601 = scalar_select %p600, %s22, 1
        %p602 = scmp.lt.s32.totalorder %s23, 0
        %s603 = scalar_select %p602, %s23, 0
        %s604 = sadd.s32 %s603, %s601
        %s605 = scalar_lea.vmem %s3, %s604
      $region52: #{_lambda_.25} parent=43 // pred_fallthru
        _
      // Predicated region
      $region53: #{_lambda_.25} parent=43 // pred_check
        %p606 = pneg %p159
      $region54: #{_lambda_.25} parent=43 // pred_check_branch
        %608 = sbr.rel (%p606) target = $region56
      $region55: #{_lambda_.25} parent=43 // pred_region
        %p609 = scmp.lt.s32.totalorder %s22, 1
        %s610 = scalar_select %p609, %s22, 1
        %p611 = scmp.lt.s32.totalorder %s23, 0
        %s612 = scalar_select %p611, %s23, 0
        %s613 = sadd.s32 %s612, %s610
        %s614 = scalar_lea.vmem %s4, %s613
      $region56: #{_lambda_.25} parent=43 // pred_fallthru
        _
    $region44: #{_lambda_.25} parent=5 // pred_fallthru
      _
  $region6: #{_lambda_.25} parent=0 // loop_footer
    %s15 = sadd.s32 1, %s11
  $region7: #{_lambda_.25} parent=0 // loop_footer_branch
    %10 = sbr.rel target = $region3
  $region8: #{_lambda_.25} parent=0 // loop_exit
    _

// kernel: _lambda_.28
$region0: #{_lambda_.28}
  #allocation0 [shape = 'u32[]', space=smem, size = 0x4, offset = 0x4, fixed_abs, tag = 'smem constant byte address 0x4 - core index']
  #allocation1 [shape = 'u32[72,128]{1,0:T(1,128)}', space=vmem, size = 0x9000, scoped, tag = 'internal scratch']
  %s0 = inlined_call_operand.vmem [shape: bf16[2,16,128], index: 0, kind: input, shape index: {}]
  %s1 = inlined_call_operand.vmem [shape: f32[2,1,128], index: 1, kind: input, shape index: {}]
  %s2 = inlined_call_operand.vmem [shape: f32[2,1,128], index: 2, kind: input, shape index: {}]
  %s3 = inlined_call_operand.vmem [shape: bf16[2,16,128], index: 3, kind: input, shape index: {}]
  %s4 = inlined_call_operand.vmem [shape: bf16[2,16,128], index: 4, kind: output, shape index: {}]
  %s5 = sld [smem:[#allocation0]]
  $region49: #{_lambda_.28} parent=0
    _
  %s7 = ssub.s32 1, %s5
  %s8 = scalar_select 0, %s7, %s5
  loop: start=0, step=1, limit=4
  $region2: #{_lambda_.28} parent=0 // loop_pre_header
    _
  $region3: #{_lambda_.28} parent=0 // loop_header
    %s10 = sphi 0, %s14
    %p11 = scmp.ge.s32.totalorder %s10, 4
    %s17 = sphi 0, %s29
    %s18 = sphi 0, %s25
    %s19 = sphi 0, %s17
    %s20 = sphi 0, %s18
    %s21 = sphi 0, %s19
    %s22 = sphi 0, %s20
    %s34 = sphi 0, %s36
    %s37 = sphi 0, %s34
    %s38 = sphi 0, %s37
    %s54 = sphi 0, %s38
    %s60 = sphi 0, %s62
    %s63 = sphi 0, %s60
    %s64 = sphi 0, %s63
    %s80 = sphi 0, %s64
    %s86 = sphi 0, %s88
    %s89 = sphi 0, %s86
    %s90 = sphi 0, %s89
    %s106 = sphi 0, %s90
    %s114 = sphi 0, %s116
    %s117 = sphi 0, %s114
    %s118 = sphi 0, %s117
    %s134 = sphi 0, %s118
    %s142 = sphi 0, %s144
    %s145 = sphi 0, %s142
    %s146 = sphi 0, %s145
    %s162 = sphi 0, %s146
  $region4: #{_lambda_.28} parent=0 // loop_header_branch
    %13 = sbr.rel (%p11) target = $region8
  $region5: #{_lambda_.28} parent=0 // loop_body
    %s15 = ssub.s32 %s10, 1
    %s16 = ssub.s32 %s10, 2
    %s23 = sadd.s32 1, %s18
    %p24 = scmp.ge.s32.totalorder %s23, 1
    %s25 = scalar_select %p24, 0, %s23
    %s26 = sadd.s32 1, %s17
    %s27 = scalar_select %p24, %s26, %s17
    %p28 = scmp.ge.s32.totalorder %s27, 2
    %s29 = scalar_select %p28, 0, %s27
    %s30 = ssub.s32 %s17, %s29
    %s31 = ssub.s32 %s18, %s25
    %s32 = sor.u32 %s30, %s31
    %p33 = scmp.eq.s32.totalorder %s32, 0
    %s35 = sadd.s32 %s34, 1
    %s36 = scalar_select %p33, %s34, %s35
    %p39 = pneg %p33
    %p40 = scmp.eq.s32.totalorder %s10, 1
    %p41 = por %p39, %p40
    %p42 = scmp.ne.s32.totalorder %s34, %s37
    %p43 = scmp.eq.s32.totalorder %s10, 0
    %p44 = por %p42, %p43
    %p45 = scmp.ne.s32.totalorder %s34, %s37
    %p46 = scmp.eq.s32.totalorder %s15, 1
    %p47 = por %p45, %p46
    %p48 = scmp.ne.s32.totalorder %s37, %s38
    %p49 = scmp.eq.s32.totalorder %s15, 0
    %p50 = por %p48, %p49
    %p51 = scmp.ne.s32.totalorder %s37, %s38
    %p52 = scmp.eq.s32.totalorder %s16, 1
    %p53 = por %p51, %p52
    %p55 = scmp.ne.s32.totalorder %s38, %s54
    %p56 = scmp.eq.s32.totalorder %s16, 0
    %p57 = por %p55, %p56
    %s58 = ssub.s32 %s17, %s29
    %p59 = scmp.eq.s32.totalorder %s58, 0
    %s61 = sadd.s32 %s60, 1
    %s62 = scalar_select %p59, %s60, %s61
    %p65 = pneg %p59
    %p66 = scmp.eq.s32.totalorder %s10, 1
    %p67 = por %p65, %p66
    %p68 = scmp.ne.s32.totalorder %s60, %s63
    %p69 = scmp.eq.s32.totalorder %s10, 0
    %p70 = por %p68, %p69
    %p71 = scmp.ne.s32.totalorder %s60, %s63
    %p72 = scmp.eq.s32.totalorder %s15, 1
    %p73 = por %p71, %p72
    %p74 = scmp.ne.s32.totalorder %s63, %s64
    %p75 = scmp.eq.s32.totalorder %s15, 0
    %p76 = por %p74, %p75
    %p77 = scmp.ne.s32.totalorder %s63, %s64
    %p78 = scmp.eq.s32.totalorder %s16, 1
    %p79 = por %p77, %p78
    %p81 = scmp.ne.s32.totalorder %s64, %s80
    %p82 = scmp.eq.s32.totalorder %s16, 0
    %p83 = por %p81, %p82
    %s84 = ssub.s32 %s17, %s29
    %p85 = scmp.eq.s32.totalorder %s84, 0
    %s87 = sadd.s32 %s86, 1
    %s88 = scalar_select %p85, %s86, %s87
    %p91 = pneg %p85
    %p92 = scmp.eq.s32.totalorder %s10, 1
    %p93 = por %p91, %p92
    %p94 = scmp.ne.s32.totalorder %s86, %s89
    %p95 = scmp.eq.s32.totalorder %s10, 0
    %p96 = por %p94, %p95
    %p97 = scmp.ne.s32.totalorder %s86, %s89
    %p98 = scmp.eq.s32.totalorder %s15, 1
    %p99 = por %p97, %p98
    %p100 = scmp.ne.s32.totalorder %s89, %s90
    %p101 = scmp.eq.s32.totalorder %s15, 0
    %p102 = por %p100, %p101
    %p103 = scmp.ne.s32.totalorder %s89, %s90
    %p104 = scmp.eq.s32.totalorder %s16, 1
    %p105 = por %p103, %p104
    %p107 = scmp.ne.s32.totalorder %s90, %s106
    %p108 = scmp.eq.s32.totalorder %s16, 0
    %p109 = por %p107, %p108
    %s110 = ssub.s32 %s17, %s29
    %s111 = ssub.s32 %s18, %s25
    %s112 = sor.u32 %s110, %s111
    %p113 = scmp.eq.s32.totalorder %s112, 0
    %s115 = sadd.s32 %s114, 1
    %s116 = scalar_select %p113, %s114, %s115
    %p119 = pneg %p113
    %p120 = scmp.eq.s32.totalorder %s10, 1
    %p121 = por %p119, %p120
    %p122 = scmp.ne.s32.totalorder %s114, %s117
    %p123 = scmp.eq.s32.totalorder %s10, 0
    %p124 = por %p122, %p123
    %p125 = scmp.ne.s32.totalorder %s114, %s117
    %p126 = scmp.eq.s32.totalorder %s15, 1
    %p127 = por %p125, %p126
    %p128 = scmp.ne.s32.totalorder %s117, %s118
    %p129 = scmp.eq.s32.totalorder %s15, 0
    %p130 = por %p128, %p129
    %p131 = scmp.ne.s32.totalorder %s117, %s118
    %p132 = scmp.eq.s32.totalorder %s16, 1
    %p133 = por %p131, %p132
    %p135 = scmp.ne.s32.totalorder %s118, %s134
    %p136 = scmp.eq.s32.totalorder %s16, 0
    %p137 = por %p135, %p136
    %s138 = ssub.s32 %s17, %s29
    %s139 = ssub.s32 %s18, %s25
    %s140 = sor.u32 %s138, %s139
    %p141 = scmp.eq.s32.totalorder %s140, 0
    %s143 = sadd.s32 %s142, 1
    %s144 = scalar_select %p141, %s142, %s143
    %p147 = pneg %p141
    %p148 = scmp.eq.s32.totalorder %s10, 1
    %p149 = por %p147, %p148
    %p150 = scmp.ne.s32.totalorder %s142, %s145
    %p151 = scmp.eq.s32.totalorder %s10, 0
    %p152 = por %p150, %p151
    %p153 = scmp.ne.s32.totalorder %s142, %s145
    %p154 = scmp.eq.s32.totalorder %s15, 1
    %p155 = por %p153, %p154
    %p156 = scmp.ne.s32.totalorder %s145, %s146
    %p157 = scmp.eq.s32.totalorder %s15, 0
    %p158 = por %p156, %p157
    %p159 = scmp.ne.s32.totalorder %s145, %s146
    %p160 = scmp.eq.s32.totalorder %s16, 1
    %p161 = por %p159, %p160
    %p163 = scmp.ne.s32.totalorder %s146, %s162
    %p164 = scmp.eq.s32.totalorder %s16, 0
    %p165 = por %p163, %p164
    %p166 = scmp.le.s32.totalorder 1, %s10
    %p167 = scmp.lt.s32.totalorder %s10, 3
    %p168 = pnand %p166, %p167
    %p169 = pneg %p168
    // Predicated region
    $region9: #{_lambda_.28} parent=5 // pred_check
      _
    $region10: #{_lambda_.28} parent=5 // pred_check_branch
      %171 = sbr.rel (%p168) target = $region12
    $region11: #{_lambda_.28} parent=5 // pred_region
      %s172 = ssub.s32 %s10, 1
    $region12: #{_lambda_.28} parent=5 // pred_fallthru
      _
    %p173 = scmp.lt.s32.totalorder %s10, 2
    // Predicated region
    $region13: #{_lambda_.28} parent=5 // pred_check
      %p174 = pneg %p173
    $region14: #{_lambda_.28} parent=5 // pred_check_branch
      %176 = sbr.rel (%p174) target = $region16
    $region15: #{_lambda_.28} parent=5 // pred_region
      // Predicated region
      $region17: #{_lambda_.28} parent=15 // pred_check
        %p177 = pneg %p44
      $region18: #{_lambda_.28} parent=15 // pred_check_branch
        %179 = sbr.rel (%p177) target = $region20
      $region19: #{_lambda_.28} parent=15 // pred_region
        %s180 = smul.u32 2, %s18
        %p181 = scmp.lt.s32.totalorder %s17, 1
        %s182 = scalar_select %p181, %s17, 1
        %p183 = scmp.lt.s32.totalorder %s180, 1
        %s184 = scalar_select %p183, %s180, 1
        %s185 = smul.addr %s182, 2
        %s186 = sadd.s32 %s184, %s185
        %s187 = smul.addr %s186, 4
        %s188 = scalar_lea.vmem %s0, %s187
        %s189 = smul.u32 2, %s18
      $region20: #{_lambda_.28} parent=15 // pred_fallthru
        _
      // Predicated region
      $region21: #{_lambda_.28} parent=15 // pred_check
        %p190 = pneg %p70
      $region22: #{_lambda_.28} parent=15 // pred_check_branch
        %192 = sbr.rel (%p190) target = $region24
      $region23: #{_lambda_.28} parent=15 // pred_region
        %p193 = scmp.lt.s32.totalorder %s17, 1
        %s194 = scalar_select %p193, %s17, 1
        %s195 = scalar_lea.vmem %s1, %s194
      $region24: #{_lambda_.28} parent=15 // pred_fallthru
        _
      // Predicated region
      $region25: #{_lambda_.28} parent=15 // pred_check
        %p196 = pneg %p96
      $region26: #{_lambda_.28} parent=15 // pred_check_branch
        %198 = sbr.rel (%p196) target = $region28
      $region27: #{_lambda_.28} parent=15 // pred_region
        %p199 = scmp.lt.s32.totalorder %s17, 1
        %s200 = scalar_select %p199, %s17, 1
        %s201 = scalar_lea.vmem %s2, %s200
      $region28: #{_lambda_.28} parent=15 // pred_fallthru
        _
      // Predicated region
      $region29: #{_lambda_.28} parent=15 // pred_check
        %p202 = pneg %p124
      $region30: #{_lambda_.28} parent=15 // pred_check_branch
        %204 = sbr.rel (%p202) target = $region32
      $region31: #{_lambda_.28} parent=15 // pred_region
        %s205 = smul.u32 2, %s18
        %p206 = scmp.lt.s32.totalorder %s17, 1
        %s207 = scalar_select %p206, %s17, 1
        %p208 = scmp.lt.s32.totalorder %s205, 1
        %s209 = scalar_select %p208, %s205, 1
        %s210 = smul.addr %s207, 2
        %s211 = sadd.s32 %s209, %s210
        %s212 = smul.addr %s211, 4
        %s213 = scalar_lea.vmem %s3, %s212
        %s214 = smul.u32 2, %s18
      $region32: #{_lambda_.28} parent=15 // pred_fallthru
        _
    $region16: #{_lambda_.28} parent=5 // pred_fallthru
      _
    %p215 = scmp.le.s32.totalorder 1, %s10
    %p216 = scmp.lt.s32.totalorder %s10, 3
    %p217 = pnand %p215, %p216
    %p218 = pneg %p217
    // Predicated region
    $region33: #{_lambda_.28} parent=5 // pred_check
      _
    $region34: #{_lambda_.28} parent=5 // pred_check_branch
      %220 = sbr.rel (%p217) target = $region36
    $region35: #{_lambda_.28} parent=5 // pred_region
      %s221 = ssub.s32 %s10, 1
      %s222 = smul.u32 2, %s20
      %p223 = scmp.lt.s32.totalorder %s19, 1
      %s224 = scalar_select %p223, %s19, 1
      %p225 = scmp.lt.s32.totalorder %s222, 1
      %s226 = scalar_select %p225, %s222, 1
      %s227 = smul.addr %s224, 2
      %s228 = sadd.s32 %s226, %s227
      %s229 = smul.addr %s228, 4
      %s230 = scalar_lea.vmem %s0, %s229
      %p231 = pneg %p50
      %p232 = pneg %p47
      %p233 = scmp.lt.s32.totalorder %s19, 1
      %s234 = scalar_select %p233, %s19, 1
      %s235 = scalar_lea.vmem %s1, %s234
      %p236 = pneg %p76
      %p237 = pneg %p73
      %p238 = scmp.lt.s32.totalorder %s19, 1
      %s239 = scalar_select %p238, %s19, 1
      %s240 = scalar_lea.vmem %s2, %s239
      %p241 = pneg %p102
      %p242 = pneg %p99
      %s243 = smul.u32 2, %s20
      %p244 = scmp.lt.s32.totalorder %s19, 1
      %s245 = scalar_select %p244, %s19, 1
      %p246 = scmp.lt.s32.totalorder %s243, 1
      %s247 = scalar_select %p246, %s243, 1
      %s248 = smul.addr %s245, 2
      %s249 = sadd.s32 %s247, %s248
      %s250 = smul.addr %s249, 4
      %s251 = scalar_lea.vmem %s3, %s250
      %p252 = pneg %p130
      %p253 = pneg %p127
      %p254 = pneg %p158
      %p255 = pneg %p155
      %s256 = smul.u32 2, %s20
      %p257 = scmp.lt.s32.totalorder %s19, 1
      %s258 = scalar_select %p257, %s19, 1
      %p259 = scmp.lt.s32.totalorder %s256, 1
      %s260 = scalar_select %p259, %s256, 1
      %s261 = smul.addr %s258, 2
      %s262 = sadd.s32 %s260, %s261
      %s263 = smul.addr %s262, 4
      %s264 = scalar_lea.vmem %s4, %s263
      %s265 = smul.u32 2, %s20
      %p266 = scmp.lt.s32.totalorder %s19, 1
      %s267 = scalar_select %p266, %s19, 1
      %p268 = scmp.lt.s32.totalorder %s265, 1
      %s269 = scalar_select %p268, %s265, 1
      %s270 = smul.addr %s267, 2
      %s271 = sadd.s32 %s269, %s270
      %s272 = smul.addr %s271, 4
      %s273 = scalar_lea.vmem %s0, %s272
      %s274 = smul.u32 2, %s20
      %p275 = scmp.lt.s32.totalorder %s19, 1
      %s276 = scalar_select %p275, %s19, 1
      %s277 = scalar_lea.vmem %s1, %s276
      %p278 = scmp.lt.s32.totalorder %s19, 1
      %s279 = scalar_select %p278, %s19, 1
      %s280 = scalar_lea.vmem %s2, %s279
      %s281 = smul.u32 2, %s20
      %p282 = scmp.lt.s32.totalorder %s19, 1
      %s283 = scalar_select %p282, %s19, 1
      %p284 = scmp.lt.s32.totalorder %s281, 1
      %s285 = scalar_select %p284, %s281, 1
      %s286 = smul.addr %s283, 2
      %s287 = sadd.s32 %s285, %s286
      %s288 = smul.addr %s287, 4
      %s289 = scalar_lea.vmem %s3, %s288
      %s290 = smul.u32 2, %s20
      %s291 = smul.u32 2, %s20
      %p292 = scmp.lt.s32.totalorder %s19, 1
      %s293 = scalar_select %p292, %s19, 1
      %p294 = scmp.lt.s32.totalorder %s291, 1
      %s295 = scalar_select %p294, %s291, 1
      %s296 = smul.addr %s293, 2
      %s297 = sadd.s32 %s295, %s296
      %s298 = smul.addr %s297, 4
      %s299 = scalar_lea.vmem %s4, %s298
      %s300 = smul.u32 2, %s20
      %v301 = vld [vmem:[%s273] sm:$0xf]
      %v302 = vld [vmem:[%s273 + $0x4] sm:$0xf]
      %v303 = vunpack.c.l.bf16 %v301
      %v304 = vunpack.c.l.bf16 %v302
      %v305 = vld [vmem:[%s277] sm:$0x1]
      %v307 = vperm.slane %v305, 0
      %v309 = vmul.f32 %v303, %v307
      %v310 = vmul.f32 %v304, %v307
      %v311 = vld [vmem:[%s280] sm:$0x1]
      %v313 = vperm.slane %v311, 0
      %v315 = vadd.f32 %v309, %v313
      %v316 = vadd.f32 %v310, %v313
      %v317 = vld [vmem:[%s289] sm:$0xf]
      %v318 = vld [vmem:[%s289 + $0x4] sm:$0xf]
      %v319 = vunpack.c.l.bf16 %v317
      %v320 = vunpack.c.l.bf16 %v318
      %v321 = vadd.f32 %v315, %v319
      %v322 = vadd.f32 %v316, %v320
      %v323 = vpack.c.bf16 %v321, %v321
      %v324 = vpack.c.bf16 %v322, %v322
      %325 = vst [vmem:[%s299] sm:$0xf] %v323
      %326 = vst [vmem:[%s299 + $0x4] sm:$0xf] %v324
      %s327 = smul.u32 2, %s20
      %p328 = scmp.lt.s32.totalorder %s19, 1
      %s329 = scalar_select %p328, %s19, 1
      %p330 = scmp.lt.s32.totalorder %s327, 1
      %s331 = scalar_select %p330, %s327, 1
      %s332 = smul.addr %s329, 2
      %s333 = sadd.s32 %s331, %s332
      %s334 = smul.addr %s333, 4
      %s335 = scalar_lea.vmem %s4, %s334
      // Predicated region
      $region37: #{_lambda_.28} parent=35 // pred_check
        %p336 = pneg %p155
      $region38: #{_lambda_.28} parent=35 // pred_check_branch
        %338 = sbr.rel (%p336) target = $region40
      $region39: #{_lambda_.28} parent=35 // pred_region
        %s339 = smul.u32 2, %s20
      $region40: #{_lambda_.28} parent=35 // pred_fallthru
        _
    $region36: #{_lambda_.28} parent=5 // pred_fallthru
      _
    %p340 = scmp.le.s32.totalorder 2, %s10
    // Predicated region
    $region41: #{_lambda_.28} parent=5 // pred_check
      %p341 = pneg %p340
    $region42: #{_lambda_.28} parent=5 // pred_check_branch
      %343 = sbr.rel (%p341) target = $region44
    $region43: #{_lambda_.28} parent=5 // pred_region
      %s344 = ssub.s32 %s10, 2
      // Predicated region
      $region45: #{_lambda_.28} parent=43 // pred_check
        %p345 = pneg %p161
      $region46: #{_lambda_.28} parent=43 // pred_check_branch
        %347 = sbr.rel (%p345) target = $region48
      $region47: #{_lambda_.28} parent=43 // pred_region
        %s348 = smul.u32 2, %s22
        %p349 = scmp.lt.s32.totalorder %s21, 1
        %s350 = scalar_select %p349, %s21, 1
        %p351 = scmp.lt.s32.totalorder %s348, 1
        %s352 = scalar_select %p351, %s348, 1
        %s353 = smul.addr %s350, 2
        %s354 = sadd.s32 %s352, %s353
        %s355 = smul.addr %s354, 4
        %s356 = scalar_lea.vmem %s4, %s355
      $region48: #{_lambda_.28} parent=43 // pred_fallthru
        _
    $region44: #{_lambda_.28} parent=5 // pred_fallthru
      _
  $region6: #{_lambda_.28} parent=0 // loop_footer
    %s14 = sadd.s32 1, %s10
  $region7: #{_lambda_.28} parent=0 // loop_footer_branch
    %9 = sbr.rel target = $region3
  $region8: #{_lambda_.28} parent=0 // loop_exit
    _

// kernel: _lambda_.34
$region0: #{_lambda_.34}
  #allocation0 [shape = 'u32[]', space=smem, size = 0x4, offset = 0x4, fixed_abs, tag = 'smem constant byte address 0x4 - core index']
  #allocation1 [shape = 'u32[72,128]{1,0:T(1,128)}', space=vmem, size = 0x9000, scoped, tag = 'internal scratch']
  %s0 = inlined_call_operand.vmem [shape: bf16[2,16,512], index: 0, kind: input, shape index: {}]
  %s1 = inlined_call_operand.vmem [shape: f32[2,1,512], index: 1, kind: input, shape index: {}]
  %s2 = inlined_call_operand.vmem [shape: f32[2,1,512], index: 2, kind: input, shape index: {}]
  %s3 = inlined_call_operand.vmem [shape: bf16[2,16,512], index: 3, kind: output, shape index: {}]
  %s4 = sld [smem:[#allocation0]]
  $region45: #{_lambda_.34} parent=0
    _
  %s6 = ssub.s32 1, %s4
  %s7 = scalar_select 0, %s6, %s4
  loop: start=0, step=1, limit=4
  $region2: #{_lambda_.34} parent=0 // loop_pre_header
    _
  $region3: #{_lambda_.34} parent=0 // loop_header
    %s9 = sphi 0, %s13
    %p10 = scmp.ge.s32.totalorder %s9, 4
    %s16 = sphi 0, %s28
    %s17 = sphi 0, %s24
    %s18 = sphi 0, %s16
    %s19 = sphi 0, %s17
    %s20 = sphi 0, %s18
    %s21 = sphi 0, %s19
    %s33 = sphi 0, %s35
    %s36 = sphi 0, %s33
    %s37 = sphi 0, %s36
    %s53 = sphi 0, %s37
    %s59 = sphi 0, %s61
    %s62 = sphi 0, %s59
    %s63 = sphi 0, %s62
    %s79 = sphi 0, %s63
    %s85 = sphi 0, %s87
    %s88 = sphi 0, %s85
    %s89 = sphi 0, %s88
    %s105 = sphi 0, %s89
    %s113 = sphi 0, %s115
    %s116 = sphi 0, %s113
    %s117 = sphi 0, %s116
    %s133 = sphi 0, %s117
  $region4: #{_lambda_.34} parent=0 // loop_header_branch
    %12 = sbr.rel (%p10) target = $region8
  $region5: #{_lambda_.34} parent=0 // loop_body
    %s14 = ssub.s32 %s9, 1
    %s15 = ssub.s32 %s9, 2
    %s22 = sadd.s32 1, %s17
    %p23 = scmp.ge.s32.totalorder %s22, 1
    %s24 = scalar_select %p23, 0, %s22
    %s25 = sadd.s32 1, %s16
    %s26 = scalar_select %p23, %s25, %s16
    %p27 = scmp.ge.s32.totalorder %s26, 2
    %s28 = scalar_select %p27, 0, %s26
    %s29 = ssub.s32 %s16, %s28
    %s30 = ssub.s32 %s17, %s24
    %s31 = sor.u32 %s29, %s30
    %p32 = scmp.eq.s32.totalorder %s31, 0
    %s34 = sadd.s32 %s33, 1
    %s35 = scalar_select %p32, %s33, %s34
    %p38 = pneg %p32
    %p39 = scmp.eq.s32.totalorder %s9, 1
    %p40 = por %p38, %p39
    %p41 = scmp.ne.s32.totalorder %s33, %s36
    %p42 = scmp.eq.s32.totalorder %s9, 0
    %p43 = por %p41, %p42
    %p44 = scmp.ne.s32.totalorder %s33, %s36
    %p45 = scmp.eq.s32.totalorder %s14, 1
    %p46 = por %p44, %p45
    %p47 = scmp.ne.s32.totalorder %s36, %s37
    %p48 = scmp.eq.s32.totalorder %s14, 0
    %p49 = por %p47, %p48
    %p50 = scmp.ne.s32.totalorder %s36, %s37
    %p51 = scmp.eq.s32.totalorder %s15, 1
    %p52 = por %p50, %p51
    %p54 = scmp.ne.s32.totalorder %s37, %s53
    %p55 = scmp.eq.s32.totalorder %s15, 0
    %p56 = por %p54, %p55
    %s57 = ssub.s32 %s16, %s28
    %p58 = scmp.eq.s32.totalorder %s57, 0
    %s60 = sadd.s32 %s59, 1
    %s61 = scalar_select %p58, %s59, %s60
    %p64 = pneg %p58
    %p65 = scmp.eq.s32.totalorder %s9, 1
    %p66 = por %p64, %p65
    %p67 = scmp.ne.s32.totalorder %s59, %s62
    %p68 = scmp.eq.s32.totalorder %s9, 0
    %p69 = por %p67, %p68
    %p70 = scmp.ne.s32.totalorder %s59, %s62
    %p71 = scmp.eq.s32.totalorder %s14, 1
    %p72 = por %p70, %p71
    %p73 = scmp.ne.s32.totalorder %s62, %s63
    %p74 = scmp.eq.s32.totalorder %s14, 0
    %p75 = por %p73, %p74
    %p76 = scmp.ne.s32.totalorder %s62, %s63
    %p77 = scmp.eq.s32.totalorder %s15, 1
    %p78 = por %p76, %p77
    %p80 = scmp.ne.s32.totalorder %s63, %s79
    %p81 = scmp.eq.s32.totalorder %s15, 0
    %p82 = por %p80, %p81
    %s83 = ssub.s32 %s16, %s28
    %p84 = scmp.eq.s32.totalorder %s83, 0
    %s86 = sadd.s32 %s85, 1
    %s87 = scalar_select %p84, %s85, %s86
    %p90 = pneg %p84
    %p91 = scmp.eq.s32.totalorder %s9, 1
    %p92 = por %p90, %p91
    %p93 = scmp.ne.s32.totalorder %s85, %s88
    %p94 = scmp.eq.s32.totalorder %s9, 0
    %p95 = por %p93, %p94
    %p96 = scmp.ne.s32.totalorder %s85, %s88
    %p97 = scmp.eq.s32.totalorder %s14, 1
    %p98 = por %p96, %p97
    %p99 = scmp.ne.s32.totalorder %s88, %s89
    %p100 = scmp.eq.s32.totalorder %s14, 0
    %p101 = por %p99, %p100
    %p102 = scmp.ne.s32.totalorder %s88, %s89
    %p103 = scmp.eq.s32.totalorder %s15, 1
    %p104 = por %p102, %p103
    %p106 = scmp.ne.s32.totalorder %s89, %s105
    %p107 = scmp.eq.s32.totalorder %s15, 0
    %p108 = por %p106, %p107
    %s109 = ssub.s32 %s16, %s28
    %s110 = ssub.s32 %s17, %s24
    %s111 = sor.u32 %s109, %s110
    %p112 = scmp.eq.s32.totalorder %s111, 0
    %s114 = sadd.s32 %s113, 1
    %s115 = scalar_select %p112, %s113, %s114
    %p118 = pneg %p112
    %p119 = scmp.eq.s32.totalorder %s9, 1
    %p120 = por %p118, %p119
    %p121 = scmp.ne.s32.totalorder %s113, %s116
    %p122 = scmp.eq.s32.totalorder %s9, 0
    %p123 = por %p121, %p122
    %p124 = scmp.ne.s32.totalorder %s113, %s116
    %p125 = scmp.eq.s32.totalorder %s14, 1
    %p126 = por %p124, %p125
    %p127 = scmp.ne.s32.totalorder %s116, %s117
    %p128 = scmp.eq.s32.totalorder %s14, 0
    %p129 = por %p127, %p128
    %p130 = scmp.ne.s32.totalorder %s116, %s117
    %p131 = scmp.eq.s32.totalorder %s15, 1
    %p132 = por %p130, %p131
    %p134 = scmp.ne.s32.totalorder %s117, %s133
    %p135 = scmp.eq.s32.totalorder %s15, 0
    %p136 = por %p134, %p135
    %p137 = scmp.le.s32.totalorder 1, %s9
    %p138 = scmp.lt.s32.totalorder %s9, 3
    %p139 = pnand %p137, %p138
    %p140 = pneg %p139
    // Predicated region
    $region9: #{_lambda_.34} parent=5 // pred_check
      _
    $region10: #{_lambda_.34} parent=5 // pred_check_branch
      %142 = sbr.rel (%p139) target = $region12
    $region11: #{_lambda_.34} parent=5 // pred_region
      %s143 = ssub.s32 %s9, 1
    $region12: #{_lambda_.34} parent=5 // pred_fallthru
      _
    %p144 = scmp.lt.s32.totalorder %s9, 2
    // Predicated region
    $region13: #{_lambda_.34} parent=5 // pred_check
      %p145 = pneg %p144
    $region14: #{_lambda_.34} parent=5 // pred_check_branch
      %147 = sbr.rel (%p145) target = $region16
    $region15: #{_lambda_.34} parent=5 // pred_region
      // Predicated region
      $region17: #{_lambda_.34} parent=15 // pred_check
        %p148 = pneg %p43
      $region18: #{_lambda_.34} parent=15 // pred_check_branch
        %150 = sbr.rel (%p148) target = $region20
      $region19: #{_lambda_.34} parent=15 // pred_region
        %s151 = smul.u32 2, %s17
        %p152 = scmp.lt.s32.totalorder %s16, 1
        %s153 = scalar_select %p152, %s16, 1
        %p154 = scmp.lt.s32.totalorder %s151, 1
        %s155 = scalar_select %p154, %s151, 1
        %s156 = smul.addr %s155, 4
        %s157 = smul.addr %s153, 8
        %s158 = sadd.s32 %s156, %s157
        %s159 = smul.addr %s158, 4
        %s160 = scalar_lea.vmem %s0, %s159
        %s161 = smul.u32 2, %s17
      $region20: #{_lambda_.34} parent=15 // pred_fallthru
        _
      // Predicated region
      $region21: #{_lambda_.34} parent=15 // pred_check
        %p162 = pneg %p69
      $region22: #{_lambda_.34} parent=15 // pred_check_branch
        %164 = sbr.rel (%p162) target = $region24
      $region23: #{_lambda_.34} parent=15 // pred_region
        %p165 = scmp.lt.s32.totalorder %s16, 1
        %s166 = scalar_select %p165, %s16, 1
        %s167 = smul.addr %s166, 4
        %s168 = scalar_lea.vmem %s1, %s167
      $region24: #{_lambda_.34} parent=15 // pred_fallthru
        _
      // Predicated region
      $region25: #{_lambda_.34} parent=15 // pred_check
        %p169 = pneg %p95
      $region26: #{_lambda_.34} parent=15 // pred_check_branch
        %171 = sbr.rel (%p169) target = $region28
      $region27: #{_lambda_.34} parent=15 // pred_region
        %p172 = scmp.lt.s32.totalorder %s16, 1
        %s173 = scalar_select %p172, %s16, 1
        %s174 = smul.addr %s173, 4
        %s175 = scalar_lea.vmem %s2, %s174
      $region28: #{_lambda_.34} parent=15 // pred_fallthru
        _
    $region16: #{_lambda_.34} parent=5 // pred_fallthru
      _
    %p176 = scmp.le.s32.totalorder 1, %s9
    %p177 = scmp.lt.s32.totalorder %s9, 3
    %p178 = pnand %p176, %p177
    %p179 = pneg %p178
    // Predicated region
    $region29: #{_lambda_.34} parent=5 // pred_check
      _
    $region30: #{_lambda_.34} parent=5 // pred_check_branch
      %181 = sbr.rel (%p178) target = $region32
    $region31: #{_lambda_.34} parent=5 // pred_region
      %s182 = ssub.s32 %s9, 1
      %s183 = smul.u32 2, %s19
      %p184 = scmp.lt.s32.totalorder %s18, 1
      %s185 = scalar_select %p184, %s18, 1
      %p186 = scmp.lt.s32.totalorder %s183, 1
      %s187 = scalar_select %p186, %s183, 1
      %s188 = smul.addr %s187, 4
      %s189 = smul.addr %s185, 8
      %s190 = sadd.s32 %s188, %s189
      %s191 = smul.addr %s190, 4
      %s192 = scalar_lea.vmem %s0, %s191
      %p193 = pneg %p49
      %p194 = pneg %p46
      %p195 = scmp.lt.s32.totalorder %s18, 1
      %s196 = scalar_select %p195, %s18, 1
      %s197 = smul.addr %s196, 4
      %s198 = scalar_lea.vmem %s1, %s197
      %p199 = pneg %p75
      %p200 = pneg %p72
      %p201 = scmp.lt.s32.totalorder %s18, 1
      %s202 = scalar_select %p201, %s18, 1
      %s203 = smul.addr %s202, 4
      %s204 = scalar_lea.vmem %s2, %s203
      %p205 = pneg %p101
      %p206 = pneg %p98
      %p207 = pneg %p129
      %p208 = pneg %p126
      %s209 = smul.u32 2, %s19
      %p210 = scmp.lt.s32.totalorder %s18, 1
      %s211 = scalar_select %p210, %s18, 1
      %p212 = scmp.lt.s32.totalorder %s209, 1
      %s213 = scalar_select %p212, %s209, 1
      %s214 = smul.addr %s213, 4
      %s215 = smul.addr %s211, 8
      %s216 = sadd.s32 %s214, %s215
      %s217 = smul.addr %s216, 4
      %s218 = scalar_lea.vmem %s3, %s217
      %s219 = smul.u32 2, %s19
      %p220 = scmp.lt.s32.totalorder %s18, 1
      %s221 = scalar_select %p220, %s18, 1
      %p222 = scmp.lt.s32.totalorder %s219, 1
      %s223 = scalar_select %p222, %s219, 1
      %s224 = smul.addr %s223, 4
      %s225 = smul.addr %s221, 8
      %s226 = sadd.s32 %s224, %s225
      %s227 = smul.addr %s226, 4
      %s228 = scalar_lea.vmem %s0, %s227
      %s229 = smul.u32 2, %s19
      %p230 = scmp.lt.s32.totalorder %s18, 1
      %s231 = scalar_select %p230, %s18, 1
      %s232 = smul.addr %s231, 4
      %s233 = scalar_lea.vmem %s1, %s232
      %p234 = scmp.lt.s32.totalorder %s18, 1
      %s235 = scalar_select %p234, %s18, 1
      %s236 = smul.addr %s235, 4
      %s237 = scalar_lea.vmem %s2, %s236
      %s238 = smul.u32 2, %s19
      %p239 = scmp.lt.s32.totalorder %s18, 1
      %s240 = scalar_select %p239, %s18, 1
      %p241 = scmp.lt.s32.totalorder %s238, 1
      %s242 = scalar_select %p241, %s238, 1
      %s243 = smul.addr %s242, 4
      %s244 = smul.addr %s240, 8
      %s245 = sadd.s32 %s243, %s244
      %s246 = smul.addr %s245, 4
      %s247 = scalar_lea.vmem %s3, %s246
      %s248 = smul.u32 2, %s19
      %v249 = vld [vmem:[%s228] sm:$0xff]
      %v250 = vld [vmem:[%s228 + $0x8] sm:$0xff]
      %v251 = vld [vmem:[%s228 + $0x10] sm:$0xff]
      %v252 = vld [vmem:[%s228 + $0x18] sm:$0xff]
      %v253 = vunpack.c.l.bf16 %v249
      %v254 = vunpack.c.h.bf16 %v249
      %v255 = vunpack.c.l.bf16 %v250
      %v256 = vunpack.c.h.bf16 %v250
      %v257 = vunpack.c.l.bf16 %v251
      %v258 = vunpack.c.h.bf16 %v251
      %v259 = vunpack.c.l.bf16 %v252
      %v260 = vunpack.c.h.bf16 %v252
      %v261 = vld [vmem:[%s233] sm:$0xf]
      %v263 = vperm.slane %v261, 0
      %v264 = vperm.slane %v261, 1
      %v265 = vperm.slane %v261, 2
      %v266 = vperm.slane %v261, 3
      %v271 = vmul.f32 %v253, %v263
      %v272 = vmul.f32 %v254, %v264
      %v273 = vmul.f32 %v255, %v265
      %v274 = vmul.f32 %v256, %v266
      %v275 = vmul.f32 %v257, %v263
      %v276 = vmul.f32 %v258, %v264
      %v277 = vmul.f32 %v259, %v265
      %v278 = vmul.f32 %v260, %v266
      %v279 = vld [vmem:[%s237] sm:$0xf]
      %v281 = vperm.slane %v279, 0
      %v282 = vperm.slane %v279, 1
      %v283 = vperm.slane %v279, 2
      %v284 = vperm.slane %v279, 3
      %v289 = vadd.f32 %v271, %v281
      %v290 = vadd.f32 %v272, %v282
      %v291 = vadd.f32 %v273, %v283
      %v292 = vadd.f32 %v274, %v284
      %v293 = vadd.f32 %v275, %v281
      %v294 = vadd.f32 %v276, %v282
      %v295 = vadd.f32 %v277, %v283
      %v296 = vadd.f32 %v278, %v284
      %v297 = vmax.f32 %v289, 0.0
      %v298 = vmax.f32 %v290, 0.0
      %v299 = vmax.f32 %v291, 0.0
      %v300 = vmax.f32 %v292, 0.0
      %v301 = vmax.f32 %v293, 0.0
      %v302 = vmax.f32 %v294, 0.0
      %v303 = vmax.f32 %v295, 0.0
      %v304 = vmax.f32 %v296, 0.0
      %v305 = vpack.c.bf16 %v298, %v297
      %v306 = vpack.c.bf16 %v300, %v299
      %v307 = vpack.c.bf16 %v302, %v301
      %v308 = vpack.c.bf16 %v304, %v303
      %309 = vst [vmem:[%s247] sm:$0xff] %v305
      %310 = vst [vmem:[%s247 + $0x8] sm:$0xff] %v306
      %311 = vst [vmem:[%s247 + $0x10] sm:$0xff] %v307
      %312 = vst [vmem:[%s247 + $0x18] sm:$0xff] %v308
      %s313 = smul.u32 2, %s19
      %p314 = scmp.lt.s32.totalorder %s18, 1
      %s315 = scalar_select %p314, %s18, 1
      %p316 = scmp.lt.s32.totalorder %s313, 1
      %s317 = scalar_select %p316, %s313, 1
      %s318 = smul.addr %s317, 4
      %s319 = smul.addr %s315, 8
      %s320 = sadd.s32 %s318, %s319
      %s321 = smul.addr %s320, 4
      %s322 = scalar_lea.vmem %s3, %s321
      // Predicated region
      $region33: #{_lambda_.34} parent=31 // pred_check
        %p323 = pneg %p126
      $region34: #{_lambda_.34} parent=31 // pred_check_branch
        %325 = sbr.rel (%p323) target = $region36
      $region35: #{_lambda_.34} parent=31 // pred_region
        %s326 = smul.u32 2, %s19
      $region36: #{_lambda_.34} parent=31 // pred_fallthru
        _
    $region32: #{_lambda_.34} parent=5 // pred_fallthru
      _
    %p327 = scmp.le.s32.totalorder 2, %s9
    // Predicated region
    $region37: #{_lambda_.34} parent=5 // pred_check
      %p328 = pneg %p327
    $region38: #{_lambda_.34} parent=5 // pred_check_branch
      %330 = sbr.rel (%p328) target = $region40
    $region39: #{_lambda_.34} parent=5 // pred_region
      %s331 = ssub.s32 %s9, 2
      // Predicated region
      $region41: #{_lambda_.34} parent=39 // pred_check
        %p332 = pneg %p132
      $region42: #{_lambda_.34} parent=39 // pred_check_branch
        %334 = sbr.rel (%p332) target = $region44
      $region43: #{_lambda_.34} parent=39 // pred_region
        %s335 = smul.u32 2, %s21
        %p336 = scmp.lt.s32.totalorder %s20, 1
        %s337 = scalar_select %p336, %s20, 1
        %p338 = scmp.lt.s32.totalorder %s335, 1
        %s339 = scalar_select %p338, %s335, 1
        %s340 = smul.addr %s339, 4
        %s341 = smul.addr %s337, 8
        %s342 = sadd.s32 %s340, %s341
        %s343 = smul.addr %s342, 4
        %s344 = scalar_lea.vmem %s3, %s343
      $region44: #{_lambda_.34} parent=39 // pred_fallthru
        _
    $region40: #{_lambda_.34} parent=5 // pred_fallthru
      _
  $region6: #{_lambda_.34} parent=0 // loop_footer
    %s13 = sadd.s32 1, %s9
  $region7: #{_lambda_.34} parent=0 // loop_footer_branch
    %8 = sbr.rel target = $region3
  $region8: #{_lambda_.34} parent=0 // loop_exit
    _

// kernel: _lambda_.33
$region0: #{_lambda_.33}
  #allocation0 [shape = 'u32[]', space=smem, size = 0x4, offset = 0x4, fixed_abs, tag = 'smem constant byte address 0x4 - core index']
  #allocation1 [shape = 'u32[72,128]{1,0:T(1,128)}', space=vmem, size = 0x9000, scoped, tag = 'internal scratch']
  %s0 = inlined_call_operand.vmem [shape: bf16[2,16,384], index: 0, kind: input, shape index: {}]
  %s1 = inlined_call_operand.vmem [shape: bf16[384,512], index: 1, kind: input, shape index: {}]
  %s2 = inlined_call_operand.vmem [shape: bf16[2,16,512], index: 2, kind: output, shape index: {0}]
  %s3 = inlined_call_operand.vmem [shape: f32[2,1,1,512], index: 3, kind: output, shape index: {1}]
  %s4 = inlined_call_operand.vmem [shape: f32[2,1,1,512], index: 4, kind: output, shape index: {2}]
  %5 = xla_tuple %s2, %s3, %s4
  %s6 = sld [smem:[#allocation0]]
  $region57: #{_lambda_.33} parent=0
    _
  %s8 = ssub.s32 1, %s6
  %s9 = scalar_select 0, %s8, %s6
  loop: start=0, step=1, limit=4
  $region2: #{_lambda_.33} parent=0 // loop_pre_header
    _
  $region3: #{_lambda_.33} parent=0 // loop_header
    %s11 = sphi 0, %s15
    %p12 = scmp.ge.s32.totalorder %s11, 4
    %s18 = sphi 0, %s30
    %s19 = sphi 0, %s26
    %s20 = sphi 0, %s18
    %s21 = sphi 0, %s19
    %s22 = sphi 0, %s20
    %s23 = sphi 0, %s21
    %s35 = sphi 0, %s37
    %s38 = sphi 0, %s35
    %s39 = sphi 0, %s38
    %s55 = sphi 0, %s39
    %s59 = sphi 0, %s59
    %s61 = sphi 0, %s59
    %s62 = sphi 0, %s61
    %s76 = sphi 0, %s62
    %s84 = sphi 0, %s86
    %s87 = sphi 0, %s84
    %s88 = sphi 0, %s87
    %s104 = sphi 0, %s88
    %s112 = sphi 0, %s114
    %s115 = sphi 0, %s112
    %s116 = sphi 0, %s115
    %s132 = sphi 0, %s116
    %s140 = sphi 0, %s142
    %s143 = sphi 0, %s140
    %s144 = sphi 0, %s143
    %s160 = sphi 0, %s144
  $region4: #{_lambda_.33} parent=0 // loop_header_branch
    %14 = sbr.rel (%p12) target = $region8
  $region5: #{_lambda_.33} parent=0 // loop_body
    %s16 = ssub.s32 %s11, 1
    %s17 = ssub.s32 %s11, 2
    %s24 = sadd.s32 1, %s19
    %p25 = scmp.ge.s32.totalorder %s24, 1
    %s26 = scalar_select %p25, 0, %s24
    %s27 = sadd.s32 1, %s18
    %s28 = scalar_select %p25, %s27, %s18
    %p29 = scmp.ge.s32.totalorder %s28, 2
    %s30 = scalar_select %p29, 0, %s28
    %s31 = ssub.s32 %s18, %s30
    %s32 = ssub.s32 %s19, %s26
    %s33 = sor.u32 %s31, %s32
    %p34 = scmp.eq.s32.totalorder %s33, 0
    %s36 = sadd.s32 %s35, 1
    %s37 = scalar_select %p34, %s35, %s36
    %p40 = pneg %p34
    %p41 = scmp.eq.s32.totalorder %s11, 1
    %p42 = por %p40, %p41
    %p43 = scmp.ne.s32.totalorder %s35, %s38
    %p44 = scmp.eq.s32.totalorder %s11, 0
    %p45 = por %p43, %p44
    %p46 = scmp.ne.s32.totalorder %s35, %s38
    %p47 = scmp.eq.s32.totalorder %s16, 1
    %p48 = por %p46, %p47
    %p49 = scmp.ne.s32.totalorder %s38, %s39
    %p50 = scmp.eq.s32.totalorder %s16, 0
    %p51 = por %p49, %p50
    %p52 = scmp.ne.s32.totalorder %s38, %s39
    %p53 = scmp.eq.s32.totalorder %s17, 1
    %p54 = por %p52, %p53
    %p56 = scmp.ne.s32.totalorder %s39, %s55
    %p57 = scmp.eq.s32.totalorder %s17, 0
    %p58 = por %p56, %p57
    %s60 = sadd.s32 %s59, 1
    %p63 = scmp.eq.s32.totalorder %s11, 1
    %p64 = scmp.ne.s32.totalorder %s59, %s61
    %p65 = scmp.eq.s32.totalorder %s11, 0
    %p66 = por %p64, %p65
    %p67 = scmp.ne.s32.totalorder %s59, %s61
    %p68 = scmp.eq.s32.totalorder %s16, 1
    %p69 = por %p67, %p68
    %p70 = scmp.ne.s32.totalorder %s61, %s62
    %p71 = scmp.eq.s32.totalorder %s16, 0
    %p72 = por %p70, %p71
    %p73 = scmp.ne.s32.totalorder %s61, %s62
    %p74 = scmp.eq.s32.totalorder %s17, 1
    %p75 = por %p73, %p74
    %p77 = scmp.ne.s32.totalorder %s62, %s76
    %p78 = scmp.eq.s32.totalorder %s17, 0
    %p79 = por %p77, %p78
    %s80 = ssub.s32 %s18, %s30
    %s81 = ssub.s32 %s19, %s26
    %s82 = sor.u32 %s80, %s81
    %p83 = scmp.eq.s32.totalorder %s82, 0
    %s85 = sadd.s32 %s84, 1
    %s86 = scalar_select %p83, %s84, %s85
    %p89 = pneg %p83
    %p90 = scmp.eq.s32.totalorder %s11, 1
    %p91 = por %p89, %p90
    %p92 = scmp.ne.s32.totalorder %s84, %s87
    %p93 = scmp.eq.s32.totalorder %s11, 0
    %p94 = por %p92, %p93
    %p95 = scmp.ne.s32.totalorder %s84, %s87
    %p96 = scmp.eq.s32.totalorder %s16, 1
    %p97 = por %p95, %p96
    %p98 = scmp.ne.s32.totalorder %s87, %s88
    %p99 = scmp.eq.s32.totalorder %s16, 0
    %p100 = por %p98, %p99
    %p101 = scmp.ne.s32.totalorder %s87, %s88
    %p102 = scmp.eq.s32.totalorder %s17, 1
    %p103 = por %p101, %p102
    %p105 = scmp.ne.s32.totalorder %s88, %s104
    %p106 = scmp.eq.s32.totalorder %s17, 0
    %p107 = por %p105, %p106
    %s108 = ssub.s32 %s18, %s30
    %s109 = ssub.s32 %s19, %s26
    %s110 = sor.u32 %s108, %s109
    %p111 = scmp.eq.s32.totalorder %s110, 0
    %s113 = sadd.s32 %s112, 1
    %s114 = scalar_select %p111, %s112, %s113
    %p117 = pneg %p111
    %p118 = scmp.eq.s32.totalorder %s11, 1
    %p119 = por %p117, %p118
    %p120 = scmp.ne.s32.totalorder %s112, %s115
    %p121 = scmp.eq.s32.totalorder %s11, 0
    %p122 = por %p120, %p121
    %p123 = scmp.ne.s32.totalorder %s112, %s115
    %p124 = scmp.eq.s32.totalorder %s16, 1
    %p125 = por %p123, %p124
    %p126 = scmp.ne.s32.totalorder %s115, %s116
    %p127 = scmp.eq.s32.totalorder %s16, 0
    %p128 = por %p126, %p127
    %p129 = scmp.ne.s32.totalorder %s115, %s116
    %p130 = scmp.eq.s32.totalorder %s17, 1
    %p131 = por %p129, %p130
    %p133 = scmp.ne.s32.totalorder %s116, %s132
    %p134 = scmp.eq.s32.totalorder %s17, 0
    %p135 = por %p133, %p134
    %s136 = ssub.s32 %s18, %s30
    %s137 = ssub.s32 %s19, %s26
    %s138 = sor.u32 %s136, %s137
    %p139 = scmp.eq.s32.totalorder %s138, 0
    %s141 = sadd.s32 %s140, 1
    %s142 = scalar_select %p139, %s140, %s141
    %p145 = pneg %p139
    %p146 = scmp.eq.s32.totalorder %s11, 1
    %p147 = por %p145, %p146
    %p148 = scmp.ne.s32.totalorder %s140, %s143
    %p149 = scmp.eq.s32.totalorder %s11, 0
    %p150 = por %p148, %p149
    %p151 = scmp.ne.s32.totalorder %s140, %s143
    %p152 = scmp.eq.s32.totalorder %s16, 1
    %p153 = por %p151, %p152
    %p154 = scmp.ne.s32.totalorder %s143, %s144
    %p155 = scmp.eq.s32.totalorder %s16, 0
    %p156 = por %p154, %p155
    %p157 = scmp.ne.s32.totalorder %s143, %s144
    %p158 = scmp.eq.s32.totalorder %s17, 1
    %p159 = por %p157, %p158
    %p161 = scmp.ne.s32.totalorder %s144, %s160
    %p162 = scmp.eq.s32.totalorder %s17, 0
    %p163 = por %p161, %p162
    %p164 = scmp.le.s32.totalorder 1, %s11
    %p165 = scmp.lt.s32.totalorder %s11, 3
    %p166 = pnand %p164, %p165
    %p167 = pneg %p166
    // Predicated region
    $region9: #{_lambda_.33} parent=5 // pred_check
      _
    $region10: #{_lambda_.33} parent=5 // pred_check_branch
      %169 = sbr.rel (%p166) target = $region12
    $region11: #{_lambda_.33} parent=5 // pred_region
      %s170 = ssub.s32 %s11, 1
      // Predicated region
      $region13: #{_lambda_.33} parent=11 // pred_check
        %p171 = pneg %p72
      $region14: #{_lambda_.33} parent=11 // pred_check_branch
        %173 = sbr.rel (%p171) target = $region16
      $region15: #{_lambda_.33} parent=11 // pred_region
        _
      $region16: #{_lambda_.33} parent=11 // pred_fallthru
        _
    $region12: #{_lambda_.33} parent=5 // pred_fallthru
      _
    %p174 = scmp.lt.s32.totalorder %s11, 2
    // Predicated region
    $region17: #{_lambda_.33} parent=5 // pred_check
      %p175 = pneg %p174
    $region18: #{_lambda_.33} parent=5 // pred_check_branch
      %177 = sbr.rel (%p175) target = $region20
    $region19: #{_lambda_.33} parent=5 // pred_region
      // Predicated region
      $region21: #{_lambda_.33} parent=19 // pred_check
        %p178 = pneg %p45
      $region22: #{_lambda_.33} parent=19 // pred_check_branch
        %180 = sbr.rel (%p178) target = $region24
      $region23: #{_lambda_.33} parent=19 // pred_region
        %s181 = smul.u32 2, %s19
        %p182 = scmp.lt.s32.totalorder %s18, 1
        %s183 = scalar_select %p182, %s18, 1
        %p184 = scmp.lt.s32.totalorder %s181, 1
        %s185 = scalar_select %p184, %s181, 1
        %s186 = smul.addr %s185, 3
        %s187 = smul.addr %s183, 6
        %s188 = sadd.s32 %s186, %s187
        %s189 = smul.addr %s188, 4
        %s190 = scalar_lea.vmem %s0, %s189
        %s191 = smul.u32 2, %s19
      $region24: #{_lambda_.33} parent=19 // pred_fallthru
        _
    $region20: #{_lambda_.33} parent=5 // pred_fallthru
      _
    %p192 = scmp.le.s32.totalorder 1, %s11
    %p193 = scmp.lt.s32.totalorder %s11, 3
    %p194 = pnand %p192, %p193
    %p195 = pneg %p194
    // Predicated region
    $region25: #{_lambda_.33} parent=5 // pred_check
      _
    $region26: #{_lambda_.33} parent=5 // pred_check_branch
      %197 = sbr.rel (%p194) target = $region28
    $region27: #{_lambda_.33} parent=5 // pred_region
      %s198 = ssub.s32 %s11, 1
      %s199 = smul.u32 2, %s21
      %p200 = scmp.lt.s32.totalorder %s20, 1
      %s201 = scalar_select %p200, %s20, 1
      %p202 = scmp.lt.s32.totalorder %s199, 1
      %s203 = scalar_select %p202, %s199, 1
      %s204 = smul.addr %s203, 3
      %s205 = smul.addr %s201, 6
      %s206 = sadd.s32 %s204, %s205
      %s207 = smul.addr %s206, 4
      %s208 = scalar_lea.vmem %s0, %s207
      %p209 = pneg %p51
      %p210 = pneg %p48
      %p211 = pneg %p72
      %p212 = pneg %p69
      %p213 = pneg %p100
      %p214 = pneg %p97
      %s215 = smul.u32 2, %s21
      %p216 = scmp.lt.s32.totalorder %s20, 1
      %s217 = scalar_select %p216, %s20, 1
      %p218 = scmp.lt.s32.totalorder %s215, 1
      %s219 = scalar_select %p218, %s215, 1
      %s220 = smul.addr %s219, 4
      %s221 = smul.addr %s217, 8
      %s222 = sadd.s32 %s220, %s221
      %s223 = smul.addr %s222, 4
      %s224 = scalar_lea.vmem %s2, %s223
      %p225 = pneg %p128
      %p226 = pneg %p125
      %p227 = scmp.lt.s32.totalorder %s20, 1
      %s228 = scalar_select %p227, %s20, 1
      %p229 = scmp.lt.s32.totalorder %s21, 0
      %s230 = scalar_select %p229, %s21, 0
      %s231 = smul.addr %s230, 4
      %s232 = smul.addr %s228, 4
      %s233 = sadd.s32 %s231, %s232
      %s234 = scalar_lea.vmem %s3, %s233
      %p235 = pneg %p156
      %p236 = pneg %p153
      %p237 = scmp.lt.s32.totalorder %s20, 1
      %s238 = scalar_select %p237, %s20, 1
      %p239 = scmp.lt.s32.totalorder %s21, 0
      %s240 = scalar_select %p239, %s21, 0
      %s241 = smul.addr %s240, 4
      %s242 = smul.addr %s238, 4
      %s243 = sadd.s32 %s241, %s242
      %s244 = scalar_lea.vmem %s4, %s243
      %s245 = smul.u32 2, %s21
      %p246 = scmp.lt.s32.totalorder %s20, 1
      %s247 = scalar_select %p246, %s20, 1
      %p248 = scmp.lt.s32.totalorder %s245, 1
      %s249 = scalar_select %p248, %s245, 1
      %s250 = smul.addr %s249, 3
      %s251 = smul.addr %s247, 6
      %s252 = sadd.s32 %s250, %s251
      %s253 = smul.addr %s252, 4
      %s254 = scalar_lea.vmem %s0, %s253
      %s255 = smul.u32 2, %s21
      %s256 = smul.u32 2, %s21
      %p257 = scmp.lt.s32.totalorder %s20, 1
      %s258 = scalar_select %p257, %s20, 1
      %p259 = scmp.lt.s32.totalorder %s256, 1
      %s260 = scalar_select %p259, %s256, 1
      %s261 = smul.addr %s260, 4
      %s262 = smul.addr %s258, 8
      %s263 = sadd.s32 %s261, %s262
      %s264 = smul.addr %s263, 4
      %s265 = scalar_lea.vmem %s2, %s264
      %s266 = smul.u32 2, %s21
      %p267 = scmp.lt.s32.totalorder %s20, 1
      %s268 = scalar_select %p267, %s20, 1
      %p269 = scmp.lt.s32.totalorder %s21, 0
      %s270 = scalar_select %p269, %s21, 0
      %s271 = smul.addr %s270, 4
      %s272 = smul.addr %s268, 4
      %s273 = sadd.s32 %s271, %s272
      %s274 = scalar_lea.vmem %s3, %s273
      %p275 = scmp.lt.s32.totalorder %s20, 1
      %s276 = scalar_select %p275, %s20, 1
      %p277 = scmp.lt.s32.totalorder %s21, 0
      %s278 = scalar_select %p277, %s21, 0
      %s279 = smul.addr %s278, 4
      %s280 = smul.addr %s276, 4
      %s281 = sadd.s32 %s279, %s280
      %s282 = scalar_lea.vmem %s4, %s281
      %v283 = vld [vmem:[%s254] sm:$0xff]
      %v284 = vld [vmem:[%s254 + $0x8] sm:$0xf]
      %v285 = vld [vmem:[%s254 + $0xc] sm:$0xff]
      %v286 = vld [vmem:[%s254 + $0x14] sm:$0xf]
      %v287 = vld [vmem:[%s1] sm:$0xff]
      %v288 = vld [vmem:[%s1 + $0x8] sm:$0xff]
      %v289 = vld [vmem:[%s1 + $0x10] sm:$0xff]
      %v290 = vld [vmem:[%s1 + $0x18] sm:$0xff]
      %v291 = vld [vmem:[%s1 + $0x20] sm:$0xff]
      %v292 = vld [vmem:[%s1 + $0x28] sm:$0xff]
      %v293 = vld [vmem:[%s1 + $0x30] sm:$0xff]
      %v294 = vld [vmem:[%s1 + $0x38] sm:$0xff]
      %v295 = vld [vmem:[%s1 + $0x40] sm:$0xff]
      %v296 = vld [vmem:[%s1 + $0x48] sm:$0xff]
      %v297 = vld [vmem:[%s1 + $0x50] sm:$0xff]
      %v298 = vld [vmem:[%s1 + $0x58] sm:$0xff]
      %v299 = vld [vmem:[%s1 + $0x60] sm:$0xff]
      %v300 = vld [vmem:[%s1 + $0x68] sm:$0xff]
      %v301 = vld [vmem:[%s1 + $0x70] sm:$0xff]
      %v302 = vld [vmem:[%s1 + $0x78] sm:$0xff]
      %v303 = vld [vmem:[%s1 + $0x80] sm:$0xff]
      %v304 = vld [vmem:[%s1 + $0x88] sm:$0xff]
      %v305 = vld [vmem:[%s1 + $0x90] sm:$0xff]
      %v306 = vld [vmem:[%s1 + $0x98] sm:$0xff]
      %v307 = vld [vmem:[%s1 + $0xa0] sm:$0xff]
      %v308 = vld [vmem:[%s1 + $0xa8] sm:$0xff]
      %v309 = vld [vmem:[%s1 + $0xb0] sm:$0xff]
      %v310 = vld [vmem:[%s1 + $0xb8] sm:$0xff]
      %v311 = vld [vmem:[%s1 + $0xc0] sm:$0xff]
      %v312 = vld [vmem:[%s1 + $0xc8] sm:$0xff]
      %v313 = vld [vmem:[%s1 + $0xd0] sm:$0xff]
      %v314 = vld [vmem:[%s1 + $0xd8] sm:$0xff]
      %v315 = vld [vmem:[%s1 + $0xe0] sm:$0xff]
      %v316 = vld [vmem:[%s1 + $0xe8] sm:$0xff]
      %v317 = vld [vmem:[%s1 + $0xf0] sm:$0xff]
      %v318 = vld [vmem:[%s1 + $0xf8] sm:$0xff]
      %v319 = vld [vmem:[%s1 + $0x100] sm:$0xff]
      %v320 = vld [vmem:[%s1 + $0x108] sm:$0xff]
      %v321 = vld [vmem:[%s1 + $0x110] sm:$0xff]
      %v322 = vld [vmem:[%s1 + $0x118] sm:$0xff]
      %v323 = vld [vmem:[%s1 + $0x120] sm:$0xff]
      %v324 = vld [vmem:[%s1 + $0x128] sm:$0xff]
      %v325 = vld [vmem:[%s1 + $0x130] sm:$0xff]
      %v326 = vld [vmem:[%s1 + $0x138] sm:$0xff]
      %v327 = vld [vmem:[%s1 + $0x140] sm:$0xff]
      %v328 = vld [vmem:[%s1 + $0x148] sm:$0xff]
      %v329 = vld [vmem:[%s1 + $0x150] sm:$0xff]
      %v330 = vld [vmem:[%s1 + $0x158] sm:$0xff]
      %v331 = vld [vmem:[%s1 + $0x160] sm:$0xff]
      %v332 = vld [vmem:[%s1 + $0x168] sm:$0xff]
      %v333 = vld [vmem:[%s1 + $0x170] sm:$0xff]
      %v334 = vld [vmem:[%s1 + $0x178] sm:$0xff]
      %v335 = vld [vmem:[%s1 + $0x180] sm:$0xff]
      %v336 = vld [vmem:[%s1 + $0x188] sm:$0xff]
      %v337 = vld [vmem:[%s1 + $0x190] sm:$0xff]
      %v338 = vld [vmem:[%s1 + $0x198] sm:$0xff]
      %v339 = vld [vmem:[%s1 + $0x1a0] sm:$0xff]
      %v340 = vld [vmem:[%s1 + $0x1a8] sm:$0xff]
      %v341 = vld [vmem:[%s1 + $0x1b0] sm:$0xff]
      %v342 = vld [vmem:[%s1 + $0x1b8] sm:$0xff]
      %v343 = vld [vmem:[%s1 + $0x1c0] sm:$0xff]
      %v344 = vld [vmem:[%s1 + $0x1c8] sm:$0xff]
      %v345 = vld [vmem:[%s1 + $0x1d0] sm:$0xff]
      %v346 = vld [vmem:[%s1 + $0x1d8] sm:$0xff]
      %v347 = vld [vmem:[%s1 + $0x1e0] sm:$0xff]
      %v348 = vld [vmem:[%s1 + $0x1e8] sm:$0xff]
      %v349 = vld [vmem:[%s1 + $0x1f0] sm:$0xff]
      %v350 = vld [vmem:[%s1 + $0x1f8] sm:$0xff]
      %v351 = vld [vmem:[%s1 + $0x200] sm:$0xff]
      %v352 = vld [vmem:[%s1 + $0x208] sm:$0xff]
      %v353 = vld [vmem:[%s1 + $0x210] sm:$0xff]
      %v354 = vld [vmem:[%s1 + $0x218] sm:$0xff]
      %v355 = vld [vmem:[%s1 + $0x220] sm:$0xff]
      %v356 = vld [vmem:[%s1 + $0x228] sm:$0xff]
      %v357 = vld [vmem:[%s1 + $0x230] sm:$0xff]
      %v358 = vld [vmem:[%s1 + $0x238] sm:$0xff]
      %v359 = vld [vmem:[%s1 + $0x240] sm:$0xff]
      %v360 = vld [vmem:[%s1 + $0x248] sm:$0xff]
      %v361 = vld [vmem:[%s1 + $0x250] sm:$0xff]
      %v362 = vld [vmem:[%s1 + $0x258] sm:$0xff]
      %v363 = vld [vmem:[%s1 + $0x260] sm:$0xff]
      %v364 = vld [vmem:[%s1 + $0x268] sm:$0xff]
      %v365 = vld [vmem:[%s1 + $0x270] sm:$0xff]
      %v366 = vld [vmem:[%s1 + $0x278] sm:$0xff]
      %v367 = vld [vmem:[%s1 + $0x280] sm:$0xff]
      %v368 = vld [vmem:[%s1 + $0x288] sm:$0xff]
      %v369 = vld [vmem:[%s1 + $0x290] sm:$0xff]
      %v370 = vld [vmem:[%s1 + $0x298] sm:$0xff]
      %v371 = vld [vmem:[%s1 + $0x2a0] sm:$0xff]
      %v372 = vld [vmem:[%s1 + $0x2a8] sm:$0xff]
      %v373 = vld [vmem:[%s1 + $0x2b0] sm:$0xff]
      %v374 = vld [vmem:[%s1 + $0x2b8] sm:$0xff]
      %v375 = vld [vmem:[%s1 + $0x2c0] sm:$0xff]
      %v376 = vld [vmem:[%s1 + $0x2c8] sm:$0xff]
      %v377 = vld [vmem:[%s1 + $0x2d0] sm:$0xff]
      %v378 = vld [vmem:[%s1 + $0x2d8] sm:$0xff]
      %v379 = vld [vmem:[%s1 + $0x2e0] sm:$0xff]
      %v380 = vld [vmem:[%s1 + $0x2e8] sm:$0xff]
      %v381 = vld [vmem:[%s1 + $0x2f0] sm:$0xff]
      %v382 = vld [vmem:[%s1 + $0x2f8] sm:$0xff]
      %v387 = vunpack.c.l.b16 %v283
      %v388 = vunpack.c.h.b16 %v283
      %v389 = vunpack.c.l.b16 %v284
      %v390 = vunpack.c.l.b16 %v285
      %v391 = vunpack.c.h.b16 %v285
      %v392 = vunpack.c.l.b16 %v286
      %v393 = vpack.c.b16 %v390, %v387
      %v394 = vpack.c.b16 %v391, %v388
      %v395 = vpack.c.b16 %v392, %v389
      %v495 = vunpack.c.l.b16 %v287
      %v496 = vunpack.c.h.b16 %v287
      %v497 = vunpack.c.l.b16 %v288
      %v498 = vunpack.c.h.b16 %v288
      %v499 = vunpack.c.l.b16 %v289
      %v500 = vunpack.c.h.b16 %v289
      %v501 = vunpack.c.l.b16 %v290
      %v502 = vunpack.c.h.b16 %v290
      %v503 = vunpack.c.l.b16 %v291
      %v504 = vunpack.c.h.b16 %v291
      %v505 = vunpack.c.l.b16 %v292
      %v506 = vunpack.c.h.b16 %v292
      %v507 = vunpack.c.l.b16 %v293
      %v508 = vunpack.c.h.b16 %v293
      %v509 = vunpack.c.l.b16 %v294
      %v510 = vunpack.c.h.b16 %v294
      %v511 = vunpack.c.l.b16 %v295
      %v512 = vunpack.c.h.b16 %v295
      %v513 = vunpack.c.l.b16 %v296
      %v514 = vunpack.c.h.b16 %v296
      %v515 = vunpack.c.l.b16 %v297
      %v516 = vunpack.c.h.b16 %v297
      %v517 = vunpack.c.l.b16 %v298
      %v518 = vunpack.c.h.b16 %v298
      %v519 = vunpack.c.l.b16 %v299
      %v520 = vunpack.c.h.b16 %v299
      %v521 = vunpack.c.l.b16 %v300
      %v522 = vunpack.c.h.b16 %v300
      %v523 = vunpack.c.l.b16 %v301
      %v524 = vunpack.c.h.b16 %v301
      %v525 = vunpack.c.l.b16 %v302
      %v526 = vunpack.c.h.b16 %v302
      %v527 = vunpack.c.l.b16 %v303
      %v528 = vunpack.c.h.b16 %v303
      %v529 = vunpack.c.l.b16 %v304
      %v530 = vunpack.c.h.b16 %v304
      %v531 = vunpack.c.l.b16 %v305
      %v532 = vunpack.c.h.b16 %v305
      %v533 = vunpack.c.l.b16 %v306
      %v534 = vunpack.c.h.b16 %v306
      %v535 = vunpack.c.l.b16 %v307
      %v536 = vunpack.c.h.b16 %v307
      %v537 = vunpack.c.l.b16 %v308
      %v538 = vunpack.c.h.b16 %v308
      %v539 = vunpack.c.l.b16 %v309
      %v540 = vunpack.c.h.b16 %v309
      %v541 = vunpack.c.l.b16 %v310
      %v542 = vunpack.c.h.b16 %v310
      %v543 = vunpack.c.l.b16 %v311
      %v544 = vunpack.c.h.b16 %v311
      %v545 = vunpack.c.l.b16 %v312
      %v546 = vunpack.c.h.b16 %v312
      %v547 = vunpack.c.l.b16 %v313
      %v548 = vunpack.c.h.b16 %v313
      %v549 = vunpack.c.l.b16 %v314
      %v550 = vunpack.c.h.b16 %v314
      %v551 = vunpack.c.l.b16 %v315
      %v552 = vunpack.c.h.b16 %v315
      %v553 = vunpack.c.l.b16 %v316
      %v554 = vunpack.c.h.b16 %v316
      %v555 = vunpack.c.l.b16 %v317
      %v556 = vunpack.c.h.b16 %v317
      %v557 = vunpack.c.l.b16 %v318
      %v558 = vunpack.c.h.b16 %v318
      %v559 = vunpack.c.l.b16 %v319
      %v560 = vunpack.c.h.b16 %v319
      %v561 = vunpack.c.l.b16 %v320
      %v562 = vunpack.c.h.b16 %v320
      %v563 = vunpack.c.l.b16 %v321
      %v564 = vunpack.c.h.b16 %v321
      %v565 = vunpack.c.l.b16 %v322
      %v566 = vunpack.c.h.b16 %v322
      %v567 = vunpack.c.l.b16 %v323
      %v568 = vunpack.c.h.b16 %v323
      %v569 = vunpack.c.l.b16 %v324
      %v570 = vunpack.c.h.b16 %v324
      %v571 = vunpack.c.l.b16 %v325
      %v572 = vunpack.c.h.b16 %v325
      %v573 = vunpack.c.l.b16 %v326
      %v574 = vunpack.c.h.b16 %v326
      %v575 = vunpack.c.l.b16 %v327
      %v576 = vunpack.c.h.b16 %v327
      %v577 = vunpack.c.l.b16 %v328
      %v578 = vunpack.c.h.b16 %v328
      %v579 = vunpack.c.l.b16 %v329
      %v580 = vunpack.c.h.b16 %v329
      %v581 = vunpack.c.l.b16 %v330
      %v582 = vunpack.c.h.b16 %v330
      %v583 = vunpack.c.l.b16 %v331
      %v584 = vunpack.c.h.b16 %v331
      %v585 = vunpack.c.l.b16 %v332
      %v586 = vunpack.c.h.b16 %v332
      %v587 = vunpack.c.l.b16 %v333
      %v588 = vunpack.c.h.b16 %v333
      %v589 = vunpack.c.l.b16 %v334
      %v590 = vunpack.c.h.b16 %v334
      %v591 = vunpack.c.l.b16 %v335
      %v592 = vunpack.c.h.b16 %v335
      %v593 = vunpack.c.l.b16 %v336
      %v594 = vunpack.c.h.b16 %v336
      %v595 = vunpack.c.l.b16 %v337
      %v596 = vunpack.c.h.b16 %v337
      %v597 = vunpack.c.l.b16 %v338
      %v598 = vunpack.c.h.b16 %v338
      %v599 = vunpack.c.l.b16 %v339
      %v600 = vunpack.c.h.b16 %v339
      %v601 = vunpack.c.l.b16 %v340
      %v602 = vunpack.c.h.b16 %v340
      %v603 = vunpack.c.l.b16 %v341
      %v604 = vunpack.c.h.b16 %v341
      %v605 = vunpack.c.l.b16 %v342
      %v606 = vunpack.c.h.b16 %v342
      %v607 = vunpack.c.l.b16 %v343
      %v608 = vunpack.c.h.b16 %v343
      %v609 = vunpack.c.l.b16 %v344
      %v610 = vunpack.c.h.b16 %v344
      %v611 = vunpack.c.l.b16 %v345
      %v612 = vunpack.c.h.b16 %v345
      %v613 = vunpack.c.l.b16 %v346
      %v614 = vunpack.c.h.b16 %v346
      %v615 = vunpack.c.l.b16 %v347
      %v616 = vunpack.c.h.b16 %v347
      %v617 = vunpack.c.l.b16 %v348
      %v618 = vunpack.c.h.b16 %v348
      %v619 = vunpack.c.l.b16 %v349
      %v620 = vunpack.c.h.b16 %v349
      %v621 = vunpack.c.l.b16 %v350
      %v622 = vunpack.c.h.b16 %v350
      %v623 = vunpack.c.l.b16 %v351
      %v624 = vunpack.c.h.b16 %v351
      %v625 = vunpack.c.l.b16 %v352
      %v626 = vunpack.c.h.b16 %v352
      %v627 = vunpack.c.l.b16 %v353
      %v628 = vunpack.c.h.b16 %v353
      %v629 = vunpack.c.l.b16 %v354
      %v630 = vunpack.c.h.b16 %v354
      %v631 = vunpack.c.l.b16 %v355
      %v632 = vunpack.c.h.b16 %v355
      %v633 = vunpack.c.l.b16 %v356
      %v634 = vunpack.c.h.b16 %v356
      %v635 = vunpack.c.l.b16 %v357
      %v636 = vunpack.c.h.b16 %v357
      %v637 = vunpack.c.l.b16 %v358
      %v638 = vunpack.c.h.b16 %v358
      %v639 = vunpack.c.l.b16 %v359
      %v640 = vunpack.c.h.b16 %v359
      %v641 = vunpack.c.l.b16 %v360
      %v642 = vunpack.c.h.b16 %v360
      %v643 = vunpack.c.l.b16 %v361
      %v644 = vunpack.c.h.b16 %v361
      %v645 = vunpack.c.l.b16 %v362
      %v646 = vunpack.c.h.b16 %v362
      %v647 = vunpack.c.l.b16 %v363
      %v648 = vunpack.c.h.b16 %v363
      %v649 = vunpack.c.l.b16 %v364
      %v650 = vunpack.c.h.b16 %v364
      %v651 = vunpack.c.l.b16 %v365
      %v652 = vunpack.c.h.b16 %v365
      %v653 = vunpack.c.l.b16 %v366
      %v654 = vunpack.c.h.b16 %v366
      %v655 = vunpack.c.l.b16 %v367
      %v656 = vunpack.c.h.b16 %v367
      %v657 = vunpack.c.l.b16 %v368
      %v658 = vunpack.c.h.b16 %v368
      %v659 = vunpack.c.l.b16 %v369
      %v660 = vunpack.c.h.b16 %v369
      %v661 = vunpack.c.l.b16 %v370
      %v662 = vunpack.c.h.b16 %v370
      %v663 = vunpack.c.l.b16 %v371
      %v664 = vunpack.c.h.b16 %v371
      %v665 = vunpack.c.l.b16 %v372
      %v666 = vunpack.c.h.b16 %v372
      %v667 = vunpack.c.l.b16 %v373
      %v668 = vunpack.c.h.b16 %v373
      %v669 = vunpack.c.l.b16 %v374
      %v670 = vunpack.c.h.b16 %v374
      %v671 = vunpack.c.l.b16 %v375
      %v672 = vunpack.c.h.b16 %v375
      %v673 = vunpack.c.l.b16 %v376
      %v674 = vunpack.c.h.b16 %v376
      %v675 = vunpack.c.l.b16 %v377
      %v676 = vunpack.c.h.b16 %v377
      %v677 = vunpack.c.l.b16 %v378
      %v678 = vunpack.c.h.b16 %v378
      %v679 = vunpack.c.l.b16 %v379
      %v680 = vunpack.c.h.b16 %v379
      %v681 = vunpack.c.l.b16 %v380
      %v682 = vunpack.c.h.b16 %v380
      %v683 = vunpack.c.l.b16 %v381
      %v684 = vunpack.c.h.b16 %v381
      %v685 = vunpack.c.l.b16 %v382
      %v686 = vunpack.c.h.b16 %v382
      %v687 = vpack.c.b16 %v499, %v495
      %v688 = vpack.c.b16 %v500, %v496
      %v689 = vpack.c.b16 %v501, %v497
      %v690 = vpack.c.b16 %v502, %v498
      %v691 = vpack.c.b16 %v507, %v503
      %v692 = vpack.c.b16 %v508, %v504
      %v693 = vpack.c.b16 %v509, %v505
      %v694 = vpack.c.b16 %v510, %v506
      %v695 = vpack.c.b16 %v515, %v511
      %v696 = vpack.c.b16 %v516, %v512
      %v697 = vpack.c.b16 %v517, %v513
      %v698 = vpack.c.b16 %v518, %v514
      %v699 = vpack.c.b16 %v523, %v519
      %v700 = vpack.c.b16 %v524, %v520
      %v701 = vpack.c.b16 %v525, %v521
      %v702 = vpack.c.b16 %v526, %v522
      %v703 = vpack.c.b16 %v531, %v527
      %v704 = vpack.c.b16 %v532, %v528
      %v705 = vpack.c.b16 %v533, %v529
      %v706 = vpack.c.b16 %v534, %v530
      %v707 = vpack.c.b16 %v539, %v535
      %v708 = vpack.c.b16 %v540, %v536
      %v709 = vpack.c.b16 %v541, %v537
      %v710 = vpack.c.b16 %v542, %v538
      %v711 = vpack.c.b16 %v547, %v543
      %v712 = vpack.c.b16 %v548, %v544
      %v713 = vpack.c.b16 %v549, %v545
      %v714 = vpack.c.b16 %v550, %v546
      %v715 = vpack.c.b16 %v555, %v551
      %v716 = vpack.c.b16 %v556, %v552
      %v717 = vpack.c.b16 %v557, %v553
      %v718 = vpack.c.b16 %v558, %v554
      %v719 = vpack.c.b16 %v563, %v559
      %v720 = vpack.c.b16 %v564, %v560
      %v721 = vpack.c.b16 %v565, %v561
      %v722 = vpack.c.b16 %v566, %v562
      %v723 = vpack.c.b16 %v571, %v567
      %v724 = vpack.c.b16 %v572, %v568
      %v725 = vpack.c.b16 %v573, %v569
      %v726 = vpack.c.b16 %v574, %v570
      %v727 = vpack.c.b16 %v579, %v575
      %v728 = vpack.c.b16 %v580, %v576
      %v729 = vpack.c.b16 %v581, %v577
      %v730 = vpack.c.b16 %v582, %v578
      %v731 = vpack.c.b16 %v587, %v583
      %v732 = vpack.c.b16 %v588, %v584
      %v733 = vpack.c.b16 %v589, %v585
      %v734 = vpack.c.b16 %v590, %v586
      %v735 = vpack.c.b16 %v595, %v591
      %v736 = vpack.c.b16 %v596, %v592
      %v737 = vpack.c.b16 %v597, %v593
      %v738 = vpack.c.b16 %v598, %v594
      %v739 = vpack.c.b16 %v603, %v599
      %v740 = vpack.c.b16 %v604, %v600
      %v741 = vpack.c.b16 %v605, %v601
      %v742 = vpack.c.b16 %v606, %v602
      %v743 = vpack.c.b16 %v611, %v607
      %v744 = vpack.c.b16 %v612, %v608
      %v745 = vpack.c.b16 %v613, %v609
      %v746 = vpack.c.b16 %v614, %v610
      %v747 = vpack.c.b16 %v619, %v615
      %v748 = vpack.c.b16 %v620, %v616
      %v749 = vpack.c.b16 %v621, %v617
      %v750 = vpack.c.b16 %v622, %v618
      %v751 = vpack.c.b16 %v627, %v623
      %v752 = vpack.c.b16 %v628, %v624
      %v753 = vpack.c.b16 %v629, %v625
      %v754 = vpack.c.b16 %v630, %v626
      %v755 = vpack.c.b16 %v635, %v631
      %v756 = vpack.c.b16 %v636, %v632
      %v757 = vpack.c.b16 %v637, %v633
      %v758 = vpack.c.b16 %v638, %v634
      %v759 = vpack.c.b16 %v643, %v639
      %v760 = vpack.c.b16 %v644, %v640
      %v761 = vpack.c.b16 %v645, %v641
      %v762 = vpack.c.b16 %v646, %v642
      %v763 = vpack.c.b16 %v651, %v647
      %v764 = vpack.c.b16 %v652, %v648
      %v765 = vpack.c.b16 %v653, %v649
      %v766 = vpack.c.b16 %v654, %v650
      %v767 = vpack.c.b16 %v659, %v655
      %v768 = vpack.c.b16 %v660, %v656
      %v769 = vpack.c.b16 %v661, %v657
      %v770 = vpack.c.b16 %v662, %v658
      %v771 = vpack.c.b16 %v667, %v663
      %v772 = vpack.c.b16 %v668, %v664
      %v773 = vpack.c.b16 %v669, %v665
      %v774 = vpack.c.b16 %v670, %v666
      %v775 = vpack.c.b16 %v675, %v671
      %v776 = vpack.c.b16 %v676, %v672
      %v777 = vpack.c.b16 %v677, %v673
      %v778 = vpack.c.b16 %v678, %v674
      %v779 = vpack.c.b16 %v683, %v679
      %v780 = vpack.c.b16 %v684, %v680
      %v781 = vpack.c.b16 %v685, %v681
      %v782 = vpack.c.b16 %v686, %v682
      %879 = vmatpush.bf16.msra.mxu0 %v715
      %880 = vmatpush.bf16.msra.mxu0 %v711
      %881 = vmatpush.bf16.msra.mxu0 %v707
      %882 = vmatpush.bf16.msra.mxu0 %v703
      %883 = vmatpush.bf16.msra.mxu0 %v699
      %884 = vmatpush.bf16.msra.mxu0 %v695
      %885 = vmatpush.bf16.msra.mxu0 %v691
      %886 = vmatpush.bf16.msra.mxu0 %v687
      %887 = vmatmul.bf16.gmra.mxu0 %v393
      %v888 = vpop.f32.mrf.mxu0
      %v889 = vadd.f32 0.0, %v888
      %v890 = vpop.f32.mrf.mxu0
      %v891 = vadd.f32 0.0, %v890
      %892 = vdwg.mxu0
      %893 = vmatpush.bf16.msra.mxu0 %v747
      %894 = vmatpush.bf16.msra.mxu0 %v743
      %895 = vmatpush.bf16.msra.mxu0 %v739
      %896 = vmatpush.bf16.msra.mxu0 %v735
      %897 = vmatpush.bf16.msra.mxu0 %v731
      %898 = vmatpush.bf16.msra.mxu0 %v727
      %899 = vmatpush.bf16.msra.mxu0 %v723
      %900 = vmatpush.bf16.msra.mxu0 %v719
      %901 = vmatmul.bf16.gmra.mxu0 %v394
      %v902 = vpop.f32.mrf.mxu0
      %v903 = vadd.f32 %v889, %v902
      %v904 = vpop.f32.mrf.mxu0
      %v905 = vadd.f32 %v891, %v904
      %906 = vdwg.mxu0
      %907 = vmatpush.bf16.msra.mxu0 %v779
      %908 = vmatpush.bf16.msra.mxu0 %v775
      %909 = vmatpush.bf16.msra.mxu0 %v771
      %910 = vmatpush.bf16.msra.mxu0 %v767
      %911 = vmatpush.bf16.msra.mxu0 %v763
      %912 = vmatpush.bf16.msra.mxu0 %v759
      %913 = vmatpush.bf16.msra.mxu0 %v755
      %914 = vmatpush.bf16.msra.mxu0 %v751
      %915 = vmatmul.bf16.gmra.mxu0 %v395
      %v916 = vpop.f32.mrf.mxu0
      %v917 = vadd.f32 %v903, %v916
      %v918 = vpop.f32.mrf.mxu0
      %v919 = vadd.f32 %v905, %v918
      %920 = vdwg.mxu0
      %921 = vmatpush.bf16.msra.mxu0 %v716
      %922 = vmatpush.bf16.msra.mxu0 %v712
      %923 = vmatpush.bf16.msra.mxu0 %v708
      %924 = vmatpush.bf16.msra.mxu0 %v704
      %925 = vmatpush.bf16.msra.mxu0 %v700
      %926 = vmatpush.bf16.msra.mxu0 %v696
      %927 = vmatpush.bf16.msra.mxu0 %v692
      %928 = vmatpush.bf16.msra.mxu0 %v688
      %929 = vmatmul.bf16.gmra.mxu0 %v393
      %v930 = vpop.f32.mrf.mxu0
      %v931 = vadd.f32 0.0, %v930
      %v932 = vpop.f32.mrf.mxu0
      %v933 = vadd.f32 0.0, %v932
      %934 = vdwg.mxu0
      %935 = vmatpush.bf16.msra.mxu0 %v748
      %936 = vmatpush.bf16.msra.mxu0 %v744
      %937 = vmatpush.bf16.msra.mxu0 %v740
      %938 = vmatpush.bf16.msra.mxu0 %v736
      %939 = vmatpush.bf16.msra.mxu0 %v732
      %940 = vmatpush.bf16.msra.mxu0 %v728
      %941 = vmatpush.bf16.msra.mxu0 %v724
      %942 = vmatpush.bf16.msra.mxu0 %v720
      %943 = vmatmul.bf16.gmra.mxu0 %v394
      %v944 = vpop.f32.mrf.mxu0
      %v945 = vadd.f32 %v931, %v944
      %v946 = vpop.f32.mrf.mxu0
      %v947 = vadd.f32 %v933, %v946
      %948 = vdwg.mxu0
      %949 = vmatpush.bf16.msra.mxu0 %v780
      %950 = vmatpush.bf16.msra.mxu0 %v776
      %951 = vmatpush.bf16.msra.mxu0 %v772
      %952 = vmatpush.bf16.msra.mxu0 %v768
      %953 = vmatpush.bf16.msra.mxu0 %v764
      %954 = vmatpush.bf16.msra.mxu0 %v760
      %955 = vmatpush.bf16.msra.mxu0 %v756
      %956 = vmatpush.bf16.msra.mxu0 %v752
      %957 = vmatmul.bf16.gmra.mxu0 %v395
      %v958 = vpop.f32.mrf.mxu0
      %v959 = vadd.f32 %v945, %v958
      %v960 = vpop.f32.mrf.mxu0
      %v961 = vadd.f32 %v947, %v960
      %962 = vdwg.mxu0
      %963 = vmatpush.bf16.msra.mxu0 %v717
      %964 = vmatpush.bf16.msra.mxu0 %v713
      %965 = vmatpush.bf16.msra.mxu0 %v709
      %966 = vmatpush.bf16.msra.mxu0 %v705
      %967 = vmatpush.bf16.msra.mxu0 %v701
      %968 = vmatpush.bf16.msra.mxu0 %v697
      %969 = vmatpush.bf16.msra.mxu0 %v693
      %970 = vmatpush.bf16.msra.mxu0 %v689
      %971 = vmatmul.bf16.gmra.mxu0 %v393
      %v972 = vpop.f32.mrf.mxu0
      %v973 = vadd.f32 0.0, %v972
      %v974 = vpop.f32.mrf.mxu0
      %v975 = vadd.f32 0.0, %v974
      %976 = vdwg.mxu0
      %977 = vmatpush.bf16.msra.mxu0 %v749
      %978 = vmatpush.bf16.msra.mxu0 %v745
      %979 = vmatpush.bf16.msra.mxu0 %v741
      %980 = vmatpush.bf16.msra.mxu0 %v737
      %981 = vmatpush.bf16.msra.mxu0 %v733
      %982 = vmatpush.bf16.msra.mxu0 %v729
      %983 = vmatpush.bf16.msra.mxu0 %v725
      %984 = vmatpush.bf16.msra.mxu0 %v721
      %985 = vmatmul.bf16.gmra.mxu0 %v394
      %v986 = vpop.f32.mrf.mxu0
      %v987 = vadd.f32 %v973, %v986
      %v988 = vpop.f32.mrf.mxu0
      %v989 = vadd.f32 %v975, %v988
      %990 = vdwg.mxu0
      %991 = vmatpush.bf16.msra.mxu0 %v781
      %992 = vmatpush.bf16.msra.mxu0 %v777
      %993 = vmatpush.bf16.msra.mxu0 %v773
      %994 = vmatpush.bf16.msra.mxu0 %v769
      %995 = vmatpush.bf16.msra.mxu0 %v765
      %996 = vmatpush.bf16.msra.mxu0 %v761
      %997 = vmatpush.bf16.msra.mxu0 %v757
      %998 = vmatpush.bf16.msra.mxu0 %v753
      %999 = vmatmul.bf16.gmra.mxu0 %v395
      %v1000 = vpop.f32.mrf.mxu0
      %v1001 = vadd.f32 %v987, %v1000
      %v1002 = vpop.f32.mrf.mxu0
      %v1003 = vadd.f32 %v989, %v1002
      %1004 = vdwg.mxu0
      %1005 = vmatpush.bf16.msra.mxu0 %v718
      %1006 = vmatpush.bf16.msra.mxu0 %v714
      %1007 = vmatpush.bf16.msra.mxu0 %v710
      %1008 = vmatpush.bf16.msra.mxu0 %v706
      %1009 = vmatpush.bf16.msra.mxu0 %v702
      %1010 = vmatpush.bf16.msra.mxu0 %v698
      %1011 = vmatpush.bf16.msra.mxu0 %v694
      %1012 = vmatpush.bf16.msra.mxu0 %v690
      %1013 = vmatmul.bf16.gmra.mxu0 %v393
      %v1014 = vpop.f32.mrf.mxu0
      %v1015 = vadd.f32 0.0, %v1014
      %v1016 = vpop.f32.mrf.mxu0
      %v1017 = vadd.f32 0.0, %v1016
      %1018 = vdwg.mxu0
      %1019 = vmatpush.bf16.msra.mxu0 %v750
      %1020 = vmatpush.bf16.msra.mxu0 %v746
      %1021 = vmatpush.bf16.msra.mxu0 %v742
      %1022 = vmatpush.bf16.msra.mxu0 %v738
      %1023 = vmatpush.bf16.msra.mxu0 %v734
      %1024 = vmatpush.bf16.msra.mxu0 %v730
      %1025 = vmatpush.bf16.msra.mxu0 %v726
      %1026 = vmatpush.bf16.msra.mxu0 %v722
      %1027 = vmatmul.bf16.gmra.mxu0 %v394
      %v1028 = vpop.f32.mrf.mxu0
      %v1029 = vadd.f32 %v1015, %v1028
      %v1030 = vpop.f32.mrf.mxu0
      %v1031 = vadd.f32 %v1017, %v1030
      %1032 = vdwg.mxu0
      %1033 = vmatpush.bf16.msra.mxu0 %v782
      %1034 = vmatpush.bf16.msra.mxu0 %v778
      %1035 = vmatpush.bf16.msra.mxu0 %v774
      %1036 = vmatpush.bf16.msra.mxu0 %v770
      %1037 = vmatpush.bf16.msra.mxu0 %v766
      %1038 = vmatpush.bf16.msra.mxu0 %v762
      %1039 = vmatpush.bf16.msra.mxu0 %v758
      %1040 = vmatpush.bf16.msra.mxu0 %v754
      %1041 = vmatmul.bf16.gmra.mxu0 %v395
      %v1042 = vpop.f32.mrf.mxu0
      %v1043 = vadd.f32 %v1029, %v1042
      %v1044 = vpop.f32.mrf.mxu0
      %v1045 = vadd.f32 %v1031, %v1044
      %1046 = vdwg.mxu0
      %v1047 = vadd.f32 %v917, %v919
      %v1048 = vrot.slane %v1047, 4
      %v1049 = vadd.f32 %v1047, %v1048
      %v1050 = vrot.slane %v1049, 2
      %v1051 = vadd.f32 %v1049, %v1050
      %v1052 = vrot.slane %v1051, 1
      %v1053 = vadd.f32 %v1051, %v1052
      %v1054 = vadd.f32 %v959, %v961
      %v1055 = vrot.slane %v1054, 4
      %v1056 = vadd.f32 %v1054, %v1055
      %v1057 = vrot.slane %v1056, 2
      %v1058 = vadd.f32 %v1056, %v1057
      %v1059 = vrot.slane %v1058, 1
      %v1060 = vadd.f32 %v1058, %v1059
      %v1061 = vadd.f32 %v1001, %v1003
      %v1062 = vrot.slane %v1061, 4
      %v1063 = vadd.f32 %v1061, %v1062
      %v1064 = vrot.slane %v1063, 2
      %v1065 = vadd.f32 %v1063, %v1064
      %v1066 = vrot.slane %v1065, 1
      %v1067 = vadd.f32 %v1065, %v1066
      %v1068 = vadd.f32 %v1043, %v1045
      %v1069 = vrot.slane %v1068, 4
      %v1070 = vadd.f32 %v1068, %v1069
      %v1071 = vrot.slane %v1070, 2
      %v1072 = vadd.f32 %v1070, %v1071
      %v1073 = vrot.slane %v1072, 1
      %v1074 = vadd.f32 %v1072, %v1073
      %v1079 = vrot.slane %v1060, 7
      %v1080 = vrot.slane %v1067, 6
      %v1081 = vrot.slane %v1074, 5
      %vm1082 = vcmask 1040384
      %v1083 = vsel %vm1082, %v1053, %v1079
      %vm1084 = vcmask 1042434
      %v1085 = vsel %vm1084, %v1080, %v1081
      %vm1086 = vcmask 1041408
      %v1087 = vsel %vm1086, %v1083, %v1085
      %v1089 = vlaneseq
      %vm1090 = vcmp.ge.s32.totalorder %v1089, 0
      %vm1091 = vcmp.lt.s32.totalorder %v1089, 512
      %vm1092 = vmand %vm1090, %vm1091
      %1093 = vst.msk [vmem:[%s274] sm:$0xf] %vm1092, %v1087
      %v1094 = vmul.f32 %v917, %v917
      %v1095 = vmul.f32 %v959, %v959
      %v1096 = vmul.f32 %v1001, %v1001
      %v1097 = vmul.f32 %v1043, %v1043
      %v1098 = vmul.f32 %v919, %v919
      %v1099 = vmul.f32 %v961, %v961
      %v1100 = vmul.f32 %v1003, %v1003
      %v1101 = vmul.f32 %v1045, %v1045
      %v1102 = vadd.f32 %v1094, %v1098
      %v1103 = vrot.slane %v1102, 4
      %v1104 = vadd.f32 %v1102, %v1103
      %v1105 = vrot.slane %v1104, 2
      %v1106 = vadd.f32 %v1104, %v1105
      %v1107 = vrot.slane %v1106, 1
      %v1108 = vadd.f32 %v1106, %v1107
      %v1109 = vadd.f32 %v1095, %v1099
      %v1110 = vrot.slane %v1109, 4
      %v1111 = vadd.f32 %v1109, %v1110
      %v1112 = vrot.slane %v1111, 2
      %v1113 = vadd.f32 %v1111, %v1112
      %v1114 = vrot.slane %v1113, 1
      %v1115 = vadd.f32 %v1113, %v1114
      %v1116 = vadd.f32 %v1096, %v1100
      %v1117 = vrot.slane %v1116, 4
      %v1118 = vadd.f32 %v1116, %v1117
      %v1119 = vrot.slane %v1118, 2
      %v1120 = vadd.f32 %v1118, %v1119
      %v1121 = vrot.slane %v1120, 1
      %v1122 = vadd.f32 %v1120, %v1121
      %v1123 = vadd.f32 %v1097, %v1101
      %v1124 = vrot.slane %v1123, 4
      %v1125 = vadd.f32 %v1123, %v1124
      %v1126 = vrot.slane %v1125, 2
      %v1127 = vadd.f32 %v1125, %v1126
      %v1128 = vrot.slane %v1127, 1
      %v1129 = vadd.f32 %v1127, %v1128
      %v1134 = vrot.slane %v1115, 7
      %v1135 = vrot.slane %v1122, 6
      %v1136 = vrot.slane %v1129, 5
      %v1137 = vsel %vm1082, %v1108, %v1134
      %v1138 = vsel %vm1084, %v1135, %v1136
      %v1139 = vsel %vm1086, %v1137, %v1138
      %1141 = vst.msk [vmem:[%s282] sm:$0xf] %vm1092, %v1139
      %v1142 = vpack.c.bf16 %v959, %v917
      %v1143 = vpack.c.bf16 %v1043, %v1001
      %v1144 = vpack.c.bf16 %v961, %v919
      %v1145 = vpack.c.bf16 %v1045, %v1003
      %1146 = vst [vmem:[%s265] sm:$0xff] %v1142
      %1147 = vst [vmem:[%s265 + $0x8] sm:$0xff] %v1143
      %1148 = vst [vmem:[%s265 + $0x10] sm:$0xff] %v1144
      %1149 = vst [vmem:[%s265 + $0x18] sm:$0xff] %v1145
      %s1150 = smul.u32 2, %s21
      %p1151 = scmp.lt.s32.totalorder %s20, 1
      %s1152 = scalar_select %p1151, %s20, 1
      %p1153 = scmp.lt.s32.totalorder %s1150, 1
      %s1154 = scalar_select %p1153, %s1150, 1
      %s1155 = smul.addr %s1154, 4
      %s1156 = smul.addr %s1152, 8
      %s1157 = sadd.s32 %s1155, %s1156
      %s1158 = smul.addr %s1157, 4
      %s1159 = scalar_lea.vmem %s2, %s1158
      %p1160 = scmp.lt.s32.totalorder %s20, 1
      %s1161 = scalar_select %p1160, %s20, 1
      %p1162 = scmp.lt.s32.totalorder %s21, 0
      %s1163 = scalar_select %p1162, %s21, 0
      %s1164 = smul.addr %s1163, 4
      %s1165 = smul.addr %s1161, 4
      %s1166 = sadd.s32 %s1164, %s1165
      %s1167 = scalar_lea.vmem %s3, %s1166
      %p1168 = scmp.lt.s32.totalorder %s20, 1
      %s1169 = scalar_select %p1168, %s20, 1
      %p1170 = scmp.lt.s32.totalorder %s21, 0
      %s1171 = scalar_select %p1170, %s21, 0
      %s1172 = smul.addr %s1171, 4
      %s1173 = smul.addr %s1169, 4
      %s1174 = sadd.s32 %s1172, %s1173
      %s1175 = scalar_lea.vmem %s4, %s1174
      // Predicated region
      $region29: #{_lambda_.33} parent=27 // pred_check
        %p1176 = pneg %p97
      $region30: #{_lambda_.33} parent=27 // pred_check_branch
        %1178 = sbr.rel (%p1176) target = $region32
      $region31: #{_lambda_.33} parent=27 // pred_region
        %s1179 = smul.u32 2, %s21
      $region32: #{_lambda_.33} parent=27 // pred_fallthru
        _
      // Predicated region
      $region33: #{_lambda_.33} parent=27 // pred_check
        %p1180 = pneg %p125
      $region34: #{_lambda_.33} parent=27 // pred_check_branch
        %1182 = sbr.rel (%p1180) target = $region36
      $region35: #{_lambda_.33} parent=27 // pred_region
        _
      $region36: #{_lambda_.33} parent=27 // pred_fallthru
        _
      // Predicated region
      $region37: #{_lambda_.33} parent=27 // pred_check
        %p1183 = pneg %p153
      $region38: #{_lambda_.33} parent=27 // pred_check_branch
        %1185 = sbr.rel (%p1183) target = $region40
      $region39: #{_lambda_.33} parent=27 // pred_region
        _
      $region40: #{_lambda_.33} parent=27 // pred_fallthru
        _
    $region28: #{_lambda_.33} parent=5 // pred_fallthru
      _
    %p1186 = scmp.le.s32.totalorder 2, %s11
    // Predicated region
    $region41: #{_lambda_.33} parent=5 // pred_check
      %p1187 = pneg %p1186
    $region42: #{_lambda_.33} parent=5 // pred_check_branch
      %1189 = sbr.rel (%p1187) target = $region44
    $region43: #{_lambda_.33} parent=5 // pred_region
      %s1190 = ssub.s32 %s11, 2
      // Predicated region
      $region45: #{_lambda_.33} parent=43 // pred_check
        %p1191 = pneg %p103
      $region46: #{_lambda_.33} parent=43 // pred_check_branch
        %1193 = sbr.rel (%p1191) target = $region48
      $region47: #{_lambda_.33} parent=43 // pred_region
        %s1194 = smul.u32 2, %s23
        %p1195 = scmp.lt.s32.totalorder %s22, 1
        %s1196 = scalar_select %p1195, %s22, 1
        %p1197 = scmp.lt.s32.totalorder %s1194, 1
        %s1198 = scalar_select %p1197, %s1194, 1
        %s1199 = smul.addr %s1198, 4
        %s1200 = smul.addr %s1196, 8
        %s1201 = sadd.s32 %s1199, %s1200
        %s1202 = smul.addr %s1201, 4
        %s1203 = scalar_lea.vmem %s2, %s1202
      $region48: #{_lambda_.33} parent=43 // pred_fallthru
        _
      // Predicated region
      $region49: #{_lambda_.33} parent=43 // pred_check
        %p1204 = pneg %p131
      $region50: #{_lambda_.33} parent=43 // pred_check_branch
        %1206 = sbr.rel (%p1204) target = $region52
      $region51: #{_lambda_.33} parent=43 // pred_region
        %p1207 = scmp.lt.s32.totalorder %s22, 1
        %s1208 = scalar_select %p1207, %s22, 1
        %p1209 = scmp.lt.s32.totalorder %s23, 0
        %s1210 = scalar_select %p1209, %s23, 0
        %s1211 = smul.addr %s1210, 4
        %s1212 = smul.addr %s1208, 4
        %s1213 = sadd.s32 %s1211, %s1212
        %s1214 = scalar_lea.vmem %s3, %s1213
      $region52: #{_lambda_.33} parent=43 // pred_fallthru
        _
      // Predicated region
      $region53: #{_lambda_.33} parent=43 // pred_check
        %p1215 = pneg %p159
      $region54: #{_lambda_.33} parent=43 // pred_check_branch
        %1217 = sbr.rel (%p1215) target = $region56
      $region55: #{_lambda_.33} parent=43 // pred_region
        %p1218 = scmp.lt.s32.totalorder %s22, 1
        %s1219 = scalar_select %p1218, %s22, 1
        %p1220 = scmp.lt.s32.totalorder %s23, 0
        %s1221 = scalar_select %p1220, %s23, 0
        %s1222 = smul.addr %s1221, 4
        %s1223 = smul.addr %s1219, 4
        %s1224 = sadd.s32 %s1222, %s1223
        %s1225 = scalar_lea.vmem %s4, %s1224
      $region56: #{_lambda_.33} parent=43 // pred_fallthru
        _
    $region44: #{_lambda_.33} parent=5 // pred_fallthru
      _
  $region6: #{_lambda_.33} parent=0 // loop_footer
    %s15 = sadd.s32 1, %s11
  $region7: #{_lambda_.33} parent=0 // loop_footer_branch
    %10 = sbr.rel target = $region3
  $region8: #{_lambda_.33} parent=0 // loop_exit
    _

// kernel: _lambda_.35
$region0: #{_lambda_.35}
  #allocation0 [shape = 'u32[]', space=smem, size = 0x4, offset = 0x4, fixed_abs, tag = 'smem constant byte address 0x4 - core index']
  #allocation1 [shape = 'u32[72,128]{1,0:T(1,128)}', space=vmem, size = 0x9000, scoped, tag = 'internal scratch']
  %s0 = inlined_call_operand.vmem [shape: bf16[2,64,256], index: 0, kind: input, shape index: {}]
  %s1 = inlined_call_operand.vmem [shape: bf16[256,512], index: 1, kind: input, shape index: {}]
  %s2 = inlined_call_operand.vmem [shape: bf16[2,64,512], index: 2, kind: output, shape index: {0}]
  %s3 = inlined_call_operand.vmem [shape: f32[2,1,1,512], index: 3, kind: output, shape index: {1}]
  %s4 = inlined_call_operand.vmem [shape: f32[2,1,1,512], index: 4, kind: output, shape index: {2}]
  %5 = xla_tuple %s2, %s3, %s4
  %s6 = sld [smem:[#allocation0]]
  $region57: #{_lambda_.35} parent=0
    _
  %s8 = ssub.s32 1, %s6
  %s9 = scalar_select 0, %s8, %s6
  loop: start=0, step=1, limit=4
  $region2: #{_lambda_.35} parent=0 // loop_pre_header
    _
  $region3: #{_lambda_.35} parent=0 // loop_header
    %s11 = sphi 0, %s15
    %p12 = scmp.ge.s32.totalorder %s11, 4
    %s18 = sphi 0, %s30
    %s19 = sphi 0, %s26
    %s20 = sphi 0, %s18
    %s21 = sphi 0, %s19
    %s22 = sphi 0, %s20
    %s23 = sphi 0, %s21
    %s35 = sphi 0, %s37
    %s38 = sphi 0, %s35
    %s39 = sphi 0, %s38
    %s55 = sphi 0, %s39
    %s59 = sphi 0, %s59
    %s61 = sphi 0, %s59
    %s62 = sphi 0, %s61
    %s76 = sphi 0, %s62
    %s84 = sphi 0, %s86
    %s87 = sphi 0, %s84
    %s88 = sphi 0, %s87
    %s104 = sphi 0, %s88
    %s112 = sphi 0, %s114
    %s115 = sphi 0, %s112
    %s116 = sphi 0, %s115
    %s132 = sphi 0, %s116
    %s140 = sphi 0, %s142
    %s143 = sphi 0, %s140
    %s144 = sphi 0, %s143
    %s160 = sphi 0, %s144
  $region4: #{_lambda_.35} parent=0 // loop_header_branch
    %14 = sbr.rel (%p12) target = $region8
  $region5: #{_lambda_.35} parent=0 // loop_body
    %s16 = ssub.s32 %s11, 1
    %s17 = ssub.s32 %s11, 2
    %s24 = sadd.s32 1, %s19
    %p25 = scmp.ge.s32.totalorder %s24, 1
    %s26 = scalar_select %p25, 0, %s24
    %s27 = sadd.s32 1, %s18
    %s28 = scalar_select %p25, %s27, %s18
    %p29 = scmp.ge.s32.totalorder %s28, 2
    %s30 = scalar_select %p29, 0, %s28
    %s31 = ssub.s32 %s18, %s30
    %s32 = ssub.s32 %s19, %s26
    %s33 = sor.u32 %s31, %s32
    %p34 = scmp.eq.s32.totalorder %s33, 0
    %s36 = sadd.s32 %s35, 1
    %s37 = scalar_select %p34, %s35, %s36
    %p40 = pneg %p34
    %p41 = scmp.eq.s32.totalorder %s11, 1
    %p42 = por %p40, %p41
    %p43 = scmp.ne.s32.totalorder %s35, %s38
    %p44 = scmp.eq.s32.totalorder %s11, 0
    %p45 = por %p43, %p44
    %p46 = scmp.ne.s32.totalorder %s35, %s38
    %p47 = scmp.eq.s32.totalorder %s16, 1
    %p48 = por %p46, %p47
    %p49 = scmp.ne.s32.totalorder %s38, %s39
    %p50 = scmp.eq.s32.totalorder %s16, 0
    %p51 = por %p49, %p50
    %p52 = scmp.ne.s32.totalorder %s38, %s39
    %p53 = scmp.eq.s32.totalorder %s17, 1
    %p54 = por %p52, %p53
    %p56 = scmp.ne.s32.totalorder %s39, %s55
    %p57 = scmp.eq.s32.totalorder %s17, 0
    %p58 = por %p56, %p57
    %s60 = sadd.s32 %s59, 1
    %p63 = scmp.eq.s32.totalorder %s11, 1
    %p64 = scmp.ne.s32.totalorder %s59, %s61
    %p65 = scmp.eq.s32.totalorder %s11, 0
    %p66 = por %p64, %p65
    %p67 = scmp.ne.s32.totalorder %s59, %s61
    %p68 = scmp.eq.s32.totalorder %s16, 1
    %p69 = por %p67, %p68
    %p70 = scmp.ne.s32.totalorder %s61, %s62
    %p71 = scmp.eq.s32.totalorder %s16, 0
    %p72 = por %p70, %p71
    %p73 = scmp.ne.s32.totalorder %s61, %s62
    %p74 = scmp.eq.s32.totalorder %s17, 1
    %p75 = por %p73, %p74
    %p77 = scmp.ne.s32.totalorder %s62, %s76
    %p78 = scmp.eq.s32.totalorder %s17, 0
    %p79 = por %p77, %p78
    %s80 = ssub.s32 %s18, %s30
    %s81 = ssub.s32 %s19, %s26
    %s82 = sor.u32 %s80, %s81
    %p83 = scmp.eq.s32.totalorder %s82, 0
    %s85 = sadd.s32 %s84, 1
    %s86 = scalar_select %p83, %s84, %s85
    %p89 = pneg %p83
    %p90 = scmp.eq.s32.totalorder %s11, 1
    %p91 = por %p89, %p90
    %p92 = scmp.ne.s32.totalorder %s84, %s87
    %p93 = scmp.eq.s32.totalorder %s11, 0
    %p94 = por %p92, %p93
    %p95 = scmp.ne.s32.totalorder %s84, %s87
    %p96 = scmp.eq.s32.totalorder %s16, 1
    %p97 = por %p95, %p96
    %p98 = scmp.ne.s32.totalorder %s87, %s88
    %p99 = scmp.eq.s32.totalorder %s16, 0
    %p100 = por %p98, %p99
    %p101 = scmp.ne.s32.totalorder %s87, %s88
    %p102 = scmp.eq.s32.totalorder %s17, 1
    %p103 = por %p101, %p102
    %p105 = scmp.ne.s32.totalorder %s88, %s104
    %p106 = scmp.eq.s32.totalorder %s17, 0
    %p107 = por %p105, %p106
    %s108 = ssub.s32 %s18, %s30
    %s109 = ssub.s32 %s19, %s26
    %s110 = sor.u32 %s108, %s109
    %p111 = scmp.eq.s32.totalorder %s110, 0
    %s113 = sadd.s32 %s112, 1
    %s114 = scalar_select %p111, %s112, %s113
    %p117 = pneg %p111
    %p118 = scmp.eq.s32.totalorder %s11, 1
    %p119 = por %p117, %p118
    %p120 = scmp.ne.s32.totalorder %s112, %s115
    %p121 = scmp.eq.s32.totalorder %s11, 0
    %p122 = por %p120, %p121
    %p123 = scmp.ne.s32.totalorder %s112, %s115
    %p124 = scmp.eq.s32.totalorder %s16, 1
    %p125 = por %p123, %p124
    %p126 = scmp.ne.s32.totalorder %s115, %s116
    %p127 = scmp.eq.s32.totalorder %s16, 0
    %p128 = por %p126, %p127
    %p129 = scmp.ne.s32.totalorder %s115, %s116
    %p130 = scmp.eq.s32.totalorder %s17, 1
    %p131 = por %p129, %p130
    %p133 = scmp.ne.s32.totalorder %s116, %s132
    %p134 = scmp.eq.s32.totalorder %s17, 0
    %p135 = por %p133, %p134
    %s136 = ssub.s32 %s18, %s30
    %s137 = ssub.s32 %s19, %s26
    %s138 = sor.u32 %s136, %s137
    %p139 = scmp.eq.s32.totalorder %s138, 0
    %s141 = sadd.s32 %s140, 1
    %s142 = scalar_select %p139, %s140, %s141
    %p145 = pneg %p139
    %p146 = scmp.eq.s32.totalorder %s11, 1
    %p147 = por %p145, %p146
    %p148 = scmp.ne.s32.totalorder %s140, %s143
    %p149 = scmp.eq.s32.totalorder %s11, 0
    %p150 = por %p148, %p149
    %p151 = scmp.ne.s32.totalorder %s140, %s143
    %p152 = scmp.eq.s32.totalorder %s16, 1
    %p153 = por %p151, %p152
    %p154 = scmp.ne.s32.totalorder %s143, %s144
    %p155 = scmp.eq.s32.totalorder %s16, 0
    %p156 = por %p154, %p155
    %p157 = scmp.ne.s32.totalorder %s143, %s144
    %p158 = scmp.eq.s32.totalorder %s17, 1
    %p159 = por %p157, %p158
    %p161 = scmp.ne.s32.totalorder %s144, %s160
    %p162 = scmp.eq.s32.totalorder %s17, 0
    %p163 = por %p161, %p162
    %p164 = scmp.le.s32.totalorder 1, %s11
    %p165 = scmp.lt.s32.totalorder %s11, 3
    %p166 = pnand %p164, %p165
    %p167 = pneg %p166
    // Predicated region
    $region9: #{_lambda_.35} parent=5 // pred_check
      _
    $region10: #{_lambda_.35} parent=5 // pred_check_branch
      %169 = sbr.rel (%p166) target = $region12
    $region11: #{_lambda_.35} parent=5 // pred_region
      %s170 = ssub.s32 %s11, 1
      // Predicated region
      $region13: #{_lambda_.35} parent=11 // pred_check
        %p171 = pneg %p72
      $region14: #{_lambda_.35} parent=11 // pred_check_branch
        %173 = sbr.rel (%p171) target = $region16
      $region15: #{_lambda_.35} parent=11 // pred_region
        _
      $region16: #{_lambda_.35} parent=11 // pred_fallthru
        _
    $region12: #{_lambda_.35} parent=5 // pred_fallthru
      _
    %p174 = scmp.lt.s32.totalorder %s11, 2
    // Predicated region
    $region17: #{_lambda_.35} parent=5 // pred_check
      %p175 = pneg %p174
    $region18: #{_lambda_.35} parent=5 // pred_check_branch
      %177 = sbr.rel (%p175) target = $region20
    $region19: #{_lambda_.35} parent=5 // pred_region
      // Predicated region
      $region21: #{_lambda_.35} parent=19 // pred_check
        %p178 = pneg %p45
      $region22: #{_lambda_.35} parent=19 // pred_check_branch
        %180 = sbr.rel (%p178) target = $region24
      $region23: #{_lambda_.35} parent=19 // pred_region
        %s181 = smul.u32 8, %s19
        %p182 = scmp.lt.s32.totalorder %s18, 1
        %s183 = scalar_select %p182, %s18, 1
        %p184 = scmp.lt.s32.totalorder %s181, 7
        %s185 = scalar_select %p184, %s181, 7
        %s186 = smul.addr %s185, 2
        %s187 = smul.addr %s183, 16
        %s188 = sadd.s32 %s186, %s187
        %s189 = smul.addr %s188, 4
        %s190 = scalar_lea.vmem %s0, %s189
        %s191 = smul.u32 8, %s19
      $region24: #{_lambda_.35} parent=19 // pred_fallthru
        _
    $region20: #{_lambda_.35} parent=5 // pred_fallthru
      _
    %p192 = scmp.le.s32.totalorder 1, %s11
    %p193 = scmp.lt.s32.totalorder %s11, 3
    %p194 = pnand %p192, %p193
    %p195 = pneg %p194
    // Predicated region
    $region25: #{_lambda_.35} parent=5 // pred_check
      _
    $region26: #{_lambda_.35} parent=5 // pred_check_branch
      %197 = sbr.rel (%p194) target = $region28
    $region27: #{_lambda_.35} parent=5 // pred_region
      %s198 = ssub.s32 %s11, 1
      %s199 = smul.u32 8, %s21
      %p200 = scmp.lt.s32.totalorder %s20, 1
      %s201 = scalar_select %p200, %s20, 1
      %p202 = scmp.lt.s32.totalorder %s199, 7
      %s203 = scalar_select %p202, %s199, 7
      %s204 = smul.addr %s203, 2
      %s205 = smul.addr %s201, 16
      %s206 = sadd.s32 %s204, %s205
      %s207 = smul.addr %s206, 4
      %s208 = scalar_lea.vmem %s0, %s207
      %p209 = pneg %p51
      %p210 = pneg %p48
      %p211 = pneg %p72
      %p212 = pneg %p69
      %p213 = pneg %p100
      %p214 = pneg %p97
      %s215 = smul.u32 8, %s21
      %p216 = scmp.lt.s32.totalorder %s20, 1
      %s217 = scalar_select %p216, %s20, 1
      %p218 = scmp.lt.s32.totalorder %s215, 7
      %s219 = scalar_select %p218, %s215, 7
      %s220 = smul.addr %s219, 4
      %s221 = smul.addr %s217, 32
      %s222 = sadd.s32 %s220, %s221
      %s223 = smul.addr %s222, 4
      %s224 = scalar_lea.vmem %s2, %s223
      %p225 = pneg %p128
      %p226 = pneg %p125
      %p227 = scmp.lt.s32.totalorder %s20, 1
      %s228 = scalar_select %p227, %s20, 1
      %p229 = scmp.lt.s32.totalorder %s21, 0
      %s230 = scalar_select %p229, %s21, 0
      %s231 = smul.addr %s230, 4
      %s232 = smul.addr %s228, 4
      %s233 = sadd.s32 %s231, %s232
      %s234 = scalar_lea.vmem %s3, %s233
      %p235 = pneg %p156
      %p236 = pneg %p153
      %p237 = scmp.lt.s32.totalorder %s20, 1
      %s238 = scalar_select %p237, %s20, 1
      %p239 = scmp.lt.s32.totalorder %s21, 0
      %s240 = scalar_select %p239, %s21, 0
      %s241 = smul.addr %s240, 4
      %s242 = smul.addr %s238, 4
      %s243 = sadd.s32 %s241, %s242
      %s244 = scalar_lea.vmem %s4, %s243
      %s245 = smul.u32 8, %s21
      %p246 = scmp.lt.s32.totalorder %s20, 1
      %s247 = scalar_select %p246, %s20, 1
      %p248 = scmp.lt.s32.totalorder %s245, 7
      %s249 = scalar_select %p248, %s245, 7
      %s250 = smul.addr %s249, 2
      %s251 = smul.addr %s247, 16
      %s252 = sadd.s32 %s250, %s251
      %s253 = smul.addr %s252, 4
      %s254 = scalar_lea.vmem %s0, %s253
      %s255 = smul.u32 8, %s21
      %s256 = smul.u32 8, %s21
      %p257 = scmp.lt.s32.totalorder %s20, 1
      %s258 = scalar_select %p257, %s20, 1
      %p259 = scmp.lt.s32.totalorder %s256, 7
      %s260 = scalar_select %p259, %s256, 7
      %s261 = smul.addr %s260, 4
      %s262 = smul.addr %s258, 32
      %s263 = sadd.s32 %s261, %s262
      %s264 = smul.addr %s263, 4
      %s265 = scalar_lea.vmem %s2, %s264
      %s266 = smul.u32 8, %s21
      %p267 = scmp.lt.s32.totalorder %s20, 1
      %s268 = scalar_select %p267, %s20, 1
      %p269 = scmp.lt.s32.totalorder %s21, 0
      %s270 = scalar_select %p269, %s21, 0
      %s271 = smul.addr %s270, 4
      %s272 = smul.addr %s268, 4
      %s273 = sadd.s32 %s271, %s272
      %s274 = scalar_lea.vmem %s3, %s273
      %p275 = scmp.lt.s32.totalorder %s20, 1
      %s276 = scalar_select %p275, %s20, 1
      %p277 = scmp.lt.s32.totalorder %s21, 0
      %s278 = scalar_select %p277, %s21, 0
      %s279 = smul.addr %s278, 4
      %s280 = smul.addr %s276, 4
      %s281 = sadd.s32 %s279, %s280
      %s282 = scalar_lea.vmem %s4, %s281
      %v283 = vld [vmem:[%s254] sm:$0xff]
      %v284 = vld [vmem:[%s254 + $0x8] sm:$0xff]
      %v285 = vld [vmem:[%s254 + $0x10] sm:$0xff]
      %v286 = vld [vmem:[%s254 + $0x18] sm:$0xff]
      %v287 = vld [vmem:[%s254 + $0x20] sm:$0xff]
      %v288 = vld [vmem:[%s254 + $0x28] sm:$0xff]
      %v289 = vld [vmem:[%s254 + $0x30] sm:$0xff]
      %v290 = vld [vmem:[%s254 + $0x38] sm:$0xff]
      %v291 = vld [vmem:[%s1] sm:$0xff]
      %v292 = vld [vmem:[%s1 + $0x8] sm:$0xff]
      %v293 = vld [vmem:[%s1 + $0x10] sm:$0xff]
      %v294 = vld [vmem:[%s1 + $0x18] sm:$0xff]
      %v295 = vld [vmem:[%s1 + $0x20] sm:$0xff]
      %v296 = vld [vmem:[%s1 + $0x28] sm:$0xff]
      %v297 = vld [vmem:[%s1 + $0x30] sm:$0xff]
      %v298 = vld [vmem:[%s1 + $0x38] sm:$0xff]
      %v299 = vld [vmem:[%s1 + $0x40] sm:$0xff]
      %v300 = vld [vmem:[%s1 + $0x48] sm:$0xff]
      %v301 = vld [vmem:[%s1 + $0x50] sm:$0xff]
      %v302 = vld [vmem:[%s1 + $0x58] sm:$0xff]
      %v303 = vld [vmem:[%s1 + $0x60] sm:$0xff]
      %v304 = vld [vmem:[%s1 + $0x68] sm:$0xff]
      %v305 = vld [vmem:[%s1 + $0x70] sm:$0xff]
      %v306 = vld [vmem:[%s1 + $0x78] sm:$0xff]
      %v307 = vld [vmem:[%s1 + $0x80] sm:$0xff]
      %v308 = vld [vmem:[%s1 + $0x88] sm:$0xff]
      %v309 = vld [vmem:[%s1 + $0x90] sm:$0xff]
      %v310 = vld [vmem:[%s1 + $0x98] sm:$0xff]
      %v311 = vld [vmem:[%s1 + $0xa0] sm:$0xff]
      %v312 = vld [vmem:[%s1 + $0xa8] sm:$0xff]
      %v313 = vld [vmem:[%s1 + $0xb0] sm:$0xff]
      %v314 = vld [vmem:[%s1 + $0xb8] sm:$0xff]
      %v315 = vld [vmem:[%s1 + $0xc0] sm:$0xff]
      %v316 = vld [vmem:[%s1 + $0xc8] sm:$0xff]
      %v317 = vld [vmem:[%s1 + $0xd0] sm:$0xff]
      %v318 = vld [vmem:[%s1 + $0xd8] sm:$0xff]
      %v319 = vld [vmem:[%s1 + $0xe0] sm:$0xff]
      %v320 = vld [vmem:[%s1 + $0xe8] sm:$0xff]
      %v321 = vld [vmem:[%s1 + $0xf0] sm:$0xff]
      %v322 = vld [vmem:[%s1 + $0xf8] sm:$0xff]
      %v323 = vld [vmem:[%s1 + $0x100] sm:$0xff]
      %v324 = vld [vmem:[%s1 + $0x108] sm:$0xff]
      %v325 = vld [vmem:[%s1 + $0x110] sm:$0xff]
      %v326 = vld [vmem:[%s1 + $0x118] sm:$0xff]
      %v327 = vld [vmem:[%s1 + $0x120] sm:$0xff]
      %v328 = vld [vmem:[%s1 + $0x128] sm:$0xff]
      %v329 = vld [vmem:[%s1 + $0x130] sm:$0xff]
      %v330 = vld [vmem:[%s1 + $0x138] sm:$0xff]
      %v331 = vld [vmem:[%s1 + $0x140] sm:$0xff]
      %v332 = vld [vmem:[%s1 + $0x148] sm:$0xff]
      %v333 = vld [vmem:[%s1 + $0x150] sm:$0xff]
      %v334 = vld [vmem:[%s1 + $0x158] sm:$0xff]
      %v335 = vld [vmem:[%s1 + $0x160] sm:$0xff]
      %v336 = vld [vmem:[%s1 + $0x168] sm:$0xff]
      %v337 = vld [vmem:[%s1 + $0x170] sm:$0xff]
      %v338 = vld [vmem:[%s1 + $0x178] sm:$0xff]
      %v339 = vld [vmem:[%s1 + $0x180] sm:$0xff]
      %v340 = vld [vmem:[%s1 + $0x188] sm:$0xff]
      %v341 = vld [vmem:[%s1 + $0x190] sm:$0xff]
      %v342 = vld [vmem:[%s1 + $0x198] sm:$0xff]
      %v343 = vld [vmem:[%s1 + $0x1a0] sm:$0xff]
      %v344 = vld [vmem:[%s1 + $0x1a8] sm:$0xff]
      %v345 = vld [vmem:[%s1 + $0x1b0] sm:$0xff]
      %v346 = vld [vmem:[%s1 + $0x1b8] sm:$0xff]
      %v347 = vld [vmem:[%s1 + $0x1c0] sm:$0xff]
      %v348 = vld [vmem:[%s1 + $0x1c8] sm:$0xff]
      %v349 = vld [vmem:[%s1 + $0x1d0] sm:$0xff]
      %v350 = vld [vmem:[%s1 + $0x1d8] sm:$0xff]
      %v351 = vld [vmem:[%s1 + $0x1e0] sm:$0xff]
      %v352 = vld [vmem:[%s1 + $0x1e8] sm:$0xff]
      %v353 = vld [vmem:[%s1 + $0x1f0] sm:$0xff]
      %v354 = vld [vmem:[%s1 + $0x1f8] sm:$0xff]
      %v363 = vunpack.c.l.b16 %v283
      %v364 = vunpack.c.h.b16 %v283
      %v365 = vunpack.c.l.b16 %v284
      %v366 = vunpack.c.h.b16 %v284
      %v367 = vunpack.c.l.b16 %v285
      %v368 = vunpack.c.h.b16 %v285
      %v369 = vunpack.c.l.b16 %v286
      %v370 = vunpack.c.h.b16 %v286
      %v371 = vunpack.c.l.b16 %v287
      %v372 = vunpack.c.h.b16 %v287
      %v373 = vunpack.c.l.b16 %v288
      %v374 = vunpack.c.h.b16 %v288
      %v375 = vunpack.c.l.b16 %v289
      %v376 = vunpack.c.h.b16 %v289
      %v377 = vunpack.c.l.b16 %v290
      %v378 = vunpack.c.h.b16 %v290
      %v379 = vpack.c.b16 %v365, %v363
      %v380 = vpack.c.b16 %v366, %v364
      %v381 = vpack.c.b16 %v369, %v367
      %v382 = vpack.c.b16 %v370, %v368
      %v383 = vpack.c.b16 %v373, %v371
      %v384 = vpack.c.b16 %v374, %v372
      %v385 = vpack.c.b16 %v377, %v375
      %v386 = vpack.c.b16 %v378, %v376
      %v459 = vunpack.c.l.b16 %v291
      %v460 = vunpack.c.h.b16 %v291
      %v461 = vunpack.c.l.b16 %v292
      %v462 = vunpack.c.h.b16 %v292
      %v463 = vunpack.c.l.b16 %v293
      %v464 = vunpack.c.h.b16 %v293
      %v465 = vunpack.c.l.b16 %v294
      %v466 = vunpack.c.h.b16 %v294
      %v467 = vunpack.c.l.b16 %v295
      %v468 = vunpack.c.h.b16 %v295
      %v469 = vunpack.c.l.b16 %v296
      %v470 = vunpack.c.h.b16 %v296
      %v471 = vunpack.c.l.b16 %v297
      %v472 = vunpack.c.h.b16 %v297
      %v473 = vunpack.c.l.b16 %v298
      %v474 = vunpack.c.h.b16 %v298
      %v475 = vunpack.c.l.b16 %v299
      %v476 = vunpack.c.h.b16 %v299
      %v477 = vunpack.c.l.b16 %v300
      %v478 = vunpack.c.h.b16 %v300
      %v479 = vunpack.c.l.b16 %v301
      %v480 = vunpack.c.h.b16 %v301
      %v481 = vunpack.c.l.b16 %v302
      %v482 = vunpack.c.h.b16 %v302
      %v483 = vunpack.c.l.b16 %v303
      %v484 = vunpack.c.h.b16 %v303
      %v485 = vunpack.c.l.b16 %v304
      %v486 = vunpack.c.h.b16 %v304
      %v487 = vunpack.c.l.b16 %v305
      %v488 = vunpack.c.h.b16 %v305
      %v489 = vunpack.c.l.b16 %v306
      %v490 = vunpack.c.h.b16 %v306
      %v491 = vunpack.c.l.b16 %v307
      %v492 = vunpack.c.h.b16 %v307
      %v493 = vunpack.c.l.b16 %v308
      %v494 = vunpack.c.h.b16 %v308
      %v495 = vunpack.c.l.b16 %v309
      %v496 = vunpack.c.h.b16 %v309
      %v497 = vunpack.c.l.b16 %v310
      %v498 = vunpack.c.h.b16 %v310
      %v499 = vunpack.c.l.b16 %v311
      %v500 = vunpack.c.h.b16 %v311
      %v501 = vunpack.c.l.b16 %v312
      %v502 = vunpack.c.h.b16 %v312
      %v503 = vunpack.c.l.b16 %v313
      %v504 = vunpack.c.h.b16 %v313
      %v505 = vunpack.c.l.b16 %v314
      %v506 = vunpack.c.h.b16 %v314
      %v507 = vunpack.c.l.b16 %v315
      %v508 = vunpack.c.h.b16 %v315
      %v509 = vunpack.c.l.b16 %v316
      %v510 = vunpack.c.h.b16 %v316
      %v511 = vunpack.c.l.b16 %v317
      %v512 = vunpack.c.h.b16 %v317
      %v513 = vunpack.c.l.b16 %v318
      %v514 = vunpack.c.h.b16 %v318
      %v515 = vunpack.c.l.b16 %v319
      %v516 = vunpack.c.h.b16 %v319
      %v517 = vunpack.c.l.b16 %v320
      %v518 = vunpack.c.h.b16 %v320
      %v519 = vunpack.c.l.b16 %v321
      %v520 = vunpack.c.h.b16 %v321
      %v521 = vunpack.c.l.b16 %v322
      %v522 = vunpack.c.h.b16 %v322
      %v523 = vunpack.c.l.b16 %v323
      %v524 = vunpack.c.h.b16 %v323
      %v525 = vunpack.c.l.b16 %v324
      %v526 = vunpack.c.h.b16 %v324
      %v527 = vunpack.c.l.b16 %v325
      %v528 = vunpack.c.h.b16 %v325
      %v529 = vunpack.c.l.b16 %v326
      %v530 = vunpack.c.h.b16 %v326
      %v531 = vunpack.c.l.b16 %v327
      %v532 = vunpack.c.h.b16 %v327
      %v533 = vunpack.c.l.b16 %v328
      %v534 = vunpack.c.h.b16 %v328
      %v535 = vunpack.c.l.b16 %v329
      %v536 = vunpack.c.h.b16 %v329
      %v537 = vunpack.c.l.b16 %v330
      %v538 = vunpack.c.h.b16 %v330
      %v539 = vunpack.c.l.b16 %v331
      %v540 = vunpack.c.h.b16 %v331
      %v541 = vunpack.c.l.b16 %v332
      %v542 = vunpack.c.h.b16 %v332
      %v543 = vunpack.c.l.b16 %v333
      %v544 = vunpack.c.h.b16 %v333
      %v545 = vunpack.c.l.b16 %v334
      %v546 = vunpack.c.h.b16 %v334
      %v547 = vunpack.c.l.b16 %v335
      %v548 = vunpack.c.h.b16 %v335
      %v549 = vunpack.c.l.b16 %v336
      %v550 = vunpack.c.h.b16 %v336
      %v551 = vunpack.c.l.b16 %v337
      %v552 = vunpack.c.h.b16 %v337
      %v553 = vunpack.c.l.b16 %v338
      %v554 = vunpack.c.h.b16 %v338
      %v555 = vunpack.c.l.b16 %v339
      %v556 = vunpack.c.h.b16 %v339
      %v557 = vunpack.c.l.b16 %v340
      %v558 = vunpack.c.h.b16 %v340
      %v559 = vunpack.c.l.b16 %v341
      %v560 = vunpack.c.h.b16 %v341
      %v561 = vunpack.c.l.b16 %v342
      %v562 = vunpack.c.h.b16 %v342
      %v563 = vunpack.c.l.b16 %v343
      %v564 = vunpack.c.h.b16 %v343
      %v565 = vunpack.c.l.b16 %v344
      %v566 = vunpack.c.h.b16 %v344
      %v567 = vunpack.c.l.b16 %v345
      %v568 = vunpack.c.h.b16 %v345
      %v569 = vunpack.c.l.b16 %v346
      %v570 = vunpack.c.h.b16 %v346
      %v571 = vunpack.c.l.b16 %v347
      %v572 = vunpack.c.h.b16 %v347
      %v573 = vunpack.c.l.b16 %v348
      %v574 = vunpack.c.h.b16 %v348
      %v575 = vunpack.c.l.b16 %v349
      %v576 = vunpack.c.h.b16 %v349
      %v577 = vunpack.c.l.b16 %v350
      %v578 = vunpack.c.h.b16 %v350
      %v579 = vunpack.c.l.b16 %v351
      %v580 = vunpack.c.h.b16 %v351
      %v581 = vunpack.c.l.b16 %v352
      %v582 = vunpack.c.h.b16 %v352
      %v583 = vunpack.c.l.b16 %v353
      %v584 = vunpack.c.h.b16 %v353
      %v585 = vunpack.c.l.b16 %v354
      %v586 = vunpack.c.h.b16 %v354
      %v587 = vpack.c.b16 %v463, %v459
      %v588 = vpack.c.b16 %v464, %v460
      %v589 = vpack.c.b16 %v465, %v461
      %v590 = vpack.c.b16 %v466, %v462
      %v591 = vpack.c.b16 %v471, %v467
      %v592 = vpack.c.b16 %v472, %v468
      %v593 = vpack.c.b16 %v473, %v469
      %v594 = vpack.c.b16 %v474, %v470
      %v595 = vpack.c.b16 %v479, %v475
      %v596 = vpack.c.b16 %v480, %v476
      %v597 = vpack.c.b16 %v481, %v477
      %v598 = vpack.c.b16 %v482, %v478
      %v599 = vpack.c.b16 %v487, %v483
      %v600 = vpack.c.b16 %v488, %v484
      %v601 = vpack.c.b16 %v489, %v485
      %v602 = vpack.c.b16 %v490, %v486
      %v603 = vpack.c.b16 %v495, %v491
      %v604 = vpack.c.b16 %v496, %v492
      %v605 = vpack.c.b16 %v497, %v493
      %v606 = vpack.c.b16 %v498, %v494
      %v607 = vpack.c.b16 %v503, %v499
      %v608 = vpack.c.b16 %v504, %v500
      %v609 = vpack.c.b16 %v505, %v501
      %v610 = vpack.c.b16 %v506, %v502
      %v611 = vpack.c.b16 %v511, %v507
      %v612 = vpack.c.b16 %v512, %v508
      %v613 = vpack.c.b16 %v513, %v509
      %v614 = vpack.c.b16 %v514, %v510
      %v615 = vpack.c.b16 %v519, %v515
      %v616 = vpack.c.b16 %v520, %v516
      %v617 = vpack.c.b16 %v521, %v517
      %v618 = vpack.c.b16 %v522, %v518
      %v619 = vpack.c.b16 %v527, %v523
      %v620 = vpack.c.b16 %v528, %v524
      %v621 = vpack.c.b16 %v529, %v525
      %v622 = vpack.c.b16 %v530, %v526
      %v623 = vpack.c.b16 %v535, %v531
      %v624 = vpack.c.b16 %v536, %v532
      %v625 = vpack.c.b16 %v537, %v533
      %v626 = vpack.c.b16 %v538, %v534
      %v627 = vpack.c.b16 %v543, %v539
      %v628 = vpack.c.b16 %v544, %v540
      %v629 = vpack.c.b16 %v545, %v541
      %v630 = vpack.c.b16 %v546, %v542
      %v631 = vpack.c.b16 %v551, %v547
      %v632 = vpack.c.b16 %v552, %v548
      %v633 = vpack.c.b16 %v553, %v549
      %v634 = vpack.c.b16 %v554, %v550
      %v635 = vpack.c.b16 %v559, %v555
      %v636 = vpack.c.b16 %v560, %v556
      %v637 = vpack.c.b16 %v561, %v557
      %v638 = vpack.c.b16 %v562, %v558
      %v639 = vpack.c.b16 %v567, %v563
      %v640 = vpack.c.b16 %v568, %v564
      %v641 = vpack.c.b16 %v569, %v565
      %v642 = vpack.c.b16 %v570, %v566
      %v643 = vpack.c.b16 %v575, %v571
      %v644 = vpack.c.b16 %v576, %v572
      %v645 = vpack.c.b16 %v577, %v573
      %v646 = vpack.c.b16 %v578, %v574
      %v647 = vpack.c.b16 %v583, %v579
      %v648 = vpack.c.b16 %v584, %v580
      %v649 = vpack.c.b16 %v585, %v581
      %v650 = vpack.c.b16 %v586, %v582
      %715 = vmatpush.bf16.msra.mxu0 %v615
      %716 = vmatpush.bf16.msra.mxu0 %v611
      %717 = vmatpush.bf16.msra.mxu0 %v607
      %718 = vmatpush.bf16.msra.mxu0 %v603
      %719 = vmatpush.bf16.msra.mxu0 %v599
      %720 = vmatpush.bf16.msra.mxu0 %v595
      %721 = vmatpush.bf16.msra.mxu0 %v591
      %722 = vmatpush.bf16.msra.mxu0 %v587
      %723 = vmatmul.bf16.gmra.mxu0 %v379
      %v724 = vpop.f32.mrf.mxu0
      %v725 = vadd.f32 0.0, %v724
      %v726 = vpop.f32.mrf.mxu0
      %v727 = vadd.f32 0.0, %v726
      %728 = vmatmul.bf16.gmra.mxu0 %v381
      %v729 = vpop.f32.mrf.mxu0
      %v730 = vadd.f32 0.0, %v729
      %v731 = vpop.f32.mrf.mxu0
      %v732 = vadd.f32 0.0, %v731
      %733 = vmatmul.bf16.gmra.mxu0 %v383
      %v734 = vpop.f32.mrf.mxu0
      %v735 = vadd.f32 0.0, %v734
      %v736 = vpop.f32.mrf.mxu0
      %v737 = vadd.f32 0.0, %v736
      %738 = vmatmul.bf16.gmra.mxu0 %v385
      %v739 = vpop.f32.mrf.mxu0
      %v740 = vadd.f32 0.0, %v739
      %v741 = vpop.f32.mrf.mxu0
      %v742 = vadd.f32 0.0, %v741
      %743 = vdwg.mxu0
      %744 = vmatpush.bf16.msra.mxu0 %v647
      %745 = vmatpush.bf16.msra.mxu0 %v643
      %746 = vmatpush.bf16.msra.mxu0 %v639
      %747 = vmatpush.bf16.msra.mxu0 %v635
      %748 = vmatpush.bf16.msra.mxu0 %v631
      %749 = vmatpush.bf16.msra.mxu0 %v627
      %750 = vmatpush.bf16.msra.mxu0 %v623
      %751 = vmatpush.bf16.msra.mxu0 %v619
      %752 = vmatmul.bf16.gmra.mxu0 %v380
      %v753 = vpop.f32.mrf.mxu0
      %v754 = vadd.f32 %v725, %v753
      %v755 = vpop.f32.mrf.mxu0
      %v756 = vadd.f32 %v727, %v755
      %757 = vmatmul.bf16.gmra.mxu0 %v382
      %v758 = vpop.f32.mrf.mxu0
      %v759 = vadd.f32 %v730, %v758
      %v760 = vpop.f32.mrf.mxu0
      %v761 = vadd.f32 %v732, %v760
      %762 = vmatmul.bf16.gmra.mxu0 %v384
      %v763 = vpop.f32.mrf.mxu0
      %v764 = vadd.f32 %v735, %v763
      %v765 = vpop.f32.mrf.mxu0
      %v766 = vadd.f32 %v737, %v765
      %767 = vmatmul.bf16.gmra.mxu0 %v386
      %v768 = vpop.f32.mrf.mxu0
      %v769 = vadd.f32 %v740, %v768
      %v770 = vpop.f32.mrf.mxu0
      %v771 = vadd.f32 %v742, %v770
      %772 = vdwg.mxu0
      %773 = vmatpush.bf16.msra.mxu0 %v616
      %774 = vmatpush.bf16.msra.mxu0 %v612
      %775 = vmatpush.bf16.msra.mxu0 %v608
      %776 = vmatpush.bf16.msra.mxu0 %v604
      %777 = vmatpush.bf16.msra.mxu0 %v600
      %778 = vmatpush.bf16.msra.mxu0 %v596
      %779 = vmatpush.bf16.msra.mxu0 %v592
      %780 = vmatpush.bf16.msra.mxu0 %v588
      %781 = vmatmul.bf16.gmra.mxu0 %v379
      %v782 = vpop.f32.mrf.mxu0
      %v783 = vadd.f32 0.0, %v782
      %v784 = vpop.f32.mrf.mxu0
      %v785 = vadd.f32 0.0, %v784
      %786 = vmatmul.bf16.gmra.mxu0 %v381
      %v787 = vpop.f32.mrf.mxu0
      %v788 = vadd.f32 0.0, %v787
      %v789 = vpop.f32.mrf.mxu0
      %v790 = vadd.f32 0.0, %v789
      %791 = vmatmul.bf16.gmra.mxu0 %v383
      %v792 = vpop.f32.mrf.mxu0
      %v793 = vadd.f32 0.0, %v792
      %v794 = vpop.f32.mrf.mxu0
      %v795 = vadd.f32 0.0, %v794
      %796 = vmatmul.bf16.gmra.mxu0 %v385
      %v797 = vpop.f32.mrf.mxu0
      %v798 = vadd.f32 0.0, %v797
      %v799 = vpop.f32.mrf.mxu0
      %v800 = vadd.f32 0.0, %v799
      %801 = vdwg.mxu0
      %802 = vmatpush.bf16.msra.mxu0 %v648
      %803 = vmatpush.bf16.msra.mxu0 %v644
      %804 = vmatpush.bf16.msra.mxu0 %v640
      %805 = vmatpush.bf16.msra.mxu0 %v636
      %806 = vmatpush.bf16.msra.mxu0 %v632
      %807 = vmatpush.bf16.msra.mxu0 %v628
      %808 = vmatpush.bf16.msra.mxu0 %v624
      %809 = vmatpush.bf16.msra.mxu0 %v620
      %810 = vmatmul.bf16.gmra.mxu0 %v380
      %v811 = vpop.f32.mrf.mxu0
      %v812 = vadd.f32 %v783, %v811
      %v813 = vpop.f32.mrf.mxu0
      %v814 = vadd.f32 %v785, %v813
      %815 = vmatmul.bf16.gmra.mxu0 %v382
      %v816 = vpop.f32.mrf.mxu0
      %v817 = vadd.f32 %v788, %v816
      %v818 = vpop.f32.mrf.mxu0
      %v819 = vadd.f32 %v790, %v818
      %820 = vmatmul.bf16.gmra.mxu0 %v384
      %v821 = vpop.f32.mrf.mxu0
      %v822 = vadd.f32 %v793, %v821
      %v823 = vpop.f32.mrf.mxu0
      %v824 = vadd.f32 %v795, %v823
      %825 = vmatmul.bf16.gmra.mxu0 %v386
      %v826 = vpop.f32.mrf.mxu0
      %v827 = vadd.f32 %v798, %v826
      %v828 = vpop.f32.mrf.mxu0
      %v829 = vadd.f32 %v800, %v828
      %830 = vdwg.mxu0
      %831 = vmatpush.bf16.msra.mxu0 %v617
      %832 = vmatpush.bf16.msra.mxu0 %v613
      %833 = vmatpush.bf16.msra.mxu0 %v609
      %834 = vmatpush.bf16.msra.mxu0 %v605
      %835 = vmatpush.bf16.msra.mxu0 %v601
      %836 = vmatpush.bf16.msra.mxu0 %v597
      %837 = vmatpush.bf16.msra.mxu0 %v593
      %838 = vmatpush.bf16.msra.mxu0 %v589
      %839 = vmatmul.bf16.gmra.mxu0 %v379
      %v840 = vpop.f32.mrf.mxu0
      %v841 = vadd.f32 0.0, %v840
      %v842 = vpop.f32.mrf.mxu0
      %v843 = vadd.f32 0.0, %v842
      %844 = vmatmul.bf16.gmra.mxu0 %v381
      %v845 = vpop.f32.mrf.mxu0
      %v846 = vadd.f32 0.0, %v845
      %v847 = vpop.f32.mrf.mxu0
      %v848 = vadd.f32 0.0, %v847
      %849 = vmatmul.bf16.gmra.mxu0 %v383
      %v850 = vpop.f32.mrf.mxu0
      %v851 = vadd.f32 0.0, %v850
      %v852 = vpop.f32.mrf.mxu0
      %v853 = vadd.f32 0.0, %v852
      %854 = vmatmul.bf16.gmra.mxu0 %v385
      %v855 = vpop.f32.mrf.mxu0
      %v856 = vadd.f32 0.0, %v855
      %v857 = vpop.f32.mrf.mxu0
      %v858 = vadd.f32 0.0, %v857
      %859 = vdwg.mxu0
      %860 = vmatpush.bf16.msra.mxu0 %v649
      %861 = vmatpush.bf16.msra.mxu0 %v645
      %862 = vmatpush.bf16.msra.mxu0 %v641
      %863 = vmatpush.bf16.msra.mxu0 %v637
      %864 = vmatpush.bf16.msra.mxu0 %v633
      %865 = vmatpush.bf16.msra.mxu0 %v629
      %866 = vmatpush.bf16.msra.mxu0 %v625
      %867 = vmatpush.bf16.msra.mxu0 %v621
      %868 = vmatmul.bf16.gmra.mxu0 %v380
      %v869 = vpop.f32.mrf.mxu0
      %v870 = vadd.f32 %v841, %v869
      %v871 = vpop.f32.mrf.mxu0
      %v872 = vadd.f32 %v843, %v871
      %873 = vmatmul.bf16.gmra.mxu0 %v382
      %v874 = vpop.f32.mrf.mxu0
      %v875 = vadd.f32 %v846, %v874
      %v876 = vpop.f32.mrf.mxu0
      %v877 = vadd.f32 %v848, %v876
      %878 = vmatmul.bf16.gmra.mxu0 %v384
      %v879 = vpop.f32.mrf.mxu0
      %v880 = vadd.f32 %v851, %v879
      %v881 = vpop.f32.mrf.mxu0
      %v882 = vadd.f32 %v853, %v881
      %883 = vmatmul.bf16.gmra.mxu0 %v386
      %v884 = vpop.f32.mrf.mxu0
      %v885 = vadd.f32 %v856, %v884
      %v886 = vpop.f32.mrf.mxu0
      %v887 = vadd.f32 %v858, %v886
      %888 = vdwg.mxu0
      %889 = vmatpush.bf16.msra.mxu0 %v618
      %890 = vmatpush.bf16.msra.mxu0 %v614
      %891 = vmatpush.bf16.msra.mxu0 %v610
      %892 = vmatpush.bf16.msra.mxu0 %v606
      %893 = vmatpush.bf16.msra.mxu0 %v602
      %894 = vmatpush.bf16.msra.mxu0 %v598
      %895 = vmatpush.bf16.msra.mxu0 %v594
      %896 = vmatpush.bf16.msra.mxu0 %v590
      %897 = vmatmul.bf16.gmra.mxu0 %v379
      %v898 = vpop.f32.mrf.mxu0
      %v899 = vadd.f32 0.0, %v898
      %v900 = vpop.f32.mrf.mxu0
      %v901 = vadd.f32 0.0, %v900
      %902 = vmatmul.bf16.gmra.mxu0 %v381
      %v903 = vpop.f32.mrf.mxu0
      %v904 = vadd.f32 0.0, %v903
      %v905 = vpop.f32.mrf.mxu0
      %v906 = vadd.f32 0.0, %v905
      %907 = vmatmul.bf16.gmra.mxu0 %v383
      %v908 = vpop.f32.mrf.mxu0
      %v909 = vadd.f32 0.0, %v908
      %v910 = vpop.f32.mrf.mxu0
      %v911 = vadd.f32 0.0, %v910
      %912 = vmatmul.bf16.gmra.mxu0 %v385
      %v913 = vpop.f32.mrf.mxu0
      %v914 = vadd.f32 0.0, %v913
      %v915 = vpop.f32.mrf.mxu0
      %v916 = vadd.f32 0.0, %v915
      %917 = vdwg.mxu0
      %918 = vmatpush.bf16.msra.mxu0 %v650
      %919 = vmatpush.bf16.msra.mxu0 %v646
      %920 = vmatpush.bf16.msra.mxu0 %v642
      %921 = vmatpush.bf16.msra.mxu0 %v638
      %922 = vmatpush.bf16.msra.mxu0 %v634
      %923 = vmatpush.bf16.msra.mxu0 %v630
      %924 = vmatpush.bf16.msra.mxu0 %v626
      %925 = vmatpush.bf16.msra.mxu0 %v622
      %926 = vmatmul.bf16.gmra.mxu0 %v380
      %v927 = vpop.f32.mrf.mxu0
      %v928 = vadd.f32 %v899, %v927
      %v929 = vpop.f32.mrf.mxu0
      %v930 = vadd.f32 %v901, %v929
      %931 = vmatmul.bf16.gmra.mxu0 %v382
      %v932 = vpop.f32.mrf.mxu0
      %v933 = vadd.f32 %v904, %v932
      %v934 = vpop.f32.mrf.mxu0
      %v935 = vadd.f32 %v906, %v934
      %936 = vmatmul.bf16.gmra.mxu0 %v384
      %v937 = vpop.f32.mrf.mxu0
      %v938 = vadd.f32 %v909, %v937
      %v939 = vpop.f32.mrf.mxu0
      %v940 = vadd.f32 %v911, %v939
      %941 = vmatmul.bf16.gmra.mxu0 %v386
      %v942 = vpop.f32.mrf.mxu0
      %v943 = vadd.f32 %v914, %v942
      %v944 = vpop.f32.mrf.mxu0
      %v945 = vadd.f32 %v916, %v944
      %946 = vdwg.mxu0
      %v947 = vadd.f32 %v754, %v756
      %v948 = vadd.f32 %v947, %v759
      %v949 = vadd.f32 %v948, %v761
      %v950 = vadd.f32 %v949, %v764
      %v951 = vadd.f32 %v950, %v766
      %v952 = vadd.f32 %v951, %v769
      %v953 = vadd.f32 %v952, %v771
      %v954 = vrot.slane %v953, 4
      %v955 = vadd.f32 %v953, %v954
      %v956 = vrot.slane %v955, 2
      %v957 = vadd.f32 %v955, %v956
      %v958 = vrot.slane %v957, 1
      %v959 = vadd.f32 %v957, %v958
      %v960 = vadd.f32 %v812, %v814
      %v961 = vadd.f32 %v960, %v817
      %v962 = vadd.f32 %v961, %v819
      %v963 = vadd.f32 %v962, %v822
      %v964 = vadd.f32 %v963, %v824
      %v965 = vadd.f32 %v964, %v827
      %v966 = vadd.f32 %v965, %v829
      %v967 = vrot.slane %v966, 4
      %v968 = vadd.f32 %v966, %v967
      %v969 = vrot.slane %v968, 2
      %v970 = vadd.f32 %v968, %v969
      %v971 = vrot.slane %v970, 1
      %v972 = vadd.f32 %v970, %v971
      %v973 = vadd.f32 %v870, %v872
      %v974 = vadd.f32 %v973, %v875
      %v975 = vadd.f32 %v974, %v877
      %v976 = vadd.f32 %v975, %v880
      %v977 = vadd.f32 %v976, %v882
      %v978 = vadd.f32 %v977, %v885
      %v979 = vadd.f32 %v978, %v887
      %v980 = vrot.slane %v979, 4
      %v981 = vadd.f32 %v979, %v980
      %v982 = vrot.slane %v981, 2
      %v983 = vadd.f32 %v981, %v982
      %v984 = vrot.slane %v983, 1
      %v985 = vadd.f32 %v983, %v984
      %v986 = vadd.f32 %v928, %v930
      %v987 = vadd.f32 %v986, %v933
      %v988 = vadd.f32 %v987, %v935
      %v989 = vadd.f32 %v988, %v938
      %v990 = vadd.f32 %v989, %v940
      %v991 = vadd.f32 %v990, %v943
      %v992 = vadd.f32 %v991, %v945
      %v993 = vrot.slane %v992, 4
      %v994 = vadd.f32 %v992, %v993
      %v995 = vrot.slane %v994, 2
      %v996 = vadd.f32 %v994, %v995
      %v997 = vrot.slane %v996, 1
      %v998 = vadd.f32 %v996, %v997
      %v1003 = vrot.slane %v972, 7
      %v1004 = vrot.slane %v985, 6
      %v1005 = vrot.slane %v998, 5
      %vm1006 = vcmask 1040384
      %v1007 = vsel %vm1006, %v959, %v1003
      %vm1008 = vcmask 1042434
      %v1009 = vsel %vm1008, %v1004, %v1005
      %vm1010 = vcmask 1041408
      %v1011 = vsel %vm1010, %v1007, %v1009
      %v1013 = vlaneseq
      %vm1014 = vcmp.ge.s32.totalorder %v1013, 0
      %vm1015 = vcmp.lt.s32.totalorder %v1013, 512
      %vm1016 = vmand %vm1014, %vm1015
      %1017 = vst.msk [vmem:[%s274] sm:$0xf] %vm1016, %v1011
      %v1018 = vmul.f32 %v754, %v754
      %v1019 = vmul.f32 %v812, %v812
      %v1020 = vmul.f32 %v870, %v870
      %v1021 = vmul.f32 %v928, %v928
      %v1022 = vmul.f32 %v756, %v756
      %v1023 = vmul.f32 %v814, %v814
      %v1024 = vmul.f32 %v872, %v872
      %v1025 = vmul.f32 %v930, %v930
      %v1026 = vmul.f32 %v759, %v759
      %v1027 = vmul.f32 %v817, %v817
      %v1028 = vmul.f32 %v875, %v875
      %v1029 = vmul.f32 %v933, %v933
      %v1030 = vmul.f32 %v761, %v761
      %v1031 = vmul.f32 %v819, %v819
      %v1032 = vmul.f32 %v877, %v877
      %v1033 = vmul.f32 %v935, %v935
      %v1034 = vmul.f32 %v764, %v764
      %v1035 = vmul.f32 %v822, %v822
      %v1036 = vmul.f32 %v880, %v880
      %v1037 = vmul.f32 %v938, %v938
      %v1038 = vmul.f32 %v766, %v766
      %v1039 = vmul.f32 %v824, %v824
      %v1040 = vmul.f32 %v882, %v882
      %v1041 = vmul.f32 %v940, %v940
      %v1042 = vmul.f32 %v769, %v769
      %v1043 = vmul.f32 %v827, %v827
      %v1044 = vmul.f32 %v885, %v885
      %v1045 = vmul.f32 %v943, %v943
      %v1046 = vmul.f32 %v771, %v771
      %v1047 = vmul.f32 %v829, %v829
      %v1048 = vmul.f32 %v887, %v887
      %v1049 = vmul.f32 %v945, %v945
      %v1050 = vadd.f32 %v1018, %v1022
      %v1051 = vadd.f32 %v1050, %v1026
      %v1052 = vadd.f32 %v1051, %v1030
      %v1053 = vadd.f32 %v1052, %v1034
      %v1054 = vadd.f32 %v1053, %v1038
      %v1055 = vadd.f32 %v1054, %v1042
      %v1056 = vadd.f32 %v1055, %v1046
      %v1057 = vrot.slane %v1056, 4
      %v1058 = vadd.f32 %v1056, %v1057
      %v1059 = vrot.slane %v1058, 2
      %v1060 = vadd.f32 %v1058, %v1059
      %v1061 = vrot.slane %v1060, 1
      %v1062 = vadd.f32 %v1060, %v1061
      %v1063 = vadd.f32 %v1019, %v1023
      %v1064 = vadd.f32 %v1063, %v1027
      %v1065 = vadd.f32 %v1064, %v1031
      %v1066 = vadd.f32 %v1065, %v1035
      %v1067 = vadd.f32 %v1066, %v1039
      %v1068 = vadd.f32 %v1067, %v1043
      %v1069 = vadd.f32 %v1068, %v1047
      %v1070 = vrot.slane %v1069, 4
      %v1071 = vadd.f32 %v1069, %v1070
      %v1072 = vrot.slane %v1071, 2
      %v1073 = vadd.f32 %v1071, %v1072
      %v1074 = vrot.slane %v1073, 1
      %v1075 = vadd.f32 %v1073, %v1074
      %v1076 = vadd.f32 %v1020, %v1024
      %v1077 = vadd.f32 %v1076, %v1028
      %v1078 = vadd.f32 %v1077, %v1032
      %v1079 = vadd.f32 %v1078, %v1036
      %v1080 = vadd.f32 %v1079, %v1040
      %v1081 = vadd.f32 %v1080, %v1044
      %v1082 = vadd.f32 %v1081, %v1048
      %v1083 = vrot.slane %v1082, 4
      %v1084 = vadd.f32 %v1082, %v1083
      %v1085 = vrot.slane %v1084, 2
      %v1086 = vadd.f32 %v1084, %v1085
      %v1087 = vrot.slane %v1086, 1
      %v1088 = vadd.f32 %v1086, %v1087
      %v1089 = vadd.f32 %v1021, %v1025
      %v1090 = vadd.f32 %v1089, %v1029
      %v1091 = vadd.f32 %v1090, %v1033
      %v1092 = vadd.f32 %v1091, %v1037
      %v1093 = vadd.f32 %v1092, %v1041
      %v1094 = vadd.f32 %v1093, %v1045
      %v1095 = vadd.f32 %v1094, %v1049
      %v1096 = vrot.slane %v1095, 4
      %v1097 = vadd.f32 %v1095, %v1096
      %v1098 = vrot.slane %v1097, 2
      %v1099 = vadd.f32 %v1097, %v1098
      %v1100 = vrot.slane %v1099, 1
      %v1101 = vadd.f32 %v1099, %v1100
      %v1106 = vrot.slane %v1075, 7
      %v1107 = vrot.slane %v1088, 6
      %v1108 = vrot.slane %v1101, 5
      %v1109 = vsel %vm1006, %v1062, %v1106
      %v1110 = vsel %vm1008, %v1107, %v1108
      %v1111 = vsel %vm1010, %v1109, %v1110
      %1113 = vst.msk [vmem:[%s282] sm:$0xf] %vm1016, %v1111
      %v1114 = vpack.c.bf16 %v812, %v754
      %v1115 = vpack.c.bf16 %v928, %v870
      %v1116 = vpack.c.bf16 %v814, %v756
      %v1117 = vpack.c.bf16 %v930, %v872
      %v1118 = vpack.c.bf16 %v817, %v759
      %v1119 = vpack.c.bf16 %v933, %v875
      %v1120 = vpack.c.bf16 %v819, %v761
      %v1121 = vpack.c.bf16 %v935, %v877
      %v1122 = vpack.c.bf16 %v822, %v764
      %v1123 = vpack.c.bf16 %v938, %v880
      %v1124 = vpack.c.bf16 %v824, %v766
      %v1125 = vpack.c.bf16 %v940, %v882
      %v1126 = vpack.c.bf16 %v827, %v769
      %v1127 = vpack.c.bf16 %v943, %v885
      %v1128 = vpack.c.bf16 %v829, %v771
      %v1129 = vpack.c.bf16 %v945, %v887
      %1130 = vst [vmem:[%s265] sm:$0xff] %v1114
      %1131 = vst [vmem:[%s265 + $0x8] sm:$0xff] %v1115
      %1132 = vst [vmem:[%s265 + $0x10] sm:$0xff] %v1116
      %1133 = vst [vmem:[%s265 + $0x18] sm:$0xff] %v1117
      %1134 = vst [vmem:[%s265 + $0x20] sm:$0xff] %v1118
      %1135 = vst [vmem:[%s265 + $0x28] sm:$0xff] %v1119
      %1136 = vst [vmem:[%s265 + $0x30] sm:$0xff] %v1120
      %1137 = vst [vmem:[%s265 + $0x38] sm:$0xff] %v1121
      %1138 = vst [vmem:[%s265 + $0x40] sm:$0xff] %v1122
      %1139 = vst [vmem:[%s265 + $0x48] sm:$0xff] %v1123
      %1140 = vst [vmem:[%s265 + $0x50] sm:$0xff] %v1124
      %1141 = vst [vmem:[%s265 + $0x58] sm:$0xff] %v1125
      %1142 = vst [vmem:[%s265 + $0x60] sm:$0xff] %v1126
      %1143 = vst [vmem:[%s265 + $0x68] sm:$0xff] %v1127
      %1144 = vst [vmem:[%s265 + $0x70] sm:$0xff] %v1128
      %1145 = vst [vmem:[%s265 + $0x78] sm:$0xff] %v1129
      %s1146 = smul.u32 8, %s21
      %p1147 = scmp.lt.s32.totalorder %s20, 1
      %s1148 = scalar_select %p1147, %s20, 1
      %p1149 = scmp.lt.s32.totalorder %s1146, 7
      %s1150 = scalar_select %p1149, %s1146, 7
      %s1151 = smul.addr %s1150, 4
      %s1152 = smul.addr %s1148, 32
      %s1153 = sadd.s32 %s1151, %s1152
      %s1154 = smul.addr %s1153, 4
      %s1155 = scalar_lea.vmem %s2, %s1154
      %p1156 = scmp.lt.s32.totalorder %s20, 1
      %s1157 = scalar_select %p1156, %s20, 1
      %p1158 = scmp.lt.s32.totalorder %s21, 0
      %s1159 = scalar_select %p1158, %s21, 0
      %s1160 = smul.addr %s1159, 4
      %s1161 = smul.addr %s1157, 4
      %s1162 = sadd.s32 %s1160, %s1161
      %s1163 = scalar_lea.vmem %s3, %s1162
      %p1164 = scmp.lt.s32.totalorder %s20, 1
      %s1165 = scalar_select %p1164, %s20, 1
      %p1166 = scmp.lt.s32.totalorder %s21, 0
      %s1167 = scalar_select %p1166, %s21, 0
      %s1168 = smul.addr %s1167, 4
      %s1169 = smul.addr %s1165, 4
      %s1170 = sadd.s32 %s1168, %s1169
      %s1171 = scalar_lea.vmem %s4, %s1170
      // Predicated region
      $region29: #{_lambda_.35} parent=27 // pred_check
        %p1172 = pneg %p97
      $region30: #{_lambda_.35} parent=27 // pred_check_branch
        %1174 = sbr.rel (%p1172) target = $region32
      $region31: #{_lambda_.35} parent=27 // pred_region
        %s1175 = smul.u32 8, %s21
      $region32: #{_lambda_.35} parent=27 // pred_fallthru
        _
      // Predicated region
      $region33: #{_lambda_.35} parent=27 // pred_check
        %p1176 = pneg %p125
      $region34: #{_lambda_.35} parent=27 // pred_check_branch
        %1178 = sbr.rel (%p1176) target = $region36
      $region35: #{_lambda_.35} parent=27 // pred_region
        _
      $region36: #{_lambda_.35} parent=27 // pred_fallthru
        _
      // Predicated region
      $region37: #{_lambda_.35} parent=27 // pred_check
        %p1179 = pneg %p153
      $region38: #{_lambda_.35} parent=27 // pred_check_branch
        %1181 = sbr.rel (%p1179) target = $region40
      $region39: #{_lambda_.35} parent=27 // pred_region
        _
      $region40: #{_lambda_.35} parent=27 // pred_fallthru
        _
    $region28: #{_lambda_.35} parent=5 // pred_fallthru
      _
    %p1182 = scmp.le.s32.totalorder 2, %s11
    // Predicated region
    $region41: #{_lambda_.35} parent=5 // pred_check
      %p1183 = pneg %p1182
    $region42: #{_lambda_.35} parent=5 // pred_check_branch
      %1185 = sbr.rel (%p1183) target = $region44
    $region43: #{_lambda_.35} parent=5 // pred_region
      %s1186 = ssub.s32 %s11, 2
      // Predicated region
      $region45: #{_lambda_.35} parent=43 // pred_check
        %p1187 = pneg %p103
      $region46: #{_lambda_.35} parent=43 // pred_check_branch
        %1189 = sbr.rel (%p1187) target = $region48
      $region47: #{_lambda_.35} parent=43 // pred_region
        %s1190 = smul.u32 8, %s23
        %p1191 = scmp.lt.s32.totalorder %s22, 1
        %s1192 = scalar_select %p1191, %s22, 1
        %p1193 = scmp.lt.s32.totalorder %s1190, 7
        %s1194 = scalar_select %p1193, %s1190, 7
        %s1195 = smul.addr %s1194, 4
        %s1196 = smul.addr %s1192, 32
        %s1197 = sadd.s32 %s1195, %s1196
        %s1198 = smul.addr %s1197, 4
        %s1199 = scalar_lea.vmem %s2, %s1198
      $region48: #{_lambda_.35} parent=43 // pred_fallthru
        _
      // Predicated region
      $region49: #{_lambda_.35} parent=43 // pred_check
        %p1200 = pneg %p131
      $region50: #{_lambda_.35} parent=43 // pred_check_branch
        %1202 = sbr.rel (%p1200) target = $region52
      $region51: #{_lambda_.35} parent=43 // pred_region
        %p1203 = scmp.lt.s32.totalorder %s22, 1
        %s1204 = scalar_select %p1203, %s22, 1
        %p1205 = scmp.lt.s32.totalorder %s23, 0
        %s1206 = scalar_select %p1205, %s23, 0
        %s1207 = smul.addr %s1206, 4
        %s1208 = smul.addr %s1204, 4
        %s1209 = sadd.s32 %s1207, %s1208
        %s1210 = scalar_lea.vmem %s3, %s1209
      $region52: #{_lambda_.35} parent=43 // pred_fallthru
        _
      // Predicated region
      $region53: #{_lambda_.35} parent=43 // pred_check
        %p1211 = pneg %p159
      $region54: #{_lambda_.35} parent=43 // pred_check_branch
        %1213 = sbr.rel (%p1211) target = $region56
      $region55: #{_lambda_.35} parent=43 // pred_region
        %p1214 = scmp.lt.s32.totalorder %s22, 1
        %s1215 = scalar_select %p1214, %s22, 1
        %p1216 = scmp.lt.s32.totalorder %s23, 0
        %s1217 = scalar_select %p1216, %s23, 0
        %s1218 = smul.addr %s1217, 4
        %s1219 = smul.addr %s1215, 4
        %s1220 = sadd.s32 %s1218, %s1219
        %s1221 = scalar_lea.vmem %s4, %s1220
      $region56: #{_lambda_.35} parent=43 // pred_fallthru
        _
    $region44: #{_lambda_.35} parent=5 // pred_fallthru
      _
  $region6: #{_lambda_.35} parent=0 // loop_footer
    %s15 = sadd.s32 1, %s11
  $region7: #{_lambda_.35} parent=0 // loop_footer_branch
    %10 = sbr.rel target = $region3
  $region8: #{_lambda_.35} parent=0 // loop_exit
    _

// kernel: _lambda_.36
$region0: #{_lambda_.36}
  #allocation0 [shape = 'u32[]', space=smem, size = 0x4, offset = 0x4, fixed_abs, tag = 'smem constant byte address 0x4 - core index']
  #allocation1 [shape = 'u32[72,128]{1,0:T(1,128)}', space=vmem, size = 0x9000, scoped, tag = 'internal scratch']
  %s0 = inlined_call_operand.vmem [shape: bf16[2,64,512], index: 0, kind: input, shape index: {}]
  %s1 = inlined_call_operand.vmem [shape: f32[2,1,512], index: 1, kind: input, shape index: {}]
  %s2 = inlined_call_operand.vmem [shape: f32[2,1,512], index: 2, kind: input, shape index: {}]
  %s3 = inlined_call_operand.vmem [shape: bf16[2,64,512], index: 3, kind: output, shape index: {}]
  %s4 = sld [smem:[#allocation0]]
  $region45: #{_lambda_.36} parent=0
    _
  %s6 = ssub.s32 1, %s4
  %s7 = scalar_select 0, %s6, %s4
  loop: start=0, step=1, limit=4
  $region2: #{_lambda_.36} parent=0 // loop_pre_header
    _
  $region3: #{_lambda_.36} parent=0 // loop_header
    %s9 = sphi 0, %s13
    %p10 = scmp.ge.s32.totalorder %s9, 4
    %s16 = sphi 0, %s28
    %s17 = sphi 0, %s24
    %s18 = sphi 0, %s16
    %s19 = sphi 0, %s17
    %s20 = sphi 0, %s18
    %s21 = sphi 0, %s19
    %s33 = sphi 0, %s35
    %s36 = sphi 0, %s33
    %s37 = sphi 0, %s36
    %s53 = sphi 0, %s37
    %s59 = sphi 0, %s61
    %s62 = sphi 0, %s59
    %s63 = sphi 0, %s62
    %s79 = sphi 0, %s63
    %s85 = sphi 0, %s87
    %s88 = sphi 0, %s85
    %s89 = sphi 0, %s88
    %s105 = sphi 0, %s89
    %s113 = sphi 0, %s115
    %s116 = sphi 0, %s113
    %s117 = sphi 0, %s116
    %s133 = sphi 0, %s117
  $region4: #{_lambda_.36} parent=0 // loop_header_branch
    %12 = sbr.rel (%p10) target = $region8
  $region5: #{_lambda_.36} parent=0 // loop_body
    %s14 = ssub.s32 %s9, 1
    %s15 = ssub.s32 %s9, 2
    %s22 = sadd.s32 1, %s17
    %p23 = scmp.ge.s32.totalorder %s22, 1
    %s24 = scalar_select %p23, 0, %s22
    %s25 = sadd.s32 1, %s16
    %s26 = scalar_select %p23, %s25, %s16
    %p27 = scmp.ge.s32.totalorder %s26, 2
    %s28 = scalar_select %p27, 0, %s26
    %s29 = ssub.s32 %s16, %s28
    %s30 = ssub.s32 %s17, %s24
    %s31 = sor.u32 %s29, %s30
    %p32 = scmp.eq.s32.totalorder %s31, 0
    %s34 = sadd.s32 %s33, 1
    %s35 = scalar_select %p32, %s33, %s34
    %p38 = pneg %p32
    %p39 = scmp.eq.s32.totalorder %s9, 1
    %p40 = por %p38, %p39
    %p41 = scmp.ne.s32.totalorder %s33, %s36
    %p42 = scmp.eq.s32.totalorder %s9, 0
    %p43 = por %p41, %p42
    %p44 = scmp.ne.s32.totalorder %s33, %s36
    %p45 = scmp.eq.s32.totalorder %s14, 1
    %p46 = por %p44, %p45
    %p47 = scmp.ne.s32.totalorder %s36, %s37
    %p48 = scmp.eq.s32.totalorder %s14, 0
    %p49 = por %p47, %p48
    %p50 = scmp.ne.s32.totalorder %s36, %s37
    %p51 = scmp.eq.s32.totalorder %s15, 1
    %p52 = por %p50, %p51
    %p54 = scmp.ne.s32.totalorder %s37, %s53
    %p55 = scmp.eq.s32.totalorder %s15, 0
    %p56 = por %p54, %p55
    %s57 = ssub.s32 %s16, %s28
    %p58 = scmp.eq.s32.totalorder %s57, 0
    %s60 = sadd.s32 %s59, 1
    %s61 = scalar_select %p58, %s59, %s60
    %p64 = pneg %p58
    %p65 = scmp.eq.s32.totalorder %s9, 1
    %p66 = por %p64, %p65
    %p67 = scmp.ne.s32.totalorder %s59, %s62
    %p68 = scmp.eq.s32.totalorder %s9, 0
    %p69 = por %p67, %p68
    %p70 = scmp.ne.s32.totalorder %s59, %s62
    %p71 = scmp.eq.s32.totalorder %s14, 1
    %p72 = por %p70, %p71
    %p73 = scmp.ne.s32.totalorder %s62, %s63
    %p74 = scmp.eq.s32.totalorder %s14, 0
    %p75 = por %p73, %p74
    %p76 = scmp.ne.s32.totalorder %s62, %s63
    %p77 = scmp.eq.s32.totalorder %s15, 1
    %p78 = por %p76, %p77
    %p80 = scmp.ne.s32.totalorder %s63, %s79
    %p81 = scmp.eq.s32.totalorder %s15, 0
    %p82 = por %p80, %p81
    %s83 = ssub.s32 %s16, %s28
    %p84 = scmp.eq.s32.totalorder %s83, 0
    %s86 = sadd.s32 %s85, 1
    %s87 = scalar_select %p84, %s85, %s86
    %p90 = pneg %p84
    %p91 = scmp.eq.s32.totalorder %s9, 1
    %p92 = por %p90, %p91
    %p93 = scmp.ne.s32.totalorder %s85, %s88
    %p94 = scmp.eq.s32.totalorder %s9, 0
    %p95 = por %p93, %p94
    %p96 = scmp.ne.s32.totalorder %s85, %s88
    %p97 = scmp.eq.s32.totalorder %s14, 1
    %p98 = por %p96, %p97
    %p99 = scmp.ne.s32.totalorder %s88, %s89
    %p100 = scmp.eq.s32.totalorder %s14, 0
    %p101 = por %p99, %p100
    %p102 = scmp.ne.s32.totalorder %s88, %s89
    %p103 = scmp.eq.s32.totalorder %s15, 1
    %p104 = por %p102, %p103
    %p106 = scmp.ne.s32.totalorder %s89, %s105
    %p107 = scmp.eq.s32.totalorder %s15, 0
    %p108 = por %p106, %p107
    %s109 = ssub.s32 %s16, %s28
    %s110 = ssub.s32 %s17, %s24
    %s111 = sor.u32 %s109, %s110
    %p112 = scmp.eq.s32.totalorder %s111, 0
    %s114 = sadd.s32 %s113, 1
    %s115 = scalar_select %p112, %s113, %s114
    %p118 = pneg %p112
    %p119 = scmp.eq.s32.totalorder %s9, 1
    %p120 = por %p118, %p119
    %p121 = scmp.ne.s32.totalorder %s113, %s116
    %p122 = scmp.eq.s32.totalorder %s9, 0
    %p123 = por %p121, %p122
    %p124 = scmp.ne.s32.totalorder %s113, %s116
    %p125 = scmp.eq.s32.totalorder %s14, 1
    %p126 = por %p124, %p125
    %p127 = scmp.ne.s32.totalorder %s116, %s117
    %p128 = scmp.eq.s32.totalorder %s14, 0
    %p129 = por %p127, %p128
    %p130 = scmp.ne.s32.totalorder %s116, %s117
    %p131 = scmp.eq.s32.totalorder %s15, 1
    %p132 = por %p130, %p131
    %p134 = scmp.ne.s32.totalorder %s117, %s133
    %p135 = scmp.eq.s32.totalorder %s15, 0
    %p136 = por %p134, %p135
    %p137 = scmp.le.s32.totalorder 1, %s9
    %p138 = scmp.lt.s32.totalorder %s9, 3
    %p139 = pnand %p137, %p138
    %p140 = pneg %p139
    // Predicated region
    $region9: #{_lambda_.36} parent=5 // pred_check
      _
    $region10: #{_lambda_.36} parent=5 // pred_check_branch
      %142 = sbr.rel (%p139) target = $region12
    $region11: #{_lambda_.36} parent=5 // pred_region
      %s143 = ssub.s32 %s9, 1
    $region12: #{_lambda_.36} parent=5 // pred_fallthru
      _
    %p144 = scmp.lt.s32.totalorder %s9, 2
    // Predicated region
    $region13: #{_lambda_.36} parent=5 // pred_check
      %p145 = pneg %p144
    $region14: #{_lambda_.36} parent=5 // pred_check_branch
      %147 = sbr.rel (%p145) target = $region16
    $region15: #{_lambda_.36} parent=5 // pred_region
      // Predicated region
      $region17: #{_lambda_.36} parent=15 // pred_check
        %p148 = pneg %p43
      $region18: #{_lambda_.36} parent=15 // pred_check_branch
        %150 = sbr.rel (%p148) target = $region20
      $region19: #{_lambda_.36} parent=15 // pred_region
        %s151 = smul.u32 8, %s17
        %p152 = scmp.lt.s32.totalorder %s16, 1
        %s153 = scalar_select %p152, %s16, 1
        %p154 = scmp.lt.s32.totalorder %s151, 7
        %s155 = scalar_select %p154, %s151, 7
        %s156 = smul.addr %s155, 4
        %s157 = smul.addr %s153, 32
        %s158 = sadd.s32 %s156, %s157
        %s159 = smul.addr %s158, 4
        %s160 = scalar_lea.vmem %s0, %s159
        %s161 = smul.u32 8, %s17
      $region20: #{_lambda_.36} parent=15 // pred_fallthru
        _
      // Predicated region
      $region21: #{_lambda_.36} parent=15 // pred_check
        %p162 = pneg %p69
      $region22: #{_lambda_.36} parent=15 // pred_check_branch
        %164 = sbr.rel (%p162) target = $region24
      $region23: #{_lambda_.36} parent=15 // pred_region
        %p165 = scmp.lt.s32.totalorder %s16, 1
        %s166 = scalar_select %p165, %s16, 1
        %s167 = smul.addr %s166, 4
        %s168 = scalar_lea.vmem %s1, %s167
      $region24: #{_lambda_.36} parent=15 // pred_fallthru
        _
      // Predicated region
      $region25: #{_lambda_.36} parent=15 // pred_check
        %p169 = pneg %p95
      $region26: #{_lambda_.36} parent=15 // pred_check_branch
        %171 = sbr.rel (%p169) target = $region28
      $region27: #{_lambda_.36} parent=15 // pred_region
        %p172 = scmp.lt.s32.totalorder %s16, 1
        %s173 = scalar_select %p172, %s16, 1
        %s174 = smul.addr %s173, 4
        %s175 = scalar_lea.vmem %s2, %s174
      $region28: #{_lambda_.36} parent=15 // pred_fallthru
        _
    $region16: #{_lambda_.36} parent=5 // pred_fallthru
      _
    %p176 = scmp.le.s32.totalorder 1, %s9
    %p177 = scmp.lt.s32.totalorder %s9, 3
    %p178 = pnand %p176, %p177
    %p179 = pneg %p178
    // Predicated region
    $region29: #{_lambda_.36} parent=5 // pred_check
      _
    $region30: #{_lambda_.36} parent=5 // pred_check_branch
      %181 = sbr.rel (%p178) target = $region32
    $region31: #{_lambda_.36} parent=5 // pred_region
      %s182 = ssub.s32 %s9, 1
      %s183 = smul.u32 8, %s19
      %p184 = scmp.lt.s32.totalorder %s18, 1
      %s185 = scalar_select %p184, %s18, 1
      %p186 = scmp.lt.s32.totalorder %s183, 7
      %s187 = scalar_select %p186, %s183, 7
      %s188 = smul.addr %s187, 4
      %s189 = smul.addr %s185, 32
      %s190 = sadd.s32 %s188, %s189
      %s191 = smul.addr %s190, 4
      %s192 = scalar_lea.vmem %s0, %s191
      %p193 = pneg %p49
      %p194 = pneg %p46
      %p195 = scmp.lt.s32.totalorder %s18, 1
      %s196 = scalar_select %p195, %s18, 1
      %s197 = smul.addr %s196, 4
      %s198 = scalar_lea.vmem %s1, %s197
      %p199 = pneg %p75
      %p200 = pneg %p72
      %p201 = scmp.lt.s32.totalorder %s18, 1
      %s202 = scalar_select %p201, %s18, 1
      %s203 = smul.addr %s202, 4
      %s204 = scalar_lea.vmem %s2, %s203
      %p205 = pneg %p101
      %p206 = pneg %p98
      %p207 = pneg %p129
      %p208 = pneg %p126
      %s209 = smul.u32 8, %s19
      %p210 = scmp.lt.s32.totalorder %s18, 1
      %s211 = scalar_select %p210, %s18, 1
      %p212 = scmp.lt.s32.totalorder %s209, 7
      %s213 = scalar_select %p212, %s209, 7
      %s214 = smul.addr %s213, 4
      %s215 = smul.addr %s211, 32
      %s216 = sadd.s32 %s214, %s215
      %s217 = smul.addr %s216, 4
      %s218 = scalar_lea.vmem %s3, %s217
      %s219 = smul.u32 8, %s19
      %p220 = scmp.lt.s32.totalorder %s18, 1
      %s221 = scalar_select %p220, %s18, 1
      %p222 = scmp.lt.s32.totalorder %s219, 7
      %s223 = scalar_select %p222, %s219, 7
      %s224 = smul.addr %s223, 4
      %s225 = smul.addr %s221, 32
      %s226 = sadd.s32 %s224, %s225
      %s227 = smul.addr %s226, 4
      %s228 = scalar_lea.vmem %s0, %s227
      %s229 = smul.u32 8, %s19
      %p230 = scmp.lt.s32.totalorder %s18, 1
      %s231 = scalar_select %p230, %s18, 1
      %s232 = smul.addr %s231, 4
      %s233 = scalar_lea.vmem %s1, %s232
      %p234 = scmp.lt.s32.totalorder %s18, 1
      %s235 = scalar_select %p234, %s18, 1
      %s236 = smul.addr %s235, 4
      %s237 = scalar_lea.vmem %s2, %s236
      %s238 = smul.u32 8, %s19
      %p239 = scmp.lt.s32.totalorder %s18, 1
      %s240 = scalar_select %p239, %s18, 1
      %p241 = scmp.lt.s32.totalorder %s238, 7
      %s242 = scalar_select %p241, %s238, 7
      %s243 = smul.addr %s242, 4
      %s244 = smul.addr %s240, 32
      %s245 = sadd.s32 %s243, %s244
      %s246 = smul.addr %s245, 4
      %s247 = scalar_lea.vmem %s3, %s246
      %s248 = smul.u32 8, %s19
      %v249 = vld [vmem:[%s228] sm:$0xff]
      %v250 = vld [vmem:[%s228 + $0x8] sm:$0xff]
      %v251 = vld [vmem:[%s228 + $0x10] sm:$0xff]
      %v252 = vld [vmem:[%s228 + $0x18] sm:$0xff]
      %v253 = vld [vmem:[%s228 + $0x20] sm:$0xff]
      %v254 = vld [vmem:[%s228 + $0x28] sm:$0xff]
      %v255 = vld [vmem:[%s228 + $0x30] sm:$0xff]
      %v256 = vld [vmem:[%s228 + $0x38] sm:$0xff]
      %v257 = vld [vmem:[%s228 + $0x40] sm:$0xff]
      %v258 = vld [vmem:[%s228 + $0x48] sm:$0xff]
      %v259 = vld [vmem:[%s228 + $0x50] sm:$0xff]
      %v260 = vld [vmem:[%s228 + $0x58] sm:$0xff]
      %v261 = vld [vmem:[%s228 + $0x60] sm:$0xff]
      %v262 = vld [vmem:[%s228 + $0x68] sm:$0xff]
      %v263 = vld [vmem:[%s228 + $0x70] sm:$0xff]
      %v264 = vld [vmem:[%s228 + $0x78] sm:$0xff]
      %v265 = vunpack.c.l.bf16 %v249
      %v266 = vunpack.c.h.bf16 %v249
      %v267 = vunpack.c.l.bf16 %v250
      %v268 = vunpack.c.h.bf16 %v250
      %v269 = vunpack.c.l.bf16 %v251
      %v270 = vunpack.c.h.bf16 %v251
      %v271 = vunpack.c.l.bf16 %v252
      %v272 = vunpack.c.h.bf16 %v252
      %v273 = vunpack.c.l.bf16 %v253
      %v274 = vunpack.c.h.bf16 %v253
      %v275 = vunpack.c.l.bf16 %v254
      %v276 = vunpack.c.h.bf16 %v254
      %v277 = vunpack.c.l.bf16 %v255
      %v278 = vunpack.c.h.bf16 %v255
      %v279 = vunpack.c.l.bf16 %v256
      %v280 = vunpack.c.h.bf16 %v256
      %v281 = vunpack.c.l.bf16 %v257
      %v282 = vunpack.c.h.bf16 %v257
      %v283 = vunpack.c.l.bf16 %v258
      %v284 = vunpack.c.h.bf16 %v258
      %v285 = vunpack.c.l.bf16 %v259
      %v286 = vunpack.c.h.bf16 %v259
      %v287 = vunpack.c.l.bf16 %v260
      %v288 = vunpack.c.h.bf16 %v260
      %v289 = vunpack.c.l.bf16 %v261
      %v290 = vunpack.c.h.bf16 %v261
      %v291 = vunpack.c.l.bf16 %v262
      %v292 = vunpack.c.h.bf16 %v262
      %v293 = vunpack.c.l.bf16 %v263
      %v294 = vunpack.c.h.bf16 %v263
      %v295 = vunpack.c.l.bf16 %v264
      %v296 = vunpack.c.h.bf16 %v264
      %v297 = vld [vmem:[%s233] sm:$0xf]
      %v299 = vperm.slane %v297, 0
      %v300 = vperm.slane %v297, 1
      %v301 = vperm.slane %v297, 2
      %v302 = vperm.slane %v297, 3
      %v307 = vmul.f32 %v265, %v299
      %v308 = vmul.f32 %v266, %v300
      %v309 = vmul.f32 %v267, %v301
      %v310 = vmul.f32 %v268, %v302
      %v311 = vmul.f32 %v269, %v299
      %v312 = vmul.f32 %v270, %v300
      %v313 = vmul.f32 %v271, %v301
      %v314 = vmul.f32 %v272, %v302
      %v315 = vmul.f32 %v273, %v299
      %v316 = vmul.f32 %v274, %v300
      %v317 = vmul.f32 %v275, %v301
      %v318 = vmul.f32 %v276, %v302
      %v319 = vmul.f32 %v277, %v299
      %v320 = vmul.f32 %v278, %v300
      %v321 = vmul.f32 %v279, %v301
      %v322 = vmul.f32 %v280, %v302
      %v323 = vmul.f32 %v281, %v299
      %v324 = vmul.f32 %v282, %v300
      %v325 = vmul.f32 %v283, %v301
      %v326 = vmul.f32 %v284, %v302
      %v327 = vmul.f32 %v285, %v299
      %v328 = vmul.f32 %v286, %v300
      %v329 = vmul.f32 %v287, %v301
      %v330 = vmul.f32 %v288, %v302
      %v331 = vmul.f32 %v289, %v299
      %v332 = vmul.f32 %v290, %v300
      %v333 = vmul.f32 %v291, %v301
      %v334 = vmul.f32 %v292, %v302
      %v335 = vmul.f32 %v293, %v299
      %v336 = vmul.f32 %v294, %v300
      %v337 = vmul.f32 %v295, %v301
      %v338 = vmul.f32 %v296, %v302
      %v339 = vld [vmem:[%s237] sm:$0xf]
      %v341 = vperm.slane %v339, 0
      %v342 = vperm.slane %v339, 1
      %v343 = vperm.slane %v339, 2
      %v344 = vperm.slane %v339, 3
      %v349 = vadd.f32 %v307, %v341
      %v350 = vadd.f32 %v308, %v342
      %v351 = vadd.f32 %v309, %v343
      %v352 = vadd.f32 %v310, %v344
      %v353 = vadd.f32 %v311, %v341
      %v354 = vadd.f32 %v312, %v342
      %v355 = vadd.f32 %v313, %v343
      %v356 = vadd.f32 %v314, %v344
      %v357 = vadd.f32 %v315, %v341
      %v358 = vadd.f32 %v316, %v342
      %v359 = vadd.f32 %v317, %v343
      %v360 = vadd.f32 %v318, %v344
      %v361 = vadd.f32 %v319, %v341
      %v362 = vadd.f32 %v320, %v342
      %v363 = vadd.f32 %v321, %v343
      %v364 = vadd.f32 %v322, %v344
      %v365 = vadd.f32 %v323, %v341
      %v366 = vadd.f32 %v324, %v342
      %v367 = vadd.f32 %v325, %v343
      %v368 = vadd.f32 %v326, %v344
      %v369 = vadd.f32 %v327, %v341
      %v370 = vadd.f32 %v328, %v342
      %v371 = vadd.f32 %v329, %v343
      %v372 = vadd.f32 %v330, %v344
      %v373 = vadd.f32 %v331, %v341
      %v374 = vadd.f32 %v332, %v342
      %v375 = vadd.f32 %v333, %v343
      %v376 = vadd.f32 %v334, %v344
      %v377 = vadd.f32 %v335, %v341
      %v378 = vadd.f32 %v336, %v342
      %v379 = vadd.f32 %v337, %v343
      %v380 = vadd.f32 %v338, %v344
      %v381 = vmax.f32 %v349, 0.0
      %v382 = vmax.f32 %v350, 0.0
      %v383 = vmax.f32 %v351, 0.0
      %v384 = vmax.f32 %v352, 0.0
      %v385 = vmax.f32 %v353, 0.0
      %v386 = vmax.f32 %v354, 0.0
      %v387 = vmax.f32 %v355, 0.0
      %v388 = vmax.f32 %v356, 0.0
      %v389 = vmax.f32 %v357, 0.0
      %v390 = vmax.f32 %v358, 0.0
      %v391 = vmax.f32 %v359, 0.0
      %v392 = vmax.f32 %v360, 0.0
      %v393 = vmax.f32 %v361, 0.0
      %v394 = vmax.f32 %v362, 0.0
      %v395 = vmax.f32 %v363, 0.0
      %v396 = vmax.f32 %v364, 0.0
      %v397 = vmax.f32 %v365, 0.0
      %v398 = vmax.f32 %v366, 0.0
      %v399 = vmax.f32 %v367, 0.0
      %v400 = vmax.f32 %v368, 0.0
      %v401 = vmax.f32 %v369, 0.0
      %v402 = vmax.f32 %v370, 0.0
      %v403 = vmax.f32 %v371, 0.0
      %v404 = vmax.f32 %v372, 0.0
      %v405 = vmax.f32 %v373, 0.0
      %v406 = vmax.f32 %v374, 0.0
      %v407 = vmax.f32 %v375, 0.0
      %v408 = vmax.f32 %v376, 0.0
      %v409 = vmax.f32 %v377, 0.0
      %v410 = vmax.f32 %v378, 0.0
      %v411 = vmax.f32 %v379, 0.0
      %v412 = vmax.f32 %v380, 0.0
      %v413 = vpack.c.bf16 %v382, %v381
      %v414 = vpack.c.bf16 %v384, %v383
      %v415 = vpack.c.bf16 %v386, %v385
      %v416 = vpack.c.bf16 %v388, %v387
      %v417 = vpack.c.bf16 %v390, %v389
      %v418 = vpack.c.bf16 %v392, %v391
      %v419 = vpack.c.bf16 %v394, %v393
      %v420 = vpack.c.bf16 %v396, %v395
      %v421 = vpack.c.bf16 %v398, %v397
      %v422 = vpack.c.bf16 %v400, %v399
      %v423 = vpack.c.bf16 %v402, %v401
      %v424 = vpack.c.bf16 %v404, %v403
      %v425 = vpack.c.bf16 %v406, %v405
      %v426 = vpack.c.bf16 %v408, %v407
      %v427 = vpack.c.bf16 %v410, %v409
      %v428 = vpack.c.bf16 %v412, %v411
      %429 = vst [vmem:[%s247] sm:$0xff] %v413
      %430 = vst [vmem:[%s247 + $0x8] sm:$0xff] %v414
      %431 = vst [vmem:[%s247 + $0x10] sm:$0xff] %v415
      %432 = vst [vmem:[%s247 + $0x18] sm:$0xff] %v416
      %433 = vst [vmem:[%s247 + $0x20] sm:$0xff] %v417
      %434 = vst [vmem:[%s247 + $0x28] sm:$0xff] %v418
      %435 = vst [vmem:[%s247 + $0x30] sm:$0xff] %v419
      %436 = vst [vmem:[%s247 + $0x38] sm:$0xff] %v420
      %437 = vst [vmem:[%s247 + $0x40] sm:$0xff] %v421
      %438 = vst [vmem:[%s247 + $0x48] sm:$0xff] %v422
      %439 = vst [vmem:[%s247 + $0x50] sm:$0xff] %v423
      %440 = vst [vmem:[%s247 + $0x58] sm:$0xff] %v424
      %441 = vst [vmem:[%s247 + $0x60] sm:$0xff] %v425
      %442 = vst [vmem:[%s247 + $0x68] sm:$0xff] %v426
      %443 = vst [vmem:[%s247 + $0x70] sm:$0xff] %v427
      %444 = vst [vmem:[%s247 + $0x78] sm:$0xff] %v428
      %s445 = smul.u32 8, %s19
      %p446 = scmp.lt.s32.totalorder %s18, 1
      %s447 = scalar_select %p446, %s18, 1
      %p448 = scmp.lt.s32.totalorder %s445, 7
      %s449 = scalar_select %p448, %s445, 7
      %s450 = smul.addr %s449, 4
      %s451 = smul.addr %s447, 32
      %s452 = sadd.s32 %s450, %s451
      %s453 = smul.addr %s452, 4
      %s454 = scalar_lea.vmem %s3, %s453
      // Predicated region
      $region33: #{_lambda_.36} parent=31 // pred_check
        %p455 = pneg %p126
      $region34: #{_lambda_.36} parent=31 // pred_check_branch
        %457 = sbr.rel (%p455) target = $region36
      $region35: #{_lambda_.36} parent=31 // pred_region
        %s458 = smul.u32 8, %s19
      $region36: #{_lambda_.36} parent=31 // pred_fallthru
        _
    $region32: #{_lambda_.36} parent=5 // pred_fallthru
      _
    %p459 = scmp.le.s32.totalorder 2, %s9
    // Predicated region
    $region37: #{_lambda_.36} parent=5 // pred_check
      %p460 = pneg %p459
    $region38: #{_lambda_.36} parent=5 // pred_check_branch
      %462 = sbr.rel (%p460) target = $region40
    $region39: #{_lambda_.36} parent=5 // pred_region
      %s463 = ssub.s32 %s9, 2
      // Predicated region
      $region41: #{_lambda_.36} parent=39 // pred_check
        %p464 = pneg %p132
      $region42: #{_lambda_.36} parent=39 // pred_check_branch
        %466 = sbr.rel (%p464) target = $region44
      $region43: #{_lambda_.36} parent=39 // pred_region
        %s467 = smul.u32 8, %s21
        %p468 = scmp.lt.s32.totalorder %s20, 1
        %s469 = scalar_select %p468, %s20, 1
        %p470 = scmp.lt.s32.totalorder %s467, 7
        %s471 = scalar_select %p470, %s467, 7
        %s472 = smul.addr %s471, 4
        %s473 = smul.addr %s469, 32
        %s474 = sadd.s32 %s472, %s473
        %s475 = smul.addr %s474, 4
        %s476 = scalar_lea.vmem %s3, %s475
      $region44: #{_lambda_.36} parent=39 // pred_fallthru
        _
    $region40: #{_lambda_.36} parent=5 // pred_fallthru
      _
  $region6: #{_lambda_.36} parent=0 // loop_footer
    %s13 = sadd.s32 1, %s9
  $region7: #{_lambda_.36} parent=0 // loop_footer_branch
    %8 = sbr.rel target = $region3
  $region8: #{_lambda_.36} parent=0 // loop_exit
    _

// kernel: _lambda_.37
$region0: #{_lambda_.37}
  #allocation0 [shape = 'u32[]', space=smem, size = 0x4, offset = 0x4, fixed_abs, tag = 'smem constant byte address 0x4 - core index']
  #allocation1 [shape = 'u32[72,128]{1,0:T(1,128)}', space=vmem, size = 0x9000, scoped, tag = 'internal scratch']
  %s0 = inlined_call_operand.vmem [shape: bf16[2,256,512], index: 0, kind: input, shape index: {}]
  %s1 = inlined_call_operand.vmem [shape: bf16[512,128], index: 1, kind: input, shape index: {}]
  %s2 = inlined_call_operand.vmem [shape: f32[2,256,128], index: 2, kind: output, shape index: {}]
  %s3 = sld [smem:[#allocation0]]
  $region41: #{_lambda_.37} parent=0
    _
  %s5 = ssub.s32 1, %s3
  %s6 = scalar_select 0, %s5, %s3
  loop: start=0, step=1, limit=4
  $region2: #{_lambda_.37} parent=0 // loop_pre_header
    _
  $region3: #{_lambda_.37} parent=0 // loop_header
    %s8 = sphi 0, %s12
    %p9 = scmp.ge.s32.totalorder %s8, 4
    %s15 = sphi 0, %s27
    %s16 = sphi 0, %s23
    %s17 = sphi 0, %s15
    %s18 = sphi 0, %s16
    %s19 = sphi 0, %s17
    %s20 = sphi 0, %s18
    %s32 = sphi 0, %s34
    %s35 = sphi 0, %s32
    %s36 = sphi 0, %s35
    %s52 = sphi 0, %s36
    %s56 = sphi 0, %s56
    %s58 = sphi 0, %s56
    %s59 = sphi 0, %s58
    %s73 = sphi 0, %s59
    %s81 = sphi 0, %s83
    %s84 = sphi 0, %s81
    %s85 = sphi 0, %s84
    %s101 = sphi 0, %s85
  $region4: #{_lambda_.37} parent=0 // loop_header_branch
    %11 = sbr.rel (%p9) target = $region8
  $region5: #{_lambda_.37} parent=0 // loop_body
    %s13 = ssub.s32 %s8, 1
    %s14 = ssub.s32 %s8, 2
    %s21 = sadd.s32 1, %s16
    %p22 = scmp.ge.s32.totalorder %s21, 1
    %s23 = scalar_select %p22, 0, %s21
    %s24 = sadd.s32 1, %s15
    %s25 = scalar_select %p22, %s24, %s15
    %p26 = scmp.ge.s32.totalorder %s25, 2
    %s27 = scalar_select %p26, 0, %s25
    %s28 = ssub.s32 %s15, %s27
    %s29 = ssub.s32 %s16, %s23
    %s30 = sor.u32 %s28, %s29
    %p31 = scmp.eq.s32.totalorder %s30, 0
    %s33 = sadd.s32 %s32, 1
    %s34 = scalar_select %p31, %s32, %s33
    %p37 = pneg %p31
    %p38 = scmp.eq.s32.totalorder %s8, 1
    %p39 = por %p37, %p38
    %p40 = scmp.ne.s32.totalorder %s32, %s35
    %p41 = scmp.eq.s32.totalorder %s8, 0
    %p42 = por %p40, %p41
    %p43 = scmp.ne.s32.totalorder %s32, %s35
    %p44 = scmp.eq.s32.totalorder %s13, 1
    %p45 = por %p43, %p44
    %p46 = scmp.ne.s32.totalorder %s35, %s36
    %p47 = scmp.eq.s32.totalorder %s13, 0
    %p48 = por %p46, %p47
    %p49 = scmp.ne.s32.totalorder %s35, %s36
    %p50 = scmp.eq.s32.totalorder %s14, 1
    %p51 = por %p49, %p50
    %p53 = scmp.ne.s32.totalorder %s36, %s52
    %p54 = scmp.eq.s32.totalorder %s14, 0
    %p55 = por %p53, %p54
    %s57 = sadd.s32 %s56, 1
    %p60 = scmp.eq.s32.totalorder %s8, 1
    %p61 = scmp.ne.s32.totalorder %s56, %s58
    %p62 = scmp.eq.s32.totalorder %s8, 0
    %p63 = por %p61, %p62
    %p64 = scmp.ne.s32.totalorder %s56, %s58
    %p65 = scmp.eq.s32.totalorder %s13, 1
    %p66 = por %p64, %p65
    %p67 = scmp.ne.s32.totalorder %s58, %s59
    %p68 = scmp.eq.s32.totalorder %s13, 0
    %p69 = por %p67, %p68
    %p70 = scmp.ne.s32.totalorder %s58, %s59
    %p71 = scmp.eq.s32.totalorder %s14, 1
    %p72 = por %p70, %p71
    %p74 = scmp.ne.s32.totalorder %s59, %s73
    %p75 = scmp.eq.s32.totalorder %s14, 0
    %p76 = por %p74, %p75
    %s77 = ssub.s32 %s15, %s27
    %s78 = ssub.s32 %s16, %s23
    %s79 = sor.u32 %s77, %s78
    %p80 = scmp.eq.s32.totalorder %s79, 0
    %s82 = sadd.s32 %s81, 1
    %s83 = scalar_select %p80, %s81, %s82
    %p86 = pneg %p80
    %p87 = scmp.eq.s32.totalorder %s8, 1
    %p88 = por %p86, %p87
    %p89 = scmp.ne.s32.totalorder %s81, %s84
    %p90 = scmp.eq.s32.totalorder %s8, 0
    %p91 = por %p89, %p90
    %p92 = scmp.ne.s32.totalorder %s81, %s84
    %p93 = scmp.eq.s32.totalorder %s13, 1
    %p94 = por %p92, %p93
    %p95 = scmp.ne.s32.totalorder %s84, %s85
    %p96 = scmp.eq.s32.totalorder %s13, 0
    %p97 = por %p95, %p96
    %p98 = scmp.ne.s32.totalorder %s84, %s85
    %p99 = scmp.eq.s32.totalorder %s14, 1
    %p100 = por %p98, %p99
    %p102 = scmp.ne.s32.totalorder %s85, %s101
    %p103 = scmp.eq.s32.totalorder %s14, 0
    %p104 = por %p102, %p103
    %p105 = scmp.le.s32.totalorder 1, %s8
    %p106 = scmp.lt.s32.totalorder %s8, 3
    %p107 = pnand %p105, %p106
    %p108 = pneg %p107
    // Predicated region
    $region9: #{_lambda_.37} parent=5 // pred_check
      _
    $region10: #{_lambda_.37} parent=5 // pred_check_branch
      %110 = sbr.rel (%p107) target = $region12
    $region11: #{_lambda_.37} parent=5 // pred_region
      %s111 = ssub.s32 %s8, 1
      // Predicated region
      $region13: #{_lambda_.37} parent=11 // pred_check
        %p112 = pneg %p69
      $region14: #{_lambda_.37} parent=11 // pred_check_branch
        %114 = sbr.rel (%p112) target = $region16
      $region15: #{_lambda_.37} parent=11 // pred_region
        _
      $region16: #{_lambda_.37} parent=11 // pred_fallthru
        _
    $region12: #{_lambda_.37} parent=5 // pred_fallthru
      _
    %p115 = scmp.lt.s32.totalorder %s8, 2
    // Predicated region
    $region17: #{_lambda_.37} parent=5 // pred_check
      %p116 = pneg %p115
    $region18: #{_lambda_.37} parent=5 // pred_check_branch
      %118 = sbr.rel (%p116) target = $region20
    $region19: #{_lambda_.37} parent=5 // pred_region
      // Predicated region
      $region21: #{_lambda_.37} parent=19 // pred_check
        %p119 = pneg %p42
      $region22: #{_lambda_.37} parent=19 // pred_check_branch
        %121 = sbr.rel (%p119) target = $region24
      $region23: #{_lambda_.37} parent=19 // pred_region
        %s122 = smul.u32 32, %s16
        %p123 = scmp.lt.s32.totalorder %s15, 1
        %s124 = scalar_select %p123, %s15, 1
        %p125 = scmp.lt.s32.totalorder %s122, 31
        %s126 = scalar_select %p125, %s122, 31
        %s127 = smul.addr %s126, 4
        %s128 = smul.addr %s124, 128
        %s129 = sadd.s32 %s127, %s128
        %s130 = smul.addr %s129, 4
        %s131 = scalar_lea.vmem %s0, %s130
        %s132 = smul.u32 32, %s16
      $region24: #{_lambda_.37} parent=19 // pred_fallthru
        _
    $region20: #{_lambda_.37} parent=5 // pred_fallthru
      _
    %p133 = scmp.le.s32.totalorder 1, %s8
    %p134 = scmp.lt.s32.totalorder %s8, 3
    %p135 = pnand %p133, %p134
    %p136 = pneg %p135
    // Predicated region
    $region25: #{_lambda_.37} parent=5 // pred_check
      _
    $region26: #{_lambda_.37} parent=5 // pred_check_branch
      %138 = sbr.rel (%p135) target = $region28
    $region27: #{_lambda_.37} parent=5 // pred_region
      %s139 = ssub.s32 %s8, 1
      %s140 = smul.u32 32, %s18
      %p141 = scmp.lt.s32.totalorder %s17, 1
      %s142 = scalar_select %p141, %s17, 1
      %p143 = scmp.lt.s32.totalorder %s140, 31
      %s144 = scalar_select %p143, %s140, 31
      %s145 = smul.addr %s144, 4
      %s146 = smul.addr %s142, 128
      %s147 = sadd.s32 %s145, %s146
      %s148 = smul.addr %s147, 4
      %s149 = scalar_lea.vmem %s0, %s148
      %p150 = pneg %p48
      %p151 = pneg %p45
      %p152 = pneg %p69
      %p153 = pneg %p66
      %p154 = pneg %p97
      %p155 = pneg %p94
      %s156 = smul.u32 32, %s18
      %p157 = scmp.lt.s32.totalorder %s17, 1
      %s158 = scalar_select %p157, %s17, 1
      %p159 = scmp.lt.s32.totalorder %s156, 31
      %s160 = scalar_select %p159, %s156, 31
      %s161 = smul.addr %s158, 32
      %s162 = sadd.s32 %s160, %s161
      %s163 = smul.addr %s162, 8
      %s164 = scalar_lea.vmem %s2, %s163
      %s165 = smul.u32 32, %s18
      %p166 = scmp.lt.s32.totalorder %s17, 1
      %s167 = scalar_select %p166, %s17, 1
      %p168 = scmp.lt.s32.totalorder %s165, 31
      %s169 = scalar_select %p168, %s165, 31
      %s170 = smul.addr %s169, 4
      %s171 = smul.addr %s167, 128
      %s172 = sadd.s32 %s170, %s171
      %s173 = smul.addr %s172, 4
      %s174 = scalar_lea.vmem %s0, %s173
      %s175 = smul.u32 32, %s18
      %s176 = smul.u32 32, %s18
      %p177 = scmp.lt.s32.totalorder %s17, 1
      %s178 = scalar_select %p177, %s17, 1
      %p179 = scmp.lt.s32.totalorder %s176, 31
      %s180 = scalar_select %p179, %s176, 31
      %s181 = smul.addr %s178, 32
      %s182 = sadd.s32 %s180, %s181
      %s183 = smul.addr %s182, 8
      %s184 = scalar_lea.vmem %s2, %s183
      %s185 = smul.u32 32, %s18
      %v186 = vld [vmem:[%s174] sm:$0xff]
      %v187 = vld [vmem:[%s174 + $0x8] sm:$0xff]
      %v188 = vld [vmem:[%s174 + $0x10] sm:$0xff]
      %v189 = vld [vmem:[%s174 + $0x18] sm:$0xff]
      %v190 = vld [vmem:[%s174 + $0x20] sm:$0xff]
      %v191 = vld [vmem:[%s174 + $0x28] sm:$0xff]
      %v192 = vld [vmem:[%s174 + $0x30] sm:$0xff]
      %v193 = vld [vmem:[%s174 + $0x38] sm:$0xff]
      %v194 = vld [vmem:[%s174 + $0x40] sm:$0xff]
      %v195 = vld [vmem:[%s174 + $0x48] sm:$0xff]
      %v196 = vld [vmem:[%s174 + $0x50] sm:$0xff]
      %v197 = vld [vmem:[%s174 + $0x58] sm:$0xff]
      %v198 = vld [vmem:[%s174 + $0x60] sm:$0xff]
      %v199 = vld [vmem:[%s174 + $0x68] sm:$0xff]
      %v200 = vld [vmem:[%s174 + $0x70] sm:$0xff]
      %v201 = vld [vmem:[%s174 + $0x78] sm:$0xff]
      %v202 = vld [vmem:[%s174 + $0x80] sm:$0xff]
      %v203 = vld [vmem:[%s174 + $0x88] sm:$0xff]
      %v204 = vld [vmem:[%s174 + $0x90] sm:$0xff]
      %v205 = vld [vmem:[%s174 + $0x98] sm:$0xff]
      %v206 = vld [vmem:[%s174 + $0xa0] sm:$0xff]
      %v207 = vld [vmem:[%s174 + $0xa8] sm:$0xff]
      %v208 = vld [vmem:[%s174 + $0xb0] sm:$0xff]
      %v209 = vld [vmem:[%s174 + $0xb8] sm:$0xff]
      %v210 = vld [vmem:[%s174 + $0xc0] sm:$0xff]
      %v211 = vld [vmem:[%s174 + $0xc8] sm:$0xff]
      %v212 = vld [vmem:[%s174 + $0xd0] sm:$0xff]
      %v213 = vld [vmem:[%s174 + $0xd8] sm:$0xff]
      %v214 = vld [vmem:[%s174 + $0xe0] sm:$0xff]
      %v215 = vld [vmem:[%s174 + $0xe8] sm:$0xff]
      %v216 = vld [vmem:[%s174 + $0xf0] sm:$0xff]
      %v217 = vld [vmem:[%s174 + $0xf8] sm:$0xff]
      %v218 = vld [vmem:[%s174 + $0x100] sm:$0xff]
      %v219 = vld [vmem:[%s174 + $0x108] sm:$0xff]
      %v220 = vld [vmem:[%s174 + $0x110] sm:$0xff]
      %v221 = vld [vmem:[%s174 + $0x118] sm:$0xff]
      %v222 = vld [vmem:[%s174 + $0x120] sm:$0xff]
      %v223 = vld [vmem:[%s174 + $0x128] sm:$0xff]
      %v224 = vld [vmem:[%s174 + $0x130] sm:$0xff]
      %v225 = vld [vmem:[%s174 + $0x138] sm:$0xff]
      %v226 = vld [vmem:[%s174 + $0x140] sm:$0xff]
      %v227 = vld [vmem:[%s174 + $0x148] sm:$0xff]
      %v228 = vld [vmem:[%s174 + $0x150] sm:$0xff]
      %v229 = vld [vmem:[%s174 + $0x158] sm:$0xff]
      %v230 = vld [vmem:[%s174 + $0x160] sm:$0xff]
      %v231 = vld [vmem:[%s174 + $0x168] sm:$0xff]
      %v232 = vld [vmem:[%s174 + $0x170] sm:$0xff]
      %v233 = vld [vmem:[%s174 + $0x178] sm:$0xff]
      %v234 = vld [vmem:[%s174 + $0x180] sm:$0xff]
      %v235 = vld [vmem:[%s174 + $0x188] sm:$0xff]
      %v236 = vld [vmem:[%s174 + $0x190] sm:$0xff]
      %v237 = vld [vmem:[%s174 + $0x198] sm:$0xff]
      %v238 = vld [vmem:[%s174 + $0x1a0] sm:$0xff]
      %v239 = vld [vmem:[%s174 + $0x1a8] sm:$0xff]
      %v240 = vld [vmem:[%s174 + $0x1b0] sm:$0xff]
      %v241 = vld [vmem:[%s174 + $0x1b8] sm:$0xff]
      %v242 = vld [vmem:[%s174 + $0x1c0] sm:$0xff]
      %v243 = vld [vmem:[%s174 + $0x1c8] sm:$0xff]
      %v244 = vld [vmem:[%s174 + $0x1d0] sm:$0xff]
      %v245 = vld [vmem:[%s174 + $0x1d8] sm:$0xff]
      %v246 = vld [vmem:[%s174 + $0x1e0] sm:$0xff]
      %v247 = vld [vmem:[%s174 + $0x1e8] sm:$0xff]
      %v248 = vld [vmem:[%s174 + $0x1f0] sm:$0xff]
      %v249 = vld [vmem:[%s174 + $0x1f8] sm:$0xff]
      %v250 = vld [vmem:[%s1] sm:$0xf]
      %v251 = vld [vmem:[%s1 + $0x4] sm:$0xf]
      %v252 = vld [vmem:[%s1 + $0x8] sm:$0xf]
      %v253 = vld [vmem:[%s1 + $0xc] sm:$0xf]
      %v254 = vld [vmem:[%s1 + $0x10] sm:$0xf]
      %v255 = vld [vmem:[%s1 + $0x14] sm:$0xf]
      %v256 = vld [vmem:[%s1 + $0x18] sm:$0xf]
      %v257 = vld [vmem:[%s1 + $0x1c] sm:$0xf]
      %v258 = vld [vmem:[%s1 + $0x20] sm:$0xf]
      %v259 = vld [vmem:[%s1 + $0x24] sm:$0xf]
      %v260 = vld [vmem:[%s1 + $0x28] sm:$0xf]
      %v261 = vld [vmem:[%s1 + $0x2c] sm:$0xf]
      %v262 = vld [vmem:[%s1 + $0x30] sm:$0xf]
      %v263 = vld [vmem:[%s1 + $0x34] sm:$0xf]
      %v264 = vld [vmem:[%s1 + $0x38] sm:$0xf]
      %v265 = vld [vmem:[%s1 + $0x3c] sm:$0xf]
      %v266 = vld [vmem:[%s1 + $0x40] sm:$0xf]
      %v267 = vld [vmem:[%s1 + $0x44] sm:$0xf]
      %v268 = vld [vmem:[%s1 + $0x48] sm:$0xf]
      %v269 = vld [vmem:[%s1 + $0x4c] sm:$0xf]
      %v270 = vld [vmem:[%s1 + $0x50] sm:$0xf]
      %v271 = vld [vmem:[%s1 + $0x54] sm:$0xf]
      %v272 = vld [vmem:[%s1 + $0x58] sm:$0xf]
      %v273 = vld [vmem:[%s1 + $0x5c] sm:$0xf]
      %v274 = vld [vmem:[%s1 + $0x60] sm:$0xf]
      %v275 = vld [vmem:[%s1 + $0x64] sm:$0xf]
      %v276 = vld [vmem:[%s1 + $0x68] sm:$0xf]
      %v277 = vld [vmem:[%s1 + $0x6c] sm:$0xf]
      %v278 = vld [vmem:[%s1 + $0x70] sm:$0xf]
      %v279 = vld [vmem:[%s1 + $0x74] sm:$0xf]
      %v280 = vld [vmem:[%s1 + $0x78] sm:$0xf]
      %v281 = vld [vmem:[%s1 + $0x7c] sm:$0xf]
      %v282 = vld [vmem:[%s1 + $0x80] sm:$0xf]
      %v283 = vld [vmem:[%s1 + $0x84] sm:$0xf]
      %v284 = vld [vmem:[%s1 + $0x88] sm:$0xf]
      %v285 = vld [vmem:[%s1 + $0x8c] sm:$0xf]
      %v286 = vld [vmem:[%s1 + $0x90] sm:$0xf]
      %v287 = vld [vmem:[%s1 + $0x94] sm:$0xf]
      %v288 = vld [vmem:[%s1 + $0x98] sm:$0xf]
      %v289 = vld [vmem:[%s1 + $0x9c] sm:$0xf]
      %v290 = vld [vmem:[%s1 + $0xa0] sm:$0xf]
      %v291 = vld [vmem:[%s1 + $0xa4] sm:$0xf]
      %v292 = vld [vmem:[%s1 + $0xa8] sm:$0xf]
      %v293 = vld [vmem:[%s1 + $0xac] sm:$0xf]
      %v294 = vld [vmem:[%s1 + $0xb0] sm:$0xf]
      %v295 = vld [vmem:[%s1 + $0xb4] sm:$0xf]
      %v296 = vld [vmem:[%s1 + $0xb8] sm:$0xf]
      %v297 = vld [vmem:[%s1 + $0xbc] sm:$0xf]
      %v298 = vld [vmem:[%s1 + $0xc0] sm:$0xf]
      %v299 = vld [vmem:[%s1 + $0xc4] sm:$0xf]
      %v300 = vld [vmem:[%s1 + $0xc8] sm:$0xf]
      %v301 = vld [vmem:[%s1 + $0xcc] sm:$0xf]
      %v302 = vld [vmem:[%s1 + $0xd0] sm:$0xf]
      %v303 = vld [vmem:[%s1 + $0xd4] sm:$0xf]
      %v304 = vld [vmem:[%s1 + $0xd8] sm:$0xf]
      %v305 = vld [vmem:[%s1 + $0xdc] sm:$0xf]
      %v306 = vld [vmem:[%s1 + $0xe0] sm:$0xf]
      %v307 = vld [vmem:[%s1 + $0xe4] sm:$0xf]
      %v308 = vld [vmem:[%s1 + $0xe8] sm:$0xf]
      %v309 = vld [vmem:[%s1 + $0xec] sm:$0xf]
      %v310 = vld [vmem:[%s1 + $0xf0] sm:$0xf]
      %v311 = vld [vmem:[%s1 + $0xf4] sm:$0xf]
      %v312 = vld [vmem:[%s1 + $0xf8] sm:$0xf]
      %v313 = vld [vmem:[%s1 + $0xfc] sm:$0xf]
      %v378 = vunpack.c.l.b16 %v186
      %v379 = vunpack.c.h.b16 %v186
      %v380 = vunpack.c.l.b16 %v187
      %v381 = vunpack.c.h.b16 %v187
      %v382 = vunpack.c.l.b16 %v188
      %v383 = vunpack.c.h.b16 %v188
      %v384 = vunpack.c.l.b16 %v189
      %v385 = vunpack.c.h.b16 %v189
      %v386 = vunpack.c.l.b16 %v190
      %v387 = vunpack.c.h.b16 %v190
      %v388 = vunpack.c.l.b16 %v191
      %v389 = vunpack.c.h.b16 %v191
      %v390 = vunpack.c.l.b16 %v192
      %v391 = vunpack.c.h.b16 %v192
      %v392 = vunpack.c.l.b16 %v193
      %v393 = vunpack.c.h.b16 %v193
      %v394 = vunpack.c.l.b16 %v194
      %v395 = vunpack.c.h.b16 %v194
      %v396 = vunpack.c.l.b16 %v195
      %v397 = vunpack.c.h.b16 %v195
      %v398 = vunpack.c.l.b16 %v196
      %v399 = vunpack.c.h.b16 %v196
      %v400 = vunpack.c.l.b16 %v197
      %v401 = vunpack.c.h.b16 %v197
      %v402 = vunpack.c.l.b16 %v198
      %v403 = vunpack.c.h.b16 %v198
      %v404 = vunpack.c.l.b16 %v199
      %v405 = vunpack.c.h.b16 %v199
      %v406 = vunpack.c.l.b16 %v200
      %v407 = vunpack.c.h.b16 %v200
      %v408 = vunpack.c.l.b16 %v201
      %v409 = vunpack.c.h.b16 %v201
      %v410 = vunpack.c.l.b16 %v202
      %v411 = vunpack.c.h.b16 %v202
      %v412 = vunpack.c.l.b16 %v203
      %v413 = vunpack.c.h.b16 %v203
      %v414 = vunpack.c.l.b16 %v204
      %v415 = vunpack.c.h.b16 %v204
      %v416 = vunpack.c.l.b16 %v205
      %v417 = vunpack.c.h.b16 %v205
      %v418 = vunpack.c.l.b16 %v206
      %v419 = vunpack.c.h.b16 %v206
      %v420 = vunpack.c.l.b16 %v207
      %v421 = vunpack.c.h.b16 %v207
      %v422 = vunpack.c.l.b16 %v208
      %v423 = vunpack.c.h.b16 %v208
      %v424 = vunpack.c.l.b16 %v209
      %v425 = vunpack.c.h.b16 %v209
      %v426 = vunpack.c.l.b16 %v210
      %v427 = vunpack.c.h.b16 %v210
      %v428 = vunpack.c.l.b16 %v211
      %v429 = vunpack.c.h.b16 %v211
      %v430 = vunpack.c.l.b16 %v212
      %v431 = vunpack.c.h.b16 %v212
      %v432 = vunpack.c.l.b16 %v213
      %v433 = vunpack.c.h.b16 %v213
      %v434 = vunpack.c.l.b16 %v214
      %v435 = vunpack.c.h.b16 %v214
      %v436 = vunpack.c.l.b16 %v215
      %v437 = vunpack.c.h.b16 %v215
      %v438 = vunpack.c.l.b16 %v216
      %v439 = vunpack.c.h.b16 %v216
      %v440 = vunpack.c.l.b16 %v217
      %v441 = vunpack.c.h.b16 %v217
      %v442 = vunpack.c.l.b16 %v218
      %v443 = vunpack.c.h.b16 %v218
      %v444 = vunpack.c.l.b16 %v219
      %v445 = vunpack.c.h.b16 %v219
      %v446 = vunpack.c.l.b16 %v220
      %v447 = vunpack.c.h.b16 %v220
      %v448 = vunpack.c.l.b16 %v221
      %v449 = vunpack.c.h.b16 %v221
      %v450 = vunpack.c.l.b16 %v222
      %v451 = vunpack.c.h.b16 %v222
      %v452 = vunpack.c.l.b16 %v223
      %v453 = vunpack.c.h.b16 %v223
      %v454 = vunpack.c.l.b16 %v224
      %v455 = vunpack.c.h.b16 %v224
      %v456 = vunpack.c.l.b16 %v225
      %v457 = vunpack.c.h.b16 %v225
      %v458 = vunpack.c.l.b16 %v226
      %v459 = vunpack.c.h.b16 %v226
      %v460 = vunpack.c.l.b16 %v227
      %v461 = vunpack.c.h.b16 %v227
      %v462 = vunpack.c.l.b16 %v228
      %v463 = vunpack.c.h.b16 %v228
      %v464 = vunpack.c.l.b16 %v229
      %v465 = vunpack.c.h.b16 %v229
      %v466 = vunpack.c.l.b16 %v230
      %v467 = vunpack.c.h.b16 %v230
      %v468 = vunpack.c.l.b16 %v231
      %v469 = vunpack.c.h.b16 %v231
      %v470 = vunpack.c.l.b16 %v232
      %v471 = vunpack.c.h.b16 %v232
      %v472 = vunpack.c.l.b16 %v233
      %v473 = vunpack.c.h.b16 %v233
      %v474 = vunpack.c.l.b16 %v234
      %v475 = vunpack.c.h.b16 %v234
      %v476 = vunpack.c.l.b16 %v235
      %v477 = vunpack.c.h.b16 %v235
      %v478 = vunpack.c.l.b16 %v236
      %v479 = vunpack.c.h.b16 %v236
      %v480 = vunpack.c.l.b16 %v237
      %v481 = vunpack.c.h.b16 %v237
      %v482 = vunpack.c.l.b16 %v238
      %v483 = vunpack.c.h.b16 %v238
      %v484 = vunpack.c.l.b16 %v239
      %v485 = vunpack.c.h.b16 %v239
      %v486 = vunpack.c.l.b16 %v240
      %v487 = vunpack.c.h.b16 %v240
      %v488 = vunpack.c.l.b16 %v241
      %v489 = vunpack.c.h.b16 %v241
      %v490 = vunpack.c.l.b16 %v242
      %v491 = vunpack.c.h.b16 %v242
      %v492 = vunpack.c.l.b16 %v243
      %v493 = vunpack.c.h.b16 %v243
      %v494 = vunpack.c.l.b16 %v244
      %v495 = vunpack.c.h.b16 %v244
      %v496 = vunpack.c.l.b16 %v245
      %v497 = vunpack.c.h.b16 %v245
      %v498 = vunpack.c.l.b16 %v246
      %v499 = vunpack.c.h.b16 %v246
      %v500 = vunpack.c.l.b16 %v247
      %v501 = vunpack.c.h.b16 %v247
      %v502 = vunpack.c.l.b16 %v248
      %v503 = vunpack.c.h.b16 %v248
      %v504 = vunpack.c.l.b16 %v249
      %v505 = vunpack.c.h.b16 %v249
      %v506 = vpack.c.b16 %v382, %v378
      %v507 = vpack.c.b16 %v383, %v379
      %v508 = vpack.c.b16 %v384, %v380
      %v509 = vpack.c.b16 %v385, %v381
      %v510 = vpack.c.b16 %v390, %v386
      %v511 = vpack.c.b16 %v391, %v387
      %v512 = vpack.c.b16 %v392, %v388
      %v513 = vpack.c.b16 %v393, %v389
      %v514 = vpack.c.b16 %v398, %v394
      %v515 = vpack.c.b16 %v399, %v395
      %v516 = vpack.c.b16 %v400, %v396
      %v517 = vpack.c.b16 %v401, %v397
      %v518 = vpack.c.b16 %v406, %v402
      %v519 = vpack.c.b16 %v407, %v403
      %v520 = vpack.c.b16 %v408, %v404
      %v521 = vpack.c.b16 %v409, %v405
      %v522 = vpack.c.b16 %v414, %v410
      %v523 = vpack.c.b16 %v415, %v411
      %v524 = vpack.c.b16 %v416, %v412
      %v525 = vpack.c.b16 %v417, %v413
      %v526 = vpack.c.b16 %v422, %v418
      %v527 = vpack.c.b16 %v423, %v419
      %v528 = vpack.c.b16 %v424, %v420
      %v529 = vpack.c.b16 %v425, %v421
      %v530 = vpack.c.b16 %v430, %v426
      %v531 = vpack.c.b16 %v431, %v427
      %v532 = vpack.c.b16 %v432, %v428
      %v533 = vpack.c.b16 %v433, %v429
      %v534 = vpack.c.b16 %v438, %v434
      %v535 = vpack.c.b16 %v439, %v435
      %v536 = vpack.c.b16 %v440, %v436
      %v537 = vpack.c.b16 %v441, %v437
      %v538 = vpack.c.b16 %v446, %v442
      %v539 = vpack.c.b16 %v447, %v443
      %v540 = vpack.c.b16 %v448, %v444
      %v541 = vpack.c.b16 %v449, %v445
      %v542 = vpack.c.b16 %v454, %v450
      %v543 = vpack.c.b16 %v455, %v451
      %v544 = vpack.c.b16 %v456, %v452
      %v545 = vpack.c.b16 %v457, %v453
      %v546 = vpack.c.b16 %v462, %v458
      %v547 = vpack.c.b16 %v463, %v459
      %v548 = vpack.c.b16 %v464, %v460
      %v549 = vpack.c.b16 %v465, %v461
      %v550 = vpack.c.b16 %v470, %v466
      %v551 = vpack.c.b16 %v471, %v467
      %v552 = vpack.c.b16 %v472, %v468
      %v553 = vpack.c.b16 %v473, %v469
      %v554 = vpack.c.b16 %v478, %v474
      %v555 = vpack.c.b16 %v479, %v475
      %v556 = vpack.c.b16 %v480, %v476
      %v557 = vpack.c.b16 %v481, %v477
      %v558 = vpack.c.b16 %v486, %v482
      %v559 = vpack.c.b16 %v487, %v483
      %v560 = vpack.c.b16 %v488, %v484
      %v561 = vpack.c.b16 %v489, %v485
      %v562 = vpack.c.b16 %v494, %v490
      %v563 = vpack.c.b16 %v495, %v491
      %v564 = vpack.c.b16 %v496, %v492
      %v565 = vpack.c.b16 %v497, %v493
      %v566 = vpack.c.b16 %v502, %v498
      %v567 = vpack.c.b16 %v503, %v499
      %v568 = vpack.c.b16 %v504, %v500
      %v569 = vpack.c.b16 %v505, %v501
      %v698 = vunpack.c.l.b16 %v250
      %v699 = vunpack.c.l.b16 %v251
      %v700 = vunpack.c.l.b16 %v252
      %v701 = vunpack.c.l.b16 %v253
      %v702 = vunpack.c.l.b16 %v254
      %v703 = vunpack.c.l.b16 %v255
      %v704 = vunpack.c.l.b16 %v256
      %v705 = vunpack.c.l.b16 %v257
      %v706 = vunpack.c.l.b16 %v258
      %v707 = vunpack.c.l.b16 %v259
      %v708 = vunpack.c.l.b16 %v260
      %v709 = vunpack.c.l.b16 %v261
      %v710 = vunpack.c.l.b16 %v262
      %v711 = vunpack.c.l.b16 %v263
      %v712 = vunpack.c.l.b16 %v264
      %v713 = vunpack.c.l.b16 %v265
      %v714 = vunpack.c.l.b16 %v266
      %v715 = vunpack.c.l.b16 %v267
      %v716 = vunpack.c.l.b16 %v268
      %v717 = vunpack.c.l.b16 %v269
      %v718 = vunpack.c.l.b16 %v270
      %v719 = vunpack.c.l.b16 %v271
      %v720 = vunpack.c.l.b16 %v272
      %v721 = vunpack.c.l.b16 %v273
      %v722 = vunpack.c.l.b16 %v274
      %v723 = vunpack.c.l.b16 %v275
      %v724 = vunpack.c.l.b16 %v276
      %v725 = vunpack.c.l.b16 %v277
      %v726 = vunpack.c.l.b16 %v278
      %v727 = vunpack.c.l.b16 %v279
      %v728 = vunpack.c.l.b16 %v280
      %v729 = vunpack.c.l.b16 %v281
      %v730 = vunpack.c.l.b16 %v282
      %v731 = vunpack.c.l.b16 %v283
      %v732 = vunpack.c.l.b16 %v284
      %v733 = vunpack.c.l.b16 %v285
      %v734 = vunpack.c.l.b16 %v286
      %v735 = vunpack.c.l.b16 %v287
      %v736 = vunpack.c.l.b16 %v288
      %v737 = vunpack.c.l.b16 %v289
      %v738 = vunpack.c.l.b16 %v290
      %v739 = vunpack.c.l.b16 %v291
      %v740 = vunpack.c.l.b16 %v292
      %v741 = vunpack.c.l.b16 %v293
      %v742 = vunpack.c.l.b16 %v294
      %v743 = vunpack.c.l.b16 %v295
      %v744 = vunpack.c.l.b16 %v296
      %v745 = vunpack.c.l.b16 %v297
      %v746 = vunpack.c.l.b16 %v298
      %v747 = vunpack.c.l.b16 %v299
      %v748 = vunpack.c.l.b16 %v300
      %v749 = vunpack.c.l.b16 %v301
      %v750 = vunpack.c.l.b16 %v302
      %v751 = vunpack.c.l.b16 %v303
      %v752 = vunpack.c.l.b16 %v304
      %v753 = vunpack.c.l.b16 %v305
      %v754 = vunpack.c.l.b16 %v306
      %v755 = vunpack.c.l.b16 %v307
      %v756 = vunpack.c.l.b16 %v308
      %v757 = vunpack.c.l.b16 %v309
      %v758 = vunpack.c.l.b16 %v310
      %v759 = vunpack.c.l.b16 %v311
      %v760 = vunpack.c.l.b16 %v312
      %v761 = vunpack.c.l.b16 %v313
      %v762 = vpack.c.b16 %v699, %v698
      %v763 = vpack.c.b16 %v701, %v700
      %v764 = vpack.c.b16 %v703, %v702
      %v765 = vpack.c.b16 %v705, %v704
      %v766 = vpack.c.b16 %v707, %v706
      %v767 = vpack.c.b16 %v709, %v708
      %v768 = vpack.c.b16 %v711, %v710
      %v769 = vpack.c.b16 %v713, %v712
      %v770 = vpack.c.b16 %v715, %v714
      %v771 = vpack.c.b16 %v717, %v716
      %v772 = vpack.c.b16 %v719, %v718
      %v773 = vpack.c.b16 %v721, %v720
      %v774 = vpack.c.b16 %v723, %v722
      %v775 = vpack.c.b16 %v725, %v724
      %v776 = vpack.c.b16 %v727, %v726
      %v777 = vpack.c.b16 %v729, %v728
      %v778 = vpack.c.b16 %v731, %v730
      %v779 = vpack.c.b16 %v733, %v732
      %v780 = vpack.c.b16 %v735, %v734
      %v781 = vpack.c.b16 %v737, %v736
      %v782 = vpack.c.b16 %v739, %v738
      %v783 = vpack.c.b16 %v741, %v740
      %v784 = vpack.c.b16 %v743, %v742
      %v785 = vpack.c.b16 %v745, %v744
      %v786 = vpack.c.b16 %v747, %v746
      %v787 = vpack.c.b16 %v749, %v748
      %v788 = vpack.c.b16 %v751, %v750
      %v789 = vpack.c.b16 %v753, %v752
      %v790 = vpack.c.b16 %v755, %v754
      %v791 = vpack.c.b16 %v757, %v756
      %v792 = vpack.c.b16 %v759, %v758
      %v793 = vpack.c.b16 %v761, %v760
      %826 = vmatpush.bf16.msra.mxu0 %v769
      %827 = vmatpush.bf16.msra.mxu0 %v768
      %828 = vmatpush.bf16.msra.mxu0 %v767
      %829 = vmatpush.bf16.msra.mxu0 %v766
      %830 = vmatpush.bf16.msra.mxu0 %v765
      %831 = vmatpush.bf16.msra.mxu0 %v764
      %832 = vmatpush.bf16.msra.mxu0 %v763
      %833 = vmatpush.bf16.msra.mxu0 %v762
      %834 = vmatmul.bf16.gmra.mxu0 %v506
      %v835 = vpop.f32.mrf.mxu0
      %v836 = vadd.f32 0.0, %v835
      %v837 = vpop.f32.mrf.mxu0
      %v838 = vadd.f32 0.0, %v837
      %839 = vmatmul.bf16.gmra.mxu0 %v510
      %v840 = vpop.f32.mrf.mxu0
      %v841 = vadd.f32 0.0, %v840
      %v842 = vpop.f32.mrf.mxu0
      %v843 = vadd.f32 0.0, %v842
      %844 = vmatmul.bf16.gmra.mxu0 %v514
      %v845 = vpop.f32.mrf.mxu0
      %v846 = vadd.f32 0.0, %v845
      %v847 = vpop.f32.mrf.mxu0
      %v848 = vadd.f32 0.0, %v847
      %849 = vmatmul.bf16.gmra.mxu0 %v518
      %v850 = vpop.f32.mrf.mxu0
      %v851 = vadd.f32 0.0, %v850
      %v852 = vpop.f32.mrf.mxu0
      %v853 = vadd.f32 0.0, %v852
      %854 = vmatmul.bf16.gmra.mxu0 %v522
      %v855 = vpop.f32.mrf.mxu0
      %v856 = vadd.f32 0.0, %v855
      %v857 = vpop.f32.mrf.mxu0
      %v858 = vadd.f32 0.0, %v857
      %859 = vmatmul.bf16.gmra.mxu0 %v526
      %v860 = vpop.f32.mrf.mxu0
      %v861 = vadd.f32 0.0, %v860
      %v862 = vpop.f32.mrf.mxu0
      %v863 = vadd.f32 0.0, %v862
      %864 = vmatmul.bf16.gmra.mxu0 %v530
      %v865 = vpop.f32.mrf.mxu0
      %v866 = vadd.f32 0.0, %v865
      %v867 = vpop.f32.mrf.mxu0
      %v868 = vadd.f32 0.0, %v867
      %869 = vmatmul.bf16.gmra.mxu0 %v534
      %v870 = vpop.f32.mrf.mxu0
      %v871 = vadd.f32 0.0, %v870
      %v872 = vpop.f32.mrf.mxu0
      %v873 = vadd.f32 0.0, %v872
      %874 = vmatmul.bf16.gmra.mxu0 %v538
      %v875 = vpop.f32.mrf.mxu0
      %v876 = vadd.f32 0.0, %v875
      %v877 = vpop.f32.mrf.mxu0
      %v878 = vadd.f32 0.0, %v877
      %879 = vmatmul.bf16.gmra.mxu0 %v542
      %v880 = vpop.f32.mrf.mxu0
      %v881 = vadd.f32 0.0, %v880
      %v882 = vpop.f32.mrf.mxu0
      %v883 = vadd.f32 0.0, %v882
      %884 = vmatmul.bf16.gmra.mxu0 %v546
      %v885 = vpop.f32.mrf.mxu0
      %v886 = vadd.f32 0.0, %v885
      %v887 = vpop.f32.mrf.mxu0
      %v888 = vadd.f32 0.0, %v887
      %889 = vmatmul.bf16.gmra.mxu0 %v550
      %v890 = vpop.f32.mrf.mxu0
      %v891 = vadd.f32 0.0, %v890
      %v892 = vpop.f32.mrf.mxu0
      %v893 = vadd.f32 0.0, %v892
      %894 = vmatmul.bf16.gmra.mxu0 %v554
      %v895 = vpop.f32.mrf.mxu0
      %v896 = vadd.f32 0.0, %v895
      %v897 = vpop.f32.mrf.mxu0
      %v898 = vadd.f32 0.0, %v897
      %899 = vmatmul.bf16.gmra.mxu0 %v558
      %v900 = vpop.f32.mrf.mxu0
      %v901 = vadd.f32 0.0, %v900
      %v902 = vpop.f32.mrf.mxu0
      %v903 = vadd.f32 0.0, %v902
      %904 = vmatmul.bf16.gmra.mxu0 %v562
      %v905 = vpop.f32.mrf.mxu0
      %v906 = vadd.f32 0.0, %v905
      %v907 = vpop.f32.mrf.mxu0
      %v908 = vadd.f32 0.0, %v907
      %909 = vmatmul.bf16.gmra.mxu0 %v566
      %v910 = vpop.f32.mrf.mxu0
      %v911 = vadd.f32 0.0, %v910
      %v912 = vpop.f32.mrf.mxu0
      %v913 = vadd.f32 0.0, %v912
      %914 = vdwg.mxu0
      %915 = vmatpush.bf16.msra.mxu0 %v777
      %916 = vmatpush.bf16.msra.mxu0 %v776
      %917 = vmatpush.bf16.msra.mxu0 %v775
      %918 = vmatpush.bf16.msra.mxu0 %v774
      %919 = vmatpush.bf16.msra.mxu0 %v773
      %920 = vmatpush.bf16.msra.mxu0 %v772
      %921 = vmatpush.bf16.msra.mxu0 %v771
      %922 = vmatpush.bf16.msra.mxu0 %v770
      %923 = vmatmul.bf16.gmra.mxu0 %v507
      %v924 = vpop.f32.mrf.mxu0
      %v925 = vadd.f32 %v836, %v924
      %v926 = vpop.f32.mrf.mxu0
      %v927 = vadd.f32 %v838, %v926
      %928 = vmatmul.bf16.gmra.mxu0 %v511
      %v929 = vpop.f32.mrf.mxu0
      %v930 = vadd.f32 %v841, %v929
      %v931 = vpop.f32.mrf.mxu0
      %v932 = vadd.f32 %v843, %v931
      %933 = vmatmul.bf16.gmra.mxu0 %v515
      %v934 = vpop.f32.mrf.mxu0
      %v935 = vadd.f32 %v846, %v934
      %v936 = vpop.f32.mrf.mxu0
      %v937 = vadd.f32 %v848, %v936
      %938 = vmatmul.bf16.gmra.mxu0 %v519
      %v939 = vpop.f32.mrf.mxu0
      %v940 = vadd.f32 %v851, %v939
      %v941 = vpop.f32.mrf.mxu0
      %v942 = vadd.f32 %v853, %v941
      %943 = vmatmul.bf16.gmra.mxu0 %v523
      %v944 = vpop.f32.mrf.mxu0
      %v945 = vadd.f32 %v856, %v944
      %v946 = vpop.f32.mrf.mxu0
      %v947 = vadd.f32 %v858, %v946
      %948 = vmatmul.bf16.gmra.mxu0 %v527
      %v949 = vpop.f32.mrf.mxu0
      %v950 = vadd.f32 %v861, %v949
      %v951 = vpop.f32.mrf.mxu0
      %v952 = vadd.f32 %v863, %v951
      %953 = vmatmul.bf16.gmra.mxu0 %v531
      %v954 = vpop.f32.mrf.mxu0
      %v955 = vadd.f32 %v866, %v954
      %v956 = vpop.f32.mrf.mxu0
      %v957 = vadd.f32 %v868, %v956
      %958 = vmatmul.bf16.gmra.mxu0 %v535
      %v959 = vpop.f32.mrf.mxu0
      %v960 = vadd.f32 %v871, %v959
      %v961 = vpop.f32.mrf.mxu0
      %v962 = vadd.f32 %v873, %v961
      %963 = vmatmul.bf16.gmra.mxu0 %v539
      %v964 = vpop.f32.mrf.mxu0
      %v965 = vadd.f32 %v876, %v964
      %v966 = vpop.f32.mrf.mxu0
      %v967 = vadd.f32 %v878, %v966
      %968 = vmatmul.bf16.gmra.mxu0 %v543
      %v969 = vpop.f32.mrf.mxu0
      %v970 = vadd.f32 %v881, %v969
      %v971 = vpop.f32.mrf.mxu0
      %v972 = vadd.f32 %v883, %v971
      %973 = vmatmul.bf16.gmra.mxu0 %v547
      %v974 = vpop.f32.mrf.mxu0
      %v975 = vadd.f32 %v886, %v974
      %v976 = vpop.f32.mrf.mxu0
      %v977 = vadd.f32 %v888, %v976
      %978 = vmatmul.bf16.gmra.mxu0 %v551
      %v979 = vpop.f32.mrf.mxu0
      %v980 = vadd.f32 %v891, %v979
      %v981 = vpop.f32.mrf.mxu0
      %v982 = vadd.f32 %v893, %v981
      %983 = vmatmul.bf16.gmra.mxu0 %v555
      %v984 = vpop.f32.mrf.mxu0
      %v985 = vadd.f32 %v896, %v984
      %v986 = vpop.f32.mrf.mxu0
      %v987 = vadd.f32 %v898, %v986
      %988 = vmatmul.bf16.gmra.mxu0 %v559
      %v989 = vpop.f32.mrf.mxu0
      %v990 = vadd.f32 %v901, %v989
      %v991 = vpop.f32.mrf.mxu0
      %v992 = vadd.f32 %v903, %v991
      %993 = vmatmul.bf16.gmra.mxu0 %v563
      %v994 = vpop.f32.mrf.mxu0
      %v995 = vadd.f32 %v906, %v994
      %v996 = vpop.f32.mrf.mxu0
      %v997 = vadd.f32 %v908, %v996
      %998 = vmatmul.bf16.gmra.mxu0 %v567
      %v999 = vpop.f32.mrf.mxu0
      %v1000 = vadd.f32 %v911, %v999
      %v1001 = vpop.f32.mrf.mxu0
      %v1002 = vadd.f32 %v913, %v1001
      %1003 = vdwg.mxu0
      %1004 = vmatpush.bf16.msra.mxu0 %v785
      %1005 = vmatpush.bf16.msra.mxu0 %v784
      %1006 = vmatpush.bf16.msra.mxu0 %v783
      %1007 = vmatpush.bf16.msra.mxu0 %v782
      %1008 = vmatpush.bf16.msra.mxu0 %v781
      %1009 = vmatpush.bf16.msra.mxu0 %v780
      %1010 = vmatpush.bf16.msra.mxu0 %v779
      %1011 = vmatpush.bf16.msra.mxu0 %v778
      %1012 = vmatmul.bf16.gmra.mxu0 %v508
      %v1013 = vpop.f32.mrf.mxu0
      %v1014 = vadd.f32 %v925, %v1013
      %v1015 = vpop.f32.mrf.mxu0
      %v1016 = vadd.f32 %v927, %v1015
      %1017 = vmatmul.bf16.gmra.mxu0 %v512
      %v1018 = vpop.f32.mrf.mxu0
      %v1019 = vadd.f32 %v930, %v1018
      %v1020 = vpop.f32.mrf.mxu0
      %v1021 = vadd.f32 %v932, %v1020
      %1022 = vmatmul.bf16.gmra.mxu0 %v516
      %v1023 = vpop.f32.mrf.mxu0
      %v1024 = vadd.f32 %v935, %v1023
      %v1025 = vpop.f32.mrf.mxu0
      %v1026 = vadd.f32 %v937, %v1025
      %1027 = vmatmul.bf16.gmra.mxu0 %v520
      %v1028 = vpop.f32.mrf.mxu0
      %v1029 = vadd.f32 %v940, %v1028
      %v1030 = vpop.f32.mrf.mxu0
      %v1031 = vadd.f32 %v942, %v1030
      %1032 = vmatmul.bf16.gmra.mxu0 %v524
      %v1033 = vpop.f32.mrf.mxu0
      %v1034 = vadd.f32 %v945, %v1033
      %v1035 = vpop.f32.mrf.mxu0
      %v1036 = vadd.f32 %v947, %v1035
      %1037 = vmatmul.bf16.gmra.mxu0 %v528
      %v1038 = vpop.f32.mrf.mxu0
      %v1039 = vadd.f32 %v950, %v1038
      %v1040 = vpop.f32.mrf.mxu0
      %v1041 = vadd.f32 %v952, %v1040
      %1042 = vmatmul.bf16.gmra.mxu0 %v532
      %v1043 = vpop.f32.mrf.mxu0
      %v1044 = vadd.f32 %v955, %v1043
      %v1045 = vpop.f32.mrf.mxu0
      %v1046 = vadd.f32 %v957, %v1045
      %1047 = vmatmul.bf16.gmra.mxu0 %v536
      %v1048 = vpop.f32.mrf.mxu0
      %v1049 = vadd.f32 %v960, %v1048
      %v1050 = vpop.f32.mrf.mxu0
      %v1051 = vadd.f32 %v962, %v1050
      %1052 = vmatmul.bf16.gmra.mxu0 %v540
      %v1053 = vpop.f32.mrf.mxu0
      %v1054 = vadd.f32 %v965, %v1053
      %v1055 = vpop.f32.mrf.mxu0
      %v1056 = vadd.f32 %v967, %v1055
      %1057 = vmatmul.bf16.gmra.mxu0 %v544
      %v1058 = vpop.f32.mrf.mxu0
      %v1059 = vadd.f32 %v970, %v1058
      %v1060 = vpop.f32.mrf.mxu0
      %v1061 = vadd.f32 %v972, %v1060
      %1062 = vmatmul.bf16.gmra.mxu0 %v548
      %v1063 = vpop.f32.mrf.mxu0
      %v1064 = vadd.f32 %v975, %v1063
      %v1065 = vpop.f32.mrf.mxu0
      %v1066 = vadd.f32 %v977, %v1065
      %1067 = vmatmul.bf16.gmra.mxu0 %v552
      %v1068 = vpop.f32.mrf.mxu0
      %v1069 = vadd.f32 %v980, %v1068
      %v1070 = vpop.f32.mrf.mxu0
      %v1071 = vadd.f32 %v982, %v1070
      %1072 = vmatmul.bf16.gmra.mxu0 %v556
      %v1073 = vpop.f32.mrf.mxu0
      %v1074 = vadd.f32 %v985, %v1073
      %v1075 = vpop.f32.mrf.mxu0
      %v1076 = vadd.f32 %v987, %v1075
      %1077 = vmatmul.bf16.gmra.mxu0 %v560
      %v1078 = vpop.f32.mrf.mxu0
      %v1079 = vadd.f32 %v990, %v1078
      %v1080 = vpop.f32.mrf.mxu0
      %v1081 = vadd.f32 %v992, %v1080
      %1082 = vmatmul.bf16.gmra.mxu0 %v564
      %v1083 = vpop.f32.mrf.mxu0
      %v1084 = vadd.f32 %v995, %v1083
      %v1085 = vpop.f32.mrf.mxu0
      %v1086 = vadd.f32 %v997, %v1085
      %1087 = vmatmul.bf16.gmra.mxu0 %v568
      %v1088 = vpop.f32.mrf.mxu0
      %v1089 = vadd.f32 %v1000, %v1088
      %v1090 = vpop.f32.mrf.mxu0
      %v1091 = vadd.f32 %v1002, %v1090
      %1092 = vdwg.mxu0
      %1093 = vmatpush.bf16.msra.mxu0 %v793
      %1094 = vmatpush.bf16.msra.mxu0 %v792
      %1095 = vmatpush.bf16.msra.mxu0 %v791
      %1096 = vmatpush.bf16.msra.mxu0 %v790
      %1097 = vmatpush.bf16.msra.mxu0 %v789
      %1098 = vmatpush.bf16.msra.mxu0 %v788
      %1099 = vmatpush.bf16.msra.mxu0 %v787
      %1100 = vmatpush.bf16.msra.mxu0 %v786
      %1101 = vmatmul.bf16.gmra.mxu0 %v509
      %v1102 = vpop.f32.mrf.mxu0
      %v1103 = vadd.f32 %v1014, %v1102
      %v1104 = vpop.f32.mrf.mxu0
      %v1105 = vadd.f32 %v1016, %v1104
      %1106 = vmatmul.bf16.gmra.mxu0 %v513
      %v1107 = vpop.f32.mrf.mxu0
      %v1108 = vadd.f32 %v1019, %v1107
      %v1109 = vpop.f32.mrf.mxu0
      %v1110 = vadd.f32 %v1021, %v1109
      %1111 = vmatmul.bf16.gmra.mxu0 %v517
      %v1112 = vpop.f32.mrf.mxu0
      %v1113 = vadd.f32 %v1024, %v1112
      %v1114 = vpop.f32.mrf.mxu0
      %v1115 = vadd.f32 %v1026, %v1114
      %1116 = vmatmul.bf16.gmra.mxu0 %v521
      %v1117 = vpop.f32.mrf.mxu0
      %v1118 = vadd.f32 %v1029, %v1117
      %v1119 = vpop.f32.mrf.mxu0
      %v1120 = vadd.f32 %v1031, %v1119
      %1121 = vmatmul.bf16.gmra.mxu0 %v525
      %v1122 = vpop.f32.mrf.mxu0
      %v1123 = vadd.f32 %v1034, %v1122
      %v1124 = vpop.f32.mrf.mxu0
      %v1125 = vadd.f32 %v1036, %v1124
      %1126 = vmatmul.bf16.gmra.mxu0 %v529
      %v1127 = vpop.f32.mrf.mxu0
      %v1128 = vadd.f32 %v1039, %v1127
      %v1129 = vpop.f32.mrf.mxu0
      %v1130 = vadd.f32 %v1041, %v1129
      %1131 = vmatmul.bf16.gmra.mxu0 %v533
      %v1132 = vpop.f32.mrf.mxu0
      %v1133 = vadd.f32 %v1044, %v1132
      %v1134 = vpop.f32.mrf.mxu0
      %v1135 = vadd.f32 %v1046, %v1134
      %1136 = vmatmul.bf16.gmra.mxu0 %v537
      %v1137 = vpop.f32.mrf.mxu0
      %v1138 = vadd.f32 %v1049, %v1137
      %v1139 = vpop.f32.mrf.mxu0
      %v1140 = vadd.f32 %v1051, %v1139
      %1141 = vmatmul.bf16.gmra.mxu0 %v541
      %v1142 = vpop.f32.mrf.mxu0
      %v1143 = vadd.f32 %v1054, %v1142
      %v1144 = vpop.f32.mrf.mxu0
      %v1145 = vadd.f32 %v1056, %v1144
      %1146 = vmatmul.bf16.gmra.mxu0 %v545
      %v1147 = vpop.f32.mrf.mxu0
      %v1148 = vadd.f32 %v1059, %v1147
      %v1149 = vpop.f32.mrf.mxu0
      %v1150 = vadd.f32 %v1061, %v1149
      %1151 = vmatmul.bf16.gmra.mxu0 %v549
      %v1152 = vpop.f32.mrf.mxu0
      %v1153 = vadd.f32 %v1064, %v1152
      %v1154 = vpop.f32.mrf.mxu0
      %v1155 = vadd.f32 %v1066, %v1154
      %1156 = vmatmul.bf16.gmra.mxu0 %v553
      %v1157 = vpop.f32.mrf.mxu0
      %v1158 = vadd.f32 %v1069, %v1157
      %v1159 = vpop.f32.mrf.mxu0
      %v1160 = vadd.f32 %v1071, %v1159
      %1161 = vmatmul.bf16.gmra.mxu0 %v557
      %v1162 = vpop.f32.mrf.mxu0
      %v1163 = vadd.f32 %v1074, %v1162
      %v1164 = vpop.f32.mrf.mxu0
      %v1165 = vadd.f32 %v1076, %v1164
      %1166 = vmatmul.bf16.gmra.mxu0 %v561
      %v1167 = vpop.f32.mrf.mxu0
      %v1168 = vadd.f32 %v1079, %v1167
      %v1169 = vpop.f32.mrf.mxu0
      %v1170 = vadd.f32 %v1081, %v1169
      %1171 = vmatmul.bf16.gmra.mxu0 %v565
      %v1172 = vpop.f32.mrf.mxu0
      %v1173 = vadd.f32 %v1084, %v1172
      %v1174 = vpop.f32.mrf.mxu0
      %v1175 = vadd.f32 %v1086, %v1174
      %1176 = vmatmul.bf16.gmra.mxu0 %v569
      %v1177 = vpop.f32.mrf.mxu0
      %v1178 = vadd.f32 %v1089, %v1177
      %v1179 = vpop.f32.mrf.mxu0
      %v1180 = vadd.f32 %v1091, %v1179
      %1181 = vdwg.mxu0
      %v1182 = vtanh.pop %v1103
      %v1183 = vtanh.pop %v1105
      %v1184 = vtanh.pop %v1108
      %v1185 = vtanh.pop %v1110
      %v1186 = vtanh.pop %v1113
      %v1187 = vtanh.pop %v1115
      %v1188 = vtanh.pop %v1118
      %v1189 = vtanh.pop %v1120
      %v1190 = vtanh.pop %v1123
      %v1191 = vtanh.pop %v1125
      %v1192 = vtanh.pop %v1128
      %v1193 = vtanh.pop %v1130
      %v1194 = vtanh.pop %v1133
      %v1195 = vtanh.pop %v1135
      %v1196 = vtanh.pop %v1138
      %v1197 = vtanh.pop %v1140
      %v1198 = vtanh.pop %v1143
      %v1199 = vtanh.pop %v1145
      %v1200 = vtanh.pop %v1148
      %v1201 = vtanh.pop %v1150
      %v1202 = vtanh.pop %v1153
      %v1203 = vtanh.pop %v1155
      %v1204 = vtanh.pop %v1158
      %v1205 = vtanh.pop %v1160
      %v1206 = vtanh.pop %v1163
      %v1207 = vtanh.pop %v1165
      %v1208 = vtanh.pop %v1168
      %v1209 = vtanh.pop %v1170
      %v1210 = vtanh.pop %v1173
      %v1211 = vtanh.pop %v1175
      %v1212 = vtanh.pop %v1178
      %v1213 = vtanh.pop %v1180
      %1214 = vst [vmem:[%s184] sm:$0xff] %v1182
      %1215 = vst [vmem:[%s184 + $0x8] sm:$0xff] %v1183
      %1216 = vst [vmem:[%s184 + $0x10] sm:$0xff] %v1184
      %1217 = vst [vmem:[%s184 + $0x18] sm:$0xff] %v1185
      %1218 = vst [vmem:[%s184 + $0x20] sm:$0xff] %v1186
      %1219 = vst [vmem:[%s184 + $0x28] sm:$0xff] %v1187
      %1220 = vst [vmem:[%s184 + $0x30] sm:$0xff] %v1188
      %1221 = vst [vmem:[%s184 + $0x38] sm:$0xff] %v1189
      %1222 = vst [vmem:[%s184 + $0x40] sm:$0xff] %v1190
      %1223 = vst [vmem:[%s184 + $0x48] sm:$0xff] %v1191
      %1224 = vst [vmem:[%s184 + $0x50] sm:$0xff] %v1192
      %1225 = vst [vmem:[%s184 + $0x58] sm:$0xff] %v1193
      %1226 = vst [vmem:[%s184 + $0x60] sm:$0xff] %v1194
      %1227 = vst [vmem:[%s184 + $0x68] sm:$0xff] %v1195
      %1228 = vst [vmem:[%s184 + $0x70] sm:$0xff] %v1196
      %1229 = vst [vmem:[%s184 + $0x78] sm:$0xff] %v1197
      %1230 = vst [vmem:[%s184 + $0x80] sm:$0xff] %v1198
      %1231 = vst [vmem:[%s184 + $0x88] sm:$0xff] %v1199
      %1232 = vst [vmem:[%s184 + $0x90] sm:$0xff] %v1200
      %1233 = vst [vmem:[%s184 + $0x98] sm:$0xff] %v1201
      %1234 = vst [vmem:[%s184 + $0xa0] sm:$0xff] %v1202
      %1235 = vst [vmem:[%s184 + $0xa8] sm:$0xff] %v1203
      %1236 = vst [vmem:[%s184 + $0xb0] sm:$0xff] %v1204
      %1237 = vst [vmem:[%s184 + $0xb8] sm:$0xff] %v1205
      %1238 = vst [vmem:[%s184 + $0xc0] sm:$0xff] %v1206
      %1239 = vst [vmem:[%s184 + $0xc8] sm:$0xff] %v1207
      %1240 = vst [vmem:[%s184 + $0xd0] sm:$0xff] %v1208
      %1241 = vst [vmem:[%s184 + $0xd8] sm:$0xff] %v1209
      %1242 = vst [vmem:[%s184 + $0xe0] sm:$0xff] %v1210
      %1243 = vst [vmem:[%s184 + $0xe8] sm:$0xff] %v1211
      %1244 = vst [vmem:[%s184 + $0xf0] sm:$0xff] %v1212
      %1245 = vst [vmem:[%s184 + $0xf8] sm:$0xff] %v1213
      %s1246 = smul.u32 32, %s18
      %p1247 = scmp.lt.s32.totalorder %s17, 1
      %s1248 = scalar_select %p1247, %s17, 1
      %p1249 = scmp.lt.s32.totalorder %s1246, 31
      %s1250 = scalar_select %p1249, %s1246, 31
      %s1251 = smul.addr %s1248, 32
      %s1252 = sadd.s32 %s1250, %s1251
      %s1253 = smul.addr %s1252, 8
      %s1254 = scalar_lea.vmem %s2, %s1253
      // Predicated region
      $region29: #{_lambda_.37} parent=27 // pred_check
        %p1255 = pneg %p94
      $region30: #{_lambda_.37} parent=27 // pred_check_branch
        %1257 = sbr.rel (%p1255) target = $region32
      $region31: #{_lambda_.37} parent=27 // pred_region
        %s1258 = smul.u32 32, %s18
      $region32: #{_lambda_.37} parent=27 // pred_fallthru
        _
    $region28: #{_lambda_.37} parent=5 // pred_fallthru
      _
    %p1259 = scmp.le.s32.totalorder 2, %s8
    // Predicated region
    $region33: #{_lambda_.37} parent=5 // pred_check
      %p1260 = pneg %p1259
    $region34: #{_lambda_.37} parent=5 // pred_check_branch
      %1262 = sbr.rel (%p1260) target = $region36
    $region35: #{_lambda_.37} parent=5 // pred_region
      %s1263 = ssub.s32 %s8, 2
      // Predicated region
      $region37: #{_lambda_.37} parent=35 // pred_check
        %p1264 = pneg %p100
      $region38: #{_lambda_.37} parent=35 // pred_check_branch
        %1266 = sbr.rel (%p1264) target = $region40
      $region39: #{_lambda_.37} parent=35 // pred_region
        %s1267 = smul.u32 32, %s20
        %p1268 = scmp.lt.s32.totalorder %s19, 1
        %s1269 = scalar_select %p1268, %s19, 1
        %p1270 = scmp.lt.s32.totalorder %s1267, 31
        %s1271 = scalar_select %p1270, %s1267, 31
        %s1272 = smul.addr %s1269, 32
        %s1273 = sadd.s32 %s1271, %s1272
        %s1274 = smul.addr %s1273, 8
        %s1275 = scalar_lea.vmem %s2, %s1274
      $region40: #{_lambda_.37} parent=35 // pred_fallthru
        _
    $region36: #{_lambda_.37} parent=5 // pred_fallthru
      _
  $region6: #{_lambda_.37} parent=0 // loop_footer
    %s12 = sadd.s32 1, %s8
  $region7: #{_lambda_.37} parent=0 // loop_footer_branch
    %7 = sbr.rel target = $region3
  $region8: #{_lambda_.37} parent=0 // loop_exit
    _

</llo_original>
